<compile_context>
chip_gen: v7x
topology: tpu7x:2x2x1
jax: 0.10.0
libtpu: 0.0.40
codegen_flags: <defaults>
</compile_context>

<pallas_src>
import functools

import jax
import jax.numpy as jnp
from jax import lax
from jax.experimental import pallas as pl
from jax.experimental.pallas import tpu as pltpu


# ------------------------- GroupNorm + Swish kernels -------------------------

def _gn_stats_kernel(x_ref, sum_ref, sq_ref):
    s = pl.program_id(1)

    @pl.when(s == 0)
    def _():
        sum_ref[...] = jnp.zeros_like(sum_ref)
        sq_ref[...] = jnp.zeros_like(sq_ref)

    x = x_ref[0].astype(jnp.float32)                    # (TS, C)
    sum_ref[0] += jnp.sum(x, axis=0, keepdims=True)     # (1, C)
    sq_ref[0] += jnp.sum(x * x, axis=0, keepdims=True)  # (1, C)


def _gn_norm_swish_kernel(x_ref, scale_ref, shift_ref, o_ref):
    x = x_ref[0].astype(jnp.float32)                    # (TS, C)
    y = x * scale_ref[0] + shift_ref[0]                 # per-channel scale/shift
    o_ref[0] = (y * jax.nn.sigmoid(y)).astype(o_ref.dtype)   # Swish -> bf16


def _pick_s_tile(S, cap=1024):
    if S <= cap:
        return S
    for t in range(cap - cap % 8, 7, -8):
        if S % t == 0:
            return t
    return S


def gn_swish(x, noise, gamma, beta, *, groups, eps=1e-5):
    """Swish(GroupNorm(x + noise[:, None, :]) * gamma + beta) emitted in bf16.

    x: (B, S, C) float32.  noise: (B, C) float32 or None.
    """
    B, S, C = x.shape
    TS = _pick_s_tile(S)
    grid = (B, S // TS)

    # Phase 1: per-channel sum / sum-of-squares (tiled over S, accumulated).
    ch_sum, ch_sq = pl.pallas_call(
        _gn_stats_kernel,
        out_shape=(jax.ShapeDtypeStruct((B, 1, C), jnp.float32),
                   jax.ShapeDtypeStruct((B, 1, C), jnp.float32)),
        grid=grid,
        in_specs=[pl.BlockSpec((1, TS, C), lambda b, s: (b, s, 0))],
        out_specs=(pl.BlockSpec((1, 1, C), lambda b, s: (b, 0, 0)),
                   pl.BlockSpec((1, 1, C), lambda b, s: (b, 0, 0))),
        compiler_params=pltpu.CompilerParams(
            dimension_semantics=("parallel", "arbitrary")),
    )(x)
    ch_sum = ch_sum[:, 0, :]                             # (B, C)
    ch_sq = ch_sq[:, 0, :]

    if noise is None:
        noise = jnp.zeros((B, C), jnp.float32)
    noise = noise.astype(jnp.float32)

    # Fold the per-(batch, channel) additive noise into the statistics:
    #   sum(x+n) = sum(x) + S*n ;  sum((x+n)^2) = sum(x^2) + 2n*sum(x) + S*n^2
    z_sum = ch_sum + S * noise
    z_sq = ch_sq + 2.0 * noise * ch_sum + S * noise * noise

    cg = C // groups
    n = float(S * cg)
    g_mean = z_sum.reshape(B, groups, cg).sum(-1) / n    # (B, groups)
    g_ex2 = z_sq.reshape(B, groups, cg).sum(-1) / n
    g_var = jnp.maximum(g_ex2 - g_mean * g_mean, 0.0)
    g_rstd = lax.rsqrt(g_var + eps)
    mean_c = jnp.repeat(g_mean, cg, axis=1)              # (B, C)
    rstd_c = jnp.repeat(g_rstd, cg, axis=1)
    scale = rstd_c * gamma[None, :]
    shift = (noise - mean_c) * scale + beta[None, :]

    # Phase 2: elementwise normalize + affine + Swish, bf16 out.
    return pl.pallas_call(
        _gn_norm_swish_kernel,
        out_shape=jax.ShapeDtypeStruct((B, S, C), jnp.bfloat16),
        grid=grid,
        in_specs=[pl.BlockSpec((1, TS, C), lambda b, s: (b, s, 0)),
                  pl.BlockSpec((1, 1, C), lambda b, s: (b, 0, 0)),
                  pl.BlockSpec((1, 1, C), lambda b, s: (b, 0, 0))],
        out_specs=pl.BlockSpec((1, TS, C), lambda b, s: (b, s, 0)),
        compiler_params=pltpu.CompilerParams(
            dimension_semantics=("parallel", "parallel")),
    )(x, scale.reshape(B, 1, C), shift.reshape(B, 1, C))


# ---------------------- fused 3x3x3 conv (tap matmul) ------------------------

def _accum_inplane_taps(p_ref, w_ref, acc_ref, *, M, Wp):
    plane = p_ref[0, 0]                                  # (Sp, C) bf16
    for t in range(9):                                   # static unroll: kh*3+kw
        start = (t // 3) * Wp + (t % 3)
        a = plane[start:start + M, :]                    # (M, C) shifted slab
        acc_ref[...] += jnp.dot(a, w_ref[t],
                                preferred_element_type=jnp.float32)


def _conv3x3_kernel(p_ref, w_ref, b_ref, o_ref, acc_ref, *, M, Wp):
    kd = pl.program_id(2)

    @pl.when(kd == 0)
    def _():
        acc_ref[...] = jnp.zeros_like(acc_ref)

    _accum_inplane_taps(p_ref, w_ref, acc_ref, M=M, Wp=Wp)

    @pl.when(kd == pl.num_programs(2) - 1)
    def _():
        o_ref[0, 0] = (acc_ref[...] + b_ref[...]).astype(o_ref.dtype)


def _conv3x3_res_kernel(p_ref, w_ref, b_ref, xr_ref, wr_ref, o_ref, acc_ref,
                        *, M, Wp):
    kd = pl.program_id(2)

    @pl.when(kd == 0)
    def _():
        acc_ref[...] = jnp.zeros_like(acc_ref)

    _accum_inplane_taps(p_ref, w_ref, acc_ref, M=M, Wp=Wp)

    @pl.when(kd == pl.num_programs(2) - 1)
    def _():
        res = jnp.dot(xr_ref[0, 0], wr_ref[...],
                      preferred_element_type=jnp.float32)      # fused 1x1x1 conv
        o_ref[0, 0] = (acc_ref[...] + b_ref[...] + res).astype(o_ref.dtype)


def conv3x3(y, w27, bias, res_x=None, res_w=None):
    """3x3x3 conv (padding=1) + bias (+ fused 1x1x1 residual conv) on the MXU.

    y:     (B, D, H, W, C)      bf16 channels-last activations.
    w27:   (27, C, Cout)        bf16, tap order (kd, kh, kw).
    bias:  (Cout,)              f32 (residual bias pre-added by caller if fused).
    res_x: (B, D, H*(W+2), Cr)  bf16 (W padded by (0, 2)); res_w: (Cr, Cout) bf16.
    Returns (B, D, H, W, Cout) float32.
    """
    B, D, H, W, C = y.shape
    Cout = w27.shape[-1]
    Wp, Hp = W + 2, H + 3        # pad H by (1,2) so the flat tap slabs stay in-bounds
    Sp = Hp * Wp                 # padded plane rows
    M = H * Wp                   # accumulator rows (output kept in padded-W layout)

    yp = jnp.pad(y, ((0, 0), (1, 1), (1, 2), (1, 1), (0, 0)))
    yp = yp.reshape(B, D + 2, Sp, C)
    bias2 = bias.reshape(1, Cout).astype(jnp.float32)

    in_specs = [pl.BlockSpec((1, 1, Sp, C), lambda b, d, kd: (b, d + kd, 0, 0)),
                pl.BlockSpec((9, C, Cout), lambda b, d, kd: (kd, 0, 0)),
                pl.BlockSpec((1, Cout), lambda b, d, kd: (0, 0))]
    args = [yp, w27, bias2]
    if res_x is None:
        kernel = functools.partial(_conv3x3_kernel, M=M, Wp=Wp)
    else:
        kernel = functools.partial(_conv3x3_res_kernel, M=M, Wp=Wp)
        Cr = res_x.shape[-1]
        in_specs += [pl.BlockSpec((1, 1, M, Cr), lambda b, d, kd: (b, d, 0, 0)),
                     pl.BlockSpec((Cr, Cout), lambda b, d, kd: (0, 0))]
        args += [res_x, res_w]

    out_flat = pl.pallas_call(
        kernel,
        out_shape=jax.ShapeDtypeStruct((B, D, M, Cout), jnp.float32),
        grid=(B, D, 3),
        in_specs=in_specs,
        out_specs=pl.BlockSpec((1, 1, M, Cout), lambda b, d, kd: (b, d, 0, 0)),
        scratch_shapes=[pltpu.VMEM((M, Cout), jnp.float32)],
        compiler_params=pltpu.CompilerParams(
            dimension_semantics=("parallel", "parallel", "arbitrary")),
    )(*args)
    # Strip the two padded-W garbage columns per row (padded-W output layout).
    return out_flat.reshape(B, D, H, Wp, Cout)[:, :, :, :W, :]


# ------------------------------- forward pass --------------------------------

def resnet_block_forward(x, time_emb, params, *, norm_groups, eps=1e-5):
    """x: (B, Cin, D, H, W), time_emb: (B, E).  Returns (B, Cout, D, H, W)."""
    B, Cin, D, H, W = x.shape
    S = D * H * W
    Cout = params["conv1_w"].shape[0]

    x_cl = jnp.transpose(x, (0, 2, 3, 4, 1)).astype(jnp.float32)   # (B,D,H,W,Cin)
    x_flat = x_cl.reshape(B, S, Cin)

    # ---- block1: GroupNorm -> Swish -> Conv3d(3, pad=1)
    y1 = gn_swish(x_flat, None, params["gn1_w"], params["gn1_b"],
                  groups=norm_groups, eps=eps)                      # bf16 (B,S,Cin)
    w1 = jnp.transpose(params["conv1_w"], (2, 3, 4, 1, 0)) \
            .reshape(27, Cin, Cout).astype(jnp.bfloat16)
    h1 = conv3x3(y1.reshape(B, D, H, W, Cin), w1, params["conv1_b"])  # f32

    # ---- FeatureWiseAffine (use_affine_level=False): h = h + Linear(time_emb)
    # TODO(synk): use_affine_level=True ((1+gamma)*h + beta) path not implemented.
    noise = time_emb @ params["noise_w"].T + params["noise_b"]      # tiny: plain XLA

    # ---- block2: (h + noise) -> GroupNorm -> Swish -> Conv3d(3, pad=1)
    # (dropout=0 -> Identity); noise is folded analytically into the GN stats.
    y2 = gn_swish(h1.reshape(B, S, Cout), noise, params["gn2_w"], params["gn2_b"],
                  groups=norm_groups, eps=eps)                      # bf16 (B,S,Cout)

    # ---- conv2 with fused bias + 1x1x1 res_conv(x) residual
    w2 = jnp.transpose(params["conv2_w"], (2, 3, 4, 1, 0)) \
            .reshape(27, Cout, Cout).astype(jnp.bfloat16)
    if "res_w" in params:               # dim != dim_out -> 1x1x1 conv residual
        wr = params["res_w"].reshape(Cout, Cin).T.astype(jnp.bfloat16)
        rb = params["res_b"]
    else:                               # dim == dim_out -> Identity residual
        wr = jnp.eye(Cin, Cout, dtype=jnp.bfloat16)
        rb = jnp.zeros((Cout,), jnp.float32)
    res_x = jnp.pad(x_cl.astype(jnp.bfloat16),
                    ((0, 0), (0, 0), (0, 0), (0, 2), (0, 0)))
    res_x = res_x.reshape(B, D, H * (W + 2), Cin)
    out = conv3x3(y2.reshape(B, D, H, W, Cout), w2,
                  params["conv2_b"] + rb, res_x=res_x, res_w=wr)    # (B,D,H,W,Cout)
    return jnp.transpose(out, (0, 4, 1, 2, 3))                      # (B,Cout,D,H,W)


# --------------------------- pure-JAX reference ------------------------------

def _ref_groupnorm(x, gamma, beta, groups, eps=1e-5):
    B, C = x.shape[:2]
    xg = x.reshape(B, groups, -1)
    mean = xg.mean(axis=-1, keepdims=True)
    var = ((xg - mean) ** 2).mean(axis=-1, keepdims=True)
    xn = ((xg - mean) / jnp.sqrt(var + eps)).reshape(x.shape)
    return xn * gamma.reshape(1, C, 1, 1, 1) + beta.reshape(1, C, 1, 1, 1)


def _ref_swish(x):
    return x * jax.nn.sigmoid(x)


def _ref_conv3d(x, w, b, pad):
    out = lax.conv_general_dilated(
        x, w, (1, 1, 1), [(pad, pad)] * 3,
        dimension_numbers=("NCDHW", "OIDHW", "NCDHW"))
    return out + b.reshape(1, -1, 1, 1, 1)


def ref_forward(x, t, p, *, norm_groups):
    h = _ref_conv3d(_ref_swish(_ref_groupnorm(x, p["gn1_w"], p["gn1_b"], norm_groups)),
                    p["conv1_w"], p["conv1_b"], 1)
    noise = t @ p["noise_w"].T + p["noise_b"]
    h = h + noise[:, :, None, None, None]
    h = _ref_conv3d(_ref_swish(_ref_groupnorm(h, p["gn2_w"], p["gn2_b"], norm_groups)),
                    p["conv2_w"], p["conv2_b"], 1)
    res = _ref_conv3d(x, p["res_w"], p["res_b"], 0)
    return h + res


# ------------------------------- params / main -------------------------------

def init_params(key, dim, dim_out, emb_dim):
    ks = jax.random.split(key, 12)
    n = lambda k, s: 0.1 * jax.random.normal(k, s, jnp.float32)
    return {
        "gn1_w": jnp.ones((dim,), jnp.float32) + n(ks[0], (dim,)),
        "gn1_b": n(ks[1], (dim,)),
        "conv1_w": n(ks[2], (dim_out, dim, 3, 3, 3)),
        "conv1_b": n(ks[3], (dim_out,)),
        "gn2_w": jnp.ones((dim_out,), jnp.float32) + n(ks[4], (dim_out,)),
        "gn2_b": n(ks[5], (dim_out,)),
        "conv2_w": n(ks[6], (dim_out, dim_out, 3, 3, 3)),
        "conv2_b": n(ks[7], (dim_out,)),
        "noise_w": n(ks[8], (dim_out, emb_dim)),   # torch Linear: (out, in)
        "noise_b": n(ks[9], (dim_out,)),
        "res_w": n(ks[10], (dim_out, dim, 1, 1, 1)),
        "res_b": n(ks[11], (dim_out,)),
    }


if __name__ == "__main__":
    B, DIM, DIM_OUT, EMB, GROUPS = 2, 4, 8, 16, 2
    D = H = W = 8

    key = jax.random.PRNGKey(0)
    kx, kt, kp = jax.random.split(key, 3)
    x = jax.random.normal(kx, (B, DIM, D, H, W), jnp.float32)
    time_emb = jax.random.normal(kt, (B, EMB), jnp.float32)
    params = init_params(kp, DIM, DIM_OUT, EMB)

    fwd = jax.jit(functools.partial(resnet_block_forward, norm_groups=GROUPS))
    out = jax.block_until_ready(fwd(x, time_emb, params))
    ref = jax.block_until_ready(ref_forward(x, time_emb, params, norm_groups=GROUPS))

    assert out.shape == (B, DIM_OUT, D, H, W), out.shape
    max_err = float(jnp.max(jnp.abs(out - ref)))
    rel_l2 = float(jnp.linalg.norm(out - ref) / jnp.linalg.norm(ref))
    # bf16 MXU operands with f32 accumulation -> small expected drift vs f32 ref.
    assert rel_l2 < 3e-2 and max_err < 1.5e-1, (max_err, rel_l2)
    print("KERNEL_OK")
</pallas_src>

<mosaic_0001>
module attributes {stable_mosaic.version = 11 : i64} {
  func.func @_gn_stats_kernel(%arg0: i32, %arg1: i32, %arg2: memref<1x512x4xf32, #tpu.memory_space<vmem>>, %arg3: memref<1x1x4xf32, #tpu.memory_space<vmem>>, %arg4: memref<1x1x4xf32, #tpu.memory_space<vmem>>) attributes {dimension_semantics = [#tpu.dimension_semantics<parallel>, #tpu.dimension_semantics<arbitrary>], iteration_bounds = array<i64: 2, 1>, scalar_prefetch = 0 : i64, scratch_operands = 0 : i64, tpu.core_type = #tpu.core_type<tc>, window_params = [{transform_indices = @transform_0, window_bounds = array<i64: 1, 512, 4>}, {transform_indices = @transform_1, window_bounds = array<i64: 1, 1, 4>}, {transform_indices = @transform_2, window_bounds = array<i64: 1, 1, 4>}]} {
    %c0_i32 = arith.constant 0 : i32
    %0 = arith.cmpi eq, %arg1, %c0_i32 : i32
    %1 = arith.extui %0 : i1 to i32
    %c0_i32_0 = arith.constant 0 : i32
    %2 = arith.cmpi ne, %1, %c0_i32_0 : i32
    scf.if %2 {
      %cst_16 = arith.constant 0.000000e+00 : f32
      %22 = vector.broadcast %cst_16 : f32 to vector<1x1x4xf32>
      %c0_17 = arith.constant 0 : index
      %c0_18 = arith.constant 0 : index
      %c0_19 = arith.constant 0 : index
      %23 = vector.load %arg3[%c0_17, %c0_18, %c0_19] : memref<1x1x4xf32, #tpu.memory_space<vmem>>, vector<1x1x4xf32>
      tpu.vector_store %arg3[%c0_17, %c0_18, %c0_19], %22 {strides = array<i32>} : memref<1x1x4xf32, #tpu.memory_space<vmem>>, vector<1x1x4xf32>,
      %cst_20 = arith.constant 0.000000e+00 : f32
      %24 = vector.broadcast %cst_20 : f32 to vector<1x1x4xf32>
      %c0_21 = arith.constant 0 : index
      %c0_22 = arith.constant 0 : index
      %c0_23 = arith.constant 0 : index
      %25 = vector.load %arg4[%c0_21, %c0_22, %c0_23] : memref<1x1x4xf32, #tpu.memory_space<vmem>>, vector<1x1x4xf32>
      tpu.vector_store %arg4[%c0_21, %c0_22, %c0_23], %24 {strides = array<i32>} : memref<1x1x4xf32, #tpu.memory_space<vmem>>, vector<1x1x4xf32>,
    } else {
    }
    %c0 = arith.constant 0 : index
    %c0_1 = arith.constant 0 : index
    %c0_2 = arith.constant 0 : index
    %3 = vector.load %arg2[%c0, %c0_1, %c0_2] : memref<1x512x4xf32, #tpu.memory_space<vmem>>, vector<1x512x4xf32>
    %4 = vector.shape_cast %3 : vector<1x512x4xf32> to vector<512x4xf32>
    %c0_3 = arith.constant 0 : index
    %c0_4 = arith.constant 0 : index
    %c0_5 = arith.constant 0 : index
    %5 = vector.load %arg3[%c0_3, %c0_4, %c0_5] : memref<1x1x4xf32, #tpu.memory_space<vmem>>, vector<1x1x4xf32>
    %6 = vector.shape_cast %5 : vector<1x1x4xf32> to vector<1x4xf32>
    %cst = arith.constant dense<0.000000e+00> : vector<4xf32>
    %7 = vector.multi_reduction <add>, %4, %cst [0] : vector<512x4xf32> to vector<4xf32>
    %8 = vector.shape_cast %7 : vector<4xf32> to vector<1x4xf32>
    %9 = arith.addf %6, %8 : vector<1x4xf32>
    %c0_6 = arith.constant 0 : index
    %c0_7 = arith.constant 0 : index
    %c0_8 = arith.constant 0 : index
    %10 = vector.load %arg3[%c0_6, %c0_7, %c0_8] : memref<1x1x4xf32, #tpu.memory_space<vmem>>, vector<1x1x4xf32>
    %11 = vector.shape_cast %10 : vector<1x1x4xf32> to vector<1x4xf32>
    %12 = vector.shape_cast %9 : vector<1x4xf32> to vector<1x1x4xf32>
    tpu.vector_store %arg3[%c0_6, %c0_7, %c0_8], %12 {strides = array<i32>} : memref<1x1x4xf32, #tpu.memory_space<vmem>>, vector<1x1x4xf32>,
    %c0_9 = arith.constant 0 : index
    %c0_10 = arith.constant 0 : index
    %c0_11 = arith.constant 0 : index
    %13 = vector.load %arg4[%c0_9, %c0_10, %c0_11] : memref<1x1x4xf32, #tpu.memory_space<vmem>>, vector<1x1x4xf32>
    %14 = vector.shape_cast %13 : vector<1x1x4xf32> to vector<1x4xf32>
    %15 = arith.mulf %4, %4 : vector<512x4xf32>
    %cst_12 = arith.constant dense<0.000000e+00> : vector<4xf32>
    %16 = vector.multi_reduction <add>, %15, %cst_12 [0] : vector<512x4xf32> to vector<4xf32>
    %17 = vector.shape_cast %16 : vector<4xf32> to vector<1x4xf32>
    %18 = arith.addf %14, %17 : vector<1x4xf32>
    %c0_13 = arith.constant 0 : index
    %c0_14 = arith.constant 0 : index
    %c0_15 = arith.constant 0 : index
    %19 = vector.load %arg4[%c0_13, %c0_14, %c0_15] : memref<1x1x4xf32, #tpu.memory_space<vmem>>, vector<1x1x4xf32>
    %20 = vector.shape_cast %19 : vector<1x1x4xf32> to vector<1x4xf32>
    %21 = vector.shape_cast %18 : vector<1x4xf32> to vector<1x1x4xf32>
    tpu.vector_store %arg4[%c0_13, %c0_14, %c0_15], %21 {strides = array<i32>} : memref<1x1x4xf32, #tpu.memory_space<vmem>>, vector<1x1x4xf32>,
    return
  }
  func.func @transform_0(%arg0: i32, %arg1: i32) -> (i32, i32, i32) {
    %c0_i32 = arith.constant 0 : i32
    %c0_i32_0 = arith.constant 0 : i32
    return %arg0, %arg1, %c0_i32 : i32, i32, i32
  }
  func.func @transform_1(%arg0: i32, %arg1: i32) -> (i32, i32, i32) {
    %c0_i32 = arith.constant 0 : i32
    %c0_i32_0 = arith.constant 0 : i32
    %c0_i32_1 = arith.constant 0 : i32
    return %arg0, %c0_i32, %c0_i32_0 : i32, i32, i32
  }
  func.func @transform_2(%arg0: i32, %arg1: i32) -> (i32, i32, i32) {
    %c0_i32 = arith.constant 0 : i32
    %c0_i32_0 = arith.constant 0 : i32
    %c0_i32_1 = arith.constant 0 : i32
    return %arg0, %c0_i32, %c0_i32_0 : i32, i32, i32
  }
}

module attributes {stable_mosaic.version = 11 : i64} {
  func.func @_gn_norm_swish_kernel(%arg0: i32, %arg1: i32, %arg2: memref<1x512x4xf32, #tpu.memory_space<vmem>>, %arg3: memref<1x1x4xf32, #tpu.memory_space<vmem>>, %arg4: memref<1x1x4xf32, #tpu.memory_space<vmem>>, %arg5: memref<1x512x4xbf16, #tpu.memory_space<vmem>>) attributes {dimension_semantics = [#tpu.dimension_semantics<parallel>, #tpu.dimension_semantics<parallel>], iteration_bounds = array<i64: 2, 1>, scalar_prefetch = 0 : i64, scratch_operands = 0 : i64, tpu.core_type = #tpu.core_type<tc>, window_params = [{transform_indices = @transform_0, window_bounds = array<i64: 1, 512, 4>}, {transform_indices = @transform_1, window_bounds = array<i64: 1, 1, 4>}, {transform_indices = @transform_2, window_bounds = array<i64: 1, 1, 4>}, {transform_indices = @transform_3, window_bounds = array<i64: 1, 512, 4>}]} {
    %c0 = arith.constant 0 : index
    %c0_0 = arith.constant 0 : index
    %c0_1 = arith.constant 0 : index
    %0 = vector.load %arg2[%c0, %c0_0, %c0_1] : memref<1x512x4xf32, #tpu.memory_space<vmem>>, vector<1x512x4xf32>
    %1 = vector.shape_cast %0 : vector<1x512x4xf32> to vector<512x4xf32>
    %c0_2 = arith.constant 0 : index
    %c0_3 = arith.constant 0 : index
    %c0_4 = arith.constant 0 : index
    %2 = vector.load %arg3[%c0_2, %c0_3, %c0_4] : memref<1x1x4xf32, #tpu.memory_space<vmem>>, vector<1x1x4xf32>
    %3 = vector.shape_cast %2 : vector<1x1x4xf32> to vector<1x4xf32>
    %4 = vector.broadcast %3 : vector<1x4xf32> to vector<512x4xf32>
    %5 = arith.mulf %1, %4 : vector<512x4xf32>
    %c0_5 = arith.constant 0 : index
    %c0_6 = arith.constant 0 : index
    %c0_7 = arith.constant 0 : index
    %6 = vector.load %arg4[%c0_5, %c0_6, %c0_7] : memref<1x1x4xf32, #tpu.memory_space<vmem>>, vector<1x1x4xf32>
    %7 = vector.shape_cast %6 : vector<1x1x4xf32> to vector<1x4xf32>
    %8 = vector.broadcast %7 : vector<1x4xf32> to vector<512x4xf32>
    %9 = arith.addf %5, %8 : vector<512x4xf32>
    %10 = arith.negf %9 : vector<512x4xf32>
    %11 = math.exp %10 : vector<512x4xf32>
    %cst = arith.constant 1.000000e+00 : f32
    %12 = vector.broadcast %cst : f32 to vector<512x4xf32>
    %13 = arith.addf %12, %11 : vector<512x4xf32>
    %14 = arith.divf %12, %13 : vector<512x4xf32>
    %15 = arith.mulf %9, %14 : vector<512x4xf32>
    %16 = arith.truncf %15 : vector<512x4xf32> to vector<512x4xbf16>
    %c0_8 = arith.constant 0 : index
    %c0_9 = arith.constant 0 : index
    %c0_10 = arith.constant 0 : index
    %17 = vector.load %arg5[%c0_8, %c0_9, %c0_10] : memref<1x512x4xbf16, #tpu.memory_space<vmem>>, vector<1x512x4xbf16>
    %18 = vector.shape_cast %17 : vector<1x512x4xbf16> to vector<512x4xbf16>
    %19 = vector.shape_cast %16 : vector<512x4xbf16> to vector<1x512x4xbf16>
    tpu.vector_store %arg5[%c0_8, %c0_9, %c0_10], %19 {strides = array<i32>} : memref<1x512x4xbf16, #tpu.memory_space<vmem>>, vector<1x512x4xbf16>,
    return
  }
  func.func @transform_0(%arg0: i32, %arg1: i32) -> (i32, i32, i32) {
    %c0_i32 = arith.constant 0 : i32
    %c0_i32_0 = arith.constant 0 : i32
    return %arg0, %arg1, %c0_i32 : i32, i32, i32
  }
  func.func @transform_1(%arg0: i32, %arg1: i32) -> (i32, i32, i32) {
    %c0_i32 = arith.constant 0 : i32
    %c0_i32_0 = arith.constant 0 : i32
    %c0_i32_1 = arith.constant 0 : i32
    return %arg0, %c0_i32, %c0_i32_0 : i32, i32, i32
  }
  func.func @transform_2(%arg0: i32, %arg1: i32) -> (i32, i32, i32) {
    %c0_i32 = arith.constant 0 : i32
    %c0_i32_0 = arith.constant 0 : i32
    %c0_i32_1 = arith.constant 0 : i32
    return %arg0, %c0_i32, %c0_i32_0 : i32, i32, i32
  }
  func.func @transform_3(%arg0: i32, %arg1: i32) -> (i32, i32, i32) {
    %c0_i32 = arith.constant 0 : i32
    %c0_i32_0 = arith.constant 0 : i32
    return %arg0, %arg1, %c0_i32 : i32, i32, i32
  }
}

module attributes {stable_mosaic.version = 11 : i64} {
  func.func @_conv3x3_kernel(%arg0: i32, %arg1: i32, %arg2: i32, %arg3: memref<1x1x110x4xbf16, #tpu.memory_space<vmem>>, %arg4: memref<9x4x8xbf16, #tpu.memory_space<vmem>>, %arg5: memref<1x8xf32, #tpu.memory_space<vmem>>, %arg6: memref<1x1x80x8xf32, #tpu.memory_space<vmem>>, %arg7: memref<80x8xf32, #tpu.memory_space<vmem>>) attributes {dimension_semantics = [#tpu.dimension_semantics<parallel>, #tpu.dimension_semantics<parallel>, #tpu.dimension_semantics<arbitrary>], iteration_bounds = array<i64: 2, 8, 3>, scalar_prefetch = 0 : i64, scratch_operands = 1 : i64, tpu.core_type = #tpu.core_type<tc>, window_params = [{transform_indices = @transform_0, window_bounds = array<i64: 1, 1, 110, 4>}, {transform_indices = @transform_1, window_bounds = array<i64: 9, 4, 8>}, {pipeline_mode = #tpu.pipeline_mode<synchronous>, transform_indices = @transform_2, window_bounds = array<i64: 1, 8>}, {transform_indices = @transform_3, window_bounds = array<i64: 1, 1, 80, 8>}]} {
    %c0_i32 = arith.constant 0 : i32
    %0 = arith.cmpi eq, %arg2, %c0_i32 : i32
    %1 = arith.extui %0 : i1 to i32
    %c0_i32_0 = arith.constant 0 : i32
    %2 = arith.cmpi ne, %1, %c0_i32_0 : i32
    scf.if %2 {
      %cst_68 = arith.constant 0.000000e+00 : f32
      %71 = vector.broadcast %cst_68 : f32 to vector<80x8xf32>
      %c0_69 = arith.constant 0 : index
      %c0_70 = arith.constant 0 : index
      %72 = vector.load %arg7[%c0_69, %c0_70] : memref<80x8xf32, #tpu.memory_space<vmem>>, vector<80x8xf32>
      tpu.vector_store %arg7[%c0_69, %c0_70], %71 {strides = array<i32>} : memref<80x8xf32, #tpu.memory_space<vmem>>, vector<80x8xf32>,
    } else {
    }
    %c0 = arith.constant 0 : index
    %c0_1 = arith.constant 0 : index
    %c0_2 = arith.constant 0 : index
    %c0_3 = arith.constant 0 : index
    %3 = vector.load %arg3[%c0, %c0_1, %c0_2, %c0_3] : memref<1x1x110x4xbf16, #tpu.memory_space<vmem>>, vector<1x1x110x4xbf16>
    %4 = vector.shape_cast %3 : vector<1x1x110x4xbf16> to vector<110x4xbf16>
    %5 = vector.extract_strided_slice %4 {offsets = [0, 0], sizes = [80, 4], strides = [1, 1]} : vector<110x4xbf16> to vector<80x4xbf16>
    %c0_4 = arith.constant 0 : index
    %c0_5 = arith.constant 0 : index
    %6 = vector.load %arg7[%c0_4, %c0_5] : memref<80x8xf32, #tpu.memory_space<vmem>>, vector<80x8xf32>
    %c0_6 = arith.constant 0 : index
    %c0_7 = arith.constant 0 : index
    %c0_8 = arith.constant 0 : index
    %7 = vector.load %arg4[%c0_6, %c0_7, %c0_8] : memref<9x4x8xbf16, #tpu.memory_space<vmem>>, vector<1x4x8xbf16>
    %8 = vector.shape_cast %7 : vector<1x4x8xbf16> to vector<4x8xbf16>
    %cst = arith.constant dense<0.000000e+00> : vector<80x8xf32>
    %9 = tpu.matmul %5, %8, %cst {dimension_numbers = #tpu.dot_dimension_numbers<[1], [0], [0], [1], [0, 0, 1, 1], [], []>} : vector<80x4xbf16>, vector<4x8xbf16>, vector<80x8xf32> -> vector<80x8xf32>
    %10 = arith.addf %6, %9 : vector<80x8xf32>
    %c0_9 = arith.constant 0 : index
    %c0_10 = arith.constant 0 : index
    %11 = vector.load %arg7[%c0_9, %c0_10] : memref<80x8xf32, #tpu.memory_space<vmem>>, vector<80x8xf32>
    tpu.vector_store %arg7[%c0_9, %c0_10], %10 {strides = array<i32>} : memref<80x8xf32, #tpu.memory_space<vmem>>, vector<80x8xf32>,
    %12 = vector.extract_strided_slice %4 {offsets = [1, 0], sizes = [80, 4], strides = [1, 1]} : vector<110x4xbf16> to vector<80x4xbf16>
    %c0_11 = arith.constant 0 : index
    %c0_12 = arith.constant 0 : index
    %13 = vector.load %arg7[%c0_11, %c0_12] : memref<80x8xf32, #tpu.memory_space<vmem>>, vector<80x8xf32>
    %c1 = arith.constant 1 : index
    %c0_13 = arith.constant 0 : index
    %c0_14 = arith.constant 0 : index
    %14 = vector.load %arg4[%c1, %c0_13, %c0_14] : memref<9x4x8xbf16, #tpu.memory_space<vmem>>, vector<1x4x8xbf16>
    %15 = vector.shape_cast %14 : vector<1x4x8xbf16> to vector<4x8xbf16>
    %cst_15 = arith.constant dense<0.000000e+00> : vector<80x8xf32>
    %16 = tpu.matmul %12, %15, %cst_15 {dimension_numbers = #tpu.dot_dimension_numbers<[1], [0], [0], [1], [0, 0, 1, 1], [], []>} : vector<80x4xbf16>, vector<4x8xbf16>, vector<80x8xf32> -> vector<80x8xf32>
    %17 = arith.addf %13, %16 : vector<80x8xf32>
    %c0_16 = arith.constant 0 : index
    %c0_17 = arith.constant 0 : index
    %18 = vector.load %arg7[%c0_16, %c0_17] : memref<80x8xf32, #tpu.memory_space<vmem>>, vector<80x8xf32>
    tpu.vector_store %arg7[%c0_16, %c0_17], %17 {strides = array<i32>} : memref<80x8xf32, #tpu.memory_space<vmem>>, vector<80x8xf32>,
    %19 = vector.extract_strided_slice %4 {offsets = [2, 0], sizes = [80, 4], strides = [1, 1]} : vector<110x4xbf16> to vector<80x4xbf16>
    %c0_18 = arith.constant 0 : index
    %c0_19 = arith.constant 0 : index
    %20 = vector.load %arg7[%c0_18, %c0_19] : memref<80x8xf32, #tpu.memory_space<vmem>>, vector<80x8xf32>
    %c2 = arith.constant 2 : index
    %c0_20 = arith.constant 0 : index
    %c0_21 = arith.constant 0 : index
    %21 = vector.load %arg4[%c2, %c0_20, %c0_21] : memref<9x4x8xbf16, #tpu.memory_space<vmem>>, vector<1x4x8xbf16>
    %22 = vector.shape_cast %21 : vector<1x4x8xbf16> to vector<4x8xbf16>
    %cst_22 = arith.constant dense<0.000000e+00> : vector<80x8xf32>
    %23 = tpu.matmul %19, %22, %cst_22 {dimension_numbers = #tpu.dot_dimension_numbers<[1], [0], [0], [1], [0, 0, 1, 1], [], []>} : vector<80x4xbf16>, vector<4x8xbf16>, vector<80x8xf32> -> vector<80x8xf32>
    %24 = arith.addf %20, %23 : vector<80x8xf32>
    %c0_23 = arith.constant 0 : index
    %c0_24 = arith.constant 0 : index
    %25 = vector.load %arg7[%c0_23, %c0_24] : memref<80x8xf32, #tpu.memory_space<vmem>>, vector<80x8xf32>
    tpu.vector_store %arg7[%c0_23, %c0_24], %24 {strides = array<i32>} : memref<80x8xf32, #tpu.memory_space<vmem>>, vector<80x8xf32>,
    %26 = vector.extract_strided_slice %4 {offsets = [10, 0], sizes = [80, 4], strides = [1, 1]} : vector<110x4xbf16> to vector<80x4xbf16>
    %c0_25 = arith.constant 0 : index
    %c0_26 = arith.constant 0 : index
    %27 = vector.load %arg7[%c0_25, %c0_26] : memref<80x8xf32, #tpu.memory_space<vmem>>, vector<80x8xf32>
    %c3 = arith.constant 3 : index
    %c0_27 = arith.constant 0 : index
    %c0_28 = arith.constant 0 : index
    %28 = vector.load %arg4[%c3, %c0_27, %c0_28] : memref<9x4x8xbf16, #tpu.memory_space<vmem>>, vector<1x4x8xbf16>
    %29 = vector.shape_cast %28 : vector<1x4x8xbf16> to vector<4x8xbf16>
    %cst_29 = arith.constant dense<0.000000e+00> : vector<80x8xf32>
    %30 = tpu.matmul %26, %29, %cst_29 {dimension_numbers = #tpu.dot_dimension_numbers<[1], [0], [0], [1], [0, 0, 1, 1], [], []>} : vector<80x4xbf16>, vector<4x8xbf16>, vector<80x8xf32> -> vector<80x8xf32>
    %31 = arith.addf %27, %30 : vector<80x8xf32>
    %c0_30 = arith.constant 0 : index
    %c0_31 = arith.constant 0 : index
    %32 = vector.load %arg7[%c0_30, %c0_31] : memref<80x8xf32, #tpu.memory_space<vmem>>, vector<80x8xf32>
    tpu.vector_store %arg7[%c0_30, %c0_31], %31 {strides = array<i32>} : memref<80x8xf32, #tpu.memory_space<vmem>>, vector<80x8xf32>,
    %33 = vector.extract_strided_slice %4 {offsets = [11, 0], sizes = [80, 4], strides = [1, 1]} : vector<110x4xbf16> to vector<80x4xbf16>
    %c0_32 = arith.constant 0 : index
    %c0_33 = arith.constant 0 : index
    %34 = vector.load %arg7[%c0_32, %c0_33] : memref<80x8xf32, #tpu.memory_space<vmem>>, vector<80x8xf32>
    %c4 = arith.constant 4 : index
    %c0_34 = arith.constant 0 : index
    %c0_35 = arith.constant 0 : index
    %35 = vector.load %arg4[%c4, %c0_34, %c0_35] : memref<9x4x8xbf16, #tpu.memory_space<vmem>>, vector<1x4x8xbf16>
    %36 = vector.shape_cast %35 : vector<1x4x8xbf16> to vector<4x8xbf16>
    %cst_36 = arith.constant dense<0.000000e+00> : vector<80x8xf32>
    %37 = tpu.matmul %33, %36, %cst_36 {dimension_numbers = #tpu.dot_dimension_numbers<[1], [0], [0], [1], [0, 0, 1, 1], [], []>} : vector<80x4xbf16>, vector<4x8xbf16>, vector<80x8xf32> -> vector<80x8xf32>
    %38 = arith.addf %34, %37 : vector<80x8xf32>
    %c0_37 = arith.constant 0 : index
    %c0_38 = arith.constant 0 : index
    %39 = vector.load %arg7[%c0_37, %c0_38] : memref<80x8xf32, #tpu.memory_space<vmem>>, vector<80x8xf32>
    tpu.vector_store %arg7[%c0_37, %c0_38], %38 {strides = array<i32>} : memref<80x8xf32, #tpu.memory_space<vmem>>, vector<80x8xf32>,
    %40 = vector.extract_strided_slice %4 {offsets = [12, 0], sizes = [80, 4], strides = [1, 1]} : vector<110x4xbf16> to vector<80x4xbf16>
    %c0_39 = arith.constant 0 : index
    %c0_40 = arith.constant 0 : index
    %41 = vector.load %arg7[%c0_39, %c0_40] : memref<80x8xf32, #tpu.memory_space<vmem>>, vector<80x8xf32>
    %c5 = arith.constant 5 : index
    %c0_41 = arith.constant 0 : index
    %c0_42 = arith.constant 0 : index
    %42 = vector.load %arg4[%c5, %c0_41, %c0_42] : memref<9x4x8xbf16, #tpu.memory_space<vmem>>, vector<1x4x8xbf16>
    %43 = vector.shape_cast %42 : vector<1x4x8xbf16> to vector<4x8xbf16>
    %cst_43 = arith.constant dense<0.000000e+00> : vector<80x8xf32>
    %44 = tpu.matmul %40, %43, %cst_43 {dimension_numbers = #tpu.dot_dimension_numbers<[1], [0], [0], [1], [0, 0, 1, 1], [], []>} : vector<80x4xbf16>, vector<4x8xbf16>, vector<80x8xf32> -> vector<80x8xf32>
    %45 = arith.addf %41, %44 : vector<80x8xf32>
    %c0_44 = arith.constant 0 : index
    %c0_45 = arith.constant 0 : index
    %46 = vector.load %arg7[%c0_44, %c0_45] : memref<80x8xf32, #tpu.memory_space<vmem>>, vector<80x8xf32>
    tpu.vector_store %arg7[%c0_44, %c0_45], %45 {strides = array<i32>} : memref<80x8xf32, #tpu.memory_space<vmem>>, vector<80x8xf32>,
    %47 = vector.extract_strided_slice %4 {offsets = [20, 0], sizes = [80, 4], strides = [1, 1]} : vector<110x4xbf16> to vector<80x4xbf16>
    %c0_46 = arith.constant 0 : index
    %c0_47 = arith.constant 0 : index
    %48 = vector.load %arg7[%c0_46, %c0_47] : memref<80x8xf32, #tpu.memory_space<vmem>>, vector<80x8xf32>
    %c6 = arith.constant 6 : index
    %c0_48 = arith.constant 0 : index
    %c0_49 = arith.constant 0 : index
    %49 = vector.load %arg4[%c6, %c0_48, %c0_49] : memref<9x4x8xbf16, #tpu.memory_space<vmem>>, vector<1x4x8xbf16>
    %50 = vector.shape_cast %49 : vector<1x4x8xbf16> to vector<4x8xbf16>
    %cst_50 = arith.constant dense<0.000000e+00> : vector<80x8xf32>
    %51 = tpu.matmul %47, %50, %cst_50 {dimension_numbers = #tpu.dot_dimension_numbers<[1], [0], [0], [1], [0, 0, 1, 1], [], []>} : vector<80x4xbf16>, vector<4x8xbf16>, vector<80x8xf32> -> vector<80x8xf32>
    %52 = arith.addf %48, %51 : vector<80x8xf32>
    %c0_51 = arith.constant 0 : index
    %c0_52 = arith.constant 0 : index
    %53 = vector.load %arg7[%c0_51, %c0_52] : memref<80x8xf32, #tpu.memory_space<vmem>>, vector<80x8xf32>
    tpu.vector_store %arg7[%c0_51, %c0_52], %52 {strides = array<i32>} : memref<80x8xf32, #tpu.memory_space<vmem>>, vector<80x8xf32>,
    %54 = vector.extract_strided_slice %4 {offsets = [21, 0], sizes = [80, 4], strides = [1, 1]} : vector<110x4xbf16> to vector<80x4xbf16>
    %c0_53 = arith.constant 0 : index
    %c0_54 = arith.constant 0 : index
    %55 = vector.load %arg7[%c0_53, %c0_54] : memref<80x8xf32, #tpu.memory_space<vmem>>, vector<80x8xf32>
    %c7 = arith.constant 7 : index
    %c0_55 = arith.constant 0 : index
    %c0_56 = arith.constant 0 : index
    %56 = vector.load %arg4[%c7, %c0_55, %c0_56] : memref<9x4x8xbf16, #tpu.memory_space<vmem>>, vector<1x4x8xbf16>
    %57 = vector.shape_cast %56 : vector<1x4x8xbf16> to vector<4x8xbf16>
    %cst_57 = arith.constant dense<0.000000e+00> : vector<80x8xf32>
    %58 = tpu.matmul %54, %57, %cst_57 {dimension_numbers = #tpu.dot_dimension_numbers<[1], [0], [0], [1], [0, 0, 1, 1], [], []>} : vector<80x4xbf16>, vector<4x8xbf16>, vector<80x8xf32> -> vector<80x8xf32>
    %59 = arith.addf %55, %58 : vector<80x8xf32>
    %c0_58 = arith.constant 0 : index
    %c0_59 = arith.constant 0 : index
    %60 = vector.load %arg7[%c0_58, %c0_59] : memref<80x8xf32, #tpu.memory_space<vmem>>, vector<80x8xf32>
    tpu.vector_store %arg7[%c0_58, %c0_59], %59 {strides = array<i32>} : memref<80x8xf32, #tpu.memory_space<vmem>>, vector<80x8xf32>,
    %61 = vector.extract_strided_slice %4 {offsets = [22, 0], sizes = [80, 4], strides = [1, 1]} : vector<110x4xbf16> to vector<80x4xbf16>
    %c0_60 = arith.constant 0 : index
    %c0_61 = arith.constant 0 : index
    %62 = vector.load %arg7[%c0_60, %c0_61] : memref<80x8xf32, #tpu.memory_space<vmem>>, vector<80x8xf32>
    %c8 = arith.constant 8 : index
    %c0_62 = arith.constant 0 : index
    %c0_63 = arith.constant 0 : index
    %63 = vector.load %arg4[%c8, %c0_62, %c0_63] : memref<9x4x8xbf16, #tpu.memory_space<vmem>>, vector<1x4x8xbf16>
    %64 = vector.shape_cast %63 : vector<1x4x8xbf16> to vector<4x8xbf16>
    %cst_64 = arith.constant dense<0.000000e+00> : vector<80x8xf32>
    %65 = tpu.matmul %61, %64, %cst_64 {dimension_numbers = #tpu.dot_dimension_numbers<[1], [0], [0], [1], [0, 0, 1, 1], [], []>} : vector<80x4xbf16>, vector<4x8xbf16>, vector<80x8xf32> -> vector<80x8xf32>
    %66 = arith.addf %62, %65 : vector<80x8xf32>
    %c0_65 = arith.constant 0 : index
    %c0_66 = arith.constant 0 : index
    %67 = vector.load %arg7[%c0_65, %c0_66] : memref<80x8xf32, #tpu.memory_space<vmem>>, vector<80x8xf32>
    tpu.vector_store %arg7[%c0_65, %c0_66], %66 {strides = array<i32>} : memref<80x8xf32, #tpu.memory_space<vmem>>, vector<80x8xf32>,
    %c2_i32 = arith.constant 2 : i32
    %68 = arith.cmpi eq, %arg2, %c2_i32 : i32
    %69 = arith.extui %68 : i1 to i32
    %c0_i32_67 = arith.constant 0 : i32
    %70 = arith.cmpi ne, %69, %c0_i32_67 : i32
    scf.if %70 {
      %c0_68 = arith.constant 0 : index
      %c0_69 = arith.constant 0 : index
      %71 = vector.load %arg7[%c0_68, %c0_69] : memref<80x8xf32, #tpu.memory_space<vmem>>, vector<80x8xf32>
      %c0_70 = arith.constant 0 : index
      %c0_71 = arith.constant 0 : index
      %72 = vector.load %arg5[%c0_70, %c0_71] : memref<1x8xf32, #tpu.memory_space<vmem>>, vector<1x8xf32>
      %73 = vector.broadcast %72 : vector<1x8xf32> to vector<80x8xf32>
      %74 = arith.addf %71, %73 : vector<80x8xf32>
      %c0_72 = arith.constant 0 : index
      %c0_73 = arith.constant 0 : index
      %c0_74 = arith.constant 0 : index
      %c0_75 = arith.constant 0 : index
      %75 = vector.load %arg6[%c0_72, %c0_73, %c0_74, %c0_75] : memref<1x1x80x8xf32, #tpu.memory_space<vmem>>, vector<1x1x80x8xf32>
      %76 = vector.shape_cast %75 : vector<1x1x80x8xf32> to vector<80x8xf32>
      %77 = vector.shape_cast %74 : vector<80x8xf32> to vector<1x1x80x8xf32>
      tpu.vector_store %arg6[%c0_72, %c0_73, %c0_74, %c0_75], %77 {strides = array<i32>} : memref<1x1x80x8xf32, #tpu.memory_space<vmem>>, vector<1x1x80x8xf32>,
    } else {
    }
    return
  }
  func.func @transform_0(%arg0: i32, %arg1: i32, %arg2: i32) -> (i32, i32, i32, i32) {
    %0 = arith.addi %arg1, %arg2 : i32
    %c0_i32 = arith.constant 0 : i32
    %c0_i32_0 = arith.constant 0 : i32
    %c0_i32_1 = arith.constant 0 : i32
    return %arg0, %0, %c0_i32, %c0_i32_0 : i32, i32, i32, i32
  }
  func.func @transform_1(%arg0: i32, %arg1: i32, %arg2: i32) -> (i32, i32, i32) {
    %c0_i32 = arith.constant 0 : i32
    %c0_i32_0 = arith.constant 0 : i32
    %c0_i32_1 = arith.constant 0 : i32
    return %arg2, %c0_i32, %c0_i32_0 : i32, i32, i32
  }
  func.func @transform_2(%arg0: i32, %arg1: i32, %arg2: i32) -> (i32, i32) {
    %c0_i32 = arith.constant 0 : i32
    %c0_i32_0 = arith.constant 0 : i32
    %c0_i32_1 = arith.constant 0 : i32
    return %c0_i32, %c0_i32_0 : i32, i32
  }
  func.func @transform_3(%arg0: i32, %arg1: i32, %arg2: i32) -> (i32, i32, i32, i32) {
    %c0_i32 = arith.constant 0 : i32
    %c0_i32_0 = arith.constant 0 : i32
    %c0_i32_1 = arith.constant 0 : i32
    return %arg0, %arg1, %c0_i32, %c0_i32_0 : i32, i32, i32, i32
  }
}

module attributes {stable_mosaic.version = 11 : i64} {
  func.func @_gn_stats_kernel(%arg0: i32, %arg1: i32, %arg2: memref<1x512x8xf32, #tpu.memory_space<vmem>>, %arg3: memref<1x1x8xf32, #tpu.memory_space<vmem>>, %arg4: memref<1x1x8xf32, #tpu.memory_space<vmem>>) attributes {dimension_semantics = [#tpu.dimension_semantics<parallel>, #tpu.dimension_semantics<arbitrary>], iteration_bounds = array<i64: 2, 1>, scalar_prefetch = 0 : i64, scratch_operands = 0 : i64, tpu.core_type = #tpu.core_type<tc>, window_params = [{transform_indices = @transform_0, window_bounds = array<i64: 1, 512, 8>}, {transform_indices = @transform_1, window_bounds = array<i64: 1, 1, 8>}, {transform_indices = @transform_2, window_bounds = array<i64: 1, 1, 8>}]} {
    %c0_i32 = arith.constant 0 : i32
    %0 = arith.cmpi eq, %arg1, %c0_i32 : i32
    %1 = arith.extui %0 : i1 to i32
    %c0_i32_0 = arith.constant 0 : i32
    %2 = arith.cmpi ne, %1, %c0_i32_0 : i32
    scf.if %2 {
      %cst_16 = arith.constant 0.000000e+00 : f32
      %22 = vector.broadcast %cst_16 : f32 to vector<1x1x8xf32>
      %c0_17 = arith.constant 0 : index
      %c0_18 = arith.constant 0 : index
      %c0_19 = arith.constant 0 : index
      %23 = vector.load %arg3[%c0_17, %c0_18, %c0_19] : memref<1x1x8xf32, #tpu.memory_space<vmem>>, vector<1x1x8xf32>
      tpu.vector_store %arg3[%c0_17, %c0_18, %c0_19], %22 {strides = array<i32>} : memref<1x1x8xf32, #tpu.memory_space<vmem>>, vector<1x1x8xf32>,
      %cst_20 = arith.constant 0.000000e+00 : f32
      %24 = vector.broadcast %cst_20 : f32 to vector<1x1x8xf32>
      %c0_21 = arith.constant 0 : index
      %c0_22 = arith.constant 0 : index
      %c0_23 = arith.constant 0 : index
      %25 = vector.load %arg4[%c0_21, %c0_22, %c0_23] : memref<1x1x8xf32, #tpu.memory_space<vmem>>, vector<1x1x8xf32>
      tpu.vector_store %arg4[%c0_21, %c0_22, %c0_23], %24 {strides = array<i32>} : memref<1x1x8xf32, #tpu.memory_space<vmem>>, vector<1x1x8xf32>,
    } else {
    }
    %c0 = arith.constant 0 : index
    %c0_1 = arith.constant 0 : index
    %c0_2 = arith.constant 0 : index
    %3 = vector.load %arg2[%c0, %c0_1, %c0_2] : memref<1x512x8xf32, #tpu.memory_space<vmem>>, vector<1x512x8xf32>
    %4 = vector.shape_cast %3 : vector<1x512x8xf32> to vector<512x8xf32>
    %c0_3 = arith.constant 0 : index
    %c0_4 = arith.constant 0 : index
    %c0_5 = arith.constant 0 : index
    %5 = vector.load %arg3[%c0_3, %c0_4, %c0_5] : memref<1x1x8xf32, #tpu.memory_space<vmem>>, vector<1x1x8xf32>
    %6 = vector.shape_cast %5 : vector<1x1x8xf32> to vector<1x8xf32>
    %cst = arith.constant dense<0.000000e+00> : vector<8xf32>
    %7 = vector.multi_reduction <add>, %4, %cst [0] : vector<512x8xf32> to vector<8xf32>
    %8 = vector.shape_cast %7 : vector<8xf32> to vector<1x8xf32>
    %9 = arith.addf %6, %8 : vector<1x8xf32>
    %c0_6 = arith.constant 0 : index
    %c0_7 = arith.constant 0 : index
    %c0_8 = arith.constant 0 : index
    %10 = vector.load %arg3[%c0_6, %c0_7, %c0_8] : memref<1x1x8xf32, #tpu.memory_space<vmem>>, vector<1x1x8xf32>
    %11 = vector.shape_cast %10 : vector<1x1x8xf32> to vector<1x8xf32>
    %12 = vector.shape_cast %9 : vector<1x8xf32> to vector<1x1x8xf32>
    tpu.vector_store %arg3[%c0_6, %c0_7, %c0_8], %12 {strides = array<i32>} : memref<1x1x8xf32, #tpu.memory_space<vmem>>, vector<1x1x8xf32>,
    %c0_9 = arith.constant 0 : index
    %c0_10 = arith.constant 0 : index
    %c0_11 = arith.constant 0 : index
    %13 = vector.load %arg4[%c0_9, %c0_10, %c0_11] : memref<1x1x8xf32, #tpu.memory_space<vmem>>, vector<1x1x8xf32>
    %14 = vector.shape_cast %13 : vector<1x1x8xf32> to vector<1x8xf32>
    %15 = arith.mulf %4, %4 : vector<512x8xf32>
    %cst_12 = arith.constant dense<0.000000e+00> : vector<8xf32>
    %16 = vector.multi_reduction <add>, %15, %cst_12 [0] : vector<512x8xf32> to vector<8xf32>
    %17 = vector.shape_cast %16 : vector<8xf32> to vector<1x8xf32>
    %18 = arith.addf %14, %17 : vector<1x8xf32>
    %c0_13 = arith.constant 0 : index
    %c0_14 = arith.constant 0 : index
    %c0_15 = arith.constant 0 : index
    %19 = vector.load %arg4[%c0_13, %c0_14, %c0_15] : memref<1x1x8xf32, #tpu.memory_space<vmem>>, vector<1x1x8xf32>
    %20 = vector.shape_cast %19 : vector<1x1x8xf32> to vector<1x8xf32>
    %21 = vector.shape_cast %18 : vector<1x8xf32> to vector<1x1x8xf32>
    tpu.vector_store %arg4[%c0_13, %c0_14, %c0_15], %21 {strides = array<i32>} : memref<1x1x8xf32, #tpu.memory_space<vmem>>, vector<1x1x8xf32>,
    return
  }
  func.func @transform_0(%arg0: i32, %arg1: i32) -> (i32, i32, i32) {
    %c0_i32 = arith.constant 0 : i32
    %c0_i32_0 = arith.constant 0 : i32
    return %arg0, %arg1, %c0_i32 : i32, i32, i32
  }
  func.func @transform_1(%arg0: i32, %arg1: i32) -> (i32, i32, i32) {
    %c0_i32 = arith.constant 0 : i32
    %c0_i32_0 = arith.constant 0 : i32
    %c0_i32_1 = arith.constant 0 : i32
    return %arg0, %c0_i32, %c0_i32_0 : i32, i32, i32
  }
  func.func @transform_2(%arg0: i32, %arg1: i32) -> (i32, i32, i32) {
    %c0_i32 = arith.constant 0 : i32
    %c0_i32_0 = arith.constant 0 : i32
    %c0_i32_1 = arith.constant 0 : i32
    return %arg0, %c0_i32, %c0_i32_0 : i32, i32, i32
  }
}

module attributes {stable_mosaic.version = 11 : i64} {
  func.func @_gn_norm_swish_kernel(%arg0: i32, %arg1: i32, %arg2: memref<1x512x8xf32, #tpu.memory_space<vmem>>, %arg3: memref<1x1x8xf32, #tpu.memory_space<vmem>>, %arg4: memref<1x1x8xf32, #tpu.memory_space<vmem>>, %arg5: memref<1x512x8xbf16, #tpu.memory_space<vmem>>) attributes {dimension_semantics = [#tpu.dimension_semantics<parallel>, #tpu.dimension_semantics<parallel>], iteration_bounds = array<i64: 2, 1>, scalar_prefetch = 0 : i64, scratch_operands = 0 : i64, tpu.core_type = #tpu.core_type<tc>, window_params = [{transform_indices = @transform_0, window_bounds = array<i64: 1, 512, 8>}, {transform_indices = @transform_1, window_bounds = array<i64: 1, 1, 8>}, {transform_indices = @transform_2, window_bounds = array<i64: 1, 1, 8>}, {transform_indices = @transform_3, window_bounds = array<i64: 1, 512, 8>}]} {
    %c0 = arith.constant 0 : index
    %c0_0 = arith.constant 0 : index
    %c0_1 = arith.constant 0 : index
    %0 = vector.load %arg2[%c0, %c0_0, %c0_1] : memref<1x512x8xf32, #tpu.memory_space<vmem>>, vector<1x512x8xf32>
    %1 = vector.shape_cast %0 : vector<1x512x8xf32> to vector<512x8xf32>
    %c0_2 = arith.constant 0 : index
    %c0_3 = arith.constant 0 : index
    %c0_4 = arith.constant 0 : index
    %2 = vector.load %arg3[%c0_2, %c0_3, %c0_4] : memref<1x1x8xf32, #tpu.memory_space<vmem>>, vector<1x1x8xf32>
    %3 = vector.shape_cast %2 : vector<1x1x8xf32> to vector<1x8xf32>
    %4 = vector.broadcast %3 : vector<1x8xf32> to vector<512x8xf32>
    %5 = arith.mulf %1, %4 : vector<512x8xf32>
    %c0_5 = arith.constant 0 : index
    %c0_6 = arith.constant 0 : index
    %c0_7 = arith.constant 0 : index
    %6 = vector.load %arg4[%c0_5, %c0_6, %c0_7] : memref<1x1x8xf32, #tpu.memory_space<vmem>>, vector<1x1x8xf32>
    %7 = vector.shape_cast %6 : vector<1x1x8xf32> to vector<1x8xf32>
    %8 = vector.broadcast %7 : vector<1x8xf32> to vector<512x8xf32>
    %9 = arith.addf %5, %8 : vector<512x8xf32>
    %10 = arith.negf %9 : vector<512x8xf32>
    %11 = math.exp %10 : vector<512x8xf32>
    %cst = arith.constant 1.000000e+00 : f32
    %12 = vector.broadcast %cst : f32 to vector<512x8xf32>
    %13 = arith.addf %12, %11 : vector<512x8xf32>
    %14 = arith.divf %12, %13 : vector<512x8xf32>
    %15 = arith.mulf %9, %14 : vector<512x8xf32>
    %16 = arith.truncf %15 : vector<512x8xf32> to vector<512x8xbf16>
    %c0_8 = arith.constant 0 : index
    %c0_9 = arith.constant 0 : index
    %c0_10 = arith.constant 0 : index
    %17 = vector.load %arg5[%c0_8, %c0_9, %c0_10] : memref<1x512x8xbf16, #tpu.memory_space<vmem>>, vector<1x512x8xbf16>
    %18 = vector.shape_cast %17 : vector<1x512x8xbf16> to vector<512x8xbf16>
    %19 = vector.shape_cast %16 : vector<512x8xbf16> to vector<1x512x8xbf16>
    tpu.vector_store %arg5[%c0_8, %c0_9, %c0_10], %19 {strides = array<i32>} : memref<1x512x8xbf16, #tpu.memory_space<vmem>>, vector<1x512x8xbf16>,
    return
  }
  func.func @transform_0(%arg0: i32, %arg1: i32) -> (i32, i32, i32) {
    %c0_i32 = arith.constant 0 : i32
    %c0_i32_0 = arith.constant 0 : i32
    return %arg0, %arg1, %c0_i32 : i32, i32, i32
  }
  func.func @transform_1(%arg0: i32, %arg1: i32) -> (i32, i32, i32) {
    %c0_i32 = arith.constant 0 : i32
    %c0_i32_0 = arith.constant 0 : i32
    %c0_i32_1 = arith.constant 0 : i32
    return %arg0, %c0_i32, %c0_i32_0 : i32, i32, i32
  }
  func.func @transform_2(%arg0: i32, %arg1: i32) -> (i32, i32, i32) {
    %c0_i32 = arith.constant 0 : i32
    %c0_i32_0 = arith.constant 0 : i32
    %c0_i32_1 = arith.constant 0 : i32
    return %arg0, %c0_i32, %c0_i32_0 : i32, i32, i32
  }
  func.func @transform_3(%arg0: i32, %arg1: i32) -> (i32, i32, i32) {
    %c0_i32 = arith.constant 0 : i32
    %c0_i32_0 = arith.constant 0 : i32
    return %arg0, %arg1, %c0_i32 : i32, i32, i32
  }
}

module attributes {stable_mosaic.version = 11 : i64} {
  func.func @_conv3x3_res_kernel(%arg0: i32, %arg1: i32, %arg2: i32, %arg3: memref<1x1x110x8xbf16, #tpu.memory_space<vmem>>, %arg4: memref<9x8x8xbf16, #tpu.memory_space<vmem>>, %arg5: memref<1x8xf32, #tpu.memory_space<vmem>>, %arg6: memref<1x1x80x4xbf16, #tpu.memory_space<vmem>>, %arg7: memref<4x8xbf16, #tpu.memory_space<vmem>>, %arg8: memref<1x1x80x8xf32, #tpu.memory_space<vmem>>, %arg9: memref<80x8xf32, #tpu.memory_space<vmem>>) attributes {dimension_semantics = [#tpu.dimension_semantics<parallel>, #tpu.dimension_semantics<parallel>, #tpu.dimension_semantics<arbitrary>], iteration_bounds = array<i64: 2, 8, 3>, scalar_prefetch = 0 : i64, scratch_operands = 1 : i64, tpu.core_type = #tpu.core_type<tc>, window_params = [{transform_indices = @transform_0, window_bounds = array<i64: 1, 1, 110, 8>}, {transform_indices = @transform_1, window_bounds = array<i64: 9, 8, 8>}, {pipeline_mode = #tpu.pipeline_mode<synchronous>, transform_indices = @transform_2, window_bounds = array<i64: 1, 8>}, {transform_indices = @transform_3, window_bounds = array<i64: 1, 1, 80, 4>}, {pipeline_mode = #tpu.pipeline_mode<synchronous>, transform_indices = @transform_4, window_bounds = array<i64: 4, 8>}, {transform_indices = @transform_5, window_bounds = array<i64: 1, 1, 80, 8>}]} {
    %c0_i32 = arith.constant 0 : i32
    %0 = arith.cmpi eq, %arg2, %c0_i32 : i32
    %1 = arith.extui %0 : i1 to i32
    %c0_i32_0 = arith.constant 0 : i32
    %2 = arith.cmpi ne, %1, %c0_i32_0 : i32
    scf.if %2 {
      %cst_68 = arith.constant 0.000000e+00 : f32
      %71 = vector.broadcast %cst_68 : f32 to vector<80x8xf32>
      %c0_69 = arith.constant 0 : index
      %c0_70 = arith.constant 0 : index
      %72 = vector.load %arg9[%c0_69, %c0_70] : memref<80x8xf32, #tpu.memory_space<vmem>>, vector<80x8xf32>
      tpu.vector_store %arg9[%c0_69, %c0_70], %71 {strides = array<i32>} : memref<80x8xf32, #tpu.memory_space<vmem>>, vector<80x8xf32>,
    } else {
    }
    %c0 = arith.constant 0 : index
    %c0_1 = arith.constant 0 : index
    %c0_2 = arith.constant 0 : index
    %c0_3 = arith.constant 0 : index
    %3 = vector.load %arg3[%c0, %c0_1, %c0_2, %c0_3] : memref<1x1x110x8xbf16, #tpu.memory_space<vmem>>, vector<1x1x110x8xbf16>
    %4 = vector.shape_cast %3 : vector<1x1x110x8xbf16> to vector<110x8xbf16>
    %5 = vector.extract_strided_slice %4 {offsets = [0, 0], sizes = [80, 8], strides = [1, 1]} : vector<110x8xbf16> to vector<80x8xbf16>
    %c0_4 = arith.constant 0 : index
    %c0_5 = arith.constant 0 : index
    %6 = vector.load %arg9[%c0_4, %c0_5] : memref<80x8xf32, #tpu.memory_space<vmem>>, vector<80x8xf32>
    %c0_6 = arith.constant 0 : index
    %c0_7 = arith.constant 0 : index
    %c0_8 = arith.constant 0 : index
    %7 = vector.load %arg4[%c0_6, %c0_7, %c0_8] : memref<9x8x8xbf16, #tpu.memory_space<vmem>>, vector<1x8x8xbf16>
    %8 = vector.shape_cast %7 : vector<1x8x8xbf16> to vector<8x8xbf16>
    %cst = arith.constant dense<0.000000e+00> : vector<80x8xf32>
    %9 = tpu.matmul %5, %8, %cst {dimension_numbers = #tpu.dot_dimension_numbers<[1], [0], [0], [1], [0, 0, 1, 1], [], []>} : vector<80x8xbf16>, vector<8x8xbf16>, vector<80x8xf32> -> vector<80x8xf32>
    %10 = arith.addf %6, %9 : vector<80x8xf32>
    %c0_9 = arith.constant 0 : index
    %c0_10 = arith.constant 0 : index
    %11 = vector.load %arg9[%c0_9, %c0_10] : memref<80x8xf32, #tpu.memory_space<vmem>>, vector<80x8xf32>
    tpu.vector_store %arg9[%c0_9, %c0_10], %10 {strides = array<i32>} : memref<80x8xf32, #tpu.memory_space<vmem>>, vector<80x8xf32>,
    %12 = vector.extract_strided_slice %4 {offsets = [1, 0], sizes = [80, 8], strides = [1, 1]} : vector<110x8xbf16> to vector<80x8xbf16>
    %c0_11 = arith.constant 0 : index
    %c0_12 = arith.constant 0 : index
    %13 = vector.load %arg9[%c0_11, %c0_12] : memref<80x8xf32, #tpu.memory_space<vmem>>, vector<80x8xf32>
    %c1 = arith.constant 1 : index
    %c0_13 = arith.constant 0 : index
    %c0_14 = arith.constant 0 : index
    %14 = vector.load %arg4[%c1, %c0_13, %c0_14] : memref<9x8x8xbf16, #tpu.memory_space<vmem>>, vector<1x8x8xbf16>
    %15 = vector.shape_cast %14 : vector<1x8x8xbf16> to vector<8x8xbf16>
    %cst_15 = arith.constant dense<0.000000e+00> : vector<80x8xf32>
    %16 = tpu.matmul %12, %15, %cst_15 {dimension_numbers = #tpu.dot_dimension_numbers<[1], [0], [0], [1], [0, 0, 1, 1], [], []>} : vector<80x8xbf16>, vector<8x8xbf16>, vector<80x8xf32> -> vector<80x8xf32>
    %17 = arith.addf %13, %16 : vector<80x8xf32>
    %c0_16 = arith.constant 0 : index
    %c0_17 = arith.constant 0 : index
    %18 = vector.load %arg9[%c0_16, %c0_17] : memref<80x8xf32, #tpu.memory_space<vmem>>, vector<80x8xf32>
    tpu.vector_store %arg9[%c0_16, %c0_17], %17 {strides = array<i32>} : memref<80x8xf32, #tpu.memory_space<vmem>>, vector<80x8xf32>,
    %19 = vector.extract_strided_slice %4 {offsets = [2, 0], sizes = [80, 8], strides = [1, 1]} : vector<110x8xbf16> to vector<80x8xbf16>
    %c0_18 = arith.constant 0 : index
    %c0_19 = arith.constant 0 : index
    %20 = vector.load %arg9[%c0_18, %c0_19] : memref<80x8xf32, #tpu.memory_space<vmem>>, vector<80x8xf32>
    %c2 = arith.constant 2 : index
    %c0_20 = arith.constant 0 : index
    %c0_21 = arith.constant 0 : index
    %21 = vector.load %arg4[%c2, %c0_20, %c0_21] : memref<9x8x8xbf16, #tpu.memory_space<vmem>>, vector<1x8x8xbf16>
    %22 = vector.shape_cast %21 : vector<1x8x8xbf16> to vector<8x8xbf16>
    %cst_22 = arith.constant dense<0.000000e+00> : vector<80x8xf32>
    %23 = tpu.matmul %19, %22, %cst_22 {dimension_numbers = #tpu.dot_dimension_numbers<[1], [0], [0], [1], [0, 0, 1, 1], [], []>} : vector<80x8xbf16>, vector<8x8xbf16>, vector<80x8xf32> -> vector<80x8xf32>
    %24 = arith.addf %20, %23 : vector<80x8xf32>
    %c0_23 = arith.constant 0 : index
    %c0_24 = arith.constant 0 : index
    %25 = vector.load %arg9[%c0_23, %c0_24] : memref<80x8xf32, #tpu.memory_space<vmem>>, vector<80x8xf32>
    tpu.vector_store %arg9[%c0_23, %c0_24], %24 {strides = array<i32>} : memref<80x8xf32, #tpu.memory_space<vmem>>, vector<80x8xf32>,
    %26 = vector.extract_strided_slice %4 {offsets = [10, 0], sizes = [80, 8], strides = [1, 1]} : vector<110x8xbf16> to vector<80x8xbf16>
    %c0_25 = arith.constant 0 : index
    %c0_26 = arith.constant 0 : index
    %27 = vector.load %arg9[%c0_25, %c0_26] : memref<80x8xf32, #tpu.memory_space<vmem>>, vector<80x8xf32>
    %c3 = arith.constant 3 : index
    %c0_27 = arith.constant 0 : index
    %c0_28 = arith.constant 0 : index
    %28 = vector.load %arg4[%c3, %c0_27, %c0_28] : memref<9x8x8xbf16, #tpu.memory_space<vmem>>, vector<1x8x8xbf16>
    %29 = vector.shape_cast %28 : vector<1x8x8xbf16> to vector<8x8xbf16>
    %cst_29 = arith.constant dense<0.000000e+00> : vector<80x8xf32>
    %30 = tpu.matmul %26, %29, %cst_29 {dimension_numbers = #tpu.dot_dimension_numbers<[1], [0], [0], [1], [0, 0, 1, 1], [], []>} : vector<80x8xbf16>, vector<8x8xbf16>, vector<80x8xf32> -> vector<80x8xf32>
    %31 = arith.addf %27, %30 : vector<80x8xf32>
    %c0_30 = arith.constant 0 : index
    %c0_31 = arith.constant 0 : index
    %32 = vector.load %arg9[%c0_30, %c0_31] : memref<80x8xf32, #tpu.memory_space<vmem>>, vector<80x8xf32>
    tpu.vector_store %arg9[%c0_30, %c0_31], %31 {strides = array<i32>} : memref<80x8xf32, #tpu.memory_space<vmem>>, vector<80x8xf32>,
    %33 = vector.extract_strided_slice %4 {offsets = [11, 0], sizes = [80, 8], strides = [1, 1]} : vector<110x8xbf16> to vector<80x8xbf16>
    %c0_32 = arith.constant 0 : index
    %c0_33 = arith.constant 0 : index
    %34 = vector.load %arg9[%c0_32, %c0_33] : memref<80x8xf32, #tpu.memory_space<vmem>>, vector<80x8xf32>
    %c4 = arith.constant 4 : index
    %c0_34 = arith.constant 0 : index
    %c0_35 = arith.constant 0 : index
    %35 = vector.load %arg4[%c4, %c0_34, %c0_35] : memref<9x8x8xbf16, #tpu.memory_space<vmem>>, vector<1x8x8xbf16>
    %36 = vector.shape_cast %35 : vector<1x8x8xbf16> to vector<8x8xbf16>
    %cst_36 = arith.constant dense<0.000000e+00> : vector<80x8xf32>
    %37 = tpu.matmul %33, %36, %cst_36 {dimension_numbers = #tpu.dot_dimension_numbers<[1], [0], [0], [1], [0, 0, 1, 1], [], []>} : vector<80x8xbf16>, vector<8x8xbf16>, vector<80x8xf32> -> vector<80x8xf32>
    %38 = arith.addf %34, %37 : vector<80x8xf32>
    %c0_37 = arith.constant 0 : index
    %c0_38 = arith.constant 0 : index
    %39 = vector.load %arg9[%c0_37, %c0_38] : memref<80x8xf32, #tpu.memory_space<vmem>>, vector<80x8xf32>
    tpu.vector_store %arg9[%c0_37, %c0_38], %38 {strides = array<i32>} : memref<80x8xf32, #tpu.memory_space<vmem>>, vector<80x8xf32>,
    %40 = vector.extract_strided_slice %4 {offsets = [12, 0], sizes = [80, 8], strides = [1, 1]} : vector<110x8xbf16> to vector<80x8xbf16>
    %c0_39 = arith.constant 0 : index
    %c0_40 = arith.constant 0 : index
    %41 = vector.load %arg9[%c0_39, %c0_40] : memref<80x8xf32, #tpu.memory_space<vmem>>, vector<80x8xf32>
    %c5 = arith.constant 5 : index
    %c0_41 = arith.constant 0 : index
    %c0_42 = arith.constant 0 : index
    %42 = vector.load %arg4[%c5, %c0_41, %c0_42] : memref<9x8x8xbf16, #tpu.memory_space<vmem>>, vector<1x8x8xbf16>
    %43 = vector.shape_cast %42 : vector<1x8x8xbf16> to vector<8x8xbf16>
    %cst_43 = arith.constant dense<0.000000e+00> : vector<80x8xf32>
    %44 = tpu.matmul %40, %43, %cst_43 {dimension_numbers = #tpu.dot_dimension_numbers<[1], [0], [0], [1], [0, 0, 1, 1], [], []>} : vector<80x8xbf16>, vector<8x8xbf16>, vector<80x8xf32> -> vector<80x8xf32>
    %45 = arith.addf %41, %44 : vector<80x8xf32>
    %c0_44 = arith.constant 0 : index
    %c0_45 = arith.constant 0 : index
    %46 = vector.load %arg9[%c0_44, %c0_45] : memref<80x8xf32, #tpu.memory_space<vmem>>, vector<80x8xf32>
    tpu.vector_store %arg9[%c0_44, %c0_45], %45 {strides = array<i32>} : memref<80x8xf32, #tpu.memory_space<vmem>>, vector<80x8xf32>,
    %47 = vector.extract_strided_slice %4 {offsets = [20, 0], sizes = [80, 8], strides = [1, 1]} : vector<110x8xbf16> to vector<80x8xbf16>
    %c0_46 = arith.constant 0 : index
    %c0_47 = arith.constant 0 : index
    %48 = vector.load %arg9[%c0_46, %c0_47] : memref<80x8xf32, #tpu.memory_space<vmem>>, vector<80x8xf32>
    %c6 = arith.constant 6 : index
    %c0_48 = arith.constant 0 : index
    %c0_49 = arith.constant 0 : index
    %49 = vector.load %arg4[%c6, %c0_48, %c0_49] : memref<9x8x8xbf16, #tpu.memory_space<vmem>>, vector<1x8x8xbf16>
    %50 = vector.shape_cast %49 : vector<1x8x8xbf16> to vector<8x8xbf16>
    %cst_50 = arith.constant dense<0.000000e+00> : vector<80x8xf32>
    %51 = tpu.matmul %47, %50, %cst_50 {dimension_numbers = #tpu.dot_dimension_numbers<[1], [0], [0], [1], [0, 0, 1, 1], [], []>} : vector<80x8xbf16>, vector<8x8xbf16>, vector<80x8xf32> -> vector<80x8xf32>
    %52 = arith.addf %48, %51 : vector<80x8xf32>
    %c0_51 = arith.constant 0 : index
    %c0_52 = arith.constant 0 : index
    %53 = vector.load %arg9[%c0_51, %c0_52] : memref<80x8xf32, #tpu.memory_space<vmem>>, vector<80x8xf32>
    tpu.vector_store %arg9[%c0_51, %c0_52], %52 {strides = array<i32>} : memref<80x8xf32, #tpu.memory_space<vmem>>, vector<80x8xf32>,
    %54 = vector.extract_strided_slice %4 {offsets = [21, 0], sizes = [80, 8], strides = [1, 1]} : vector<110x8xbf16> to vector<80x8xbf16>
    %c0_53 = arith.constant 0 : index
    %c0_54 = arith.constant 0 : index
    %55 = vector.load %arg9[%c0_53, %c0_54] : memref<80x8xf32, #tpu.memory_space<vmem>>, vector<80x8xf32>
    %c7 = arith.constant 7 : index
    %c0_55 = arith.constant 0 : index
    %c0_56 = arith.constant 0 : index
    %56 = vector.load %arg4[%c7, %c0_55, %c0_56] : memref<9x8x8xbf16, #tpu.memory_space<vmem>>, vector<1x8x8xbf16>
    %57 = vector.shape_cast %56 : vector<1x8x8xbf16> to vector<8x8xbf16>
    %cst_57 = arith.constant dense<0.000000e+00> : vector<80x8xf32>
    %58 = tpu.matmul %54, %57, %cst_57 {dimension_numbers = #tpu.dot_dimension_numbers<[1], [0], [0], [1], [0, 0, 1, 1], [], []>} : vector<80x8xbf16>, vector<8x8xbf16>, vector<80x8xf32> -> vector<80x8xf32>
    %59 = arith.addf %55, %58 : vector<80x8xf32>
    %c0_58 = arith.constant 0 : index
    %c0_59 = arith.constant 0 : index
    %60 = vector.load %arg9[%c0_58, %c0_59] : memref<80x8xf32, #tpu.memory_space<vmem>>, vector<80x8xf32>
    tpu.vector_store %arg9[%c0_58, %c0_59], %59 {strides = array<i32>} : memref<80x8xf32, #tpu.memory_space<vmem>>, vector<80x8xf32>,
    %61 = vector.extract_strided_slice %4 {offsets = [22, 0], sizes = [80, 8], strides = [1, 1]} : vector<110x8xbf16> to vector<80x8xbf16>
    %c0_60 = arith.constant 0 : index
    %c0_61 = arith.constant 0 : index
    %62 = vector.load %arg9[%c0_60, %c0_61] : memref<80x8xf32, #tpu.memory_space<vmem>>, vector<80x8xf32>
    %c8 = arith.constant 8 : index
    %c0_62 = arith.constant 0 : index
    %c0_63 = arith.constant 0 : index
    %63 = vector.load %arg4[%c8, %c0_62, %c0_63] : memref<9x8x8xbf16, #tpu.memory_space<vmem>>, vector<1x8x8xbf16>
    %64 = vector.shape_cast %63 : vector<1x8x8xbf16> to vector<8x8xbf16>
    %cst_64 = arith.constant dense<0.000000e+00> : vector<80x8xf32>
    %65 = tpu.matmul %61, %64, %cst_64 {dimension_numbers = #tpu.dot_dimension_numbers<[1], [0], [0], [1], [0, 0, 1, 1], [], []>} : vector<80x8xbf16>, vector<8x8xbf16>, vector<80x8xf32> -> vector<80x8xf32>
    %66 = arith.addf %62, %65 : vector<80x8xf32>
    %c0_65 = arith.constant 0 : index
    %c0_66 = arith.constant 0 : index
    %67 = vector.load %arg9[%c0_65, %c0_66] : memref<80x8xf32, #tpu.memory_space<vmem>>, vector<80x8xf32>
    tpu.vector_store %arg9[%c0_65, %c0_66], %66 {strides = array<i32>} : memref<80x8xf32, #tpu.memory_space<vmem>>, vector<80x8xf32>,
    %c2_i32 = arith.constant 2 : i32
    %68 = arith.cmpi eq, %arg2, %c2_i32 : i32
    %69 = arith.extui %68 : i1 to i32
    %c0_i32_67 = arith.constant 0 : i32
    %70 = arith.cmpi ne, %69, %c0_i32_67 : i32
    scf.if %70 {
      %c0_68 = arith.constant 0 : index
      %c0_69 = arith.constant 0 : index
      %c0_70 = arith.constant 0 : index
      %c0_71 = arith.constant 0 : index
      %71 = vector.load %arg6[%c0_68, %c0_69, %c0_70, %c0_71] : memref<1x1x80x4xbf16, #tpu.memory_space<vmem>>, vector<1x1x80x4xbf16>
      %72 = vector.shape_cast %71 : vector<1x1x80x4xbf16> to vector<80x4xbf16>
      %c0_72 = arith.constant 0 : index
      %c0_73 = arith.constant 0 : index
      %73 = vector.load %arg7[%c0_72, %c0_73] : memref<4x8xbf16, #tpu.memory_space<vmem>>, vector<4x8xbf16>
      %cst_74 = arith.constant dense<0.000000e+00> : vector<80x8xf32>
      %74 = tpu.matmul %72, %73, %cst_74 {dimension_numbers = #tpu.dot_dimension_numbers<[1], [0], [0], [1], [0, 0, 1, 1], [], []>} : vector<80x4xbf16>, vector<4x8xbf16>, vector<80x8xf32> -> vector<80x8xf32>
      %c0_75 = arith.constant 0 : index
      %c0_76 = arith.constant 0 : index
      %75 = vector.load %arg9[%c0_75, %c0_76] : memref<80x8xf32, #tpu.memory_space<vmem>>, vector<80x8xf32>
      %c0_77 = arith.constant 0 : index
      %c0_78 = arith.constant 0 : index
      %76 = vector.load %arg5[%c0_77, %c0_78] : memref<1x8xf32, #tpu.memory_space<vmem>>, vector<1x8xf32>
      %77 = vector.broadcast %76 : vector<1x8xf32> to vector<80x8xf32>
      %78 = arith.addf %75, %77 : vector<80x8xf32>
      %79 = arith.addf %78, %74 : vector<80x8xf32>
      %c0_79 = arith.constant 0 : index
      %c0_80 = arith.constant 0 : index
      %c0_81 = arith.constant 0 : index
      %c0_82 = arith.constant 0 : index
      %80 = vector.load %arg8[%c0_79, %c0_80, %c0_81, %c0_82] : memref<1x1x80x8xf32, #tpu.memory_space<vmem>>, vector<1x1x80x8xf32>
      %81 = vector.shape_cast %80 : vector<1x1x80x8xf32> to vector<80x8xf32>
      %82 = vector.shape_cast %79 : vector<80x8xf32> to vector<1x1x80x8xf32>
      tpu.vector_store %arg8[%c0_79, %c0_80, %c0_81, %c0_82], %82 {strides = array<i32>} : memref<1x1x80x8xf32, #tpu.memory_space<vmem>>, vector<1x1x80x8xf32>,
    } else {
    }
    return
  }
  func.func @transform_0(%arg0: i32, %arg1: i32, %arg2: i32) -> (i32, i32, i32, i32) {
    %0 = arith.addi %arg1, %arg2 : i32
    %c0_i32 = arith.constant 0 : i32
    %c0_i32_0 = arith.constant 0 : i32
    %c0_i32_1 = arith.constant 0 : i32
    return %arg0, %0, %c0_i32, %c0_i32_0 : i32, i32, i32, i32
  }
  func.func @transform_1(%arg0: i32, %arg1: i32, %arg2: i32) -> (i32, i32, i32) {
    %c0_i32 = arith.constant 0 : i32
    %c0_i32_0 = arith.constant 0 : i32
    %c0_i32_1 = arith.constant 0 : i32
    return %arg2, %c0_i32, %c0_i32_0 : i32, i32, i32
  }
  func.func @transform_2(%arg0: i32, %arg1: i32, %arg2: i32) -> (i32, i32) {
    %c0_i32 = arith.constant 0 : i32
    %c0_i32_0 = arith.constant 0 : i32
    %c0_i32_1 = arith.constant 0 : i32
    return %c0_i32, %c0_i32_0 : i32, i32
  }
  func.func @transform_3(%arg0: i32, %arg1: i32, %arg2: i32) -> (i32, i32, i32, i32) {
    %c0_i32 = arith.constant 0 : i32
    %c0_i32_0 = arith.constant 0 : i32
    %c0_i32_1 = arith.constant 0 : i32
    return %arg0, %arg1, %c0_i32, %c0_i32_0 : i32, i32, i32, i32
  }
  func.func @transform_4(%arg0: i32, %arg1: i32, %arg2: i32) -> (i32, i32) {
    %c0_i32 = arith.constant 0 : i32
    %c0_i32_0 = arith.constant 0 : i32
    %c0_i32_1 = arith.constant 0 : i32
    return %c0_i32, %c0_i32_0 : i32, i32
  }
  func.func @transform_5(%arg0: i32, %arg1: i32, %arg2: i32) -> (i32, i32, i32, i32) {
    %c0_i32 = arith.constant 0 : i32
    %c0_i32_0 = arith.constant 0 : i32
    %c0_i32_1 = arith.constant 0 : i32
    return %arg0, %arg1, %c0_i32, %c0_i32_0 : i32, i32, i32, i32
  }
}

</mosaic_0001>

<llo_original>
// kernel: resnet_block_forward.6
$region0: #{resnet_block_forward.6}
  #allocation0 [shape = 'u32[]', space=smem, size = 0x4, offset = 0x4, fixed_abs, tag = 'smem constant byte address 0x4 - core index']
  #allocation1 [shape = 'u32[144,128]{1,0:T(1,128)}', space=vmem, size = 0x12000, scoped, tag = 'internal scratch']
  %s0 = inlined_call_operand.vmem [shape: f32[2,512,4], index: 0, kind: input, shape index: {}]
  %s1 = inlined_call_operand.vmem [shape: f32[2,1,4], index: 1, kind: output, shape index: {0}]
  %s2 = inlined_call_operand.vmem [shape: f32[2,1,4], index: 2, kind: output, shape index: {1}]
  %3 = xla_tuple %s1, %s2
  %s4 = sld [smem:[#allocation0]]
  $region49: #{resnet_block_forward.6} parent=0
    _
  %s6 = ssub.s32 1, %s4
  %s7 = scalar_select 0, %s6, %s4
  loop: start=0, step=1, limit=4
  $region2: #{resnet_block_forward.6} parent=0 // loop_pre_header
    _
  $region3: #{resnet_block_forward.6} parent=0 // loop_header
    %s9 = sphi 0, %s13
    %p10 = scmp.ge.s32.totalorder %s9, 4
    %s16 = sphi 0, %s28
    %s17 = sphi 0, %s24
    %s18 = sphi 0, %s16
    %s19 = sphi 0, %s17
    %s20 = sphi 0, %s18
    %s21 = sphi 0, %s19
    %s33 = sphi 0, %s35
    %s36 = sphi 0, %s33
    %s37 = sphi 0, %s36
    %s53 = sphi 0, %s37
    %s59 = sphi 0, %s61
    %s62 = sphi 0, %s59
    %s63 = sphi 0, %s62
    %s79 = sphi 0, %s63
    %s85 = sphi 0, %s87
    %s88 = sphi 0, %s85
    %s89 = sphi 0, %s88
    %s105 = sphi 0, %s89
  $region4: #{resnet_block_forward.6} parent=0 // loop_header_branch
    %12 = sbr.rel (%p10) target = $region8
  $region5: #{resnet_block_forward.6} parent=0 // loop_body
    %s14 = ssub.s32 %s9, 1
    %s15 = ssub.s32 %s9, 2
    %s22 = sadd.s32 1, %s17
    %p23 = scmp.ge.s32.totalorder %s22, 1
    %s24 = scalar_select %p23, 0, %s22
    %s25 = sadd.s32 1, %s16
    %s26 = scalar_select %p23, %s25, %s16
    %p27 = scmp.ge.s32.totalorder %s26, 2
    %s28 = scalar_select %p27, 0, %s26
    %s29 = ssub.s32 %s16, %s28
    %s30 = ssub.s32 %s17, %s24
    %s31 = sor.u32 %s29, %s30
    %p32 = scmp.eq.s32.totalorder %s31, 0
    %s34 = sadd.s32 %s33, 1
    %s35 = scalar_select %p32, %s33, %s34
    %p38 = pneg %p32
    %p39 = scmp.eq.s32.totalorder %s9, 1
    %p40 = por %p38, %p39
    %p41 = scmp.ne.s32.totalorder %s33, %s36
    %p42 = scmp.eq.s32.totalorder %s9, 0
    %p43 = por %p41, %p42
    %p44 = scmp.ne.s32.totalorder %s33, %s36
    %p45 = scmp.eq.s32.totalorder %s14, 1
    %p46 = por %p44, %p45
    %p47 = scmp.ne.s32.totalorder %s36, %s37
    %p48 = scmp.eq.s32.totalorder %s14, 0
    %p49 = por %p47, %p48
    %p50 = scmp.ne.s32.totalorder %s36, %s37
    %p51 = scmp.eq.s32.totalorder %s15, 1
    %p52 = por %p50, %p51
    %p54 = scmp.ne.s32.totalorder %s37, %s53
    %p55 = scmp.eq.s32.totalorder %s15, 0
    %p56 = por %p54, %p55
    %s57 = ssub.s32 %s16, %s28
    %p58 = scmp.eq.s32.totalorder %s57, 0
    %s60 = sadd.s32 %s59, 1
    %s61 = scalar_select %p58, %s59, %s60
    %p64 = pneg %p58
    %p65 = scmp.eq.s32.totalorder %s9, 1
    %p66 = por %p64, %p65
    %p67 = scmp.ne.s32.totalorder %s59, %s62
    %p68 = scmp.eq.s32.totalorder %s9, 0
    %p69 = por %p67, %p68
    %p70 = scmp.ne.s32.totalorder %s59, %s62
    %p71 = scmp.eq.s32.totalorder %s14, 1
    %p72 = por %p70, %p71
    %p73 = scmp.ne.s32.totalorder %s62, %s63
    %p74 = scmp.eq.s32.totalorder %s14, 0
    %p75 = por %p73, %p74
    %p76 = scmp.ne.s32.totalorder %s62, %s63
    %p77 = scmp.eq.s32.totalorder %s15, 1
    %p78 = por %p76, %p77
    %p80 = scmp.ne.s32.totalorder %s63, %s79
    %p81 = scmp.eq.s32.totalorder %s15, 0
    %p82 = por %p80, %p81
    %s83 = ssub.s32 %s16, %s28
    %p84 = scmp.eq.s32.totalorder %s83, 0
    %s86 = sadd.s32 %s85, 1
    %s87 = scalar_select %p84, %s85, %s86
    %p90 = pneg %p84
    %p91 = scmp.eq.s32.totalorder %s9, 1
    %p92 = por %p90, %p91
    %p93 = scmp.ne.s32.totalorder %s85, %s88
    %p94 = scmp.eq.s32.totalorder %s9, 0
    %p95 = por %p93, %p94
    %p96 = scmp.ne.s32.totalorder %s85, %s88
    %p97 = scmp.eq.s32.totalorder %s14, 1
    %p98 = por %p96, %p97
    %p99 = scmp.ne.s32.totalorder %s88, %s89
    %p100 = scmp.eq.s32.totalorder %s14, 0
    %p101 = por %p99, %p100
    %p102 = scmp.ne.s32.totalorder %s88, %s89
    %p103 = scmp.eq.s32.totalorder %s15, 1
    %p104 = por %p102, %p103
    %p106 = scmp.ne.s32.totalorder %s89, %s105
    %p107 = scmp.eq.s32.totalorder %s15, 0
    %p108 = por %p106, %p107
    %p109 = scmp.le.s32.totalorder 1, %s9
    %p110 = scmp.lt.s32.totalorder %s9, 3
    %p111 = pnand %p109, %p110
    %p112 = pneg %p111
    // Predicated region
    $region9: #{resnet_block_forward.6} parent=5 // pred_check
      _
    $region10: #{resnet_block_forward.6} parent=5 // pred_check_branch
      %114 = sbr.rel (%p111) target = $region12
    $region11: #{resnet_block_forward.6} parent=5 // pred_region
      %s115 = ssub.s32 %s9, 1
    $region12: #{resnet_block_forward.6} parent=5 // pred_fallthru
      _
    %p116 = scmp.lt.s32.totalorder %s9, 2
    // Predicated region
    $region13: #{resnet_block_forward.6} parent=5 // pred_check
      %p117 = pneg %p116
    $region14: #{resnet_block_forward.6} parent=5 // pred_check_branch
      %119 = sbr.rel (%p117) target = $region16
    $region15: #{resnet_block_forward.6} parent=5 // pred_region
      // Predicated region
      $region17: #{resnet_block_forward.6} parent=15 // pred_check
        %p120 = pneg %p43
      $region18: #{resnet_block_forward.6} parent=15 // pred_check_branch
        %122 = sbr.rel (%p120) target = $region20
      $region19: #{resnet_block_forward.6} parent=15 // pred_region
        %s123 = smul.u32 64, %s17
        %p124 = scmp.lt.s32.totalorder %s16, 1
        %s125 = scalar_select %p124, %s16, 1
        %p126 = scmp.lt.s32.totalorder %s123, 63
        %s127 = scalar_select %p126, %s123, 63
        %s128 = smul.addr %s125, 64
        %s129 = sadd.s32 %s127, %s128
        %s130 = smul.addr %s129, 8
        %s131 = scalar_lea.vmem %s0, %s130
        %s132 = smul.u32 64, %s17
      $region20: #{resnet_block_forward.6} parent=15 // pred_fallthru
        _
    $region16: #{resnet_block_forward.6} parent=5 // pred_fallthru
      _
    %p133 = scmp.le.s32.totalorder 1, %s9
    %p134 = scmp.lt.s32.totalorder %s9, 3
    %p135 = pnand %p133, %p134
    %p136 = pneg %p135
    // Predicated region
    $region21: #{resnet_block_forward.6} parent=5 // pred_check
      _
    $region22: #{resnet_block_forward.6} parent=5 // pred_check_branch
      %138 = sbr.rel (%p135) target = $region24
    $region23: #{resnet_block_forward.6} parent=5 // pred_region
      %s139 = ssub.s32 %s9, 1
      %s140 = smul.u32 64, %s19
      %p141 = scmp.lt.s32.totalorder %s18, 1
      %s142 = scalar_select %p141, %s18, 1
      %p143 = scmp.lt.s32.totalorder %s140, 63
      %s144 = scalar_select %p143, %s140, 63
      %s145 = smul.addr %s142, 64
      %s146 = sadd.s32 %s144, %s145
      %s147 = smul.addr %s146, 8
      %s148 = scalar_lea.vmem %s0, %s147
      %p149 = pneg %p49
      %p150 = pneg %p46
      %p151 = pneg %p75
      %p152 = pneg %p72
      %p153 = scmp.lt.s32.totalorder %s18, 1
      %s154 = scalar_select %p153, %s18, 1
      %s155 = scalar_lea.vmem %s1, %s154
      %p156 = pneg %p101
      %p157 = pneg %p98
      %p158 = scmp.lt.s32.totalorder %s18, 1
      %s159 = scalar_select %p158, %s18, 1
      %s160 = scalar_lea.vmem %s2, %s159
      %s161 = smul.u32 64, %s19
      %p162 = scmp.lt.s32.totalorder %s18, 1
      %s163 = scalar_select %p162, %s18, 1
      %p164 = scmp.lt.s32.totalorder %s161, 63
      %s165 = scalar_select %p164, %s161, 63
      %s166 = smul.addr %s163, 64
      %s167 = sadd.s32 %s165, %s166
      %s168 = smul.addr %s167, 8
      %s169 = scalar_lea.vmem %s0, %s168
      %s170 = smul.u32 64, %s19
      %p171 = scmp.lt.s32.totalorder %s18, 1
      %s172 = scalar_select %p171, %s18, 1
      %s173 = scalar_lea.vmem %s1, %s172
      %p174 = scmp.lt.s32.totalorder %s18, 1
      %s175 = scalar_select %p174, %s18, 1
      %s176 = scalar_lea.vmem %s2, %s175
      %p177 = scmp.eq.s32.totalorder %s19, 0
      // Predicated region
      $region25: #{resnet_block_forward.6} parent=23 // pred_check
        %p178 = pneg %p177
      $region26: #{resnet_block_forward.6} parent=23 // pred_check_branch
        %180 = sbr.rel (%p178) target = $region28
      $region27: #{resnet_block_forward.6} parent=23 // pred_region
        %vm181 = vcmask 24576
        %182 = vst.msk [vmem:[%s173] sm:$0x1] %vm181, 0.0
        %183 = vst.msk [vmem:[%s176] sm:$0x1] %vm181, 0.0
      $region28: #{resnet_block_forward.6} parent=23 // pred_fallthru
        _
      %v184 = vld [vmem:[%s169] sm:$0xff]
      %v185 = vld [vmem:[%s169 + $0x8] sm:$0xff]
      %v186 = vld [vmem:[%s169 + $0x10] sm:$0xff]
      %v187 = vld [vmem:[%s169 + $0x18] sm:$0xff]
      %v188 = vld [vmem:[%s169 + $0x20] sm:$0xff]
      %v189 = vld [vmem:[%s169 + $0x28] sm:$0xff]
      %v190 = vld [vmem:[%s169 + $0x30] sm:$0xff]
      %v191 = vld [vmem:[%s169 + $0x38] sm:$0xff]
      %v192 = vld [vmem:[%s169 + $0x40] sm:$0xff]
      %v193 = vld [vmem:[%s169 + $0x48] sm:$0xff]
      %v194 = vld [vmem:[%s169 + $0x50] sm:$0xff]
      %v195 = vld [vmem:[%s169 + $0x58] sm:$0xff]
      %v196 = vld [vmem:[%s169 + $0x60] sm:$0xff]
      %v197 = vld [vmem:[%s169 + $0x68] sm:$0xff]
      %v198 = vld [vmem:[%s169 + $0x70] sm:$0xff]
      %v199 = vld [vmem:[%s169 + $0x78] sm:$0xff]
      %v200 = vld [vmem:[%s169 + $0x80] sm:$0xff]
      %v201 = vld [vmem:[%s169 + $0x88] sm:$0xff]
      %v202 = vld [vmem:[%s169 + $0x90] sm:$0xff]
      %v203 = vld [vmem:[%s169 + $0x98] sm:$0xff]
      %v204 = vld [vmem:[%s169 + $0xa0] sm:$0xff]
      %v205 = vld [vmem:[%s169 + $0xa8] sm:$0xff]
      %v206 = vld [vmem:[%s169 + $0xb0] sm:$0xff]
      %v207 = vld [vmem:[%s169 + $0xb8] sm:$0xff]
      %v208 = vld [vmem:[%s169 + $0xc0] sm:$0xff]
      %v209 = vld [vmem:[%s169 + $0xc8] sm:$0xff]
      %v210 = vld [vmem:[%s169 + $0xd0] sm:$0xff]
      %v211 = vld [vmem:[%s169 + $0xd8] sm:$0xff]
      %v212 = vld [vmem:[%s169 + $0xe0] sm:$0xff]
      %v213 = vld [vmem:[%s169 + $0xe8] sm:$0xff]
      %v214 = vld [vmem:[%s169 + $0xf0] sm:$0xff]
      %v215 = vld [vmem:[%s169 + $0xf8] sm:$0xff]
      %v216 = vld [vmem:[%s169 + $0x100] sm:$0xff]
      %v217 = vld [vmem:[%s169 + $0x108] sm:$0xff]
      %v218 = vld [vmem:[%s169 + $0x110] sm:$0xff]
      %v219 = vld [vmem:[%s169 + $0x118] sm:$0xff]
      %v220 = vld [vmem:[%s169 + $0x120] sm:$0xff]
      %v221 = vld [vmem:[%s169 + $0x128] sm:$0xff]
      %v222 = vld [vmem:[%s169 + $0x130] sm:$0xff]
      %v223 = vld [vmem:[%s169 + $0x138] sm:$0xff]
      %v224 = vld [vmem:[%s169 + $0x140] sm:$0xff]
      %v225 = vld [vmem:[%s169 + $0x148] sm:$0xff]
      %v226 = vld [vmem:[%s169 + $0x150] sm:$0xff]
      %v227 = vld [vmem:[%s169 + $0x158] sm:$0xff]
      %v228 = vld [vmem:[%s169 + $0x160] sm:$0xff]
      %v229 = vld [vmem:[%s169 + $0x168] sm:$0xff]
      %v230 = vld [vmem:[%s169 + $0x170] sm:$0xff]
      %v231 = vld [vmem:[%s169 + $0x178] sm:$0xff]
      %v232 = vld [vmem:[%s169 + $0x180] sm:$0xff]
      %v233 = vld [vmem:[%s169 + $0x188] sm:$0xff]
      %v234 = vld [vmem:[%s169 + $0x190] sm:$0xff]
      %v235 = vld [vmem:[%s169 + $0x198] sm:$0xff]
      %v236 = vld [vmem:[%s169 + $0x1a0] sm:$0xff]
      %v237 = vld [vmem:[%s169 + $0x1a8] sm:$0xff]
      %v238 = vld [vmem:[%s169 + $0x1b0] sm:$0xff]
      %v239 = vld [vmem:[%s169 + $0x1b8] sm:$0xff]
      %v240 = vld [vmem:[%s169 + $0x1c0] sm:$0xff]
      %v241 = vld [vmem:[%s169 + $0x1c8] sm:$0xff]
      %v242 = vld [vmem:[%s169 + $0x1d0] sm:$0xff]
      %v243 = vld [vmem:[%s169 + $0x1d8] sm:$0xff]
      %v244 = vld [vmem:[%s169 + $0x1e0] sm:$0xff]
      %v245 = vld [vmem:[%s169 + $0x1e8] sm:$0xff]
      %v246 = vld [vmem:[%s169 + $0x1f0] sm:$0xff]
      %v247 = vld [vmem:[%s169 + $0x1f8] sm:$0xff]
      %v248 = vld [vmem:[%s173] sm:$0x1]
      %vm249 = vcmask 31744
      %v250 = vsel %vm249, %v184, 0.0
      %v251 = vsel %vm249, %v185, 0.0
      %v252 = vadd.f32 %v250, %v251
      %v253 = vsel %vm249, %v186, 0.0
      %v254 = vadd.f32 %v252, %v253
      %v255 = vsel %vm249, %v187, 0.0
      %v256 = vadd.f32 %v254, %v255
      %v257 = vsel %vm249, %v188, 0.0
      %v258 = vadd.f32 %v256, %v257
      %v259 = vsel %vm249, %v189, 0.0
      %v260 = vadd.f32 %v258, %v259
      %v261 = vsel %vm249, %v190, 0.0
      %v262 = vadd.f32 %v260, %v261
      %v263 = vsel %vm249, %v191, 0.0
      %v264 = vadd.f32 %v262, %v263
      %v265 = vsel %vm249, %v192, 0.0
      %v266 = vadd.f32 %v264, %v265
      %v267 = vsel %vm249, %v193, 0.0
      %v268 = vadd.f32 %v266, %v267
      %v269 = vsel %vm249, %v194, 0.0
      %v270 = vadd.f32 %v268, %v269
      %v271 = vsel %vm249, %v195, 0.0
      %v272 = vadd.f32 %v270, %v271
      %v273 = vsel %vm249, %v196, 0.0
      %v274 = vadd.f32 %v272, %v273
      %v275 = vsel %vm249, %v197, 0.0
      %v276 = vadd.f32 %v274, %v275
      %v277 = vsel %vm249, %v198, 0.0
      %v278 = vadd.f32 %v276, %v277
      %v279 = vsel %vm249, %v199, 0.0
      %v280 = vadd.f32 %v278, %v279
      %v281 = vsel %vm249, %v200, 0.0
      %v282 = vadd.f32 %v280, %v281
      %v283 = vsel %vm249, %v201, 0.0
      %v284 = vadd.f32 %v282, %v283
      %v285 = vsel %vm249, %v202, 0.0
      %v286 = vadd.f32 %v284, %v285
      %v287 = vsel %vm249, %v203, 0.0
      %v288 = vadd.f32 %v286, %v287
      %v289 = vsel %vm249, %v204, 0.0
      %v290 = vadd.f32 %v288, %v289
      %v291 = vsel %vm249, %v205, 0.0
      %v292 = vadd.f32 %v290, %v291
      %v293 = vsel %vm249, %v206, 0.0
      %v294 = vadd.f32 %v292, %v293
      %v295 = vsel %vm249, %v207, 0.0
      %v296 = vadd.f32 %v294, %v295
      %v297 = vsel %vm249, %v208, 0.0
      %v298 = vadd.f32 %v296, %v297
      %v299 = vsel %vm249, %v209, 0.0
      %v300 = vadd.f32 %v298, %v299
      %v301 = vsel %vm249, %v210, 0.0
      %v302 = vadd.f32 %v300, %v301
      %v303 = vsel %vm249, %v211, 0.0
      %v304 = vadd.f32 %v302, %v303
      %v305 = vsel %vm249, %v212, 0.0
      %v306 = vadd.f32 %v304, %v305
      %v307 = vsel %vm249, %v213, 0.0
      %v308 = vadd.f32 %v306, %v307
      %v309 = vsel %vm249, %v214, 0.0
      %v310 = vadd.f32 %v308, %v309
      %v311 = vsel %vm249, %v215, 0.0
      %v312 = vadd.f32 %v310, %v311
      %v313 = vsel %vm249, %v216, 0.0
      %v314 = vadd.f32 %v312, %v313
      %v315 = vsel %vm249, %v217, 0.0
      %v316 = vadd.f32 %v314, %v315
      %v317 = vsel %vm249, %v218, 0.0
      %v318 = vadd.f32 %v316, %v317
      %v319 = vsel %vm249, %v219, 0.0
      %v320 = vadd.f32 %v318, %v319
      %v321 = vsel %vm249, %v220, 0.0
      %v322 = vadd.f32 %v320, %v321
      %v323 = vsel %vm249, %v221, 0.0
      %v324 = vadd.f32 %v322, %v323
      %v325 = vsel %vm249, %v222, 0.0
      %v326 = vadd.f32 %v324, %v325
      %v327 = vsel %vm249, %v223, 0.0
      %v328 = vadd.f32 %v326, %v327
      %v329 = vsel %vm249, %v224, 0.0
      %v330 = vadd.f32 %v328, %v329
      %v331 = vsel %vm249, %v225, 0.0
      %v332 = vadd.f32 %v330, %v331
      %v333 = vsel %vm249, %v226, 0.0
      %v334 = vadd.f32 %v332, %v333
      %v335 = vsel %vm249, %v227, 0.0
      %v336 = vadd.f32 %v334, %v335
      %v337 = vsel %vm249, %v228, 0.0
      %v338 = vadd.f32 %v336, %v337
      %v339 = vsel %vm249, %v229, 0.0
      %v340 = vadd.f32 %v338, %v339
      %v341 = vsel %vm249, %v230, 0.0
      %v342 = vadd.f32 %v340, %v341
      %v343 = vsel %vm249, %v231, 0.0
      %v344 = vadd.f32 %v342, %v343
      %v345 = vsel %vm249, %v232, 0.0
      %v346 = vadd.f32 %v344, %v345
      %v347 = vsel %vm249, %v233, 0.0
      %v348 = vadd.f32 %v346, %v347
      %v349 = vsel %vm249, %v234, 0.0
      %v350 = vadd.f32 %v348, %v349
      %v351 = vsel %vm249, %v235, 0.0
      %v352 = vadd.f32 %v350, %v351
      %v353 = vsel %vm249, %v236, 0.0
      %v354 = vadd.f32 %v352, %v353
      %v355 = vsel %vm249, %v237, 0.0
      %v356 = vadd.f32 %v354, %v355
      %v357 = vsel %vm249, %v238, 0.0
      %v358 = vadd.f32 %v356, %v357
      %v359 = vsel %vm249, %v239, 0.0
      %v360 = vadd.f32 %v358, %v359
      %v361 = vsel %vm249, %v240, 0.0
      %v362 = vadd.f32 %v360, %v361
      %v363 = vsel %vm249, %v241, 0.0
      %v364 = vadd.f32 %v362, %v363
      %v365 = vsel %vm249, %v242, 0.0
      %v366 = vadd.f32 %v364, %v365
      %v367 = vsel %vm249, %v243, 0.0
      %v368 = vadd.f32 %v366, %v367
      %v369 = vsel %vm249, %v244, 0.0
      %v370 = vadd.f32 %v368, %v369
      %v371 = vsel %vm249, %v245, 0.0
      %v372 = vadd.f32 %v370, %v371
      %v373 = vsel %vm249, %v246, 0.0
      %v374 = vadd.f32 %v372, %v373
      %v375 = vsel %vm249, %v247, 0.0
      %v376 = vadd.f32 %v374, %v375
      %v377 = vrot.slane %v376, 4
      %v378 = vadd.f32 %v376, %v377
      %v379 = vrot.slane %v378, 2
      %v380 = vadd.f32 %v378, %v379
      %v381 = vrot.slane %v380, 1
      %v382 = vadd.f32 %v380, %v381
      %v383 = vadd.f32 %v248, %v382
      %vm384 = vcmask 24576
      %385 = vst.msk [vmem:[%s173] sm:$0x1] %vm384, %v383
      %v386 = vld [vmem:[%s176] sm:$0x1]
      %v387 = vmul.f32 %v184, %v184
      %v388 = vmul.f32 %v185, %v185
      %v389 = vmul.f32 %v186, %v186
      %v390 = vmul.f32 %v187, %v187
      %v391 = vmul.f32 %v188, %v188
      %v392 = vmul.f32 %v189, %v189
      %v393 = vmul.f32 %v190, %v190
      %v394 = vmul.f32 %v191, %v191
      %v395 = vmul.f32 %v192, %v192
      %v396 = vmul.f32 %v193, %v193
      %v397 = vmul.f32 %v194, %v194
      %v398 = vmul.f32 %v195, %v195
      %v399 = vmul.f32 %v196, %v196
      %v400 = vmul.f32 %v197, %v197
      %v401 = vmul.f32 %v198, %v198
      %v402 = vmul.f32 %v199, %v199
      %v403 = vmul.f32 %v200, %v200
      %v404 = vmul.f32 %v201, %v201
      %v405 = vmul.f32 %v202, %v202
      %v406 = vmul.f32 %v203, %v203
      %v407 = vmul.f32 %v204, %v204
      %v408 = vmul.f32 %v205, %v205
      %v409 = vmul.f32 %v206, %v206
      %v410 = vmul.f32 %v207, %v207
      %v411 = vmul.f32 %v208, %v208
      %v412 = vmul.f32 %v209, %v209
      %v413 = vmul.f32 %v210, %v210
      %v414 = vmul.f32 %v211, %v211
      %v415 = vmul.f32 %v212, %v212
      %v416 = vmul.f32 %v213, %v213
      %v417 = vmul.f32 %v214, %v214
      %v418 = vmul.f32 %v215, %v215
      %v419 = vmul.f32 %v216, %v216
      %v420 = vmul.f32 %v217, %v217
      %v421 = vmul.f32 %v218, %v218
      %v422 = vmul.f32 %v219, %v219
      %v423 = vmul.f32 %v220, %v220
      %v424 = vmul.f32 %v221, %v221
      %v425 = vmul.f32 %v222, %v222
      %v426 = vmul.f32 %v223, %v223
      %v427 = vmul.f32 %v224, %v224
      %v428 = vmul.f32 %v225, %v225
      %v429 = vmul.f32 %v226, %v226
      %v430 = vmul.f32 %v227, %v227
      %v431 = vmul.f32 %v228, %v228
      %v432 = vmul.f32 %v229, %v229
      %v433 = vmul.f32 %v230, %v230
      %v434 = vmul.f32 %v231, %v231
      %v435 = vmul.f32 %v232, %v232
      %v436 = vmul.f32 %v233, %v233
      %v437 = vmul.f32 %v234, %v234
      %v438 = vmul.f32 %v235, %v235
      %v439 = vmul.f32 %v236, %v236
      %v440 = vmul.f32 %v237, %v237
      %v441 = vmul.f32 %v238, %v238
      %v442 = vmul.f32 %v239, %v239
      %v443 = vmul.f32 %v240, %v240
      %v444 = vmul.f32 %v241, %v241
      %v445 = vmul.f32 %v242, %v242
      %v446 = vmul.f32 %v243, %v243
      %v447 = vmul.f32 %v244, %v244
      %v448 = vmul.f32 %v245, %v245
      %v449 = vmul.f32 %v246, %v246
      %v450 = vmul.f32 %v247, %v247
      %v451 = vsel %vm249, %v387, 0.0
      %v452 = vsel %vm249, %v388, 0.0
      %v453 = vadd.f32 %v451, %v452
      %v454 = vsel %vm249, %v389, 0.0
      %v455 = vadd.f32 %v453, %v454
      %v456 = vsel %vm249, %v390, 0.0
      %v457 = vadd.f32 %v455, %v456
      %v458 = vsel %vm249, %v391, 0.0
      %v459 = vadd.f32 %v457, %v458
      %v460 = vsel %vm249, %v392, 0.0
      %v461 = vadd.f32 %v459, %v460
      %v462 = vsel %vm249, %v393, 0.0
      %v463 = vadd.f32 %v461, %v462
      %v464 = vsel %vm249, %v394, 0.0
      %v465 = vadd.f32 %v463, %v464
      %v466 = vsel %vm249, %v395, 0.0
      %v467 = vadd.f32 %v465, %v466
      %v468 = vsel %vm249, %v396, 0.0
      %v469 = vadd.f32 %v467, %v468
      %v470 = vsel %vm249, %v397, 0.0
      %v471 = vadd.f32 %v469, %v470
      %v472 = vsel %vm249, %v398, 0.0
      %v473 = vadd.f32 %v471, %v472
      %v474 = vsel %vm249, %v399, 0.0
      %v475 = vadd.f32 %v473, %v474
      %v476 = vsel %vm249, %v400, 0.0
      %v477 = vadd.f32 %v475, %v476
      %v478 = vsel %vm249, %v401, 0.0
      %v479 = vadd.f32 %v477, %v478
      %v480 = vsel %vm249, %v402, 0.0
      %v481 = vadd.f32 %v479, %v480
      %v482 = vsel %vm249, %v403, 0.0
      %v483 = vadd.f32 %v481, %v482
      %v484 = vsel %vm249, %v404, 0.0
      %v485 = vadd.f32 %v483, %v484
      %v486 = vsel %vm249, %v405, 0.0
      %v487 = vadd.f32 %v485, %v486
      %v488 = vsel %vm249, %v406, 0.0
      %v489 = vadd.f32 %v487, %v488
      %v490 = vsel %vm249, %v407, 0.0
      %v491 = vadd.f32 %v489, %v490
      %v492 = vsel %vm249, %v408, 0.0
      %v493 = vadd.f32 %v491, %v492
      %v494 = vsel %vm249, %v409, 0.0
      %v495 = vadd.f32 %v493, %v494
      %v496 = vsel %vm249, %v410, 0.0
      %v497 = vadd.f32 %v495, %v496
      %v498 = vsel %vm249, %v411, 0.0
      %v499 = vadd.f32 %v497, %v498
      %v500 = vsel %vm249, %v412, 0.0
      %v501 = vadd.f32 %v499, %v500
      %v502 = vsel %vm249, %v413, 0.0
      %v503 = vadd.f32 %v501, %v502
      %v504 = vsel %vm249, %v414, 0.0
      %v505 = vadd.f32 %v503, %v504
      %v506 = vsel %vm249, %v415, 0.0
      %v507 = vadd.f32 %v505, %v506
      %v508 = vsel %vm249, %v416, 0.0
      %v509 = vadd.f32 %v507, %v508
      %v510 = vsel %vm249, %v417, 0.0
      %v511 = vadd.f32 %v509, %v510
      %v512 = vsel %vm249, %v418, 0.0
      %v513 = vadd.f32 %v511, %v512
      %v514 = vsel %vm249, %v419, 0.0
      %v515 = vadd.f32 %v513, %v514
      %v516 = vsel %vm249, %v420, 0.0
      %v517 = vadd.f32 %v515, %v516
      %v518 = vsel %vm249, %v421, 0.0
      %v519 = vadd.f32 %v517, %v518
      %v520 = vsel %vm249, %v422, 0.0
      %v521 = vadd.f32 %v519, %v520
      %v522 = vsel %vm249, %v423, 0.0
      %v523 = vadd.f32 %v521, %v522
      %v524 = vsel %vm249, %v424, 0.0
      %v525 = vadd.f32 %v523, %v524
      %v526 = vsel %vm249, %v425, 0.0
      %v527 = vadd.f32 %v525, %v526
      %v528 = vsel %vm249, %v426, 0.0
      %v529 = vadd.f32 %v527, %v528
      %v530 = vsel %vm249, %v427, 0.0
      %v531 = vadd.f32 %v529, %v530
      %v532 = vsel %vm249, %v428, 0.0
      %v533 = vadd.f32 %v531, %v532
      %v534 = vsel %vm249, %v429, 0.0
      %v535 = vadd.f32 %v533, %v534
      %v536 = vsel %vm249, %v430, 0.0
      %v537 = vadd.f32 %v535, %v536
      %v538 = vsel %vm249, %v431, 0.0
      %v539 = vadd.f32 %v537, %v538
      %v540 = vsel %vm249, %v432, 0.0
      %v541 = vadd.f32 %v539, %v540
      %v542 = vsel %vm249, %v433, 0.0
      %v543 = vadd.f32 %v541, %v542
      %v544 = vsel %vm249, %v434, 0.0
      %v545 = vadd.f32 %v543, %v544
      %v546 = vsel %vm249, %v435, 0.0
      %v547 = vadd.f32 %v545, %v546
      %v548 = vsel %vm249, %v436, 0.0
      %v549 = vadd.f32 %v547, %v548
      %v550 = vsel %vm249, %v437, 0.0
      %v551 = vadd.f32 %v549, %v550
      %v552 = vsel %vm249, %v438, 0.0
      %v553 = vadd.f32 %v551, %v552
      %v554 = vsel %vm249, %v439, 0.0
      %v555 = vadd.f32 %v553, %v554
      %v556 = vsel %vm249, %v440, 0.0
      %v557 = vadd.f32 %v555, %v556
      %v558 = vsel %vm249, %v441, 0.0
      %v559 = vadd.f32 %v557, %v558
      %v560 = vsel %vm249, %v442, 0.0
      %v561 = vadd.f32 %v559, %v560
      %v562 = vsel %vm249, %v443, 0.0
      %v563 = vadd.f32 %v561, %v562
      %v564 = vsel %vm249, %v444, 0.0
      %v565 = vadd.f32 %v563, %v564
      %v566 = vsel %vm249, %v445, 0.0
      %v567 = vadd.f32 %v565, %v566
      %v568 = vsel %vm249, %v446, 0.0
      %v569 = vadd.f32 %v567, %v568
      %v570 = vsel %vm249, %v447, 0.0
      %v571 = vadd.f32 %v569, %v570
      %v572 = vsel %vm249, %v448, 0.0
      %v573 = vadd.f32 %v571, %v572
      %v574 = vsel %vm249, %v449, 0.0
      %v575 = vadd.f32 %v573, %v574
      %v576 = vsel %vm249, %v450, 0.0
      %v577 = vadd.f32 %v575, %v576
      %v578 = vrot.slane %v577, 4
      %v579 = vadd.f32 %v577, %v578
      %v580 = vrot.slane %v579, 2
      %v581 = vadd.f32 %v579, %v580
      %v582 = vrot.slane %v581, 1
      %v583 = vadd.f32 %v581, %v582
      %v584 = vadd.f32 %v386, %v583
      %585 = vst.msk [vmem:[%s176] sm:$0x1] %vm384, %v584
      %p586 = scmp.lt.s32.totalorder %s18, 1
      %s587 = scalar_select %p586, %s18, 1
      %s588 = scalar_lea.vmem %s1, %s587
      %p589 = scmp.lt.s32.totalorder %s18, 1
      %s590 = scalar_select %p589, %s18, 1
      %s591 = scalar_lea.vmem %s2, %s590
      // Predicated region
      $region29: #{resnet_block_forward.6} parent=23 // pred_check
        %p592 = pneg %p72
      $region30: #{resnet_block_forward.6} parent=23 // pred_check_branch
        %594 = sbr.rel (%p592) target = $region32
      $region31: #{resnet_block_forward.6} parent=23 // pred_region
        _
      $region32: #{resnet_block_forward.6} parent=23 // pred_fallthru
        _
      // Predicated region
      $region33: #{resnet_block_forward.6} parent=23 // pred_check
        %p595 = pneg %p98
      $region34: #{resnet_block_forward.6} parent=23 // pred_check_branch
        %597 = sbr.rel (%p595) target = $region36
      $region35: #{resnet_block_forward.6} parent=23 // pred_region
        _
      $region36: #{resnet_block_forward.6} parent=23 // pred_fallthru
        _
    $region24: #{resnet_block_forward.6} parent=5 // pred_fallthru
      _
    %p598 = scmp.le.s32.totalorder 2, %s9
    // Predicated region
    $region37: #{resnet_block_forward.6} parent=5 // pred_check
      %p599 = pneg %p598
    $region38: #{resnet_block_forward.6} parent=5 // pred_check_branch
      %601 = sbr.rel (%p599) target = $region40
    $region39: #{resnet_block_forward.6} parent=5 // pred_region
      %s602 = ssub.s32 %s9, 2
      // Predicated region
      $region41: #{resnet_block_forward.6} parent=39 // pred_check
        %p603 = pneg %p78
      $region42: #{resnet_block_forward.6} parent=39 // pred_check_branch
        %605 = sbr.rel (%p603) target = $region44
      $region43: #{resnet_block_forward.6} parent=39 // pred_region
        %p606 = scmp.lt.s32.totalorder %s20, 1
        %s607 = scalar_select %p606, %s20, 1
        %s608 = scalar_lea.vmem %s1, %s607
      $region44: #{resnet_block_forward.6} parent=39 // pred_fallthru
        _
      // Predicated region
      $region45: #{resnet_block_forward.6} parent=39 // pred_check
        %p609 = pneg %p104
      $region46: #{resnet_block_forward.6} parent=39 // pred_check_branch
        %611 = sbr.rel (%p609) target = $region48
      $region47: #{resnet_block_forward.6} parent=39 // pred_region
        %p612 = scmp.lt.s32.totalorder %s20, 1
        %s613 = scalar_select %p612, %s20, 1
        %s614 = scalar_lea.vmem %s2, %s613
      $region48: #{resnet_block_forward.6} parent=39 // pred_fallthru
        _
    $region40: #{resnet_block_forward.6} parent=5 // pred_fallthru
      _
  $region6: #{resnet_block_forward.6} parent=0 // loop_footer
    %s13 = sadd.s32 1, %s9
  $region7: #{resnet_block_forward.6} parent=0 // loop_footer_branch
    %8 = sbr.rel target = $region3
  $region8: #{resnet_block_forward.6} parent=0 // loop_exit
    _

// kernel: resnet_block_forward.7
$region0: #{resnet_block_forward.7}
  #allocation0 [shape = 'u32[]', space=smem, size = 0x4, offset = 0x4, fixed_abs, tag = 'smem constant byte address 0x4 - core index']
  #allocation1 [shape = 'u32[144,128]{1,0:T(1,128)}', space=vmem, size = 0x12000, scoped, tag = 'internal scratch']
  %s0 = inlined_call_operand.vmem [shape: f32[2,512,4], index: 0, kind: input, shape index: {}]
  %s1 = inlined_call_operand.vmem [shape: f32[2,1,4], index: 1, kind: input, shape index: {}]
  %s2 = inlined_call_operand.vmem [shape: f32[2,1,4], index: 2, kind: input, shape index: {}]
  %s3 = inlined_call_operand.vmem [shape: bf16[2,512,4], index: 3, kind: output, shape index: {}]
  %s4 = sld [smem:[#allocation0]]
  $region45: #{resnet_block_forward.7} parent=0
    _
  %s6 = ssub.s32 1, %s4
  %s7 = scalar_select 0, %s6, %s4
  loop: start=0, step=1, limit=4
  $region2: #{resnet_block_forward.7} parent=0 // loop_pre_header
    _
  $region3: #{resnet_block_forward.7} parent=0 // loop_header
    %s9 = sphi 0, %s13
    %p10 = scmp.ge.s32.totalorder %s9, 4
    %s16 = sphi 0, %s28
    %s17 = sphi 0, %s24
    %s18 = sphi 0, %s16
    %s19 = sphi 0, %s17
    %s20 = sphi 0, %s18
    %s21 = sphi 0, %s19
    %s33 = sphi 0, %s35
    %s36 = sphi 0, %s33
    %s37 = sphi 0, %s36
    %s53 = sphi 0, %s37
    %s59 = sphi 0, %s61
    %s62 = sphi 0, %s59
    %s63 = sphi 0, %s62
    %s79 = sphi 0, %s63
    %s85 = sphi 0, %s87
    %s88 = sphi 0, %s85
    %s89 = sphi 0, %s88
    %s105 = sphi 0, %s89
    %s113 = sphi 0, %s115
    %s116 = sphi 0, %s113
    %s117 = sphi 0, %s116
    %s133 = sphi 0, %s117
  $region4: #{resnet_block_forward.7} parent=0 // loop_header_branch
    %12 = sbr.rel (%p10) target = $region8
  $region5: #{resnet_block_forward.7} parent=0 // loop_body
    %s14 = ssub.s32 %s9, 1
    %s15 = ssub.s32 %s9, 2
    %s22 = sadd.s32 1, %s17
    %p23 = scmp.ge.s32.totalorder %s22, 1
    %s24 = scalar_select %p23, 0, %s22
    %s25 = sadd.s32 1, %s16
    %s26 = scalar_select %p23, %s25, %s16
    %p27 = scmp.ge.s32.totalorder %s26, 2
    %s28 = scalar_select %p27, 0, %s26
    %s29 = ssub.s32 %s16, %s28
    %s30 = ssub.s32 %s17, %s24
    %s31 = sor.u32 %s29, %s30
    %p32 = scmp.eq.s32.totalorder %s31, 0
    %s34 = sadd.s32 %s33, 1
    %s35 = scalar_select %p32, %s33, %s34
    %p38 = pneg %p32
    %p39 = scmp.eq.s32.totalorder %s9, 1
    %p40 = por %p38, %p39
    %p41 = scmp.ne.s32.totalorder %s33, %s36
    %p42 = scmp.eq.s32.totalorder %s9, 0
    %p43 = por %p41, %p42
    %p44 = scmp.ne.s32.totalorder %s33, %s36
    %p45 = scmp.eq.s32.totalorder %s14, 1
    %p46 = por %p44, %p45
    %p47 = scmp.ne.s32.totalorder %s36, %s37
    %p48 = scmp.eq.s32.totalorder %s14, 0
    %p49 = por %p47, %p48
    %p50 = scmp.ne.s32.totalorder %s36, %s37
    %p51 = scmp.eq.s32.totalorder %s15, 1
    %p52 = por %p50, %p51
    %p54 = scmp.ne.s32.totalorder %s37, %s53
    %p55 = scmp.eq.s32.totalorder %s15, 0
    %p56 = por %p54, %p55
    %s57 = ssub.s32 %s16, %s28
    %p58 = scmp.eq.s32.totalorder %s57, 0
    %s60 = sadd.s32 %s59, 1
    %s61 = scalar_select %p58, %s59, %s60
    %p64 = pneg %p58
    %p65 = scmp.eq.s32.totalorder %s9, 1
    %p66 = por %p64, %p65
    %p67 = scmp.ne.s32.totalorder %s59, %s62
    %p68 = scmp.eq.s32.totalorder %s9, 0
    %p69 = por %p67, %p68
    %p70 = scmp.ne.s32.totalorder %s59, %s62
    %p71 = scmp.eq.s32.totalorder %s14, 1
    %p72 = por %p70, %p71
    %p73 = scmp.ne.s32.totalorder %s62, %s63
    %p74 = scmp.eq.s32.totalorder %s14, 0
    %p75 = por %p73, %p74
    %p76 = scmp.ne.s32.totalorder %s62, %s63
    %p77 = scmp.eq.s32.totalorder %s15, 1
    %p78 = por %p76, %p77
    %p80 = scmp.ne.s32.totalorder %s63, %s79
    %p81 = scmp.eq.s32.totalorder %s15, 0
    %p82 = por %p80, %p81
    %s83 = ssub.s32 %s16, %s28
    %p84 = scmp.eq.s32.totalorder %s83, 0
    %s86 = sadd.s32 %s85, 1
    %s87 = scalar_select %p84, %s85, %s86
    %p90 = pneg %p84
    %p91 = scmp.eq.s32.totalorder %s9, 1
    %p92 = por %p90, %p91
    %p93 = scmp.ne.s32.totalorder %s85, %s88
    %p94 = scmp.eq.s32.totalorder %s9, 0
    %p95 = por %p93, %p94
    %p96 = scmp.ne.s32.totalorder %s85, %s88
    %p97 = scmp.eq.s32.totalorder %s14, 1
    %p98 = por %p96, %p97
    %p99 = scmp.ne.s32.totalorder %s88, %s89
    %p100 = scmp.eq.s32.totalorder %s14, 0
    %p101 = por %p99, %p100
    %p102 = scmp.ne.s32.totalorder %s88, %s89
    %p103 = scmp.eq.s32.totalorder %s15, 1
    %p104 = por %p102, %p103
    %p106 = scmp.ne.s32.totalorder %s89, %s105
    %p107 = scmp.eq.s32.totalorder %s15, 0
    %p108 = por %p106, %p107
    %s109 = ssub.s32 %s16, %s28
    %s110 = ssub.s32 %s17, %s24
    %s111 = sor.u32 %s109, %s110
    %p112 = scmp.eq.s32.totalorder %s111, 0
    %s114 = sadd.s32 %s113, 1
    %s115 = scalar_select %p112, %s113, %s114
    %p118 = pneg %p112
    %p119 = scmp.eq.s32.totalorder %s9, 1
    %p120 = por %p118, %p119
    %p121 = scmp.ne.s32.totalorder %s113, %s116
    %p122 = scmp.eq.s32.totalorder %s9, 0
    %p123 = por %p121, %p122
    %p124 = scmp.ne.s32.totalorder %s113, %s116
    %p125 = scmp.eq.s32.totalorder %s14, 1
    %p126 = por %p124, %p125
    %p127 = scmp.ne.s32.totalorder %s116, %s117
    %p128 = scmp.eq.s32.totalorder %s14, 0
    %p129 = por %p127, %p128
    %p130 = scmp.ne.s32.totalorder %s116, %s117
    %p131 = scmp.eq.s32.totalorder %s15, 1
    %p132 = por %p130, %p131
    %p134 = scmp.ne.s32.totalorder %s117, %s133
    %p135 = scmp.eq.s32.totalorder %s15, 0
    %p136 = por %p134, %p135
    %p137 = scmp.le.s32.totalorder 1, %s9
    %p138 = scmp.lt.s32.totalorder %s9, 3
    %p139 = pnand %p137, %p138
    %p140 = pneg %p139
    // Predicated region
    $region9: #{resnet_block_forward.7} parent=5 // pred_check
      _
    $region10: #{resnet_block_forward.7} parent=5 // pred_check_branch
      %142 = sbr.rel (%p139) target = $region12
    $region11: #{resnet_block_forward.7} parent=5 // pred_region
      %s143 = ssub.s32 %s9, 1
    $region12: #{resnet_block_forward.7} parent=5 // pred_fallthru
      _
    %p144 = scmp.lt.s32.totalorder %s9, 2
    // Predicated region
    $region13: #{resnet_block_forward.7} parent=5 // pred_check
      %p145 = pneg %p144
    $region14: #{resnet_block_forward.7} parent=5 // pred_check_branch
      %147 = sbr.rel (%p145) target = $region16
    $region15: #{resnet_block_forward.7} parent=5 // pred_region
      // Predicated region
      $region17: #{resnet_block_forward.7} parent=15 // pred_check
        %p148 = pneg %p43
      $region18: #{resnet_block_forward.7} parent=15 // pred_check_branch
        %150 = sbr.rel (%p148) target = $region20
      $region19: #{resnet_block_forward.7} parent=15 // pred_region
        %s151 = smul.u32 64, %s17
        %p152 = scmp.lt.s32.totalorder %s16, 1
        %s153 = scalar_select %p152, %s16, 1
        %p154 = scmp.lt.s32.totalorder %s151, 63
        %s155 = scalar_select %p154, %s151, 63
        %s156 = smul.addr %s153, 64
        %s157 = sadd.s32 %s155, %s156
        %s158 = smul.addr %s157, 8
        %s159 = scalar_lea.vmem %s0, %s158
        %s160 = smul.u32 64, %s17
      $region20: #{resnet_block_forward.7} parent=15 // pred_fallthru
        _
      // Predicated region
      $region21: #{resnet_block_forward.7} parent=15 // pred_check
        %p161 = pneg %p69
      $region22: #{resnet_block_forward.7} parent=15 // pred_check_branch
        %163 = sbr.rel (%p161) target = $region24
      $region23: #{resnet_block_forward.7} parent=15 // pred_region
        %p164 = scmp.lt.s32.totalorder %s16, 1
        %s165 = scalar_select %p164, %s16, 1
        %s166 = scalar_lea.vmem %s1, %s165
      $region24: #{resnet_block_forward.7} parent=15 // pred_fallthru
        _
      // Predicated region
      $region25: #{resnet_block_forward.7} parent=15 // pred_check
        %p167 = pneg %p95
      $region26: #{resnet_block_forward.7} parent=15 // pred_check_branch
        %169 = sbr.rel (%p167) target = $region28
      $region27: #{resnet_block_forward.7} parent=15 // pred_region
        %p170 = scmp.lt.s32.totalorder %s16, 1
        %s171 = scalar_select %p170, %s16, 1
        %s172 = scalar_lea.vmem %s2, %s171
      $region28: #{resnet_block_forward.7} parent=15 // pred_fallthru
        _
    $region16: #{resnet_block_forward.7} parent=5 // pred_fallthru
      _
    %p173 = scmp.le.s32.totalorder 1, %s9
    %p174 = scmp.lt.s32.totalorder %s9, 3
    %p175 = pnand %p173, %p174
    %p176 = pneg %p175
    // Predicated region
    $region29: #{resnet_block_forward.7} parent=5 // pred_check
      _
    $region30: #{resnet_block_forward.7} parent=5 // pred_check_branch
      %178 = sbr.rel (%p175) target = $region32
    $region31: #{resnet_block_forward.7} parent=5 // pred_region
      %s179 = ssub.s32 %s9, 1
      %s180 = smul.u32 64, %s19
      %p181 = scmp.lt.s32.totalorder %s18, 1
      %s182 = scalar_select %p181, %s18, 1
      %p183 = scmp.lt.s32.totalorder %s180, 63
      %s184 = scalar_select %p183, %s180, 63
      %s185 = smul.addr %s182, 64
      %s186 = sadd.s32 %s184, %s185
      %s187 = smul.addr %s186, 8
      %s188 = scalar_lea.vmem %s0, %s187
      %p189 = pneg %p49
      %p190 = pneg %p46
      %p191 = scmp.lt.s32.totalorder %s18, 1
      %s192 = scalar_select %p191, %s18, 1
      %s193 = scalar_lea.vmem %s1, %s192
      %p194 = pneg %p75
      %p195 = pneg %p72
      %p196 = scmp.lt.s32.totalorder %s18, 1
      %s197 = scalar_select %p196, %s18, 1
      %s198 = scalar_lea.vmem %s2, %s197
      %p199 = pneg %p101
      %p200 = pneg %p98
      %p201 = pneg %p129
      %p202 = pneg %p126
      %s203 = smul.u32 64, %s19
      %p204 = scmp.lt.s32.totalorder %s18, 1
      %s205 = scalar_select %p204, %s18, 1
      %p206 = scmp.lt.s32.totalorder %s203, 63
      %s207 = scalar_select %p206, %s203, 63
      %s208 = smul.addr %s205, 64
      %s209 = sadd.s32 %s207, %s208
      %s210 = smul.addr %s209, 4
      %s211 = scalar_lea.vmem %s3, %s210
      %s212 = smul.u32 64, %s19
      %p213 = scmp.lt.s32.totalorder %s18, 1
      %s214 = scalar_select %p213, %s18, 1
      %p215 = scmp.lt.s32.totalorder %s212, 63
      %s216 = scalar_select %p215, %s212, 63
      %s217 = smul.addr %s214, 64
      %s218 = sadd.s32 %s216, %s217
      %s219 = smul.addr %s218, 8
      %s220 = scalar_lea.vmem %s0, %s219
      %s221 = smul.u32 64, %s19
      %p222 = scmp.lt.s32.totalorder %s18, 1
      %s223 = scalar_select %p222, %s18, 1
      %s224 = scalar_lea.vmem %s1, %s223
      %p225 = scmp.lt.s32.totalorder %s18, 1
      %s226 = scalar_select %p225, %s18, 1
      %s227 = scalar_lea.vmem %s2, %s226
      %s228 = smul.u32 64, %s19
      %p229 = scmp.lt.s32.totalorder %s18, 1
      %s230 = scalar_select %p229, %s18, 1
      %p231 = scmp.lt.s32.totalorder %s228, 63
      %s232 = scalar_select %p231, %s228, 63
      %s233 = smul.addr %s230, 64
      %s234 = sadd.s32 %s232, %s233
      %s235 = smul.addr %s234, 4
      %s236 = scalar_lea.vmem %s3, %s235
      %s237 = smul.u32 64, %s19
      %v238 = vld [vmem:[%s220] sm:$0xff]
      %v239 = vld [vmem:[%s220 + $0x8] sm:$0xff]
      %v240 = vld [vmem:[%s220 + $0x10] sm:$0xff]
      %v241 = vld [vmem:[%s220 + $0x18] sm:$0xff]
      %v242 = vld [vmem:[%s220 + $0x20] sm:$0xff]
      %v243 = vld [vmem:[%s220 + $0x28] sm:$0xff]
      %v244 = vld [vmem:[%s220 + $0x30] sm:$0xff]
      %v245 = vld [vmem:[%s220 + $0x38] sm:$0xff]
      %v246 = vld [vmem:[%s220 + $0x40] sm:$0xff]
      %v247 = vld [vmem:[%s220 + $0x48] sm:$0xff]
      %v248 = vld [vmem:[%s220 + $0x50] sm:$0xff]
      %v249 = vld [vmem:[%s220 + $0x58] sm:$0xff]
      %v250 = vld [vmem:[%s220 + $0x60] sm:$0xff]
      %v251 = vld [vmem:[%s220 + $0x68] sm:$0xff]
      %v252 = vld [vmem:[%s220 + $0x70] sm:$0xff]
      %v253 = vld [vmem:[%s220 + $0x78] sm:$0xff]
      %v254 = vld [vmem:[%s220 + $0x80] sm:$0xff]
      %v255 = vld [vmem:[%s220 + $0x88] sm:$0xff]
      %v256 = vld [vmem:[%s220 + $0x90] sm:$0xff]
      %v257 = vld [vmem:[%s220 + $0x98] sm:$0xff]
      %v258 = vld [vmem:[%s220 + $0xa0] sm:$0xff]
      %v259 = vld [vmem:[%s220 + $0xa8] sm:$0xff]
      %v260 = vld [vmem:[%s220 + $0xb0] sm:$0xff]
      %v261 = vld [vmem:[%s220 + $0xb8] sm:$0xff]
      %v262 = vld [vmem:[%s220 + $0xc0] sm:$0xff]
      %v263 = vld [vmem:[%s220 + $0xc8] sm:$0xff]
      %v264 = vld [vmem:[%s220 + $0xd0] sm:$0xff]
      %v265 = vld [vmem:[%s220 + $0xd8] sm:$0xff]
      %v266 = vld [vmem:[%s220 + $0xe0] sm:$0xff]
      %v267 = vld [vmem:[%s220 + $0xe8] sm:$0xff]
      %v268 = vld [vmem:[%s220 + $0xf0] sm:$0xff]
      %v269 = vld [vmem:[%s220 + $0xf8] sm:$0xff]
      %v270 = vld [vmem:[%s220 + $0x100] sm:$0xff]
      %v271 = vld [vmem:[%s220 + $0x108] sm:$0xff]
      %v272 = vld [vmem:[%s220 + $0x110] sm:$0xff]
      %v273 = vld [vmem:[%s220 + $0x118] sm:$0xff]
      %v274 = vld [vmem:[%s220 + $0x120] sm:$0xff]
      %v275 = vld [vmem:[%s220 + $0x128] sm:$0xff]
      %v276 = vld [vmem:[%s220 + $0x130] sm:$0xff]
      %v277 = vld [vmem:[%s220 + $0x138] sm:$0xff]
      %v278 = vld [vmem:[%s220 + $0x140] sm:$0xff]
      %v279 = vld [vmem:[%s220 + $0x148] sm:$0xff]
      %v280 = vld [vmem:[%s220 + $0x150] sm:$0xff]
      %v281 = vld [vmem:[%s220 + $0x158] sm:$0xff]
      %v282 = vld [vmem:[%s220 + $0x160] sm:$0xff]
      %v283 = vld [vmem:[%s220 + $0x168] sm:$0xff]
      %v284 = vld [vmem:[%s220 + $0x170] sm:$0xff]
      %v285 = vld [vmem:[%s220 + $0x178] sm:$0xff]
      %v286 = vld [vmem:[%s220 + $0x180] sm:$0xff]
      %v287 = vld [vmem:[%s220 + $0x188] sm:$0xff]
      %v288 = vld [vmem:[%s220 + $0x190] sm:$0xff]
      %v289 = vld [vmem:[%s220 + $0x198] sm:$0xff]
      %v290 = vld [vmem:[%s220 + $0x1a0] sm:$0xff]
      %v291 = vld [vmem:[%s220 + $0x1a8] sm:$0xff]
      %v292 = vld [vmem:[%s220 + $0x1b0] sm:$0xff]
      %v293 = vld [vmem:[%s220 + $0x1b8] sm:$0xff]
      %v294 = vld [vmem:[%s220 + $0x1c0] sm:$0xff]
      %v295 = vld [vmem:[%s220 + $0x1c8] sm:$0xff]
      %v296 = vld [vmem:[%s220 + $0x1d0] sm:$0xff]
      %v297 = vld [vmem:[%s220 + $0x1d8] sm:$0xff]
      %v298 = vld [vmem:[%s220 + $0x1e0] sm:$0xff]
      %v299 = vld [vmem:[%s220 + $0x1e8] sm:$0xff]
      %v300 = vld [vmem:[%s220 + $0x1f0] sm:$0xff]
      %v301 = vld [vmem:[%s220 + $0x1f8] sm:$0xff]
      %v302 = vld [vmem:[%s224] sm:$0x1]
      %v304 = vlaneseq
      %v305 = vshrl.u32 %v304, 7
      %v306 = vsub.s32 0, %v305
      %v307 = vrot.slane %v302, %v306
      %v309 = vmul.f32 %v238, %v307
      %v310 = vmul.f32 %v239, %v307
      %v311 = vmul.f32 %v240, %v307
      %v312 = vmul.f32 %v241, %v307
      %v313 = vmul.f32 %v242, %v307
      %v314 = vmul.f32 %v243, %v307
      %v315 = vmul.f32 %v244, %v307
      %v316 = vmul.f32 %v245, %v307
      %v317 = vmul.f32 %v246, %v307
      %v318 = vmul.f32 %v247, %v307
      %v319 = vmul.f32 %v248, %v307
      %v320 = vmul.f32 %v249, %v307
      %v321 = vmul.f32 %v250, %v307
      %v322 = vmul.f32 %v251, %v307
      %v323 = vmul.f32 %v252, %v307
      %v324 = vmul.f32 %v253, %v307
      %v325 = vmul.f32 %v254, %v307
      %v326 = vmul.f32 %v255, %v307
      %v327 = vmul.f32 %v256, %v307
      %v328 = vmul.f32 %v257, %v307
      %v329 = vmul.f32 %v258, %v307
      %v330 = vmul.f32 %v259, %v307
      %v331 = vmul.f32 %v260, %v307
      %v332 = vmul.f32 %v261, %v307
      %v333 = vmul.f32 %v262, %v307
      %v334 = vmul.f32 %v263, %v307
      %v335 = vmul.f32 %v264, %v307
      %v336 = vmul.f32 %v265, %v307
      %v337 = vmul.f32 %v266, %v307
      %v338 = vmul.f32 %v267, %v307
      %v339 = vmul.f32 %v268, %v307
      %v340 = vmul.f32 %v269, %v307
      %v341 = vmul.f32 %v270, %v307
      %v342 = vmul.f32 %v271, %v307
      %v343 = vmul.f32 %v272, %v307
      %v344 = vmul.f32 %v273, %v307
      %v345 = vmul.f32 %v274, %v307
      %v346 = vmul.f32 %v275, %v307
      %v347 = vmul.f32 %v276, %v307
      %v348 = vmul.f32 %v277, %v307
      %v349 = vmul.f32 %v278, %v307
      %v350 = vmul.f32 %v279, %v307
      %v351 = vmul.f32 %v280, %v307
      %v352 = vmul.f32 %v281, %v307
      %v353 = vmul.f32 %v282, %v307
      %v354 = vmul.f32 %v283, %v307
      %v355 = vmul.f32 %v284, %v307
      %v356 = vmul.f32 %v285, %v307
      %v357 = vmul.f32 %v286, %v307
      %v358 = vmul.f32 %v287, %v307
      %v359 = vmul.f32 %v288, %v307
      %v360 = vmul.f32 %v289, %v307
      %v361 = vmul.f32 %v290, %v307
      %v362 = vmul.f32 %v291, %v307
      %v363 = vmul.f32 %v292, %v307
      %v364 = vmul.f32 %v293, %v307
      %v365 = vmul.f32 %v294, %v307
      %v366 = vmul.f32 %v295, %v307
      %v367 = vmul.f32 %v296, %v307
      %v368 = vmul.f32 %v297, %v307
      %v369 = vmul.f32 %v298, %v307
      %v370 = vmul.f32 %v299, %v307
      %v371 = vmul.f32 %v300, %v307
      %v372 = vmul.f32 %v301, %v307
      %v373 = vld [vmem:[%s227] sm:$0x1]
      %v375 = vlaneseq
      %v376 = vshrl.u32 %v375, 7
      %v377 = vsub.s32 0, %v376
      %v378 = vrot.slane %v373, %v377
      %v380 = vadd.f32 %v309, %v378
      %v381 = vadd.f32 %v310, %v378
      %v382 = vadd.f32 %v311, %v378
      %v383 = vadd.f32 %v312, %v378
      %v384 = vadd.f32 %v313, %v378
      %v385 = vadd.f32 %v314, %v378
      %v386 = vadd.f32 %v315, %v378
      %v387 = vadd.f32 %v316, %v378
      %v388 = vadd.f32 %v317, %v378
      %v389 = vadd.f32 %v318, %v378
      %v390 = vadd.f32 %v319, %v378
      %v391 = vadd.f32 %v320, %v378
      %v392 = vadd.f32 %v321, %v378
      %v393 = vadd.f32 %v322, %v378
      %v394 = vadd.f32 %v323, %v378
      %v395 = vadd.f32 %v324, %v378
      %v396 = vadd.f32 %v325, %v378
      %v397 = vadd.f32 %v326, %v378
      %v398 = vadd.f32 %v327, %v378
      %v399 = vadd.f32 %v328, %v378
      %v400 = vadd.f32 %v329, %v378
      %v401 = vadd.f32 %v330, %v378
      %v402 = vadd.f32 %v331, %v378
      %v403 = vadd.f32 %v332, %v378
      %v404 = vadd.f32 %v333, %v378
      %v405 = vadd.f32 %v334, %v378
      %v406 = vadd.f32 %v335, %v378
      %v407 = vadd.f32 %v336, %v378
      %v408 = vadd.f32 %v337, %v378
      %v409 = vadd.f32 %v338, %v378
      %v410 = vadd.f32 %v339, %v378
      %v411 = vadd.f32 %v340, %v378
      %v412 = vadd.f32 %v341, %v378
      %v413 = vadd.f32 %v342, %v378
      %v414 = vadd.f32 %v343, %v378
      %v415 = vadd.f32 %v344, %v378
      %v416 = vadd.f32 %v345, %v378
      %v417 = vadd.f32 %v346, %v378
      %v418 = vadd.f32 %v347, %v378
      %v419 = vadd.f32 %v348, %v378
      %v420 = vadd.f32 %v349, %v378
      %v421 = vadd.f32 %v350, %v378
      %v422 = vadd.f32 %v351, %v378
      %v423 = vadd.f32 %v352, %v378
      %v424 = vadd.f32 %v353, %v378
      %v425 = vadd.f32 %v354, %v378
      %v426 = vadd.f32 %v355, %v378
      %v427 = vadd.f32 %v356, %v378
      %v428 = vadd.f32 %v357, %v378
      %v429 = vadd.f32 %v358, %v378
      %v430 = vadd.f32 %v359, %v378
      %v431 = vadd.f32 %v360, %v378
      %v432 = vadd.f32 %v361, %v378
      %v433 = vadd.f32 %v362, %v378
      %v434 = vadd.f32 %v363, %v378
      %v435 = vadd.f32 %v364, %v378
      %v436 = vadd.f32 %v365, %v378
      %v437 = vadd.f32 %v366, %v378
      %v438 = vadd.f32 %v367, %v378
      %v439 = vadd.f32 %v368, %v378
      %v440 = vadd.f32 %v369, %v378
      %v441 = vadd.f32 %v370, %v378
      %v442 = vadd.f32 %v371, %v378
      %v443 = vadd.f32 %v372, %v378
      %v444 = vxor.u32 %v380, 2147483648
      %v445 = vxor.u32 %v381, 2147483648
      %v446 = vxor.u32 %v382, 2147483648
      %v447 = vxor.u32 %v383, 2147483648
      %v448 = vxor.u32 %v384, 2147483648
      %v449 = vxor.u32 %v385, 2147483648
      %v450 = vxor.u32 %v386, 2147483648
      %v451 = vxor.u32 %v387, 2147483648
      %v452 = vxor.u32 %v388, 2147483648
      %v453 = vxor.u32 %v389, 2147483648
      %v454 = vxor.u32 %v390, 2147483648
      %v455 = vxor.u32 %v391, 2147483648
      %v456 = vxor.u32 %v392, 2147483648
      %v457 = vxor.u32 %v393, 2147483648
      %v458 = vxor.u32 %v394, 2147483648
      %v459 = vxor.u32 %v395, 2147483648
      %v460 = vxor.u32 %v396, 2147483648
      %v461 = vxor.u32 %v397, 2147483648
      %v462 = vxor.u32 %v398, 2147483648
      %v463 = vxor.u32 %v399, 2147483648
      %v464 = vxor.u32 %v400, 2147483648
      %v465 = vxor.u32 %v401, 2147483648
      %v466 = vxor.u32 %v402, 2147483648
      %v467 = vxor.u32 %v403, 2147483648
      %v468 = vxor.u32 %v404, 2147483648
      %v469 = vxor.u32 %v405, 2147483648
      %v470 = vxor.u32 %v406, 2147483648
      %v471 = vxor.u32 %v407, 2147483648
      %v472 = vxor.u32 %v408, 2147483648
      %v473 = vxor.u32 %v409, 2147483648
      %v474 = vxor.u32 %v410, 2147483648
      %v475 = vxor.u32 %v411, 2147483648
      %v476 = vxor.u32 %v412, 2147483648
      %v477 = vxor.u32 %v413, 2147483648
      %v478 = vxor.u32 %v414, 2147483648
      %v479 = vxor.u32 %v415, 2147483648
      %v480 = vxor.u32 %v416, 2147483648
      %v481 = vxor.u32 %v417, 2147483648
      %v482 = vxor.u32 %v418, 2147483648
      %v483 = vxor.u32 %v419, 2147483648
      %v484 = vxor.u32 %v420, 2147483648
      %v485 = vxor.u32 %v421, 2147483648
      %v486 = vxor.u32 %v422, 2147483648
      %v487 = vxor.u32 %v423, 2147483648
      %v488 = vxor.u32 %v424, 2147483648
      %v489 = vxor.u32 %v425, 2147483648
      %v490 = vxor.u32 %v426, 2147483648
      %v491 = vxor.u32 %v427, 2147483648
      %v492 = vxor.u32 %v428, 2147483648
      %v493 = vxor.u32 %v429, 2147483648
      %v494 = vxor.u32 %v430, 2147483648
      %v495 = vxor.u32 %v431, 2147483648
      %v496 = vxor.u32 %v432, 2147483648
      %v497 = vxor.u32 %v433, 2147483648
      %v498 = vxor.u32 %v434, 2147483648
      %v499 = vxor.u32 %v435, 2147483648
      %v500 = vxor.u32 %v436, 2147483648
      %v501 = vxor.u32 %v437, 2147483648
      %v502 = vxor.u32 %v438, 2147483648
      %v503 = vxor.u32 %v439, 2147483648
      %v504 = vxor.u32 %v440, 2147483648
      %v505 = vxor.u32 %v441, 2147483648
      %v506 = vxor.u32 %v442, 2147483648
      %v507 = vxor.u32 %v443, 2147483648
      %v508 = vmul.f32 %v444, 1.442695
      %v509 = vpow.pop %v508
      %v510 = vmul.f32 %v445, 1.442695
      %v511 = vpow.pop %v510
      %v512 = vmul.f32 %v446, 1.442695
      %v513 = vpow.pop %v512
      %v514 = vmul.f32 %v447, 1.442695
      %v515 = vpow.pop %v514
      %v516 = vmul.f32 %v448, 1.442695
      %v517 = vpow.pop %v516
      %v518 = vmul.f32 %v449, 1.442695
      %v519 = vpow.pop %v518
      %v520 = vmul.f32 %v450, 1.442695
      %v521 = vpow.pop %v520
      %v522 = vmul.f32 %v451, 1.442695
      %v523 = vpow.pop %v522
      %v524 = vmul.f32 %v452, 1.442695
      %v525 = vpow.pop %v524
      %v526 = vmul.f32 %v453, 1.442695
      %v527 = vpow.pop %v526
      %v528 = vmul.f32 %v454, 1.442695
      %v529 = vpow.pop %v528
      %v530 = vmul.f32 %v455, 1.442695
      %v531 = vpow.pop %v530
      %v532 = vmul.f32 %v456, 1.442695
      %v533 = vpow.pop %v532
      %v534 = vmul.f32 %v457, 1.442695
      %v535 = vpow.pop %v534
      %v536 = vmul.f32 %v458, 1.442695
      %v537 = vpow.pop %v536
      %v538 = vmul.f32 %v459, 1.442695
      %v539 = vpow.pop %v538
      %v540 = vmul.f32 %v460, 1.442695
      %v541 = vpow.pop %v540
      %v542 = vmul.f32 %v461, 1.442695
      %v543 = vpow.pop %v542
      %v544 = vmul.f32 %v462, 1.442695
      %v545 = vpow.pop %v544
      %v546 = vmul.f32 %v463, 1.442695
      %v547 = vpow.pop %v546
      %v548 = vmul.f32 %v464, 1.442695
      %v549 = vpow.pop %v548
      %v550 = vmul.f32 %v465, 1.442695
      %v551 = vpow.pop %v550
      %v552 = vmul.f32 %v466, 1.442695
      %v553 = vpow.pop %v552
      %v554 = vmul.f32 %v467, 1.442695
      %v555 = vpow.pop %v554
      %v556 = vmul.f32 %v468, 1.442695
      %v557 = vpow.pop %v556
      %v558 = vmul.f32 %v469, 1.442695
      %v559 = vpow.pop %v558
      %v560 = vmul.f32 %v470, 1.442695
      %v561 = vpow.pop %v560
      %v562 = vmul.f32 %v471, 1.442695
      %v563 = vpow.pop %v562
      %v564 = vmul.f32 %v472, 1.442695
      %v565 = vpow.pop %v564
      %v566 = vmul.f32 %v473, 1.442695
      %v567 = vpow.pop %v566
      %v568 = vmul.f32 %v474, 1.442695
      %v569 = vpow.pop %v568
      %v570 = vmul.f32 %v475, 1.442695
      %v571 = vpow.pop %v570
      %v572 = vmul.f32 %v476, 1.442695
      %v573 = vpow.pop %v572
      %v574 = vmul.f32 %v477, 1.442695
      %v575 = vpow.pop %v574
      %v576 = vmul.f32 %v478, 1.442695
      %v577 = vpow.pop %v576
      %v578 = vmul.f32 %v479, 1.442695
      %v579 = vpow.pop %v578
      %v580 = vmul.f32 %v480, 1.442695
      %v581 = vpow.pop %v580
      %v582 = vmul.f32 %v481, 1.442695
      %v583 = vpow.pop %v582
      %v584 = vmul.f32 %v482, 1.442695
      %v585 = vpow.pop %v584
      %v586 = vmul.f32 %v483, 1.442695
      %v587 = vpow.pop %v586
      %v588 = vmul.f32 %v484, 1.442695
      %v589 = vpow.pop %v588
      %v590 = vmul.f32 %v485, 1.442695
      %v591 = vpow.pop %v590
      %v592 = vmul.f32 %v486, 1.442695
      %v593 = vpow.pop %v592
      %v594 = vmul.f32 %v487, 1.442695
      %v595 = vpow.pop %v594
      %v596 = vmul.f32 %v488, 1.442695
      %v597 = vpow.pop %v596
      %v598 = vmul.f32 %v489, 1.442695
      %v599 = vpow.pop %v598
      %v600 = vmul.f32 %v490, 1.442695
      %v601 = vpow.pop %v600
      %v602 = vmul.f32 %v491, 1.442695
      %v603 = vpow.pop %v602
      %v604 = vmul.f32 %v492, 1.442695
      %v605 = vpow.pop %v604
      %v606 = vmul.f32 %v493, 1.442695
      %v607 = vpow.pop %v606
      %v608 = vmul.f32 %v494, 1.442695
      %v609 = vpow.pop %v608
      %v610 = vmul.f32 %v495, 1.442695
      %v611 = vpow.pop %v610
      %v612 = vmul.f32 %v496, 1.442695
      %v613 = vpow.pop %v612
      %v614 = vmul.f32 %v497, 1.442695
      %v615 = vpow.pop %v614
      %v616 = vmul.f32 %v498, 1.442695
      %v617 = vpow.pop %v616
      %v618 = vmul.f32 %v499, 1.442695
      %v619 = vpow.pop %v618
      %v620 = vmul.f32 %v500, 1.442695
      %v621 = vpow.pop %v620
      %v622 = vmul.f32 %v501, 1.442695
      %v623 = vpow.pop %v622
      %v624 = vmul.f32 %v502, 1.442695
      %v625 = vpow.pop %v624
      %v626 = vmul.f32 %v503, 1.442695
      %v627 = vpow.pop %v626
      %v628 = vmul.f32 %v504, 1.442695
      %v629 = vpow.pop %v628
      %v630 = vmul.f32 %v505, 1.442695
      %v631 = vpow.pop %v630
      %v632 = vmul.f32 %v506, 1.442695
      %v633 = vpow.pop %v632
      %v634 = vmul.f32 %v507, 1.442695
      %v635 = vpow.pop %v634
      %v636 = vadd.f32 %v509, 1.0
      %v637 = vadd.f32 %v511, 1.0
      %v638 = vadd.f32 %v513, 1.0
      %v639 = vadd.f32 %v515, 1.0
      %v640 = vadd.f32 %v517, 1.0
      %v641 = vadd.f32 %v519, 1.0
      %v642 = vadd.f32 %v521, 1.0
      %v643 = vadd.f32 %v523, 1.0
      %v644 = vadd.f32 %v525, 1.0
      %v645 = vadd.f32 %v527, 1.0
      %v646 = vadd.f32 %v529, 1.0
      %v647 = vadd.f32 %v531, 1.0
      %v648 = vadd.f32 %v533, 1.0
      %v649 = vadd.f32 %v535, 1.0
      %v650 = vadd.f32 %v537, 1.0
      %v651 = vadd.f32 %v539, 1.0
      %v652 = vadd.f32 %v541, 1.0
      %v653 = vadd.f32 %v543, 1.0
      %v654 = vadd.f32 %v545, 1.0
      %v655 = vadd.f32 %v547, 1.0
      %v656 = vadd.f32 %v549, 1.0
      %v657 = vadd.f32 %v551, 1.0
      %v658 = vadd.f32 %v553, 1.0
      %v659 = vadd.f32 %v555, 1.0
      %v660 = vadd.f32 %v557, 1.0
      %v661 = vadd.f32 %v559, 1.0
      %v662 = vadd.f32 %v561, 1.0
      %v663 = vadd.f32 %v563, 1.0
      %v664 = vadd.f32 %v565, 1.0
      %v665 = vadd.f32 %v567, 1.0
      %v666 = vadd.f32 %v569, 1.0
      %v667 = vadd.f32 %v571, 1.0
      %v668 = vadd.f32 %v573, 1.0
      %v669 = vadd.f32 %v575, 1.0
      %v670 = vadd.f32 %v577, 1.0
      %v671 = vadd.f32 %v579, 1.0
      %v672 = vadd.f32 %v581, 1.0
      %v673 = vadd.f32 %v583, 1.0
      %v674 = vadd.f32 %v585, 1.0
      %v675 = vadd.f32 %v587, 1.0
      %v676 = vadd.f32 %v589, 1.0
      %v677 = vadd.f32 %v591, 1.0
      %v678 = vadd.f32 %v593, 1.0
      %v679 = vadd.f32 %v595, 1.0
      %v680 = vadd.f32 %v597, 1.0
      %v681 = vadd.f32 %v599, 1.0
      %v682 = vadd.f32 %v601, 1.0
      %v683 = vadd.f32 %v603, 1.0
      %v684 = vadd.f32 %v605, 1.0
      %v685 = vadd.f32 %v607, 1.0
      %v686 = vadd.f32 %v609, 1.0
      %v687 = vadd.f32 %v611, 1.0
      %v688 = vadd.f32 %v613, 1.0
      %v689 = vadd.f32 %v615, 1.0
      %v690 = vadd.f32 %v617, 1.0
      %v691 = vadd.f32 %v619, 1.0
      %v692 = vadd.f32 %v621, 1.0
      %v693 = vadd.f32 %v623, 1.0
      %v694 = vadd.f32 %v625, 1.0
      %v695 = vadd.f32 %v627, 1.0
      %v696 = vadd.f32 %v629, 1.0
      %v697 = vadd.f32 %v631, 1.0
      %v698 = vadd.f32 %v633, 1.0
      %v699 = vadd.f32 %v635, 1.0
      %v700 = vrcp.pop %v636
      %v701 = vmul.f32 1.0, %v700
      %v702 = vrcp.pop %v637
      %v703 = vmul.f32 1.0, %v702
      %v704 = vrcp.pop %v638
      %v705 = vmul.f32 1.0, %v704
      %v706 = vrcp.pop %v639
      %v707 = vmul.f32 1.0, %v706
      %v708 = vrcp.pop %v640
      %v709 = vmul.f32 1.0, %v708
      %v710 = vrcp.pop %v641
      %v711 = vmul.f32 1.0, %v710
      %v712 = vrcp.pop %v642
      %v713 = vmul.f32 1.0, %v712
      %v714 = vrcp.pop %v643
      %v715 = vmul.f32 1.0, %v714
      %v716 = vrcp.pop %v644
      %v717 = vmul.f32 1.0, %v716
      %v718 = vrcp.pop %v645
      %v719 = vmul.f32 1.0, %v718
      %v720 = vrcp.pop %v646
      %v721 = vmul.f32 1.0, %v720
      %v722 = vrcp.pop %v647
      %v723 = vmul.f32 1.0, %v722
      %v724 = vrcp.pop %v648
      %v725 = vmul.f32 1.0, %v724
      %v726 = vrcp.pop %v649
      %v727 = vmul.f32 1.0, %v726
      %v728 = vrcp.pop %v650
      %v729 = vmul.f32 1.0, %v728
      %v730 = vrcp.pop %v651
      %v731 = vmul.f32 1.0, %v730
      %v732 = vrcp.pop %v652
      %v733 = vmul.f32 1.0, %v732
      %v734 = vrcp.pop %v653
      %v735 = vmul.f32 1.0, %v734
      %v736 = vrcp.pop %v654
      %v737 = vmul.f32 1.0, %v736
      %v738 = vrcp.pop %v655
      %v739 = vmul.f32 1.0, %v738
      %v740 = vrcp.pop %v656
      %v741 = vmul.f32 1.0, %v740
      %v742 = vrcp.pop %v657
      %v743 = vmul.f32 1.0, %v742
      %v744 = vrcp.pop %v658
      %v745 = vmul.f32 1.0, %v744
      %v746 = vrcp.pop %v659
      %v747 = vmul.f32 1.0, %v746
      %v748 = vrcp.pop %v660
      %v749 = vmul.f32 1.0, %v748
      %v750 = vrcp.pop %v661
      %v751 = vmul.f32 1.0, %v750
      %v752 = vrcp.pop %v662
      %v753 = vmul.f32 1.0, %v752
      %v754 = vrcp.pop %v663
      %v755 = vmul.f32 1.0, %v754
      %v756 = vrcp.pop %v664
      %v757 = vmul.f32 1.0, %v756
      %v758 = vrcp.pop %v665
      %v759 = vmul.f32 1.0, %v758
      %v760 = vrcp.pop %v666
      %v761 = vmul.f32 1.0, %v760
      %v762 = vrcp.pop %v667
      %v763 = vmul.f32 1.0, %v762
      %v764 = vrcp.pop %v668
      %v765 = vmul.f32 1.0, %v764
      %v766 = vrcp.pop %v669
      %v767 = vmul.f32 1.0, %v766
      %v768 = vrcp.pop %v670
      %v769 = vmul.f32 1.0, %v768
      %v770 = vrcp.pop %v671
      %v771 = vmul.f32 1.0, %v770
      %v772 = vrcp.pop %v672
      %v773 = vmul.f32 1.0, %v772
      %v774 = vrcp.pop %v673
      %v775 = vmul.f32 1.0, %v774
      %v776 = vrcp.pop %v674
      %v777 = vmul.f32 1.0, %v776
      %v778 = vrcp.pop %v675
      %v779 = vmul.f32 1.0, %v778
      %v780 = vrcp.pop %v676
      %v781 = vmul.f32 1.0, %v780
      %v782 = vrcp.pop %v677
      %v783 = vmul.f32 1.0, %v782
      %v784 = vrcp.pop %v678
      %v785 = vmul.f32 1.0, %v784
      %v786 = vrcp.pop %v679
      %v787 = vmul.f32 1.0, %v786
      %v788 = vrcp.pop %v680
      %v789 = vmul.f32 1.0, %v788
      %v790 = vrcp.pop %v681
      %v791 = vmul.f32 1.0, %v790
      %v792 = vrcp.pop %v682
      %v793 = vmul.f32 1.0, %v792
      %v794 = vrcp.pop %v683
      %v795 = vmul.f32 1.0, %v794
      %v796 = vrcp.pop %v684
      %v797 = vmul.f32 1.0, %v796
      %v798 = vrcp.pop %v685
      %v799 = vmul.f32 1.0, %v798
      %v800 = vrcp.pop %v686
      %v801 = vmul.f32 1.0, %v800
      %v802 = vrcp.pop %v687
      %v803 = vmul.f32 1.0, %v802
      %v804 = vrcp.pop %v688
      %v805 = vmul.f32 1.0, %v804
      %v806 = vrcp.pop %v689
      %v807 = vmul.f32 1.0, %v806
      %v808 = vrcp.pop %v690
      %v809 = vmul.f32 1.0, %v808
      %v810 = vrcp.pop %v691
      %v811 = vmul.f32 1.0, %v810
      %v812 = vrcp.pop %v692
      %v813 = vmul.f32 1.0, %v812
      %v814 = vrcp.pop %v693
      %v815 = vmul.f32 1.0, %v814
      %v816 = vrcp.pop %v694
      %v817 = vmul.f32 1.0, %v816
      %v818 = vrcp.pop %v695
      %v819 = vmul.f32 1.0, %v818
      %v820 = vrcp.pop %v696
      %v821 = vmul.f32 1.0, %v820
      %v822 = vrcp.pop %v697
      %v823 = vmul.f32 1.0, %v822
      %v824 = vrcp.pop %v698
      %v825 = vmul.f32 1.0, %v824
      %v826 = vrcp.pop %v699
      %v827 = vmul.f32 1.0, %v826
      %v828 = vmul.f32 %v380, %v701
      %v829 = vmul.f32 %v381, %v703
      %v830 = vmul.f32 %v382, %v705
      %v831 = vmul.f32 %v383, %v707
      %v832 = vmul.f32 %v384, %v709
      %v833 = vmul.f32 %v385, %v711
      %v834 = vmul.f32 %v386, %v713
      %v835 = vmul.f32 %v387, %v715
      %v836 = vmul.f32 %v388, %v717
      %v837 = vmul.f32 %v389, %v719
      %v838 = vmul.f32 %v390, %v721
      %v839 = vmul.f32 %v391, %v723
      %v840 = vmul.f32 %v392, %v725
      %v841 = vmul.f32 %v393, %v727
      %v842 = vmul.f32 %v394, %v729
      %v843 = vmul.f32 %v395, %v731
      %v844 = vmul.f32 %v396, %v733
      %v845 = vmul.f32 %v397, %v735
      %v846 = vmul.f32 %v398, %v737
      %v847 = vmul.f32 %v399, %v739
      %v848 = vmul.f32 %v400, %v741
      %v849 = vmul.f32 %v401, %v743
      %v850 = vmul.f32 %v402, %v745
      %v851 = vmul.f32 %v403, %v747
      %v852 = vmul.f32 %v404, %v749
      %v853 = vmul.f32 %v405, %v751
      %v854 = vmul.f32 %v406, %v753
      %v855 = vmul.f32 %v407, %v755
      %v856 = vmul.f32 %v408, %v757
      %v857 = vmul.f32 %v409, %v759
      %v858 = vmul.f32 %v410, %v761
      %v859 = vmul.f32 %v411, %v763
      %v860 = vmul.f32 %v412, %v765
      %v861 = vmul.f32 %v413, %v767
      %v862 = vmul.f32 %v414, %v769
      %v863 = vmul.f32 %v415, %v771
      %v864 = vmul.f32 %v416, %v773
      %v865 = vmul.f32 %v417, %v775
      %v866 = vmul.f32 %v418, %v777
      %v867 = vmul.f32 %v419, %v779
      %v868 = vmul.f32 %v420, %v781
      %v869 = vmul.f32 %v421, %v783
      %v870 = vmul.f32 %v422, %v785
      %v871 = vmul.f32 %v423, %v787
      %v872 = vmul.f32 %v424, %v789
      %v873 = vmul.f32 %v425, %v791
      %v874 = vmul.f32 %v426, %v793
      %v875 = vmul.f32 %v427, %v795
      %v876 = vmul.f32 %v428, %v797
      %v877 = vmul.f32 %v429, %v799
      %v878 = vmul.f32 %v430, %v801
      %v879 = vmul.f32 %v431, %v803
      %v880 = vmul.f32 %v432, %v805
      %v881 = vmul.f32 %v433, %v807
      %v882 = vmul.f32 %v434, %v809
      %v883 = vmul.f32 %v435, %v811
      %v884 = vmul.f32 %v436, %v813
      %v885 = vmul.f32 %v437, %v815
      %v886 = vmul.f32 %v438, %v817
      %v887 = vmul.f32 %v439, %v819
      %v888 = vmul.f32 %v440, %v821
      %v889 = vmul.f32 %v441, %v823
      %v890 = vmul.f32 %v442, %v825
      %v891 = vmul.f32 %v443, %v827
      %v892 = vpack.c.bf16 %v829, %v828
      %v893 = vpack.c.bf16 %v831, %v830
      %v894 = vpack.c.bf16 %v833, %v832
      %v895 = vpack.c.bf16 %v835, %v834
      %v896 = vpack.c.bf16 %v837, %v836
      %v897 = vpack.c.bf16 %v839, %v838
      %v898 = vpack.c.bf16 %v841, %v840
      %v899 = vpack.c.bf16 %v843, %v842
      %v900 = vpack.c.bf16 %v845, %v844
      %v901 = vpack.c.bf16 %v847, %v846
      %v902 = vpack.c.bf16 %v849, %v848
      %v903 = vpack.c.bf16 %v851, %v850
      %v904 = vpack.c.bf16 %v853, %v852
      %v905 = vpack.c.bf16 %v855, %v854
      %v906 = vpack.c.bf16 %v857, %v856
      %v907 = vpack.c.bf16 %v859, %v858
      %v908 = vpack.c.bf16 %v861, %v860
      %v909 = vpack.c.bf16 %v863, %v862
      %v910 = vpack.c.bf16 %v865, %v864
      %v911 = vpack.c.bf16 %v867, %v866
      %v912 = vpack.c.bf16 %v869, %v868
      %v913 = vpack.c.bf16 %v871, %v870
      %v914 = vpack.c.bf16 %v873, %v872
      %v915 = vpack.c.bf16 %v875, %v874
      %v916 = vpack.c.bf16 %v877, %v876
      %v917 = vpack.c.bf16 %v879, %v878
      %v918 = vpack.c.bf16 %v881, %v880
      %v919 = vpack.c.bf16 %v883, %v882
      %v920 = vpack.c.bf16 %v885, %v884
      %v921 = vpack.c.bf16 %v887, %v886
      %v922 = vpack.c.bf16 %v889, %v888
      %v923 = vpack.c.bf16 %v891, %v890
      %v956 = vunpack.c.l.b16 %v892
      %v957 = vunpack.c.h.b16 %v892
      %v958 = vunpack.c.l.b16 %v893
      %v959 = vunpack.c.h.b16 %v893
      %v960 = vunpack.c.l.b16 %v894
      %v961 = vunpack.c.h.b16 %v894
      %v962 = vunpack.c.l.b16 %v895
      %v963 = vunpack.c.h.b16 %v895
      %v964 = vunpack.c.l.b16 %v896
      %v965 = vunpack.c.h.b16 %v896
      %v966 = vunpack.c.l.b16 %v897
      %v967 = vunpack.c.h.b16 %v897
      %v968 = vunpack.c.l.b16 %v898
      %v969 = vunpack.c.h.b16 %v898
      %v970 = vunpack.c.l.b16 %v899
      %v971 = vunpack.c.h.b16 %v899
      %v972 = vunpack.c.l.b16 %v900
      %v973 = vunpack.c.h.b16 %v900
      %v974 = vunpack.c.l.b16 %v901
      %v975 = vunpack.c.h.b16 %v901
      %v976 = vunpack.c.l.b16 %v902
      %v977 = vunpack.c.h.b16 %v902
      %v978 = vunpack.c.l.b16 %v903
      %v979 = vunpack.c.h.b16 %v903
      %v980 = vunpack.c.l.b16 %v904
      %v981 = vunpack.c.h.b16 %v904
      %v982 = vunpack.c.l.b16 %v905
      %v983 = vunpack.c.h.b16 %v905
      %v984 = vunpack.c.l.b16 %v906
      %v985 = vunpack.c.h.b16 %v906
      %v986 = vunpack.c.l.b16 %v907
      %v987 = vunpack.c.h.b16 %v907
      %v988 = vunpack.c.l.b16 %v908
      %v989 = vunpack.c.h.b16 %v908
      %v990 = vunpack.c.l.b16 %v909
      %v991 = vunpack.c.h.b16 %v909
      %v992 = vunpack.c.l.b16 %v910
      %v993 = vunpack.c.h.b16 %v910
      %v994 = vunpack.c.l.b16 %v911
      %v995 = vunpack.c.h.b16 %v911
      %v996 = vunpack.c.l.b16 %v912
      %v997 = vunpack.c.h.b16 %v912
      %v998 = vunpack.c.l.b16 %v913
      %v999 = vunpack.c.h.b16 %v913
      %v1000 = vunpack.c.l.b16 %v914
      %v1001 = vunpack.c.h.b16 %v914
      %v1002 = vunpack.c.l.b16 %v915
      %v1003 = vunpack.c.h.b16 %v915
      %v1004 = vunpack.c.l.b16 %v916
      %v1005 = vunpack.c.h.b16 %v916
      %v1006 = vunpack.c.l.b16 %v917
      %v1007 = vunpack.c.h.b16 %v917
      %v1008 = vunpack.c.l.b16 %v918
      %v1009 = vunpack.c.h.b16 %v918
      %v1010 = vunpack.c.l.b16 %v919
      %v1011 = vunpack.c.h.b16 %v919
      %v1012 = vunpack.c.l.b16 %v920
      %v1013 = vunpack.c.h.b16 %v920
      %v1014 = vunpack.c.l.b16 %v921
      %v1015 = vunpack.c.h.b16 %v921
      %v1016 = vunpack.c.l.b16 %v922
      %v1017 = vunpack.c.h.b16 %v922
      %v1018 = vunpack.c.l.b16 %v923
      %v1019 = vunpack.c.h.b16 %v923
      %v1020 = vpack.c.b16 %v956, %v956
      %v1021 = vpack.c.b16 %v957, %v957
      %v1022 = vpack.c.b16 %v958, %v958
      %v1023 = vpack.c.b16 %v959, %v959
      %v1024 = vpack.c.b16 %v960, %v960
      %v1025 = vpack.c.b16 %v961, %v961
      %v1026 = vpack.c.b16 %v962, %v962
      %v1027 = vpack.c.b16 %v963, %v963
      %v1028 = vpack.c.b16 %v964, %v964
      %v1029 = vpack.c.b16 %v965, %v965
      %v1030 = vpack.c.b16 %v966, %v966
      %v1031 = vpack.c.b16 %v967, %v967
      %v1032 = vpack.c.b16 %v968, %v968
      %v1033 = vpack.c.b16 %v969, %v969
      %v1034 = vpack.c.b16 %v970, %v970
      %v1035 = vpack.c.b16 %v971, %v971
      %v1036 = vpack.c.b16 %v972, %v972
      %v1037 = vpack.c.b16 %v973, %v973
      %v1038 = vpack.c.b16 %v974, %v974
      %v1039 = vpack.c.b16 %v975, %v975
      %v1040 = vpack.c.b16 %v976, %v976
      %v1041 = vpack.c.b16 %v977, %v977
      %v1042 = vpack.c.b16 %v978, %v978
      %v1043 = vpack.c.b16 %v979, %v979
      %v1044 = vpack.c.b16 %v980, %v980
      %v1045 = vpack.c.b16 %v981, %v981
      %v1046 = vpack.c.b16 %v982, %v982
      %v1047 = vpack.c.b16 %v983, %v983
      %v1048 = vpack.c.b16 %v984, %v984
      %v1049 = vpack.c.b16 %v985, %v985
      %v1050 = vpack.c.b16 %v986, %v986
      %v1051 = vpack.c.b16 %v987, %v987
      %v1052 = vpack.c.b16 %v988, %v988
      %v1053 = vpack.c.b16 %v989, %v989
      %v1054 = vpack.c.b16 %v990, %v990
      %v1055 = vpack.c.b16 %v991, %v991
      %v1056 = vpack.c.b16 %v992, %v992
      %v1057 = vpack.c.b16 %v993, %v993
      %v1058 = vpack.c.b16 %v994, %v994
      %v1059 = vpack.c.b16 %v995, %v995
      %v1060 = vpack.c.b16 %v996, %v996
      %v1061 = vpack.c.b16 %v997, %v997
      %v1062 = vpack.c.b16 %v998, %v998
      %v1063 = vpack.c.b16 %v999, %v999
      %v1064 = vpack.c.b16 %v1000, %v1000
      %v1065 = vpack.c.b16 %v1001, %v1001
      %v1066 = vpack.c.b16 %v1002, %v1002
      %v1067 = vpack.c.b16 %v1003, %v1003
      %v1068 = vpack.c.b16 %v1004, %v1004
      %v1069 = vpack.c.b16 %v1005, %v1005
      %v1070 = vpack.c.b16 %v1006, %v1006
      %v1071 = vpack.c.b16 %v1007, %v1007
      %v1072 = vpack.c.b16 %v1008, %v1008
      %v1073 = vpack.c.b16 %v1009, %v1009
      %v1074 = vpack.c.b16 %v1010, %v1010
      %v1075 = vpack.c.b16 %v1011, %v1011
      %v1076 = vpack.c.b16 %v1012, %v1012
      %v1077 = vpack.c.b16 %v1013, %v1013
      %v1078 = vpack.c.b16 %v1014, %v1014
      %v1079 = vpack.c.b16 %v1015, %v1015
      %v1080 = vpack.c.b16 %v1016, %v1016
      %v1081 = vpack.c.b16 %v1017, %v1017
      %v1082 = vpack.c.b16 %v1018, %v1018
      %v1083 = vpack.c.b16 %v1019, %v1019
      %vm1148 = vcmask 27648
      %1149 = vst.msk [vmem:[%s236] sm:$0xf] %vm1148, %v1020
      %1150 = vst.msk [vmem:[%s236 + $0x4] sm:$0xf] %vm1148, %v1021
      %1151 = vst.msk [vmem:[%s236 + $0x8] sm:$0xf] %vm1148, %v1022
      %1152 = vst.msk [vmem:[%s236 + $0xc] sm:$0xf] %vm1148, %v1023
      %1153 = vst.msk [vmem:[%s236 + $0x10] sm:$0xf] %vm1148, %v1024
      %1154 = vst.msk [vmem:[%s236 + $0x14] sm:$0xf] %vm1148, %v1025
      %1155 = vst.msk [vmem:[%s236 + $0x18] sm:$0xf] %vm1148, %v1026
      %1156 = vst.msk [vmem:[%s236 + $0x1c] sm:$0xf] %vm1148, %v1027
      %1157 = vst.msk [vmem:[%s236 + $0x20] sm:$0xf] %vm1148, %v1028
      %1158 = vst.msk [vmem:[%s236 + $0x24] sm:$0xf] %vm1148, %v1029
      %1159 = vst.msk [vmem:[%s236 + $0x28] sm:$0xf] %vm1148, %v1030
      %1160 = vst.msk [vmem:[%s236 + $0x2c] sm:$0xf] %vm1148, %v1031
      %1161 = vst.msk [vmem:[%s236 + $0x30] sm:$0xf] %vm1148, %v1032
      %1162 = vst.msk [vmem:[%s236 + $0x34] sm:$0xf] %vm1148, %v1033
      %1163 = vst.msk [vmem:[%s236 + $0x38] sm:$0xf] %vm1148, %v1034
      %1164 = vst.msk [vmem:[%s236 + $0x3c] sm:$0xf] %vm1148, %v1035
      %1165 = vst.msk [vmem:[%s236 + $0x40] sm:$0xf] %vm1148, %v1036
      %1166 = vst.msk [vmem:[%s236 + $0x44] sm:$0xf] %vm1148, %v1037
      %1167 = vst.msk [vmem:[%s236 + $0x48] sm:$0xf] %vm1148, %v1038
      %1168 = vst.msk [vmem:[%s236 + $0x4c] sm:$0xf] %vm1148, %v1039
      %1169 = vst.msk [vmem:[%s236 + $0x50] sm:$0xf] %vm1148, %v1040
      %1170 = vst.msk [vmem:[%s236 + $0x54] sm:$0xf] %vm1148, %v1041
      %1171 = vst.msk [vmem:[%s236 + $0x58] sm:$0xf] %vm1148, %v1042
      %1172 = vst.msk [vmem:[%s236 + $0x5c] sm:$0xf] %vm1148, %v1043
      %1173 = vst.msk [vmem:[%s236 + $0x60] sm:$0xf] %vm1148, %v1044
      %1174 = vst.msk [vmem:[%s236 + $0x64] sm:$0xf] %vm1148, %v1045
      %1175 = vst.msk [vmem:[%s236 + $0x68] sm:$0xf] %vm1148, %v1046
      %1176 = vst.msk [vmem:[%s236 + $0x6c] sm:$0xf] %vm1148, %v1047
      %1177 = vst.msk [vmem:[%s236 + $0x70] sm:$0xf] %vm1148, %v1048
      %1178 = vst.msk [vmem:[%s236 + $0x74] sm:$0xf] %vm1148, %v1049
      %1179 = vst.msk [vmem:[%s236 + $0x78] sm:$0xf] %vm1148, %v1050
      %1180 = vst.msk [vmem:[%s236 + $0x7c] sm:$0xf] %vm1148, %v1051
      %1181 = vst.msk [vmem:[%s236 + $0x80] sm:$0xf] %vm1148, %v1052
      %1182 = vst.msk [vmem:[%s236 + $0x84] sm:$0xf] %vm1148, %v1053
      %1183 = vst.msk [vmem:[%s236 + $0x88] sm:$0xf] %vm1148, %v1054
      %1184 = vst.msk [vmem:[%s236 + $0x8c] sm:$0xf] %vm1148, %v1055
      %1185 = vst.msk [vmem:[%s236 + $0x90] sm:$0xf] %vm1148, %v1056
      %1186 = vst.msk [vmem:[%s236 + $0x94] sm:$0xf] %vm1148, %v1057
      %1187 = vst.msk [vmem:[%s236 + $0x98] sm:$0xf] %vm1148, %v1058
      %1188 = vst.msk [vmem:[%s236 + $0x9c] sm:$0xf] %vm1148, %v1059
      %1189 = vst.msk [vmem:[%s236 + $0xa0] sm:$0xf] %vm1148, %v1060
      %1190 = vst.msk [vmem:[%s236 + $0xa4] sm:$0xf] %vm1148, %v1061
      %1191 = vst.msk [vmem:[%s236 + $0xa8] sm:$0xf] %vm1148, %v1062
      %1192 = vst.msk [vmem:[%s236 + $0xac] sm:$0xf] %vm1148, %v1063
      %1193 = vst.msk [vmem:[%s236 + $0xb0] sm:$0xf] %vm1148, %v1064
      %1194 = vst.msk [vmem:[%s236 + $0xb4] sm:$0xf] %vm1148, %v1065
      %1195 = vst.msk [vmem:[%s236 + $0xb8] sm:$0xf] %vm1148, %v1066
      %1196 = vst.msk [vmem:[%s236 + $0xbc] sm:$0xf] %vm1148, %v1067
      %1197 = vst.msk [vmem:[%s236 + $0xc0] sm:$0xf] %vm1148, %v1068
      %1198 = vst.msk [vmem:[%s236 + $0xc4] sm:$0xf] %vm1148, %v1069
      %1199 = vst.msk [vmem:[%s236 + $0xc8] sm:$0xf] %vm1148, %v1070
      %1200 = vst.msk [vmem:[%s236 + $0xcc] sm:$0xf] %vm1148, %v1071
      %1201 = vst.msk [vmem:[%s236 + $0xd0] sm:$0xf] %vm1148, %v1072
      %1202 = vst.msk [vmem:[%s236 + $0xd4] sm:$0xf] %vm1148, %v1073
      %1203 = vst.msk [vmem:[%s236 + $0xd8] sm:$0xf] %vm1148, %v1074
      %1204 = vst.msk [vmem:[%s236 + $0xdc] sm:$0xf] %vm1148, %v1075
      %1205 = vst.msk [vmem:[%s236 + $0xe0] sm:$0xf] %vm1148, %v1076
      %1206 = vst.msk [vmem:[%s236 + $0xe4] sm:$0xf] %vm1148, %v1077
      %1207 = vst.msk [vmem:[%s236 + $0xe8] sm:$0xf] %vm1148, %v1078
      %1208 = vst.msk [vmem:[%s236 + $0xec] sm:$0xf] %vm1148, %v1079
      %1209 = vst.msk [vmem:[%s236 + $0xf0] sm:$0xf] %vm1148, %v1080
      %1210 = vst.msk [vmem:[%s236 + $0xf4] sm:$0xf] %vm1148, %v1081
      %1211 = vst.msk [vmem:[%s236 + $0xf8] sm:$0xf] %vm1148, %v1082
      %1212 = vst.msk [vmem:[%s236 + $0xfc] sm:$0xf] %vm1148, %v1083
      %s1213 = smul.u32 64, %s19
      %p1214 = scmp.lt.s32.totalorder %s18, 1
      %s1215 = scalar_select %p1214, %s18, 1
      %p1216 = scmp.lt.s32.totalorder %s1213, 63
      %s1217 = scalar_select %p1216, %s1213, 63
      %s1218 = smul.addr %s1215, 64
      %s1219 = sadd.s32 %s1217, %s1218
      %s1220 = smul.addr %s1219, 4
      %s1221 = scalar_lea.vmem %s3, %s1220
      // Predicated region
      $region33: #{resnet_block_forward.7} parent=31 // pred_check
        %p1222 = pneg %p126
      $region34: #{resnet_block_forward.7} parent=31 // pred_check_branch
        %1224 = sbr.rel (%p1222) target = $region36
      $region35: #{resnet_block_forward.7} parent=31 // pred_region
        %s1225 = smul.u32 64, %s19
      $region36: #{resnet_block_forward.7} parent=31 // pred_fallthru
        _
    $region32: #{resnet_block_forward.7} parent=5 // pred_fallthru
      _
    %p1226 = scmp.le.s32.totalorder 2, %s9
    // Predicated region
    $region37: #{resnet_block_forward.7} parent=5 // pred_check
      %p1227 = pneg %p1226
    $region38: #{resnet_block_forward.7} parent=5 // pred_check_branch
      %1229 = sbr.rel (%p1227) target = $region40
    $region39: #{resnet_block_forward.7} parent=5 // pred_region
      %s1230 = ssub.s32 %s9, 2
      // Predicated region
      $region41: #{resnet_block_forward.7} parent=39 // pred_check
        %p1231 = pneg %p132
      $region42: #{resnet_block_forward.7} parent=39 // pred_check_branch
        %1233 = sbr.rel (%p1231) target = $region44
      $region43: #{resnet_block_forward.7} parent=39 // pred_region
        %s1234 = smul.u32 64, %s21
        %p1235 = scmp.lt.s32.totalorder %s20, 1
        %s1236 = scalar_select %p1235, %s20, 1
        %p1237 = scmp.lt.s32.totalorder %s1234, 63
        %s1238 = scalar_select %p1237, %s1234, 63
        %s1239 = smul.addr %s1236, 64
        %s1240 = sadd.s32 %s1238, %s1239
        %s1241 = smul.addr %s1240, 4
        %s1242 = scalar_lea.vmem %s3, %s1241
      $region44: #{resnet_block_forward.7} parent=39 // pred_fallthru
        _
    $region40: #{resnet_block_forward.7} parent=5 // pred_fallthru
      _
  $region6: #{resnet_block_forward.7} parent=0 // loop_footer
    %s13 = sadd.s32 1, %s9
  $region7: #{resnet_block_forward.7} parent=0 // loop_footer_branch
    %8 = sbr.rel target = $region3
  $region8: #{resnet_block_forward.7} parent=0 // loop_exit
    _

// kernel: resnet_block_forward.8
$region0: #{resnet_block_forward.8}
  #allocation0 [shape = 'u32[]', space=smem, size = 0x4, offset = 0x4, fixed_abs, tag = 'smem constant byte address 0x4 - core index']
  #allocation1 [shape = 'u32[144,128]{1,0:T(1,128)}', space=vmem, size = 0x12000, scoped, tag = 'internal scratch']
  #allocation2 [shape = 'f32[80,8]{1,0:T(8,128)}', space=vmem, size = 0xa000, scoped, tag = 'scratch operand']
  %s0 = inlined_call_operand.vmem [shape: bf16[2,10,110,4], index: 0, kind: input, shape index: {}]
  %s1 = inlined_call_operand.vmem [shape: bf16[27,4,8], index: 1, kind: input, shape index: {}]
  %s2 = inlined_call_operand.vmem [shape: f32[1,8], index: 2, kind: input, shape index: {}]
  %s3 = inlined_call_operand.vmem [shape: f32[2,8,80,8], index: 3, kind: output, shape index: {}]
  %s4 = sld [smem:[#allocation0]]
  $region53: #{resnet_block_forward.8} parent=0
    _
  %s6 = ssub.s32 1, %s4
  %s7 = scalar_select 0, %s6, %s4
  loop: start=0, step=1, limit=50
  $region2: #{resnet_block_forward.8} parent=0 // loop_pre_header
    _
  $region3: #{resnet_block_forward.8} parent=0 // loop_header
    %s9 = sphi 0, %s13
    %p10 = scmp.ge.s32.totalorder %s9, 50
    %s16 = sphi 0, %s35
    %s17 = sphi 0, %s31
    %s18 = sphi 0, %s27
    %s19 = sphi 0, %s16
    %s20 = sphi 0, %s17
    %s21 = sphi 0, %s18
    %s22 = sphi 0, %s19
    %s23 = sphi 0, %s20
    %s24 = sphi 0, %s21
    %s42 = sphi 0, %s44
    %s45 = sphi 0, %s42
    %s46 = sphi 0, %s45
    %s62 = sphi 0, %s46
    %s68 = sphi 0, %s70
    %s71 = sphi 0, %s68
    %s72 = sphi 0, %s71
    %s88 = sphi 0, %s72
    %s92 = sphi 0, %s92
    %s94 = sphi 0, %s92
    %s95 = sphi 0, %s94
    %s109 = sphi 0, %s95
    %s117 = sphi 0, %s119
    %s120 = sphi 0, %s117
    %s121 = sphi 0, %s120
    %s137 = sphi 0, %s121
  $region4: #{resnet_block_forward.8} parent=0 // loop_header_branch
    %12 = sbr.rel (%p10) target = $region8
  $region5: #{resnet_block_forward.8} parent=0 // loop_body
    %s14 = ssub.s32 %s9, 1
    %s15 = ssub.s32 %s9, 2
    %s25 = sadd.s32 1, %s18
    %p26 = scmp.ge.s32.totalorder %s25, 3
    %s27 = scalar_select %p26, 0, %s25
    %s28 = sadd.s32 1, %s17
    %s29 = scalar_select %p26, %s28, %s17
    %p30 = scmp.ge.s32.totalorder %s29, 8
    %s31 = scalar_select %p30, 0, %s29
    %s32 = sadd.s32 1, %s16
    %s33 = scalar_select %p30, %s32, %s16
    %p34 = scmp.ge.s32.totalorder %s33, 2
    %s35 = scalar_select %p34, 0, %s33
    %s36 = sadd.s32 %s17, %s18
    %s37 = sadd.s32 %s31, %s27
    %s38 = ssub.s32 %s16, %s35
    %s39 = ssub.s32 %s36, %s37
    %s40 = sor.u32 %s38, %s39
    %p41 = scmp.eq.s32.totalorder %s40, 0
    %s43 = sadd.s32 %s42, 1
    %s44 = scalar_select %p41, %s42, %s43
    %p47 = pneg %p41
    %p48 = scmp.eq.s32.totalorder %s9, 47
    %p49 = por %p47, %p48
    %p50 = scmp.ne.s32.totalorder %s42, %s45
    %p51 = scmp.eq.s32.totalorder %s9, 0
    %p52 = por %p50, %p51
    %p53 = scmp.ne.s32.totalorder %s42, %s45
    %p54 = scmp.eq.s32.totalorder %s14, 47
    %p55 = por %p53, %p54
    %p56 = scmp.ne.s32.totalorder %s45, %s46
    %p57 = scmp.eq.s32.totalorder %s14, 0
    %p58 = por %p56, %p57
    %p59 = scmp.ne.s32.totalorder %s45, %s46
    %p60 = scmp.eq.s32.totalorder %s15, 47
    %p61 = por %p59, %p60
    %p63 = scmp.ne.s32.totalorder %s46, %s62
    %p64 = scmp.eq.s32.totalorder %s15, 0
    %p65 = por %p63, %p64
    %s66 = ssub.s32 %s18, %s27
    %p67 = scmp.eq.s32.totalorder %s66, 0
    %s69 = sadd.s32 %s68, 1
    %s70 = scalar_select %p67, %s68, %s69
    %p73 = pneg %p67
    %p74 = scmp.eq.s32.totalorder %s9, 47
    %p75 = por %p73, %p74
    %p76 = scmp.ne.s32.totalorder %s68, %s71
    %p77 = scmp.eq.s32.totalorder %s9, 0
    %p78 = por %p76, %p77
    %p79 = scmp.ne.s32.totalorder %s68, %s71
    %p80 = scmp.eq.s32.totalorder %s14, 47
    %p81 = por %p79, %p80
    %p82 = scmp.ne.s32.totalorder %s71, %s72
    %p83 = scmp.eq.s32.totalorder %s14, 0
    %p84 = por %p82, %p83
    %p85 = scmp.ne.s32.totalorder %s71, %s72
    %p86 = scmp.eq.s32.totalorder %s15, 47
    %p87 = por %p85, %p86
    %p89 = scmp.ne.s32.totalorder %s72, %s88
    %p90 = scmp.eq.s32.totalorder %s15, 0
    %p91 = por %p89, %p90
    %s93 = sadd.s32 %s92, 1
    %p96 = scmp.eq.s32.totalorder %s9, 47
    %p97 = scmp.ne.s32.totalorder %s92, %s94
    %p98 = scmp.eq.s32.totalorder %s9, 0
    %p99 = por %p97, %p98
    %p100 = scmp.ne.s32.totalorder %s92, %s94
    %p101 = scmp.eq.s32.totalorder %s14, 47
    %p102 = por %p100, %p101
    %p103 = scmp.ne.s32.totalorder %s94, %s95
    %p104 = scmp.eq.s32.totalorder %s14, 0
    %p105 = por %p103, %p104
    %p106 = scmp.ne.s32.totalorder %s94, %s95
    %p107 = scmp.eq.s32.totalorder %s15, 47
    %p108 = por %p106, %p107
    %p110 = scmp.ne.s32.totalorder %s95, %s109
    %p111 = scmp.eq.s32.totalorder %s15, 0
    %p112 = por %p110, %p111
    %s113 = ssub.s32 %s16, %s35
    %s114 = ssub.s32 %s17, %s31
    %s115 = sor.u32 %s113, %s114
    %p116 = scmp.eq.s32.totalorder %s115, 0
    %s118 = sadd.s32 %s117, 1
    %s119 = scalar_select %p116, %s117, %s118
    %p122 = pneg %p116
    %p123 = scmp.eq.s32.totalorder %s9, 47
    %p124 = por %p122, %p123
    %p125 = scmp.ne.s32.totalorder %s117, %s120
    %p126 = scmp.eq.s32.totalorder %s9, 0
    %p127 = por %p125, %p126
    %p128 = scmp.ne.s32.totalorder %s117, %s120
    %p129 = scmp.eq.s32.totalorder %s14, 47
    %p130 = por %p128, %p129
    %p131 = scmp.ne.s32.totalorder %s120, %s121
    %p132 = scmp.eq.s32.totalorder %s14, 0
    %p133 = por %p131, %p132
    %p134 = scmp.ne.s32.totalorder %s120, %s121
    %p135 = scmp.eq.s32.totalorder %s15, 47
    %p136 = por %p134, %p135
    %p138 = scmp.ne.s32.totalorder %s121, %s137
    %p139 = scmp.eq.s32.totalorder %s15, 0
    %p140 = por %p138, %p139
    %p141 = scmp.le.s32.totalorder 1, %s9
    %p142 = scmp.lt.s32.totalorder %s9, 49
    %p143 = pnand %p141, %p142
    %p144 = pneg %p143
    // Predicated region
    $region9: #{resnet_block_forward.8} parent=5 // pred_check
      _
    $region10: #{resnet_block_forward.8} parent=5 // pred_check_branch
      %146 = sbr.rel (%p143) target = $region12
    $region11: #{resnet_block_forward.8} parent=5 // pred_region
      %s147 = ssub.s32 %s9, 1
      // Predicated region
      $region13: #{resnet_block_forward.8} parent=11 // pred_check
        %p148 = pneg %p105
      $region14: #{resnet_block_forward.8} parent=11 // pred_check_branch
        %150 = sbr.rel (%p148) target = $region16
      $region15: #{resnet_block_forward.8} parent=11 // pred_region
        _
      $region16: #{resnet_block_forward.8} parent=11 // pred_fallthru
        _
    $region12: #{resnet_block_forward.8} parent=5 // pred_fallthru
      _
    %p151 = scmp.lt.s32.totalorder %s9, 48
    // Predicated region
    $region17: #{resnet_block_forward.8} parent=5 // pred_check
      %p152 = pneg %p151
    $region18: #{resnet_block_forward.8} parent=5 // pred_check_branch
      %154 = sbr.rel (%p152) target = $region20
    $region19: #{resnet_block_forward.8} parent=5 // pred_region
      // Predicated region
      $region21: #{resnet_block_forward.8} parent=19 // pred_check
        %p155 = pneg %p52
      $region22: #{resnet_block_forward.8} parent=19 // pred_check_branch
        %157 = sbr.rel (%p155) target = $region24
      $region23: #{resnet_block_forward.8} parent=19 // pred_region
        %s158 = sadd.s32 %s17, %s18
        %p159 = scmp.lt.s32.totalorder %s16, 1
        %s160 = scalar_select %p159, %s16, 1
        %p161 = scmp.lt.s32.totalorder %s158, 9
        %s162 = scalar_select %p161, %s158, 9
        %s163 = smul.addr %s162, 14
        %s164 = smul.addr %s160, 140
        %s165 = sadd.s32 %s163, %s164
        %s166 = smul.addr %s165, 4
        %s167 = scalar_lea.vmem %s0, %s166
        %s168 = sadd.s32 %s17, %s18
      $region24: #{resnet_block_forward.8} parent=19 // pred_fallthru
        _
      // Predicated region
      $region25: #{resnet_block_forward.8} parent=19 // pred_check
        %p169 = pneg %p78
      $region26: #{resnet_block_forward.8} parent=19 // pred_check_branch
        %171 = sbr.rel (%p169) target = $region28
      $region27: #{resnet_block_forward.8} parent=19 // pred_region
        %s172 = smul.u32 9, %s18
        %p173 = scmp.lt.s32.totalorder %s172, 26
        %s174 = scalar_select %p173, %s172, 26
        %s175 = smul.addr %s174, 2
        %s176 = scalar_lea.vmem %s1, %s175
        %s177 = smul.u32 9, %s18
      $region28: #{resnet_block_forward.8} parent=19 // pred_fallthru
        _
    $region20: #{resnet_block_forward.8} parent=5 // pred_fallthru
      _
    %p178 = scmp.le.s32.totalorder 1, %s9
    %p179 = scmp.lt.s32.totalorder %s9, 49
    %p180 = pnand %p178, %p179
    %p181 = pneg %p180
    // Predicated region
    $region29: #{resnet_block_forward.8} parent=5 // pred_check
      _
    $region30: #{resnet_block_forward.8} parent=5 // pred_check_branch
      %183 = sbr.rel (%p180) target = $region32
    $region31: #{resnet_block_forward.8} parent=5 // pred_region
      %s184 = ssub.s32 %s9, 1
      %s185 = sadd.s32 %s20, %s21
      %p186 = scmp.lt.s32.totalorder %s19, 1
      %s187 = scalar_select %p186, %s19, 1
      %p188 = scmp.lt.s32.totalorder %s185, 9
      %s189 = scalar_select %p188, %s185, 9
      %s190 = smul.addr %s189, 14
      %s191 = smul.addr %s187, 140
      %s192 = sadd.s32 %s190, %s191
      %s193 = smul.addr %s192, 4
      %s194 = scalar_lea.vmem %s0, %s193
      %p195 = pneg %p58
      %p196 = pneg %p55
      %s197 = smul.u32 9, %s21
      %p198 = scmp.lt.s32.totalorder %s197, 26
      %s199 = scalar_select %p198, %s197, 26
      %s200 = smul.addr %s199, 2
      %s201 = scalar_lea.vmem %s1, %s200
      %p202 = pneg %p84
      %p203 = pneg %p81
      %p204 = pneg %p105
      %p205 = pneg %p102
      %p206 = pneg %p133
      %p207 = pneg %p130
      %p208 = scmp.lt.s32.totalorder %s19, 1
      %s209 = scalar_select %p208, %s19, 1
      %p210 = scmp.lt.s32.totalorder %s20, 7
      %s211 = scalar_select %p210, %s20, 7
      %s212 = smul.addr %s211, 10
      %s213 = smul.addr %s209, 80
      %s214 = sadd.s32 %s212, %s213
      %s215 = smul.addr %s214, 8
      %s216 = scalar_lea.vmem %s3, %s215
      %s217 = sadd.s32 %s20, %s21
      %p218 = scmp.lt.s32.totalorder %s19, 1
      %s219 = scalar_select %p218, %s19, 1
      %p220 = scmp.lt.s32.totalorder %s217, 9
      %s221 = scalar_select %p220, %s217, 9
      %s222 = smul.addr %s221, 14
      %s223 = smul.addr %s219, 140
      %s224 = sadd.s32 %s222, %s223
      %s225 = smul.addr %s224, 4
      %s226 = scalar_lea.vmem %s0, %s225
      %s227 = sadd.s32 %s20, %s21
      %s228 = smul.u32 9, %s21
      %p229 = scmp.lt.s32.totalorder %s228, 26
      %s230 = scalar_select %p229, %s228, 26
      %s231 = smul.addr %s230, 2
      %s232 = scalar_lea.vmem %s1, %s231
      %s233 = smul.u32 9, %s21
      %p234 = scmp.lt.s32.totalorder %s19, 1
      %s235 = scalar_select %p234, %s19, 1
      %p236 = scmp.lt.s32.totalorder %s20, 7
      %s237 = scalar_select %p236, %s20, 7
      %s238 = smul.addr %s237, 10
      %s239 = smul.addr %s235, 80
      %s240 = sadd.s32 %s238, %s239
      %s241 = smul.addr %s240, 8
      %s242 = scalar_lea.vmem %s3, %s241
      %p244 = scmp.eq.s32.totalorder %s21, 0
      // Predicated region
      $region33: #{resnet_block_forward.8} parent=31 // pred_check
        %p245 = pneg %p244
      $region34: #{resnet_block_forward.8} parent=31 // pred_check_branch
        %247 = sbr.rel (%p245) target = $region36
      $region35: #{resnet_block_forward.8} parent=31 // pred_region
        %vm248 = vcmask 64512
        %249 = vst.msk [vmem:[#allocation2] sm:$0xff] %vm248, 0.0
        %250 = vst.msk [vmem:[#allocation2 + $0x8] sm:$0xff] %vm248, 0.0
        %251 = vst.msk [vmem:[#allocation2 + $0x10] sm:$0xff] %vm248, 0.0
        %252 = vst.msk [vmem:[#allocation2 + $0x18] sm:$0xff] %vm248, 0.0
        %253 = vst.msk [vmem:[#allocation2 + $0x20] sm:$0xff] %vm248, 0.0
        %254 = vst.msk [vmem:[#allocation2 + $0x28] sm:$0xff] %vm248, 0.0
        %255 = vst.msk [vmem:[#allocation2 + $0x30] sm:$0xff] %vm248, 0.0
        %256 = vst.msk [vmem:[#allocation2 + $0x38] sm:$0xff] %vm248, 0.0
        %257 = vst.msk [vmem:[#allocation2 + $0x40] sm:$0xff] %vm248, 0.0
        %258 = vst.msk [vmem:[#allocation2 + $0x48] sm:$0xff] %vm248, 0.0
      $region36: #{resnet_block_forward.8} parent=31 // pred_fallthru
        _
      %v259 = vld [vmem:[%s226] sm:$0xf]
      %v260 = vld [vmem:[%s226 + $0x4] sm:$0xf]
      %v261 = vld [vmem:[%s226 + $0x8] sm:$0xf]
      %v262 = vld [vmem:[%s226 + $0xc] sm:$0xf]
      %v263 = vld [vmem:[%s226 + $0x10] sm:$0xf]
      %v264 = vld [vmem:[%s226 + $0x14] sm:$0xf]
      %v265 = vld [vmem:[%s226 + $0x18] sm:$0xf]
      %v266 = vld [vmem:[%s226 + $0x1c] sm:$0xf]
      %v267 = vld [vmem:[%s226 + $0x20] sm:$0xf]
      %v268 = vld [vmem:[%s226 + $0x24] sm:$0xf]
      %v269 = vld [vmem:[%s226 + $0x28] sm:$0xf]
      %v270 = vld [vmem:[%s226 + $0x2c] sm:$0xf]
      %v271 = vld [vmem:[%s226 + $0x30] sm:$0xf]
      %v272 = vld [vmem:[#allocation2] sm:$0xff]
      %v273 = vld [vmem:[#allocation2 + $0x8] sm:$0xff]
      %v274 = vld [vmem:[#allocation2 + $0x10] sm:$0xff]
      %v275 = vld [vmem:[#allocation2 + $0x18] sm:$0xff]
      %v276 = vld [vmem:[#allocation2 + $0x20] sm:$0xff]
      %v277 = vld [vmem:[#allocation2 + $0x28] sm:$0xff]
      %v278 = vld [vmem:[#allocation2 + $0x30] sm:$0xff]
      %v279 = vld [vmem:[#allocation2 + $0x38] sm:$0xff]
      %v280 = vld [vmem:[#allocation2 + $0x40] sm:$0xff]
      %v281 = vld [vmem:[#allocation2 + $0x48] sm:$0xff]
      %v282 = vld [vmem:[%s232] sm:$0x3]
      %v293 = vunpack.c.l.b16 %v259
      %v294 = vunpack.c.l.b16 %v260
      %v295 = vunpack.c.l.b16 %v261
      %v296 = vunpack.c.l.b16 %v262
      %v297 = vunpack.c.l.b16 %v263
      %v298 = vunpack.c.l.b16 %v264
      %v299 = vunpack.c.l.b16 %v265
      %v300 = vunpack.c.l.b16 %v266
      %v301 = vunpack.c.l.b16 %v267
      %v302 = vunpack.c.l.b16 %v268
      %v303 = vpack.c.b16 %v294, %v293
      %v304 = vpack.c.b16 %v296, %v295
      %v305 = vpack.c.b16 %v298, %v297
      %v306 = vpack.c.b16 %v300, %v299
      %v307 = vpack.c.b16 %v302, %v301
      %vm308 = vcmask 31744
      %v310 = vsel %vm308, %v303, 0
      %v313 = vsel %vm308, %v304, 0
      %v316 = vsel %vm308, %v305, 0
      %v319 = vsel %vm308, %v306, 0
      %v322 = vsel %vm308, %v307, 0
      %vm324 = vcmask 1041408
      %v326 = vsel %vm324, %v282, 0
      %328 = vmatprep.subr.bf16.mxu0 0
      %329 = vmatpush1.bf16.msra.mxu0 %v326
      %330 = vmatprep.subr.bf16.mxu0 0
      %331 = vmatpush1.bf16.msra.mxu0 0
      %332 = vmatprep.subr.bf16.mxu0 0
      %333 = vmatpush1.bf16.msra.mxu0 0
      %334 = vmatprep.subr.bf16.mxu0 0
      %335 = vmatpush1.bf16.msra.mxu0 0
      %336 = vmatprep.subr.bf16.mxu0 0
      %337 = vmatpush1.bf16.msra.mxu0 0
      %338 = vmatprep.subr.bf16.mxu0 0
      %339 = vmatpush1.bf16.msra.mxu0 0
      %340 = vmatprep.subr.bf16.mxu0 0
      %341 = vmatpush1.bf16.msra.mxu0 0
      %342 = vmatprep.subr.bf16.mxu0 0
      %343 = vmatpush1.bf16.msra.mxu0 0
      %344 = vmatprep.subr.bf16.mxu0 0
      %345 = vmatpush1.bf16.msra.mxu0 0
      %346 = vmatprep.subr.bf16.mxu0 0
      %347 = vmatpush1.bf16.msra.mxu0 0
      %348 = vmatprep.subr.bf16.mxu0 0
      %349 = vmatpush1.bf16.msra.mxu0 0
      %350 = vmatprep.subr.bf16.mxu0 0
      %351 = vmatpush1.bf16.msra.mxu0 0
      %352 = vmatprep.subr.bf16.mxu0 0
      %353 = vmatpush1.bf16.msra.mxu0 0
      %354 = vmatprep.subr.bf16.mxu0 0
      %355 = vmatpush1.bf16.msra.mxu0 0
      %356 = vmatprep.subr.bf16.mxu0 0
      %357 = vmatpush1.bf16.msra.mxu0 0
      %358 = vmatprep.subr.bf16.mxu0 0
      %359 = vmatpush1.bf16.msra.mxu0 0
      %360 = vmatprep.mubr.bf16.mxu0 0
      %361 = vmatmul.mubr.bf16.gmra.mrb[0].mxu0 %v310
      %v362 = vpop.f32.mrb[0].mxu0
      %v363 = vadd.f32 0.0, %v362
      %v364 = vpop.f32.mrb[0].mxu0
      %v365 = vpop.f32.mrb[0].mxu0
      %v366 = vadd.f32 0.0, %v365
      %v367 = vpop.f32.mrb[0].mxu0
      %368 = vmatprep.mubr.bf16.mxu0 0
      %369 = vmatmul.mubr.bf16.gmra.mrb[0].mxu0 %v313
      %v370 = vpop.f32.mrb[0].mxu0
      %v371 = vadd.f32 0.0, %v370
      %v372 = vpop.f32.mrb[0].mxu0
      %v373 = vpop.f32.mrb[0].mxu0
      %v374 = vadd.f32 0.0, %v373
      %v375 = vpop.f32.mrb[0].mxu0
      %376 = vmatprep.mubr.bf16.mxu0 0
      %377 = vmatmul.mubr.bf16.gmra.mrb[0].mxu0 %v316
      %v378 = vpop.f32.mrb[0].mxu0
      %v379 = vadd.f32 0.0, %v378
      %v380 = vpop.f32.mrb[0].mxu0
      %v381 = vpop.f32.mrb[0].mxu0
      %v382 = vadd.f32 0.0, %v381
      %v383 = vpop.f32.mrb[0].mxu0
      %384 = vmatprep.mubr.bf16.mxu0 0
      %385 = vmatmul.mubr.bf16.gmra.mrb[0].mxu0 %v319
      %v386 = vpop.f32.mrb[0].mxu0
      %v387 = vadd.f32 0.0, %v386
      %v388 = vpop.f32.mrb[0].mxu0
      %v389 = vpop.f32.mrb[0].mxu0
      %v390 = vadd.f32 0.0, %v389
      %v391 = vpop.f32.mrb[0].mxu0
      %392 = vmatprep.mubr.bf16.mxu0 0
      %393 = vmatmul.mubr.bf16.gmra.mrb[0].mxu0 %v322
      %v394 = vpop.f32.mrb[0].mxu0
      %v395 = vadd.f32 0.0, %v394
      %v396 = vpop.f32.mrb[0].mxu0
      %v397 = vpop.f32.mrb[0].mxu0
      %v398 = vadd.f32 0.0, %v397
      %v399 = vpop.f32.mrb[0].mxu0
      %400 = vdwg.mxu0
      %v401 = vadd.f32 %v272, %v363
      %v402 = vadd.f32 %v273, %v366
      %v403 = vadd.f32 %v274, %v371
      %v404 = vadd.f32 %v275, %v374
      %v405 = vadd.f32 %v276, %v379
      %v406 = vadd.f32 %v277, %v382
      %v407 = vadd.f32 %v278, %v387
      %v408 = vadd.f32 %v279, %v390
      %v409 = vadd.f32 %v280, %v395
      %v410 = vadd.f32 %v281, %v398
      %vm411 = vcmask 64512
      %412 = vst.msk [vmem:[#allocation2] sm:$0xff] %vm411, %v401
      %413 = vst.msk [vmem:[#allocation2 + $0x8] sm:$0xff] %vm411, %v402
      %414 = vst.msk [vmem:[#allocation2 + $0x10] sm:$0xff] %vm411, %v403
      %415 = vst.msk [vmem:[#allocation2 + $0x18] sm:$0xff] %vm411, %v404
      %416 = vst.msk [vmem:[#allocation2 + $0x20] sm:$0xff] %vm411, %v405
      %417 = vst.msk [vmem:[#allocation2 + $0x28] sm:$0xff] %vm411, %v406
      %418 = vst.msk [vmem:[#allocation2 + $0x30] sm:$0xff] %vm411, %v407
      %419 = vst.msk [vmem:[#allocation2 + $0x38] sm:$0xff] %vm411, %v408
      %420 = vst.msk [vmem:[#allocation2 + $0x40] sm:$0xff] %vm411, %v409
      %421 = vst.msk [vmem:[#allocation2 + $0x48] sm:$0xff] %vm411, %v410
      %v422 = vld [vmem:[#allocation2] sm:$0xff]
      %v423 = vld [vmem:[#allocation2 + $0x8] sm:$0xff]
      %v424 = vld [vmem:[#allocation2 + $0x10] sm:$0xff]
      %v425 = vld [vmem:[#allocation2 + $0x18] sm:$0xff]
      %v426 = vld [vmem:[#allocation2 + $0x20] sm:$0xff]
      %v427 = vld [vmem:[#allocation2 + $0x28] sm:$0xff]
      %v428 = vld [vmem:[#allocation2 + $0x30] sm:$0xff]
      %v429 = vld [vmem:[#allocation2 + $0x38] sm:$0xff]
      %v430 = vld [vmem:[#allocation2 + $0x40] sm:$0xff]
      %v431 = vld [vmem:[#allocation2 + $0x48] sm:$0xff]
      %s432 = scalar_lea.vmem %s232, 2
      %v433 = vld [vmem:[%s432] sm:$0x3]
      %v435 = vunpack.c.l.b16 %v269
      %v436 = vpack.c.b16 %v435, %v435
      %vm437 = vsmask.f32 7424
      %v438 = vshrl.u32 %v303, 16
      %v440 = vshll.u32 %v303, 16
      %v442 = vrot.slane %v440, 1
      %v443 = vor.u32 %v438, %v442
      %v444 = vshll.u32 %v304, 16
      %v446 = vrot.slane %v444, 1
      %v447 = vsel %vm437, %v443, %v446
      %v448 = vshrl.u32 %v304, 16
      %v450 = vor.u32 %v448, %v446
      %v451 = vshll.u32 %v305, 16
      %v453 = vrot.slane %v451, 1
      %v454 = vsel %vm437, %v450, %v453
      %v455 = vshrl.u32 %v305, 16
      %v457 = vor.u32 %v455, %v453
      %v458 = vshll.u32 %v306, 16
      %v460 = vrot.slane %v458, 1
      %v461 = vsel %vm437, %v457, %v460
      %v462 = vshrl.u32 %v306, 16
      %v464 = vor.u32 %v462, %v460
      %v465 = vshll.u32 %v307, 16
      %v467 = vrot.slane %v465, 1
      %v468 = vsel %vm437, %v464, %v467
      %v469 = vshrl.u32 %v307, 16
      %v471 = vor.u32 %v469, %v467
      %v473 = vshll.u32 %v436, 16
      %v475 = vrot.slane %v473, 1
      %v476 = vsel %vm437, %v471, %v475
      %v478 = vsel %vm308, %v447, 0
      %v481 = vsel %vm308, %v454, 0
      %v484 = vsel %vm308, %v461, 0
      %v487 = vsel %vm308, %v468, 0
      %v490 = vsel %vm308, %v476, 0
      %v493 = vsel %vm324, %v433, 0
      %495 = vmatprep.subr.bf16.mxu0 0
      %496 = vmatpush1.bf16.msra.mxu0 %v493
      %497 = vmatprep.subr.bf16.mxu0 0
      %498 = vmatpush1.bf16.msra.mxu0 0
      %499 = vmatprep.subr.bf16.mxu0 0
      %500 = vmatpush1.bf16.msra.mxu0 0
      %501 = vmatprep.subr.bf16.mxu0 0
      %502 = vmatpush1.bf16.msra.mxu0 0
      %503 = vmatprep.subr.bf16.mxu0 0
      %504 = vmatpush1.bf16.msra.mxu0 0
      %505 = vmatprep.subr.bf16.mxu0 0
      %506 = vmatpush1.bf16.msra.mxu0 0
      %507 = vmatprep.subr.bf16.mxu0 0
      %508 = vmatpush1.bf16.msra.mxu0 0
      %509 = vmatprep.subr.bf16.mxu0 0
      %510 = vmatpush1.bf16.msra.mxu0 0
      %511 = vmatprep.subr.bf16.mxu0 0
      %512 = vmatpush1.bf16.msra.mxu0 0
      %513 = vmatprep.subr.bf16.mxu0 0
      %514 = vmatpush1.bf16.msra.mxu0 0
      %515 = vmatprep.subr.bf16.mxu0 0
      %516 = vmatpush1.bf16.msra.mxu0 0
      %517 = vmatprep.subr.bf16.mxu0 0
      %518 = vmatpush1.bf16.msra.mxu0 0
      %519 = vmatprep.subr.bf16.mxu0 0
      %520 = vmatpush1.bf16.msra.mxu0 0
      %521 = vmatprep.subr.bf16.mxu0 0
      %522 = vmatpush1.bf16.msra.mxu0 0
      %523 = vmatprep.subr.bf16.mxu0 0
      %524 = vmatpush1.bf16.msra.mxu0 0
      %525 = vmatprep.subr.bf16.mxu0 0
      %526 = vmatpush1.bf16.msra.mxu0 0
      %527 = vmatprep.mubr.bf16.mxu0 0
      %528 = vmatmul.mubr.bf16.gmra.mrb[0].mxu0 %v478
      %v529 = vpop.f32.mrb[0].mxu0
      %v530 = vadd.f32 0.0, %v529
      %v531 = vpop.f32.mrb[0].mxu0
      %v532 = vpop.f32.mrb[0].mxu0
      %v533 = vadd.f32 0.0, %v532
      %v534 = vpop.f32.mrb[0].mxu0
      %535 = vmatprep.mubr.bf16.mxu0 0
      %536 = vmatmul.mubr.bf16.gmra.mrb[0].mxu0 %v481
      %v537 = vpop.f32.mrb[0].mxu0
      %v538 = vadd.f32 0.0, %v537
      %v539 = vpop.f32.mrb[0].mxu0
      %v540 = vpop.f32.mrb[0].mxu0
      %v541 = vadd.f32 0.0, %v540
      %v542 = vpop.f32.mrb[0].mxu0
      %543 = vmatprep.mubr.bf16.mxu0 0
      %544 = vmatmul.mubr.bf16.gmra.mrb[0].mxu0 %v484
      %v545 = vpop.f32.mrb[0].mxu0
      %v546 = vadd.f32 0.0, %v545
      %v547 = vpop.f32.mrb[0].mxu0
      %v548 = vpop.f32.mrb[0].mxu0
      %v549 = vadd.f32 0.0, %v548
      %v550 = vpop.f32.mrb[0].mxu0
      %551 = vmatprep.mubr.bf16.mxu0 0
      %552 = vmatmul.mubr.bf16.gmra.mrb[0].mxu0 %v487
      %v553 = vpop.f32.mrb[0].mxu0
      %v554 = vadd.f32 0.0, %v553
      %v555 = vpop.f32.mrb[0].mxu0
      %v556 = vpop.f32.mrb[0].mxu0
      %v557 = vadd.f32 0.0, %v556
      %v558 = vpop.f32.mrb[0].mxu0
      %559 = vmatprep.mubr.bf16.mxu0 0
      %560 = vmatmul.mubr.bf16.gmra.mrb[0].mxu0 %v490
      %v561 = vpop.f32.mrb[0].mxu0
      %v562 = vadd.f32 0.0, %v561
      %v563 = vpop.f32.mrb[0].mxu0
      %v564 = vpop.f32.mrb[0].mxu0
      %v565 = vadd.f32 0.0, %v564
      %v566 = vpop.f32.mrb[0].mxu0
      %567 = vdwg.mxu0
      %v568 = vadd.f32 %v422, %v530
      %v569 = vadd.f32 %v423, %v533
      %v570 = vadd.f32 %v424, %v538
      %v571 = vadd.f32 %v425, %v541
      %v572 = vadd.f32 %v426, %v546
      %v573 = vadd.f32 %v427, %v549
      %v574 = vadd.f32 %v428, %v554
      %v575 = vadd.f32 %v429, %v557
      %v576 = vadd.f32 %v430, %v562
      %v577 = vadd.f32 %v431, %v565
      %578 = vst.msk [vmem:[#allocation2] sm:$0xff] %vm411, %v568
      %579 = vst.msk [vmem:[#allocation2 + $0x8] sm:$0xff] %vm411, %v569
      %580 = vst.msk [vmem:[#allocation2 + $0x10] sm:$0xff] %vm411, %v570
      %581 = vst.msk [vmem:[#allocation2 + $0x18] sm:$0xff] %vm411, %v571
      %582 = vst.msk [vmem:[#allocation2 + $0x20] sm:$0xff] %vm411, %v572
      %583 = vst.msk [vmem:[#allocation2 + $0x28] sm:$0xff] %vm411, %v573
      %584 = vst.msk [vmem:[#allocation2 + $0x30] sm:$0xff] %vm411, %v574
      %585 = vst.msk [vmem:[#allocation2 + $0x38] sm:$0xff] %vm411, %v575
      %586 = vst.msk [vmem:[#allocation2 + $0x40] sm:$0xff] %vm411, %v576
      %587 = vst.msk [vmem:[#allocation2 + $0x48] sm:$0xff] %vm411, %v577
      %v588 = vld [vmem:[#allocation2] sm:$0xff]
      %v589 = vld [vmem:[#allocation2 + $0x8] sm:$0xff]
      %v590 = vld [vmem:[#allocation2 + $0x10] sm:$0xff]
      %v591 = vld [vmem:[#allocation2 + $0x18] sm:$0xff]
      %v592 = vld [vmem:[#allocation2 + $0x20] sm:$0xff]
      %v593 = vld [vmem:[#allocation2 + $0x28] sm:$0xff]
      %v594 = vld [vmem:[#allocation2 + $0x30] sm:$0xff]
      %v595 = vld [vmem:[#allocation2 + $0x38] sm:$0xff]
      %v596 = vld [vmem:[#allocation2 + $0x40] sm:$0xff]
      %v597 = vld [vmem:[#allocation2 + $0x48] sm:$0xff]
      %s598 = scalar_lea.vmem %s232, 4
      %v599 = vld [vmem:[%s598] sm:$0x3]
      %vm600 = vcmask 1046528
      %v601 = vrot.slane %v303, 1
      %v602 = vrot.slane %v304, 1
      %v603 = vsel %vm600, %v601, %v602
      %v604 = vrot.slane %v305, 1
      %v605 = vsel %vm600, %v602, %v604
      %v606 = vrot.slane %v306, 1
      %v607 = vsel %vm600, %v604, %v606
      %v608 = vrot.slane %v307, 1
      %v609 = vsel %vm600, %v606, %v608
      %v610 = vrot.slane %v436, 1
      %v611 = vsel %vm600, %v608, %v610
      %v613 = vsel %vm308, %v603, 0
      %v616 = vsel %vm308, %v605, 0
      %v619 = vsel %vm308, %v607, 0
      %v622 = vsel %vm308, %v609, 0
      %v625 = vsel %vm308, %v611, 0
      %v628 = vsel %vm324, %v599, 0
      %630 = vmatprep.subr.bf16.mxu0 0
      %631 = vmatpush1.bf16.msra.mxu0 %v628
      %632 = vmatprep.subr.bf16.mxu0 0
      %633 = vmatpush1.bf16.msra.mxu0 0
      %634 = vmatprep.subr.bf16.mxu0 0
      %635 = vmatpush1.bf16.msra.mxu0 0
      %636 = vmatprep.subr.bf16.mxu0 0
      %637 = vmatpush1.bf16.msra.mxu0 0
      %638 = vmatprep.subr.bf16.mxu0 0
      %639 = vmatpush1.bf16.msra.mxu0 0
      %640 = vmatprep.subr.bf16.mxu0 0
      %641 = vmatpush1.bf16.msra.mxu0 0
      %642 = vmatprep.subr.bf16.mxu0 0
      %643 = vmatpush1.bf16.msra.mxu0 0
      %644 = vmatprep.subr.bf16.mxu0 0
      %645 = vmatpush1.bf16.msra.mxu0 0
      %646 = vmatprep.subr.bf16.mxu0 0
      %647 = vmatpush1.bf16.msra.mxu0 0
      %648 = vmatprep.subr.bf16.mxu0 0
      %649 = vmatpush1.bf16.msra.mxu0 0
      %650 = vmatprep.subr.bf16.mxu0 0
      %651 = vmatpush1.bf16.msra.mxu0 0
      %652 = vmatprep.subr.bf16.mxu0 0
      %653 = vmatpush1.bf16.msra.mxu0 0
      %654 = vmatprep.subr.bf16.mxu0 0
      %655 = vmatpush1.bf16.msra.mxu0 0
      %656 = vmatprep.subr.bf16.mxu0 0
      %657 = vmatpush1.bf16.msra.mxu0 0
      %658 = vmatprep.subr.bf16.mxu0 0
      %659 = vmatpush1.bf16.msra.mxu0 0
      %660 = vmatprep.subr.bf16.mxu0 0
      %661 = vmatpush1.bf16.msra.mxu0 0
      %662 = vmatprep.mubr.bf16.mxu0 0
      %663 = vmatmul.mubr.bf16.gmra.mrb[0].mxu0 %v613
      %v664 = vpop.f32.mrb[0].mxu0
      %v665 = vadd.f32 0.0, %v664
      %v666 = vpop.f32.mrb[0].mxu0
      %v667 = vpop.f32.mrb[0].mxu0
      %v668 = vadd.f32 0.0, %v667
      %v669 = vpop.f32.mrb[0].mxu0
      %670 = vmatprep.mubr.bf16.mxu0 0
      %671 = vmatmul.mubr.bf16.gmra.mrb[0].mxu0 %v616
      %v672 = vpop.f32.mrb[0].mxu0
      %v673 = vadd.f32 0.0, %v672
      %v674 = vpop.f32.mrb[0].mxu0
      %v675 = vpop.f32.mrb[0].mxu0
      %v676 = vadd.f32 0.0, %v675
      %v677 = vpop.f32.mrb[0].mxu0
      %678 = vmatprep.mubr.bf16.mxu0 0
      %679 = vmatmul.mubr.bf16.gmra.mrb[0].mxu0 %v619
      %v680 = vpop.f32.mrb[0].mxu0
      %v681 = vadd.f32 0.0, %v680
      %v682 = vpop.f32.mrb[0].mxu0
      %v683 = vpop.f32.mrb[0].mxu0
      %v684 = vadd.f32 0.0, %v683
      %v685 = vpop.f32.mrb[0].mxu0
      %686 = vmatprep.mubr.bf16.mxu0 0
      %687 = vmatmul.mubr.bf16.gmra.mrb[0].mxu0 %v622
      %v688 = vpop.f32.mrb[0].mxu0
      %v689 = vadd.f32 0.0, %v688
      %v690 = vpop.f32.mrb[0].mxu0
      %v691 = vpop.f32.mrb[0].mxu0
      %v692 = vadd.f32 0.0, %v691
      %v693 = vpop.f32.mrb[0].mxu0
      %694 = vmatprep.mubr.bf16.mxu0 0
      %695 = vmatmul.mubr.bf16.gmra.mrb[0].mxu0 %v625
      %v696 = vpop.f32.mrb[0].mxu0
      %v697 = vadd.f32 0.0, %v696
      %v698 = vpop.f32.mrb[0].mxu0
      %v699 = vpop.f32.mrb[0].mxu0
      %v700 = vadd.f32 0.0, %v699
      %v701 = vpop.f32.mrb[0].mxu0
      %702 = vdwg.mxu0
      %v703 = vadd.f32 %v588, %v665
      %v704 = vadd.f32 %v589, %v668
      %v705 = vadd.f32 %v590, %v673
      %v706 = vadd.f32 %v591, %v676
      %v707 = vadd.f32 %v592, %v681
      %v708 = vadd.f32 %v593, %v684
      %v709 = vadd.f32 %v594, %v689
      %v710 = vadd.f32 %v595, %v692
      %v711 = vadd.f32 %v596, %v697
      %v712 = vadd.f32 %v597, %v700
      %713 = vst.msk [vmem:[#allocation2] sm:$0xff] %vm411, %v703
      %714 = vst.msk [vmem:[#allocation2 + $0x8] sm:$0xff] %vm411, %v704
      %715 = vst.msk [vmem:[#allocation2 + $0x10] sm:$0xff] %vm411, %v705
      %716 = vst.msk [vmem:[#allocation2 + $0x18] sm:$0xff] %vm411, %v706
      %717 = vst.msk [vmem:[#allocation2 + $0x20] sm:$0xff] %vm411, %v707
      %718 = vst.msk [vmem:[#allocation2 + $0x28] sm:$0xff] %vm411, %v708
      %719 = vst.msk [vmem:[#allocation2 + $0x30] sm:$0xff] %vm411, %v709
      %720 = vst.msk [vmem:[#allocation2 + $0x38] sm:$0xff] %vm411, %v710
      %721 = vst.msk [vmem:[#allocation2 + $0x40] sm:$0xff] %vm411, %v711
      %722 = vst.msk [vmem:[#allocation2 + $0x48] sm:$0xff] %vm411, %v712
      %v723 = vld [vmem:[#allocation2] sm:$0xff]
      %v724 = vld [vmem:[#allocation2 + $0x8] sm:$0xff]
      %v725 = vld [vmem:[#allocation2 + $0x10] sm:$0xff]
      %v726 = vld [vmem:[#allocation2 + $0x18] sm:$0xff]
      %v727 = vld [vmem:[#allocation2 + $0x20] sm:$0xff]
      %v728 = vld [vmem:[#allocation2 + $0x28] sm:$0xff]
      %v729 = vld [vmem:[#allocation2 + $0x30] sm:$0xff]
      %v730 = vld [vmem:[#allocation2 + $0x38] sm:$0xff]
      %v731 = vld [vmem:[#allocation2 + $0x40] sm:$0xff]
      %v732 = vld [vmem:[#allocation2 + $0x48] sm:$0xff]
      %s733 = scalar_lea.vmem %s232, 6
      %v734 = vld [vmem:[%s733] sm:$0x3]
      %v736 = vunpack.c.l.b16 %v270
      %v737 = vpack.c.b16 %v295, %v294
      %v738 = vpack.c.b16 %v297, %v296
      %v739 = vpack.c.b16 %v299, %v298
      %v740 = vpack.c.b16 %v301, %v300
      %v741 = vpack.c.b16 %v435, %v302
      %v742 = vpack.c.b16 %v736, %v736
      %v743 = vrot.slane %v737, 1
      %v744 = vrot.slane %v738, 1
      %v745 = vsel %vm600, %v743, %v744
      %v746 = vrot.slane %v739, 1
      %v747 = vsel %vm600, %v744, %v746
      %v748 = vrot.slane %v740, 1
      %v749 = vsel %vm600, %v746, %v748
      %v750 = vrot.slane %v741, 1
      %v751 = vsel %vm600, %v748, %v750
      %v752 = vrot.slane %v742, 1
      %v753 = vsel %vm600, %v750, %v752
      %v755 = vsel %vm308, %v745, 0
      %v758 = vsel %vm308, %v747, 0
      %v761 = vsel %vm308, %v749, 0
      %v764 = vsel %vm308, %v751, 0
      %v767 = vsel %vm308, %v753, 0
      %v770 = vsel %vm324, %v734, 0
      %772 = vmatprep.subr.bf16.mxu0 0
      %773 = vmatpush1.bf16.msra.mxu0 %v770
      %774 = vmatprep.subr.bf16.mxu0 0
      %775 = vmatpush1.bf16.msra.mxu0 0
      %776 = vmatprep.subr.bf16.mxu0 0
      %777 = vmatpush1.bf16.msra.mxu0 0
      %778 = vmatprep.subr.bf16.mxu0 0
      %779 = vmatpush1.bf16.msra.mxu0 0
      %780 = vmatprep.subr.bf16.mxu0 0
      %781 = vmatpush1.bf16.msra.mxu0 0
      %782 = vmatprep.subr.bf16.mxu0 0
      %783 = vmatpush1.bf16.msra.mxu0 0
      %784 = vmatprep.subr.bf16.mxu0 0
      %785 = vmatpush1.bf16.msra.mxu0 0
      %786 = vmatprep.subr.bf16.mxu0 0
      %787 = vmatpush1.bf16.msra.mxu0 0
      %788 = vmatprep.subr.bf16.mxu0 0
      %789 = vmatpush1.bf16.msra.mxu0 0
      %790 = vmatprep.subr.bf16.mxu0 0
      %791 = vmatpush1.bf16.msra.mxu0 0
      %792 = vmatprep.subr.bf16.mxu0 0
      %793 = vmatpush1.bf16.msra.mxu0 0
      %794 = vmatprep.subr.bf16.mxu0 0
      %795 = vmatpush1.bf16.msra.mxu0 0
      %796 = vmatprep.subr.bf16.mxu0 0
      %797 = vmatpush1.bf16.msra.mxu0 0
      %798 = vmatprep.subr.bf16.mxu0 0
      %799 = vmatpush1.bf16.msra.mxu0 0
      %800 = vmatprep.subr.bf16.mxu0 0
      %801 = vmatpush1.bf16.msra.mxu0 0
      %802 = vmatprep.subr.bf16.mxu0 0
      %803 = vmatpush1.bf16.msra.mxu0 0
      %804 = vmatprep.mubr.bf16.mxu0 0
      %805 = vmatmul.mubr.bf16.gmra.mrb[0].mxu0 %v755
      %v806 = vpop.f32.mrb[0].mxu0
      %v807 = vadd.f32 0.0, %v806
      %v808 = vpop.f32.mrb[0].mxu0
      %v809 = vpop.f32.mrb[0].mxu0
      %v810 = vadd.f32 0.0, %v809
      %v811 = vpop.f32.mrb[0].mxu0
      %812 = vmatprep.mubr.bf16.mxu0 0
      %813 = vmatmul.mubr.bf16.gmra.mrb[0].mxu0 %v758
      %v814 = vpop.f32.mrb[0].mxu0
      %v815 = vadd.f32 0.0, %v814
      %v816 = vpop.f32.mrb[0].mxu0
      %v817 = vpop.f32.mrb[0].mxu0
      %v818 = vadd.f32 0.0, %v817
      %v819 = vpop.f32.mrb[0].mxu0
      %820 = vmatprep.mubr.bf16.mxu0 0
      %821 = vmatmul.mubr.bf16.gmra.mrb[0].mxu0 %v761
      %v822 = vpop.f32.mrb[0].mxu0
      %v823 = vadd.f32 0.0, %v822
      %v824 = vpop.f32.mrb[0].mxu0
      %v825 = vpop.f32.mrb[0].mxu0
      %v826 = vadd.f32 0.0, %v825
      %v827 = vpop.f32.mrb[0].mxu0
      %828 = vmatprep.mubr.bf16.mxu0 0
      %829 = vmatmul.mubr.bf16.gmra.mrb[0].mxu0 %v764
      %v830 = vpop.f32.mrb[0].mxu0
      %v831 = vadd.f32 0.0, %v830
      %v832 = vpop.f32.mrb[0].mxu0
      %v833 = vpop.f32.mrb[0].mxu0
      %v834 = vadd.f32 0.0, %v833
      %v835 = vpop.f32.mrb[0].mxu0
      %836 = vmatprep.mubr.bf16.mxu0 0
      %837 = vmatmul.mubr.bf16.gmra.mrb[0].mxu0 %v767
      %v838 = vpop.f32.mrb[0].mxu0
      %v839 = vadd.f32 0.0, %v838
      %v840 = vpop.f32.mrb[0].mxu0
      %v841 = vpop.f32.mrb[0].mxu0
      %v842 = vadd.f32 0.0, %v841
      %v843 = vpop.f32.mrb[0].mxu0
      %844 = vdwg.mxu0
      %v845 = vadd.f32 %v723, %v807
      %v846 = vadd.f32 %v724, %v810
      %v847 = vadd.f32 %v725, %v815
      %v848 = vadd.f32 %v726, %v818
      %v849 = vadd.f32 %v727, %v823
      %v850 = vadd.f32 %v728, %v826
      %v851 = vadd.f32 %v729, %v831
      %v852 = vadd.f32 %v730, %v834
      %v853 = vadd.f32 %v731, %v839
      %v854 = vadd.f32 %v732, %v842
      %855 = vst.msk [vmem:[#allocation2] sm:$0xff] %vm411, %v845
      %856 = vst.msk [vmem:[#allocation2 + $0x8] sm:$0xff] %vm411, %v846
      %857 = vst.msk [vmem:[#allocation2 + $0x10] sm:$0xff] %vm411, %v847
      %858 = vst.msk [vmem:[#allocation2 + $0x18] sm:$0xff] %vm411, %v848
      %859 = vst.msk [vmem:[#allocation2 + $0x20] sm:$0xff] %vm411, %v849
      %860 = vst.msk [vmem:[#allocation2 + $0x28] sm:$0xff] %vm411, %v850
      %861 = vst.msk [vmem:[#allocation2 + $0x30] sm:$0xff] %vm411, %v851
      %862 = vst.msk [vmem:[#allocation2 + $0x38] sm:$0xff] %vm411, %v852
      %863 = vst.msk [vmem:[#allocation2 + $0x40] sm:$0xff] %vm411, %v853
      %864 = vst.msk [vmem:[#allocation2 + $0x48] sm:$0xff] %vm411, %v854
      %v865 = vld [vmem:[#allocation2] sm:$0xff]
      %v866 = vld [vmem:[#allocation2 + $0x8] sm:$0xff]
      %v867 = vld [vmem:[#allocation2 + $0x10] sm:$0xff]
      %v868 = vld [vmem:[#allocation2 + $0x18] sm:$0xff]
      %v869 = vld [vmem:[#allocation2 + $0x20] sm:$0xff]
      %v870 = vld [vmem:[#allocation2 + $0x28] sm:$0xff]
      %v871 = vld [vmem:[#allocation2 + $0x30] sm:$0xff]
      %v872 = vld [vmem:[#allocation2 + $0x38] sm:$0xff]
      %v873 = vld [vmem:[#allocation2 + $0x40] sm:$0xff]
      %v874 = vld [vmem:[#allocation2 + $0x48] sm:$0xff]
      %s875 = scalar_lea.vmem %s232, 8
      %v876 = vld [vmem:[%s875] sm:$0x3]
      %vm877 = vsmask.f32 6400
      %v879 = vshrl.u32 %v737, 16
      %v881 = vrot.slane %v879, 1
      %v882 = vshll.u32 %v737, 16
      %v884 = vrot.slane %v882, 2
      %v885 = vor.u32 %v881, %v884
      %v887 = vshrl.u32 %v738, 16
      %v889 = vrot.slane %v887, 1
      %v890 = vshll.u32 %v738, 16
      %v892 = vrot.slane %v890, 2
      %v893 = vor.u32 %v889, %v892
      %v894 = vsel %vm877, %v885, %v893
      %v896 = vshrl.u32 %v739, 16
      %v898 = vrot.slane %v896, 1
      %v899 = vshll.u32 %v739, 16
      %v901 = vrot.slane %v899, 2
      %v902 = vor.u32 %v898, %v901
      %v903 = vsel %vm877, %v893, %v902
      %v905 = vshrl.u32 %v740, 16
      %v907 = vrot.slane %v905, 1
      %v908 = vshll.u32 %v740, 16
      %v910 = vrot.slane %v908, 2
      %v911 = vor.u32 %v907, %v910
      %v912 = vsel %vm877, %v902, %v911
      %v914 = vshrl.u32 %v741, 16
      %v916 = vrot.slane %v914, 1
      %v917 = vshll.u32 %v741, 16
      %v919 = vrot.slane %v917, 2
      %v920 = vor.u32 %v916, %v919
      %v921 = vsel %vm877, %v911, %v920
      %v923 = vshrl.u32 %v742, 16
      %v925 = vrot.slane %v923, 1
      %v926 = vshll.u32 %v742, 16
      %v928 = vrot.slane %v926, 2
      %v929 = vor.u32 %v925, %v928
      %v930 = vsel %vm877, %v920, %v929
      %v932 = vsel %vm308, %v894, 0
      %v935 = vsel %vm308, %v903, 0
      %v938 = vsel %vm308, %v912, 0
      %v941 = vsel %vm308, %v921, 0
      %v944 = vsel %vm308, %v930, 0
      %v947 = vsel %vm324, %v876, 0
      %949 = vmatprep.subr.bf16.mxu0 0
      %950 = vmatpush1.bf16.msra.mxu0 %v947
      %951 = vmatprep.subr.bf16.mxu0 0
      %952 = vmatpush1.bf16.msra.mxu0 0
      %953 = vmatprep.subr.bf16.mxu0 0
      %954 = vmatpush1.bf16.msra.mxu0 0
      %955 = vmatprep.subr.bf16.mxu0 0
      %956 = vmatpush1.bf16.msra.mxu0 0
      %957 = vmatprep.subr.bf16.mxu0 0
      %958 = vmatpush1.bf16.msra.mxu0 0
      %959 = vmatprep.subr.bf16.mxu0 0
      %960 = vmatpush1.bf16.msra.mxu0 0
      %961 = vmatprep.subr.bf16.mxu0 0
      %962 = vmatpush1.bf16.msra.mxu0 0
      %963 = vmatprep.subr.bf16.mxu0 0
      %964 = vmatpush1.bf16.msra.mxu0 0
      %965 = vmatprep.subr.bf16.mxu0 0
      %966 = vmatpush1.bf16.msra.mxu0 0
      %967 = vmatprep.subr.bf16.mxu0 0
      %968 = vmatpush1.bf16.msra.mxu0 0
      %969 = vmatprep.subr.bf16.mxu0 0
      %970 = vmatpush1.bf16.msra.mxu0 0
      %971 = vmatprep.subr.bf16.mxu0 0
      %972 = vmatpush1.bf16.msra.mxu0 0
      %973 = vmatprep.subr.bf16.mxu0 0
      %974 = vmatpush1.bf16.msra.mxu0 0
      %975 = vmatprep.subr.bf16.mxu0 0
      %976 = vmatpush1.bf16.msra.mxu0 0
      %977 = vmatprep.subr.bf16.mxu0 0
      %978 = vmatpush1.bf16.msra.mxu0 0
      %979 = vmatprep.subr.bf16.mxu0 0
      %980 = vmatpush1.bf16.msra.mxu0 0
      %981 = vmatprep.mubr.bf16.mxu0 0
      %982 = vmatmul.mubr.bf16.gmra.mrb[0].mxu0 %v932
      %v983 = vpop.f32.mrb[0].mxu0
      %v984 = vadd.f32 0.0, %v983
      %v985 = vpop.f32.mrb[0].mxu0
      %v986 = vpop.f32.mrb[0].mxu0
      %v987 = vadd.f32 0.0, %v986
      %v988 = vpop.f32.mrb[0].mxu0
      %989 = vmatprep.mubr.bf16.mxu0 0
      %990 = vmatmul.mubr.bf16.gmra.mrb[0].mxu0 %v935
      %v991 = vpop.f32.mrb[0].mxu0
      %v992 = vadd.f32 0.0, %v991
      %v993 = vpop.f32.mrb[0].mxu0
      %v994 = vpop.f32.mrb[0].mxu0
      %v995 = vadd.f32 0.0, %v994
      %v996 = vpop.f32.mrb[0].mxu0
      %997 = vmatprep.mubr.bf16.mxu0 0
      %998 = vmatmul.mubr.bf16.gmra.mrb[0].mxu0 %v938
      %v999 = vpop.f32.mrb[0].mxu0
      %v1000 = vadd.f32 0.0, %v999
      %v1001 = vpop.f32.mrb[0].mxu0
      %v1002 = vpop.f32.mrb[0].mxu0
      %v1003 = vadd.f32 0.0, %v1002
      %v1004 = vpop.f32.mrb[0].mxu0
      %1005 = vmatprep.mubr.bf16.mxu0 0
      %1006 = vmatmul.mubr.bf16.gmra.mrb[0].mxu0 %v941
      %v1007 = vpop.f32.mrb[0].mxu0
      %v1008 = vadd.f32 0.0, %v1007
      %v1009 = vpop.f32.mrb[0].mxu0
      %v1010 = vpop.f32.mrb[0].mxu0
      %v1011 = vadd.f32 0.0, %v1010
      %v1012 = vpop.f32.mrb[0].mxu0
      %1013 = vmatprep.mubr.bf16.mxu0 0
      %1014 = vmatmul.mubr.bf16.gmra.mrb[0].mxu0 %v944
      %v1015 = vpop.f32.mrb[0].mxu0
      %v1016 = vadd.f32 0.0, %v1015
      %v1017 = vpop.f32.mrb[0].mxu0
      %v1018 = vpop.f32.mrb[0].mxu0
      %v1019 = vadd.f32 0.0, %v1018
      %v1020 = vpop.f32.mrb[0].mxu0
      %1021 = vdwg.mxu0
      %v1022 = vadd.f32 %v865, %v984
      %v1023 = vadd.f32 %v866, %v987
      %v1024 = vadd.f32 %v867, %v992
      %v1025 = vadd.f32 %v868, %v995
      %v1026 = vadd.f32 %v869, %v1000
      %v1027 = vadd.f32 %v870, %v1003
      %v1028 = vadd.f32 %v871, %v1008
      %v1029 = vadd.f32 %v872, %v1011
      %v1030 = vadd.f32 %v873, %v1016
      %v1031 = vadd.f32 %v874, %v1019
      %1032 = vst.msk [vmem:[#allocation2] sm:$0xff] %vm411, %v1022
      %1033 = vst.msk [vmem:[#allocation2 + $0x8] sm:$0xff] %vm411, %v1023
      %1034 = vst.msk [vmem:[#allocation2 + $0x10] sm:$0xff] %vm411, %v1024
      %1035 = vst.msk [vmem:[#allocation2 + $0x18] sm:$0xff] %vm411, %v1025
      %1036 = vst.msk [vmem:[#allocation2 + $0x20] sm:$0xff] %vm411, %v1026
      %1037 = vst.msk [vmem:[#allocation2 + $0x28] sm:$0xff] %vm411, %v1027
      %1038 = vst.msk [vmem:[#allocation2 + $0x30] sm:$0xff] %vm411, %v1028
      %1039 = vst.msk [vmem:[#allocation2 + $0x38] sm:$0xff] %vm411, %v1029
      %1040 = vst.msk [vmem:[#allocation2 + $0x40] sm:$0xff] %vm411, %v1030
      %1041 = vst.msk [vmem:[#allocation2 + $0x48] sm:$0xff] %vm411, %v1031
      %v1042 = vld [vmem:[#allocation2] sm:$0xff]
      %v1043 = vld [vmem:[#allocation2 + $0x8] sm:$0xff]
      %v1044 = vld [vmem:[#allocation2 + $0x10] sm:$0xff]
      %v1045 = vld [vmem:[#allocation2 + $0x18] sm:$0xff]
      %v1046 = vld [vmem:[#allocation2 + $0x20] sm:$0xff]
      %v1047 = vld [vmem:[#allocation2 + $0x28] sm:$0xff]
      %v1048 = vld [vmem:[#allocation2 + $0x30] sm:$0xff]
      %v1049 = vld [vmem:[#allocation2 + $0x38] sm:$0xff]
      %v1050 = vld [vmem:[#allocation2 + $0x40] sm:$0xff]
      %v1051 = vld [vmem:[#allocation2 + $0x48] sm:$0xff]
      %s1052 = scalar_lea.vmem %s232, 10
      %v1053 = vld [vmem:[%s1052] sm:$0x3]
      %vm1054 = vcmask 1045504
      %v1055 = vrot.slane %v737, 2
      %v1056 = vrot.slane %v738, 2
      %v1057 = vsel %vm1054, %v1055, %v1056
      %v1058 = vrot.slane %v739, 2
      %v1059 = vsel %vm1054, %v1056, %v1058
      %v1060 = vrot.slane %v740, 2
      %v1061 = vsel %vm1054, %v1058, %v1060
      %v1062 = vrot.slane %v741, 2
      %v1063 = vsel %vm1054, %v1060, %v1062
      %v1064 = vrot.slane %v742, 2
      %v1065 = vsel %vm1054, %v1062, %v1064
      %v1067 = vsel %vm308, %v1057, 0
      %v1070 = vsel %vm308, %v1059, 0
      %v1073 = vsel %vm308, %v1061, 0
      %v1076 = vsel %vm308, %v1063, 0
      %v1079 = vsel %vm308, %v1065, 0
      %v1082 = vsel %vm324, %v1053, 0
      %1084 = vmatprep.subr.bf16.mxu0 0
      %1085 = vmatpush1.bf16.msra.mxu0 %v1082
      %1086 = vmatprep.subr.bf16.mxu0 0
      %1087 = vmatpush1.bf16.msra.mxu0 0
      %1088 = vmatprep.subr.bf16.mxu0 0
      %1089 = vmatpush1.bf16.msra.mxu0 0
      %1090 = vmatprep.subr.bf16.mxu0 0
      %1091 = vmatpush1.bf16.msra.mxu0 0
      %1092 = vmatprep.subr.bf16.mxu0 0
      %1093 = vmatpush1.bf16.msra.mxu0 0
      %1094 = vmatprep.subr.bf16.mxu0 0
      %1095 = vmatpush1.bf16.msra.mxu0 0
      %1096 = vmatprep.subr.bf16.mxu0 0
      %1097 = vmatpush1.bf16.msra.mxu0 0
      %1098 = vmatprep.subr.bf16.mxu0 0
      %1099 = vmatpush1.bf16.msra.mxu0 0
      %1100 = vmatprep.subr.bf16.mxu0 0
      %1101 = vmatpush1.bf16.msra.mxu0 0
      %1102 = vmatprep.subr.bf16.mxu0 0
      %1103 = vmatpush1.bf16.msra.mxu0 0
      %1104 = vmatprep.subr.bf16.mxu0 0
      %1105 = vmatpush1.bf16.msra.mxu0 0
      %1106 = vmatprep.subr.bf16.mxu0 0
      %1107 = vmatpush1.bf16.msra.mxu0 0
      %1108 = vmatprep.subr.bf16.mxu0 0
      %1109 = vmatpush1.bf16.msra.mxu0 0
      %1110 = vmatprep.subr.bf16.mxu0 0
      %1111 = vmatpush1.bf16.msra.mxu0 0
      %1112 = vmatprep.subr.bf16.mxu0 0
      %1113 = vmatpush1.bf16.msra.mxu0 0
      %1114 = vmatprep.subr.bf16.mxu0 0
      %1115 = vmatpush1.bf16.msra.mxu0 0
      %1116 = vmatprep.mubr.bf16.mxu0 0
      %1117 = vmatmul.mubr.bf16.gmra.mrb[0].mxu0 %v1067
      %v1118 = vpop.f32.mrb[0].mxu0
      %v1119 = vadd.f32 0.0, %v1118
      %v1120 = vpop.f32.mrb[0].mxu0
      %v1121 = vpop.f32.mrb[0].mxu0
      %v1122 = vadd.f32 0.0, %v1121
      %v1123 = vpop.f32.mrb[0].mxu0
      %1124 = vmatprep.mubr.bf16.mxu0 0
      %1125 = vmatmul.mubr.bf16.gmra.mrb[0].mxu0 %v1070
      %v1126 = vpop.f32.mrb[0].mxu0
      %v1127 = vadd.f32 0.0, %v1126
      %v1128 = vpop.f32.mrb[0].mxu0
      %v1129 = vpop.f32.mrb[0].mxu0
      %v1130 = vadd.f32 0.0, %v1129
      %v1131 = vpop.f32.mrb[0].mxu0
      %1132 = vmatprep.mubr.bf16.mxu0 0
      %1133 = vmatmul.mubr.bf16.gmra.mrb[0].mxu0 %v1073
      %v1134 = vpop.f32.mrb[0].mxu0
      %v1135 = vadd.f32 0.0, %v1134
      %v1136 = vpop.f32.mrb[0].mxu0
      %v1137 = vpop.f32.mrb[0].mxu0
      %v1138 = vadd.f32 0.0, %v1137
      %v1139 = vpop.f32.mrb[0].mxu0
      %1140 = vmatprep.mubr.bf16.mxu0 0
      %1141 = vmatmul.mubr.bf16.gmra.mrb[0].mxu0 %v1076
      %v1142 = vpop.f32.mrb[0].mxu0
      %v1143 = vadd.f32 0.0, %v1142
      %v1144 = vpop.f32.mrb[0].mxu0
      %v1145 = vpop.f32.mrb[0].mxu0
      %v1146 = vadd.f32 0.0, %v1145
      %v1147 = vpop.f32.mrb[0].mxu0
      %1148 = vmatprep.mubr.bf16.mxu0 0
      %1149 = vmatmul.mubr.bf16.gmra.mrb[0].mxu0 %v1079
      %v1150 = vpop.f32.mrb[0].mxu0
      %v1151 = vadd.f32 0.0, %v1150
      %v1152 = vpop.f32.mrb[0].mxu0
      %v1153 = vpop.f32.mrb[0].mxu0
      %v1154 = vadd.f32 0.0, %v1153
      %v1155 = vpop.f32.mrb[0].mxu0
      %1156 = vdwg.mxu0
      %v1157 = vadd.f32 %v1042, %v1119
      %v1158 = vadd.f32 %v1043, %v1122
      %v1159 = vadd.f32 %v1044, %v1127
      %v1160 = vadd.f32 %v1045, %v1130
      %v1161 = vadd.f32 %v1046, %v1135
      %v1162 = vadd.f32 %v1047, %v1138
      %v1163 = vadd.f32 %v1048, %v1143
      %v1164 = vadd.f32 %v1049, %v1146
      %v1165 = vadd.f32 %v1050, %v1151
      %v1166 = vadd.f32 %v1051, %v1154
      %1167 = vst.msk [vmem:[#allocation2] sm:$0xff] %vm411, %v1157
      %1168 = vst.msk [vmem:[#allocation2 + $0x8] sm:$0xff] %vm411, %v1158
      %1169 = vst.msk [vmem:[#allocation2 + $0x10] sm:$0xff] %vm411, %v1159
      %1170 = vst.msk [vmem:[#allocation2 + $0x18] sm:$0xff] %vm411, %v1160
      %1171 = vst.msk [vmem:[#allocation2 + $0x20] sm:$0xff] %vm411, %v1161
      %1172 = vst.msk [vmem:[#allocation2 + $0x28] sm:$0xff] %vm411, %v1162
      %1173 = vst.msk [vmem:[#allocation2 + $0x30] sm:$0xff] %vm411, %v1163
      %1174 = vst.msk [vmem:[#allocation2 + $0x38] sm:$0xff] %vm411, %v1164
      %1175 = vst.msk [vmem:[#allocation2 + $0x40] sm:$0xff] %vm411, %v1165
      %1176 = vst.msk [vmem:[#allocation2 + $0x48] sm:$0xff] %vm411, %v1166
      %v1177 = vld [vmem:[#allocation2] sm:$0xff]
      %v1178 = vld [vmem:[#allocation2 + $0x8] sm:$0xff]
      %v1179 = vld [vmem:[#allocation2 + $0x10] sm:$0xff]
      %v1180 = vld [vmem:[#allocation2 + $0x18] sm:$0xff]
      %v1181 = vld [vmem:[#allocation2 + $0x20] sm:$0xff]
      %v1182 = vld [vmem:[#allocation2 + $0x28] sm:$0xff]
      %v1183 = vld [vmem:[#allocation2 + $0x30] sm:$0xff]
      %v1184 = vld [vmem:[#allocation2 + $0x38] sm:$0xff]
      %v1185 = vld [vmem:[#allocation2 + $0x40] sm:$0xff]
      %v1186 = vld [vmem:[#allocation2 + $0x48] sm:$0xff]
      %s1187 = scalar_lea.vmem %s232, 12
      %v1188 = vld [vmem:[%s1187] sm:$0x3]
      %v1190 = vunpack.c.l.b16 %v271
      %v1191 = vpack.c.b16 %v736, %v435
      %v1192 = vpack.c.b16 %v1190, %v1190
      %v1193 = vrot.slane %v304, 2
      %v1194 = vrot.slane %v305, 2
      %v1195 = vsel %vm1054, %v1193, %v1194
      %v1196 = vrot.slane %v306, 2
      %v1197 = vsel %vm1054, %v1194, %v1196
      %v1198 = vrot.slane %v307, 2
      %v1199 = vsel %vm1054, %v1196, %v1198
      %v1200 = vrot.slane %v1191, 2
      %v1201 = vsel %vm1054, %v1198, %v1200
      %v1202 = vrot.slane %v1192, 2
      %v1203 = vsel %vm1054, %v1200, %v1202
      %v1205 = vsel %vm308, %v1195, 0
      %v1208 = vsel %vm308, %v1197, 0
      %v1211 = vsel %vm308, %v1199, 0
      %v1214 = vsel %vm308, %v1201, 0
      %v1217 = vsel %vm308, %v1203, 0
      %v1220 = vsel %vm324, %v1188, 0
      %1222 = vmatprep.subr.bf16.mxu0 0
      %1223 = vmatpush1.bf16.msra.mxu0 %v1220
      %1224 = vmatprep.subr.bf16.mxu0 0
      %1225 = vmatpush1.bf16.msra.mxu0 0
      %1226 = vmatprep.subr.bf16.mxu0 0
      %1227 = vmatpush1.bf16.msra.mxu0 0
      %1228 = vmatprep.subr.bf16.mxu0 0
      %1229 = vmatpush1.bf16.msra.mxu0 0
      %1230 = vmatprep.subr.bf16.mxu0 0
      %1231 = vmatpush1.bf16.msra.mxu0 0
      %1232 = vmatprep.subr.bf16.mxu0 0
      %1233 = vmatpush1.bf16.msra.mxu0 0
      %1234 = vmatprep.subr.bf16.mxu0 0
      %1235 = vmatpush1.bf16.msra.mxu0 0
      %1236 = vmatprep.subr.bf16.mxu0 0
      %1237 = vmatpush1.bf16.msra.mxu0 0
      %1238 = vmatprep.subr.bf16.mxu0 0
      %1239 = vmatpush1.bf16.msra.mxu0 0
      %1240 = vmatprep.subr.bf16.mxu0 0
      %1241 = vmatpush1.bf16.msra.mxu0 0
      %1242 = vmatprep.subr.bf16.mxu0 0
      %1243 = vmatpush1.bf16.msra.mxu0 0
      %1244 = vmatprep.subr.bf16.mxu0 0
      %1245 = vmatpush1.bf16.msra.mxu0 0
      %1246 = vmatprep.subr.bf16.mxu0 0
      %1247 = vmatpush1.bf16.msra.mxu0 0
      %1248 = vmatprep.subr.bf16.mxu0 0
      %1249 = vmatpush1.bf16.msra.mxu0 0
      %1250 = vmatprep.subr.bf16.mxu0 0
      %1251 = vmatpush1.bf16.msra.mxu0 0
      %1252 = vmatprep.subr.bf16.mxu0 0
      %1253 = vmatpush1.bf16.msra.mxu0 0
      %1254 = vmatprep.mubr.bf16.mxu0 0
      %1255 = vmatmul.mubr.bf16.gmra.mrb[0].mxu0 %v1205
      %v1256 = vpop.f32.mrb[0].mxu0
      %v1257 = vadd.f32 0.0, %v1256
      %v1258 = vpop.f32.mrb[0].mxu0
      %v1259 = vpop.f32.mrb[0].mxu0
      %v1260 = vadd.f32 0.0, %v1259
      %v1261 = vpop.f32.mrb[0].mxu0
      %1262 = vmatprep.mubr.bf16.mxu0 0
      %1263 = vmatmul.mubr.bf16.gmra.mrb[0].mxu0 %v1208
      %v1264 = vpop.f32.mrb[0].mxu0
      %v1265 = vadd.f32 0.0, %v1264
      %v1266 = vpop.f32.mrb[0].mxu0
      %v1267 = vpop.f32.mrb[0].mxu0
      %v1268 = vadd.f32 0.0, %v1267
      %v1269 = vpop.f32.mrb[0].mxu0
      %1270 = vmatprep.mubr.bf16.mxu0 0
      %1271 = vmatmul.mubr.bf16.gmra.mrb[0].mxu0 %v1211
      %v1272 = vpop.f32.mrb[0].mxu0
      %v1273 = vadd.f32 0.0, %v1272
      %v1274 = vpop.f32.mrb[0].mxu0
      %v1275 = vpop.f32.mrb[0].mxu0
      %v1276 = vadd.f32 0.0, %v1275
      %v1277 = vpop.f32.mrb[0].mxu0
      %1278 = vmatprep.mubr.bf16.mxu0 0
      %1279 = vmatmul.mubr.bf16.gmra.mrb[0].mxu0 %v1214
      %v1280 = vpop.f32.mrb[0].mxu0
      %v1281 = vadd.f32 0.0, %v1280
      %v1282 = vpop.f32.mrb[0].mxu0
      %v1283 = vpop.f32.mrb[0].mxu0
      %v1284 = vadd.f32 0.0, %v1283
      %v1285 = vpop.f32.mrb[0].mxu0
      %1286 = vmatprep.mubr.bf16.mxu0 0
      %1287 = vmatmul.mubr.bf16.gmra.mrb[0].mxu0 %v1217
      %v1288 = vpop.f32.mrb[0].mxu0
      %v1289 = vadd.f32 0.0, %v1288
      %v1290 = vpop.f32.mrb[0].mxu0
      %v1291 = vpop.f32.mrb[0].mxu0
      %v1292 = vadd.f32 0.0, %v1291
      %v1293 = vpop.f32.mrb[0].mxu0
      %1294 = vdwg.mxu0
      %v1295 = vadd.f32 %v1177, %v1257
      %v1296 = vadd.f32 %v1178, %v1260
      %v1297 = vadd.f32 %v1179, %v1265
      %v1298 = vadd.f32 %v1180, %v1268
      %v1299 = vadd.f32 %v1181, %v1273
      %v1300 = vadd.f32 %v1182, %v1276
      %v1301 = vadd.f32 %v1183, %v1281
      %v1302 = vadd.f32 %v1184, %v1284
      %v1303 = vadd.f32 %v1185, %v1289
      %v1304 = vadd.f32 %v1186, %v1292
      %1305 = vst.msk [vmem:[#allocation2] sm:$0xff] %vm411, %v1295
      %1306 = vst.msk [vmem:[#allocation2 + $0x8] sm:$0xff] %vm411, %v1296
      %1307 = vst.msk [vmem:[#allocation2 + $0x10] sm:$0xff] %vm411, %v1297
      %1308 = vst.msk [vmem:[#allocation2 + $0x18] sm:$0xff] %vm411, %v1298
      %1309 = vst.msk [vmem:[#allocation2 + $0x20] sm:$0xff] %vm411, %v1299
      %1310 = vst.msk [vmem:[#allocation2 + $0x28] sm:$0xff] %vm411, %v1300
      %1311 = vst.msk [vmem:[#allocation2 + $0x30] sm:$0xff] %vm411, %v1301
      %1312 = vst.msk [vmem:[#allocation2 + $0x38] sm:$0xff] %vm411, %v1302
      %1313 = vst.msk [vmem:[#allocation2 + $0x40] sm:$0xff] %vm411, %v1303
      %1314 = vst.msk [vmem:[#allocation2 + $0x48] sm:$0xff] %vm411, %v1304
      %v1315 = vld [vmem:[#allocation2] sm:$0xff]
      %v1316 = vld [vmem:[#allocation2 + $0x8] sm:$0xff]
      %v1317 = vld [vmem:[#allocation2 + $0x10] sm:$0xff]
      %v1318 = vld [vmem:[#allocation2 + $0x18] sm:$0xff]
      %v1319 = vld [vmem:[#allocation2 + $0x20] sm:$0xff]
      %v1320 = vld [vmem:[#allocation2 + $0x28] sm:$0xff]
      %v1321 = vld [vmem:[#allocation2 + $0x30] sm:$0xff]
      %v1322 = vld [vmem:[#allocation2 + $0x38] sm:$0xff]
      %v1323 = vld [vmem:[#allocation2 + $0x40] sm:$0xff]
      %v1324 = vld [vmem:[#allocation2 + $0x48] sm:$0xff]
      %s1325 = scalar_lea.vmem %s232, 14
      %v1326 = vld [vmem:[%s1325] sm:$0x3]
      %vm1327 = vsmask.f32 5376
      %v1328 = vrot.slane %v448, 2
      %v1329 = vrot.slane %v444, 3
      %v1330 = vor.u32 %v1328, %v1329
      %v1331 = vrot.slane %v455, 2
      %v1332 = vrot.slane %v451, 3
      %v1333 = vor.u32 %v1331, %v1332
      %v1334 = vsel %vm1327, %v1330, %v1333
      %v1335 = vrot.slane %v462, 2
      %v1336 = vrot.slane %v458, 3
      %v1337 = vor.u32 %v1335, %v1336
      %v1338 = vsel %vm1327, %v1333, %v1337
      %v1339 = vrot.slane %v469, 2
      %v1340 = vrot.slane %v465, 3
      %v1341 = vor.u32 %v1339, %v1340
      %v1342 = vsel %vm1327, %v1337, %v1341
      %v1344 = vshrl.u32 %v1191, 16
      %v1346 = vrot.slane %v1344, 2
      %v1347 = vshll.u32 %v1191, 16
      %v1349 = vrot.slane %v1347, 3
      %v1350 = vor.u32 %v1346, %v1349
      %v1351 = vsel %vm1327, %v1341, %v1350
      %v1353 = vshrl.u32 %v1192, 16
      %v1355 = vrot.slane %v1353, 2
      %v1356 = vshll.u32 %v1192, 16
      %v1358 = vrot.slane %v1356, 3
      %v1359 = vor.u32 %v1355, %v1358
      %v1360 = vsel %vm1327, %v1350, %v1359
      %v1362 = vsel %vm308, %v1334, 0
      %v1365 = vsel %vm308, %v1338, 0
      %v1368 = vsel %vm308, %v1342, 0
      %v1371 = vsel %vm308, %v1351, 0
      %v1374 = vsel %vm308, %v1360, 0
      %v1377 = vsel %vm324, %v1326, 0
      %1379 = vmatprep.subr.bf16.mxu0 0
      %1380 = vmatpush1.bf16.msra.mxu0 %v1377
      %1381 = vmatprep.subr.bf16.mxu0 0
      %1382 = vmatpush1.bf16.msra.mxu0 0
      %1383 = vmatprep.subr.bf16.mxu0 0
      %1384 = vmatpush1.bf16.msra.mxu0 0
      %1385 = vmatprep.subr.bf16.mxu0 0
      %1386 = vmatpush1.bf16.msra.mxu0 0
      %1387 = vmatprep.subr.bf16.mxu0 0
      %1388 = vmatpush1.bf16.msra.mxu0 0
      %1389 = vmatprep.subr.bf16.mxu0 0
      %1390 = vmatpush1.bf16.msra.mxu0 0
      %1391 = vmatprep.subr.bf16.mxu0 0
      %1392 = vmatpush1.bf16.msra.mxu0 0
      %1393 = vmatprep.subr.bf16.mxu0 0
      %1394 = vmatpush1.bf16.msra.mxu0 0
      %1395 = vmatprep.subr.bf16.mxu0 0
      %1396 = vmatpush1.bf16.msra.mxu0 0
      %1397 = vmatprep.subr.bf16.mxu0 0
      %1398 = vmatpush1.bf16.msra.mxu0 0
      %1399 = vmatprep.subr.bf16.mxu0 0
      %1400 = vmatpush1.bf16.msra.mxu0 0
      %1401 = vmatprep.subr.bf16.mxu0 0
      %1402 = vmatpush1.bf16.msra.mxu0 0
      %1403 = vmatprep.subr.bf16.mxu0 0
      %1404 = vmatpush1.bf16.msra.mxu0 0
      %1405 = vmatprep.subr.bf16.mxu0 0
      %1406 = vmatpush1.bf16.msra.mxu0 0
      %1407 = vmatprep.subr.bf16.mxu0 0
      %1408 = vmatpush1.bf16.msra.mxu0 0
      %1409 = vmatprep.subr.bf16.mxu0 0
      %1410 = vmatpush1.bf16.msra.mxu0 0
      %1411 = vmatprep.mubr.bf16.mxu0 0
      %1412 = vmatmul.mubr.bf16.gmra.mrb[0].mxu0 %v1362
      %v1413 = vpop.f32.mrb[0].mxu0
      %v1414 = vadd.f32 0.0, %v1413
      %v1415 = vpop.f32.mrb[0].mxu0
      %v1416 = vpop.f32.mrb[0].mxu0
      %v1417 = vadd.f32 0.0, %v1416
      %v1418 = vpop.f32.mrb[0].mxu0
      %1419 = vmatprep.mubr.bf16.mxu0 0
      %1420 = vmatmul.mubr.bf16.gmra.mrb[0].mxu0 %v1365
      %v1421 = vpop.f32.mrb[0].mxu0
      %v1422 = vadd.f32 0.0, %v1421
      %v1423 = vpop.f32.mrb[0].mxu0
      %v1424 = vpop.f32.mrb[0].mxu0
      %v1425 = vadd.f32 0.0, %v1424
      %v1426 = vpop.f32.mrb[0].mxu0
      %1427 = vmatprep.mubr.bf16.mxu0 0
      %1428 = vmatmul.mubr.bf16.gmra.mrb[0].mxu0 %v1368
      %v1429 = vpop.f32.mrb[0].mxu0
      %v1430 = vadd.f32 0.0, %v1429
      %v1431 = vpop.f32.mrb[0].mxu0
      %v1432 = vpop.f32.mrb[0].mxu0
      %v1433 = vadd.f32 0.0, %v1432
      %v1434 = vpop.f32.mrb[0].mxu0
      %1435 = vmatprep.mubr.bf16.mxu0 0
      %1436 = vmatmul.mubr.bf16.gmra.mrb[0].mxu0 %v1371
      %v1437 = vpop.f32.mrb[0].mxu0
      %v1438 = vadd.f32 0.0, %v1437
      %v1439 = vpop.f32.mrb[0].mxu0
      %v1440 = vpop.f32.mrb[0].mxu0
      %v1441 = vadd.f32 0.0, %v1440
      %v1442 = vpop.f32.mrb[0].mxu0
      %1443 = vmatprep.mubr.bf16.mxu0 0
      %1444 = vmatmul.mubr.bf16.gmra.mrb[0].mxu0 %v1374
      %v1445 = vpop.f32.mrb[0].mxu0
      %v1446 = vadd.f32 0.0, %v1445
      %v1447 = vpop.f32.mrb[0].mxu0
      %v1448 = vpop.f32.mrb[0].mxu0
      %v1449 = vadd.f32 0.0, %v1448
      %v1450 = vpop.f32.mrb[0].mxu0
      %1451 = vdwg.mxu0
      %v1452 = vadd.f32 %v1315, %v1414
      %v1453 = vadd.f32 %v1316, %v1417
      %v1454 = vadd.f32 %v1317, %v1422
      %v1455 = vadd.f32 %v1318, %v1425
      %v1456 = vadd.f32 %v1319, %v1430
      %v1457 = vadd.f32 %v1320, %v1433
      %v1458 = vadd.f32 %v1321, %v1438
      %v1459 = vadd.f32 %v1322, %v1441
      %v1460 = vadd.f32 %v1323, %v1446
      %v1461 = vadd.f32 %v1324, %v1449
      %1462 = vst.msk [vmem:[#allocation2] sm:$0xff] %vm411, %v1452
      %1463 = vst.msk [vmem:[#allocation2 + $0x8] sm:$0xff] %vm411, %v1453
      %1464 = vst.msk [vmem:[#allocation2 + $0x10] sm:$0xff] %vm411, %v1454
      %1465 = vst.msk [vmem:[#allocation2 + $0x18] sm:$0xff] %vm411, %v1455
      %1466 = vst.msk [vmem:[#allocation2 + $0x20] sm:$0xff] %vm411, %v1456
      %1467 = vst.msk [vmem:[#allocation2 + $0x28] sm:$0xff] %vm411, %v1457
      %1468 = vst.msk [vmem:[#allocation2 + $0x30] sm:$0xff] %vm411, %v1458
      %1469 = vst.msk [vmem:[#allocation2 + $0x38] sm:$0xff] %vm411, %v1459
      %1470 = vst.msk [vmem:[#allocation2 + $0x40] sm:$0xff] %vm411, %v1460
      %1471 = vst.msk [vmem:[#allocation2 + $0x48] sm:$0xff] %vm411, %v1461
      %v1472 = vld [vmem:[#allocation2] sm:$0xff]
      %v1473 = vld [vmem:[#allocation2 + $0x8] sm:$0xff]
      %v1474 = vld [vmem:[#allocation2 + $0x10] sm:$0xff]
      %v1475 = vld [vmem:[#allocation2 + $0x18] sm:$0xff]
      %v1476 = vld [vmem:[#allocation2 + $0x20] sm:$0xff]
      %v1477 = vld [vmem:[#allocation2 + $0x28] sm:$0xff]
      %v1478 = vld [vmem:[#allocation2 + $0x30] sm:$0xff]
      %v1479 = vld [vmem:[#allocation2 + $0x38] sm:$0xff]
      %v1480 = vld [vmem:[#allocation2 + $0x40] sm:$0xff]
      %v1481 = vld [vmem:[#allocation2 + $0x48] sm:$0xff]
      %s1482 = scalar_lea.vmem %s232, 16
      %v1483 = vld [vmem:[%s1482] sm:$0x3]
      %vm1484 = vcmask 1044480
      %v1485 = vrot.slane %v304, 3
      %v1486 = vrot.slane %v305, 3
      %v1487 = vsel %vm1484, %v1485, %v1486
      %v1488 = vrot.slane %v306, 3
      %v1489 = vsel %vm1484, %v1486, %v1488
      %v1490 = vrot.slane %v307, 3
      %v1491 = vsel %vm1484, %v1488, %v1490
      %v1492 = vrot.slane %v1191, 3
      %v1493 = vsel %vm1484, %v1490, %v1492
      %v1494 = vrot.slane %v1192, 3
      %v1495 = vsel %vm1484, %v1492, %v1494
      %v1497 = vsel %vm308, %v1487, 0
      %v1500 = vsel %vm308, %v1489, 0
      %v1503 = vsel %vm308, %v1491, 0
      %v1506 = vsel %vm308, %v1493, 0
      %v1509 = vsel %vm308, %v1495, 0
      %v1512 = vsel %vm324, %v1483, 0
      %1514 = vmatprep.subr.bf16.mxu0 0
      %1515 = vmatpush1.bf16.msra.mxu0 %v1512
      %1516 = vmatprep.subr.bf16.mxu0 0
      %1517 = vmatpush1.bf16.msra.mxu0 0
      %1518 = vmatprep.subr.bf16.mxu0 0
      %1519 = vmatpush1.bf16.msra.mxu0 0
      %1520 = vmatprep.subr.bf16.mxu0 0
      %1521 = vmatpush1.bf16.msra.mxu0 0
      %1522 = vmatprep.subr.bf16.mxu0 0
      %1523 = vmatpush1.bf16.msra.mxu0 0
      %1524 = vmatprep.subr.bf16.mxu0 0
      %1525 = vmatpush1.bf16.msra.mxu0 0
      %1526 = vmatprep.subr.bf16.mxu0 0
      %1527 = vmatpush1.bf16.msra.mxu0 0
      %1528 = vmatprep.subr.bf16.mxu0 0
      %1529 = vmatpush1.bf16.msra.mxu0 0
      %1530 = vmatprep.subr.bf16.mxu0 0
      %1531 = vmatpush1.bf16.msra.mxu0 0
      %1532 = vmatprep.subr.bf16.mxu0 0
      %1533 = vmatpush1.bf16.msra.mxu0 0
      %1534 = vmatprep.subr.bf16.mxu0 0
      %1535 = vmatpush1.bf16.msra.mxu0 0
      %1536 = vmatprep.subr.bf16.mxu0 0
      %1537 = vmatpush1.bf16.msra.mxu0 0
      %1538 = vmatprep.subr.bf16.mxu0 0
      %1539 = vmatpush1.bf16.msra.mxu0 0
      %1540 = vmatprep.subr.bf16.mxu0 0
      %1541 = vmatpush1.bf16.msra.mxu0 0
      %1542 = vmatprep.subr.bf16.mxu0 0
      %1543 = vmatpush1.bf16.msra.mxu0 0
      %1544 = vmatprep.subr.bf16.mxu0 0
      %1545 = vmatpush1.bf16.msra.mxu0 0
      %1546 = vmatprep.mubr.bf16.mxu0 0
      %1547 = vmatmul.mubr.bf16.gmra.mrb[0].mxu0 %v1497
      %v1548 = vpop.f32.mrb[0].mxu0
      %v1549 = vadd.f32 0.0, %v1548
      %v1550 = vpop.f32.mrb[0].mxu0
      %v1551 = vpop.f32.mrb[0].mxu0
      %v1552 = vadd.f32 0.0, %v1551
      %v1553 = vpop.f32.mrb[0].mxu0
      %1554 = vmatprep.mubr.bf16.mxu0 0
      %1555 = vmatmul.mubr.bf16.gmra.mrb[0].mxu0 %v1500
      %v1556 = vpop.f32.mrb[0].mxu0
      %v1557 = vadd.f32 0.0, %v1556
      %v1558 = vpop.f32.mrb[0].mxu0
      %v1559 = vpop.f32.mrb[0].mxu0
      %v1560 = vadd.f32 0.0, %v1559
      %v1561 = vpop.f32.mrb[0].mxu0
      %1562 = vmatprep.mubr.bf16.mxu0 0
      %1563 = vmatmul.mubr.bf16.gmra.mrb[0].mxu0 %v1503
      %v1564 = vpop.f32.mrb[0].mxu0
      %v1565 = vadd.f32 0.0, %v1564
      %v1566 = vpop.f32.mrb[0].mxu0
      %v1567 = vpop.f32.mrb[0].mxu0
      %v1568 = vadd.f32 0.0, %v1567
      %v1569 = vpop.f32.mrb[0].mxu0
      %1570 = vmatprep.mubr.bf16.mxu0 0
      %1571 = vmatmul.mubr.bf16.gmra.mrb[0].mxu0 %v1506
      %v1572 = vpop.f32.mrb[0].mxu0
      %v1573 = vadd.f32 0.0, %v1572
      %v1574 = vpop.f32.mrb[0].mxu0
      %v1575 = vpop.f32.mrb[0].mxu0
      %v1576 = vadd.f32 0.0, %v1575
      %v1577 = vpop.f32.mrb[0].mxu0
      %1578 = vmatprep.mubr.bf16.mxu0 0
      %1579 = vmatmul.mubr.bf16.gmra.mrb[0].mxu0 %v1509
      %v1580 = vpop.f32.mrb[0].mxu0
      %v1581 = vadd.f32 0.0, %v1580
      %v1582 = vpop.f32.mrb[0].mxu0
      %v1583 = vpop.f32.mrb[0].mxu0
      %v1584 = vadd.f32 0.0, %v1583
      %v1585 = vpop.f32.mrb[0].mxu0
      %1586 = vdwg.mxu0
      %v1587 = vadd.f32 %v1472, %v1549
      %v1588 = vadd.f32 %v1473, %v1552
      %v1589 = vadd.f32 %v1474, %v1557
      %v1590 = vadd.f32 %v1475, %v1560
      %v1591 = vadd.f32 %v1476, %v1565
      %v1592 = vadd.f32 %v1477, %v1568
      %v1593 = vadd.f32 %v1478, %v1573
      %v1594 = vadd.f32 %v1479, %v1576
      %v1595 = vadd.f32 %v1480, %v1581
      %v1596 = vadd.f32 %v1481, %v1584
      %1597 = vst.msk [vmem:[#allocation2] sm:$0xff] %vm411, %v1587
      %1598 = vst.msk [vmem:[#allocation2 + $0x8] sm:$0xff] %vm411, %v1588
      %1599 = vst.msk [vmem:[#allocation2 + $0x10] sm:$0xff] %vm411, %v1589
      %1600 = vst.msk [vmem:[#allocation2 + $0x18] sm:$0xff] %vm411, %v1590
      %1601 = vst.msk [vmem:[#allocation2 + $0x20] sm:$0xff] %vm411, %v1591
      %1602 = vst.msk [vmem:[#allocation2 + $0x28] sm:$0xff] %vm411, %v1592
      %1603 = vst.msk [vmem:[#allocation2 + $0x30] sm:$0xff] %vm411, %v1593
      %1604 = vst.msk [vmem:[#allocation2 + $0x38] sm:$0xff] %vm411, %v1594
      %1605 = vst.msk [vmem:[#allocation2 + $0x40] sm:$0xff] %vm411, %v1595
      %1606 = vst.msk [vmem:[#allocation2 + $0x48] sm:$0xff] %vm411, %v1596
      %p1607 = scmp.eq.s32.totalorder %s21, 2
      // Predicated region
      $region37: #{resnet_block_forward.8} parent=31 // pred_check
        %p1608 = pneg %p1607
      $region38: #{resnet_block_forward.8} parent=31 // pred_check_branch
        %1610 = sbr.rel (%p1608) target = $region40
      $region39: #{resnet_block_forward.8} parent=31 // pred_region
        %v1611 = vld [vmem:[#allocation2] sm:$0xff]
        %v1612 = vld [vmem:[#allocation2 + $0x8] sm:$0xff]
        %v1613 = vld [vmem:[#allocation2 + $0x10] sm:$0xff]
        %v1614 = vld [vmem:[#allocation2 + $0x18] sm:$0xff]
        %v1615 = vld [vmem:[#allocation2 + $0x20] sm:$0xff]
        %v1616 = vld [vmem:[#allocation2 + $0x28] sm:$0xff]
        %v1617 = vld [vmem:[#allocation2 + $0x30] sm:$0xff]
        %v1618 = vld [vmem:[#allocation2 + $0x38] sm:$0xff]
        %v1619 = vld [vmem:[#allocation2 + $0x40] sm:$0xff]
        %v1620 = vld [vmem:[#allocation2 + $0x48] sm:$0xff]
        %v1621 = vld [vmem:[%s2] sm:$0x1]
        %v1623 = vlaneseq
        %v1624 = vshrl.u32 %v1623, 7
        %v1625 = vsub.s32 0, %v1624
        %v1626 = vrot.slane %v1621, %v1625
        %v1628 = vadd.f32 %v1611, %v1626
        %v1629 = vadd.f32 %v1612, %v1626
        %v1630 = vadd.f32 %v1613, %v1626
        %v1631 = vadd.f32 %v1614, %v1626
        %v1632 = vadd.f32 %v1615, %v1626
        %v1633 = vadd.f32 %v1616, %v1626
        %v1634 = vadd.f32 %v1617, %v1626
        %v1635 = vadd.f32 %v1618, %v1626
        %v1636 = vadd.f32 %v1619, %v1626
        %v1637 = vadd.f32 %v1620, %v1626
        %1638 = vst.msk [vmem:[%s242] sm:$0xff] %vm411, %v1628
        %1639 = vst.msk [vmem:[%s242 + $0x8] sm:$0xff] %vm411, %v1629
        %1640 = vst.msk [vmem:[%s242 + $0x10] sm:$0xff] %vm411, %v1630
        %1641 = vst.msk [vmem:[%s242 + $0x18] sm:$0xff] %vm411, %v1631
        %1642 = vst.msk [vmem:[%s242 + $0x20] sm:$0xff] %vm411, %v1632
        %1643 = vst.msk [vmem:[%s242 + $0x28] sm:$0xff] %vm411, %v1633
        %1644 = vst.msk [vmem:[%s242 + $0x30] sm:$0xff] %vm411, %v1634
        %1645 = vst.msk [vmem:[%s242 + $0x38] sm:$0xff] %vm411, %v1635
        %1646 = vst.msk [vmem:[%s242 + $0x40] sm:$0xff] %vm411, %v1636
        %1647 = vst.msk [vmem:[%s242 + $0x48] sm:$0xff] %vm411, %v1637
      $region40: #{resnet_block_forward.8} parent=31 // pred_fallthru
        _
      %p1648 = scmp.lt.s32.totalorder %s19, 1
      %s1649 = scalar_select %p1648, %s19, 1
      %p1650 = scmp.lt.s32.totalorder %s20, 7
      %s1651 = scalar_select %p1650, %s20, 7
      %s1652 = smul.addr %s1651, 10
      %s1653 = smul.addr %s1649, 80
      %s1654 = sadd.s32 %s1652, %s1653
      %s1655 = smul.addr %s1654, 8
      %s1656 = scalar_lea.vmem %s3, %s1655
      // Predicated region
      $region41: #{resnet_block_forward.8} parent=31 // pred_check
        %p1657 = pneg %p130
      $region42: #{resnet_block_forward.8} parent=31 // pred_check_branch
        %1659 = sbr.rel (%p1657) target = $region44
      $region43: #{resnet_block_forward.8} parent=31 // pred_region
        _
      $region44: #{resnet_block_forward.8} parent=31 // pred_fallthru
        _
    $region32: #{resnet_block_forward.8} parent=5 // pred_fallthru
      _
    %p1660 = scmp.le.s32.totalorder 2, %s9
    // Predicated region
    $region45: #{resnet_block_forward.8} parent=5 // pred_check
      %p1661 = pneg %p1660
    $region46: #{resnet_block_forward.8} parent=5 // pred_check_branch
      %1663 = sbr.rel (%p1661) target = $region48
    $region47: #{resnet_block_forward.8} parent=5 // pred_region
      %s1664 = ssub.s32 %s9, 2
      // Predicated region
      $region49: #{resnet_block_forward.8} parent=47 // pred_check
        %p1665 = pneg %p136
      $region50: #{resnet_block_forward.8} parent=47 // pred_check_branch
        %1667 = sbr.rel (%p1665) target = $region52
      $region51: #{resnet_block_forward.8} parent=47 // pred_region
        %p1668 = scmp.lt.s32.totalorder %s22, 1
        %s1669 = scalar_select %p1668, %s22, 1
        %p1670 = scmp.lt.s32.totalorder %s23, 7
        %s1671 = scalar_select %p1670, %s23, 7
        %s1672 = smul.addr %s1671, 10
        %s1673 = smul.addr %s1669, 80
        %s1674 = sadd.s32 %s1672, %s1673
        %s1675 = smul.addr %s1674, 8
        %s1676 = scalar_lea.vmem %s3, %s1675
      $region52: #{resnet_block_forward.8} parent=47 // pred_fallthru
        _
    $region48: #{resnet_block_forward.8} parent=5 // pred_fallthru
      _
  $region6: #{resnet_block_forward.8} parent=0 // loop_footer
    %s13 = sadd.s32 1, %s9
  $region7: #{resnet_block_forward.8} parent=0 // loop_footer_branch
    %8 = sbr.rel target = $region3
  $region8: #{resnet_block_forward.8} parent=0 // loop_exit
    _

// kernel: resnet_block_forward.9
$region0: #{resnet_block_forward.9}
  #allocation0 [shape = 'u32[]', space=smem, size = 0x4, offset = 0x4, fixed_abs, tag = 'smem constant byte address 0x4 - core index']
  #allocation1 [shape = 'u32[144,128]{1,0:T(1,128)}', space=vmem, size = 0x12000, scoped, tag = 'internal scratch']
  %s0 = inlined_call_operand.vmem [shape: f32[2,512,8], index: 0, kind: input, shape index: {}]
  %s1 = inlined_call_operand.vmem [shape: f32[2,1,8], index: 1, kind: output, shape index: {0}]
  %s2 = inlined_call_operand.vmem [shape: f32[2,1,8], index: 2, kind: output, shape index: {1}]
  %3 = xla_tuple %s1, %s2
  %s4 = sld [smem:[#allocation0]]
  $region49: #{resnet_block_forward.9} parent=0
    _
  %s6 = ssub.s32 1, %s4
  %s7 = scalar_select 0, %s6, %s4
  loop: start=0, step=1, limit=4
  $region2: #{resnet_block_forward.9} parent=0 // loop_pre_header
    _
  $region3: #{resnet_block_forward.9} parent=0 // loop_header
    %s9 = sphi 0, %s13
    %p10 = scmp.ge.s32.totalorder %s9, 4
    %s16 = sphi 0, %s28
    %s17 = sphi 0, %s24
    %s18 = sphi 0, %s16
    %s19 = sphi 0, %s17
    %s20 = sphi 0, %s18
    %s21 = sphi 0, %s19
    %s33 = sphi 0, %s35
    %s36 = sphi 0, %s33
    %s37 = sphi 0, %s36
    %s53 = sphi 0, %s37
    %s59 = sphi 0, %s61
    %s62 = sphi 0, %s59
    %s63 = sphi 0, %s62
    %s79 = sphi 0, %s63
    %s85 = sphi 0, %s87
    %s88 = sphi 0, %s85
    %s89 = sphi 0, %s88
    %s105 = sphi 0, %s89
  $region4: #{resnet_block_forward.9} parent=0 // loop_header_branch
    %12 = sbr.rel (%p10) target = $region8
  $region5: #{resnet_block_forward.9} parent=0 // loop_body
    %s14 = ssub.s32 %s9, 1
    %s15 = ssub.s32 %s9, 2
    %s22 = sadd.s32 1, %s17
    %p23 = scmp.ge.s32.totalorder %s22, 1
    %s24 = scalar_select %p23, 0, %s22
    %s25 = sadd.s32 1, %s16
    %s26 = scalar_select %p23, %s25, %s16
    %p27 = scmp.ge.s32.totalorder %s26, 2
    %s28 = scalar_select %p27, 0, %s26
    %s29 = ssub.s32 %s16, %s28
    %s30 = ssub.s32 %s17, %s24
    %s31 = sor.u32 %s29, %s30
    %p32 = scmp.eq.s32.totalorder %s31, 0
    %s34 = sadd.s32 %s33, 1
    %s35 = scalar_select %p32, %s33, %s34
    %p38 = pneg %p32
    %p39 = scmp.eq.s32.totalorder %s9, 1
    %p40 = por %p38, %p39
    %p41 = scmp.ne.s32.totalorder %s33, %s36
    %p42 = scmp.eq.s32.totalorder %s9, 0
    %p43 = por %p41, %p42
    %p44 = scmp.ne.s32.totalorder %s33, %s36
    %p45 = scmp.eq.s32.totalorder %s14, 1
    %p46 = por %p44, %p45
    %p47 = scmp.ne.s32.totalorder %s36, %s37
    %p48 = scmp.eq.s32.totalorder %s14, 0
    %p49 = por %p47, %p48
    %p50 = scmp.ne.s32.totalorder %s36, %s37
    %p51 = scmp.eq.s32.totalorder %s15, 1
    %p52 = por %p50, %p51
    %p54 = scmp.ne.s32.totalorder %s37, %s53
    %p55 = scmp.eq.s32.totalorder %s15, 0
    %p56 = por %p54, %p55
    %s57 = ssub.s32 %s16, %s28
    %p58 = scmp.eq.s32.totalorder %s57, 0
    %s60 = sadd.s32 %s59, 1
    %s61 = scalar_select %p58, %s59, %s60
    %p64 = pneg %p58
    %p65 = scmp.eq.s32.totalorder %s9, 1
    %p66 = por %p64, %p65
    %p67 = scmp.ne.s32.totalorder %s59, %s62
    %p68 = scmp.eq.s32.totalorder %s9, 0
    %p69 = por %p67, %p68
    %p70 = scmp.ne.s32.totalorder %s59, %s62
    %p71 = scmp.eq.s32.totalorder %s14, 1
    %p72 = por %p70, %p71
    %p73 = scmp.ne.s32.totalorder %s62, %s63
    %p74 = scmp.eq.s32.totalorder %s14, 0
    %p75 = por %p73, %p74
    %p76 = scmp.ne.s32.totalorder %s62, %s63
    %p77 = scmp.eq.s32.totalorder %s15, 1
    %p78 = por %p76, %p77
    %p80 = scmp.ne.s32.totalorder %s63, %s79
    %p81 = scmp.eq.s32.totalorder %s15, 0
    %p82 = por %p80, %p81
    %s83 = ssub.s32 %s16, %s28
    %p84 = scmp.eq.s32.totalorder %s83, 0
    %s86 = sadd.s32 %s85, 1
    %s87 = scalar_select %p84, %s85, %s86
    %p90 = pneg %p84
    %p91 = scmp.eq.s32.totalorder %s9, 1
    %p92 = por %p90, %p91
    %p93 = scmp.ne.s32.totalorder %s85, %s88
    %p94 = scmp.eq.s32.totalorder %s9, 0
    %p95 = por %p93, %p94
    %p96 = scmp.ne.s32.totalorder %s85, %s88
    %p97 = scmp.eq.s32.totalorder %s14, 1
    %p98 = por %p96, %p97
    %p99 = scmp.ne.s32.totalorder %s88, %s89
    %p100 = scmp.eq.s32.totalorder %s14, 0
    %p101 = por %p99, %p100
    %p102 = scmp.ne.s32.totalorder %s88, %s89
    %p103 = scmp.eq.s32.totalorder %s15, 1
    %p104 = por %p102, %p103
    %p106 = scmp.ne.s32.totalorder %s89, %s105
    %p107 = scmp.eq.s32.totalorder %s15, 0
    %p108 = por %p106, %p107
    %p109 = scmp.le.s32.totalorder 1, %s9
    %p110 = scmp.lt.s32.totalorder %s9, 3
    %p111 = pnand %p109, %p110
    %p112 = pneg %p111
    // Predicated region
    $region9: #{resnet_block_forward.9} parent=5 // pred_check
      _
    $region10: #{resnet_block_forward.9} parent=5 // pred_check_branch
      %114 = sbr.rel (%p111) target = $region12
    $region11: #{resnet_block_forward.9} parent=5 // pred_region
      %s115 = ssub.s32 %s9, 1
    $region12: #{resnet_block_forward.9} parent=5 // pred_fallthru
      _
    %p116 = scmp.lt.s32.totalorder %s9, 2
    // Predicated region
    $region13: #{resnet_block_forward.9} parent=5 // pred_check
      %p117 = pneg %p116
    $region14: #{resnet_block_forward.9} parent=5 // pred_check_branch
      %119 = sbr.rel (%p117) target = $region16
    $region15: #{resnet_block_forward.9} parent=5 // pred_region
      // Predicated region
      $region17: #{resnet_block_forward.9} parent=15 // pred_check
        %p120 = pneg %p43
      $region18: #{resnet_block_forward.9} parent=15 // pred_check_branch
        %122 = sbr.rel (%p120) target = $region20
      $region19: #{resnet_block_forward.9} parent=15 // pred_region
        %s123 = smul.u32 64, %s17
        %p124 = scmp.lt.s32.totalorder %s16, 1
        %s125 = scalar_select %p124, %s16, 1
        %p126 = scmp.lt.s32.totalorder %s123, 63
        %s127 = scalar_select %p126, %s123, 63
        %s128 = smul.addr %s125, 64
        %s129 = sadd.s32 %s127, %s128
        %s130 = smul.addr %s129, 8
        %s131 = scalar_lea.vmem %s0, %s130
        %s132 = smul.u32 64, %s17
      $region20: #{resnet_block_forward.9} parent=15 // pred_fallthru
        _
    $region16: #{resnet_block_forward.9} parent=5 // pred_fallthru
      _
    %p133 = scmp.le.s32.totalorder 1, %s9
    %p134 = scmp.lt.s32.totalorder %s9, 3
    %p135 = pnand %p133, %p134
    %p136 = pneg %p135
    // Predicated region
    $region21: #{resnet_block_forward.9} parent=5 // pred_check
      _
    $region22: #{resnet_block_forward.9} parent=5 // pred_check_branch
      %138 = sbr.rel (%p135) target = $region24
    $region23: #{resnet_block_forward.9} parent=5 // pred_region
      %s139 = ssub.s32 %s9, 1
      %s140 = smul.u32 64, %s19
      %p141 = scmp.lt.s32.totalorder %s18, 1
      %s142 = scalar_select %p141, %s18, 1
      %p143 = scmp.lt.s32.totalorder %s140, 63
      %s144 = scalar_select %p143, %s140, 63
      %s145 = smul.addr %s142, 64
      %s146 = sadd.s32 %s144, %s145
      %s147 = smul.addr %s146, 8
      %s148 = scalar_lea.vmem %s0, %s147
      %p149 = pneg %p49
      %p150 = pneg %p46
      %p151 = pneg %p75
      %p152 = pneg %p72
      %p153 = scmp.lt.s32.totalorder %s18, 1
      %s154 = scalar_select %p153, %s18, 1
      %s155 = scalar_lea.vmem %s1, %s154
      %p156 = pneg %p101
      %p157 = pneg %p98
      %p158 = scmp.lt.s32.totalorder %s18, 1
      %s159 = scalar_select %p158, %s18, 1
      %s160 = scalar_lea.vmem %s2, %s159
      %s161 = smul.u32 64, %s19
      %p162 = scmp.lt.s32.totalorder %s18, 1
      %s163 = scalar_select %p162, %s18, 1
      %p164 = scmp.lt.s32.totalorder %s161, 63
      %s165 = scalar_select %p164, %s161, 63
      %s166 = smul.addr %s163, 64
      %s167 = sadd.s32 %s165, %s166
      %s168 = smul.addr %s167, 8
      %s169 = scalar_lea.vmem %s0, %s168
      %s170 = smul.u32 64, %s19
      %p171 = scmp.lt.s32.totalorder %s18, 1
      %s172 = scalar_select %p171, %s18, 1
      %s173 = scalar_lea.vmem %s1, %s172
      %p174 = scmp.lt.s32.totalorder %s18, 1
      %s175 = scalar_select %p174, %s18, 1
      %s176 = scalar_lea.vmem %s2, %s175
      %p177 = scmp.eq.s32.totalorder %s19, 0
      // Predicated region
      $region25: #{resnet_block_forward.9} parent=23 // pred_check
        %p178 = pneg %p177
      $region26: #{resnet_block_forward.9} parent=23 // pred_check_branch
        %180 = sbr.rel (%p178) target = $region28
      $region27: #{resnet_block_forward.9} parent=23 // pred_region
        %vm181 = vcmask 57344
        %182 = vst.msk [vmem:[%s173] sm:$0x1] %vm181, 0.0
        %183 = vst.msk [vmem:[%s176] sm:$0x1] %vm181, 0.0
      $region28: #{resnet_block_forward.9} parent=23 // pred_fallthru
        _
      %v184 = vld [vmem:[%s169] sm:$0xff]
      %v185 = vld [vmem:[%s169 + $0x8] sm:$0xff]
      %v186 = vld [vmem:[%s169 + $0x10] sm:$0xff]
      %v187 = vld [vmem:[%s169 + $0x18] sm:$0xff]
      %v188 = vld [vmem:[%s169 + $0x20] sm:$0xff]
      %v189 = vld [vmem:[%s169 + $0x28] sm:$0xff]
      %v190 = vld [vmem:[%s169 + $0x30] sm:$0xff]
      %v191 = vld [vmem:[%s169 + $0x38] sm:$0xff]
      %v192 = vld [vmem:[%s169 + $0x40] sm:$0xff]
      %v193 = vld [vmem:[%s169 + $0x48] sm:$0xff]
      %v194 = vld [vmem:[%s169 + $0x50] sm:$0xff]
      %v195 = vld [vmem:[%s169 + $0x58] sm:$0xff]
      %v196 = vld [vmem:[%s169 + $0x60] sm:$0xff]
      %v197 = vld [vmem:[%s169 + $0x68] sm:$0xff]
      %v198 = vld [vmem:[%s169 + $0x70] sm:$0xff]
      %v199 = vld [vmem:[%s169 + $0x78] sm:$0xff]
      %v200 = vld [vmem:[%s169 + $0x80] sm:$0xff]
      %v201 = vld [vmem:[%s169 + $0x88] sm:$0xff]
      %v202 = vld [vmem:[%s169 + $0x90] sm:$0xff]
      %v203 = vld [vmem:[%s169 + $0x98] sm:$0xff]
      %v204 = vld [vmem:[%s169 + $0xa0] sm:$0xff]
      %v205 = vld [vmem:[%s169 + $0xa8] sm:$0xff]
      %v206 = vld [vmem:[%s169 + $0xb0] sm:$0xff]
      %v207 = vld [vmem:[%s169 + $0xb8] sm:$0xff]
      %v208 = vld [vmem:[%s169 + $0xc0] sm:$0xff]
      %v209 = vld [vmem:[%s169 + $0xc8] sm:$0xff]
      %v210 = vld [vmem:[%s169 + $0xd0] sm:$0xff]
      %v211 = vld [vmem:[%s169 + $0xd8] sm:$0xff]
      %v212 = vld [vmem:[%s169 + $0xe0] sm:$0xff]
      %v213 = vld [vmem:[%s169 + $0xe8] sm:$0xff]
      %v214 = vld [vmem:[%s169 + $0xf0] sm:$0xff]
      %v215 = vld [vmem:[%s169 + $0xf8] sm:$0xff]
      %v216 = vld [vmem:[%s169 + $0x100] sm:$0xff]
      %v217 = vld [vmem:[%s169 + $0x108] sm:$0xff]
      %v218 = vld [vmem:[%s169 + $0x110] sm:$0xff]
      %v219 = vld [vmem:[%s169 + $0x118] sm:$0xff]
      %v220 = vld [vmem:[%s169 + $0x120] sm:$0xff]
      %v221 = vld [vmem:[%s169 + $0x128] sm:$0xff]
      %v222 = vld [vmem:[%s169 + $0x130] sm:$0xff]
      %v223 = vld [vmem:[%s169 + $0x138] sm:$0xff]
      %v224 = vld [vmem:[%s169 + $0x140] sm:$0xff]
      %v225 = vld [vmem:[%s169 + $0x148] sm:$0xff]
      %v226 = vld [vmem:[%s169 + $0x150] sm:$0xff]
      %v227 = vld [vmem:[%s169 + $0x158] sm:$0xff]
      %v228 = vld [vmem:[%s169 + $0x160] sm:$0xff]
      %v229 = vld [vmem:[%s169 + $0x168] sm:$0xff]
      %v230 = vld [vmem:[%s169 + $0x170] sm:$0xff]
      %v231 = vld [vmem:[%s169 + $0x178] sm:$0xff]
      %v232 = vld [vmem:[%s169 + $0x180] sm:$0xff]
      %v233 = vld [vmem:[%s169 + $0x188] sm:$0xff]
      %v234 = vld [vmem:[%s169 + $0x190] sm:$0xff]
      %v235 = vld [vmem:[%s169 + $0x198] sm:$0xff]
      %v236 = vld [vmem:[%s169 + $0x1a0] sm:$0xff]
      %v237 = vld [vmem:[%s169 + $0x1a8] sm:$0xff]
      %v238 = vld [vmem:[%s169 + $0x1b0] sm:$0xff]
      %v239 = vld [vmem:[%s169 + $0x1b8] sm:$0xff]
      %v240 = vld [vmem:[%s169 + $0x1c0] sm:$0xff]
      %v241 = vld [vmem:[%s169 + $0x1c8] sm:$0xff]
      %v242 = vld [vmem:[%s169 + $0x1d0] sm:$0xff]
      %v243 = vld [vmem:[%s169 + $0x1d8] sm:$0xff]
      %v244 = vld [vmem:[%s169 + $0x1e0] sm:$0xff]
      %v245 = vld [vmem:[%s169 + $0x1e8] sm:$0xff]
      %v246 = vld [vmem:[%s169 + $0x1f0] sm:$0xff]
      %v247 = vld [vmem:[%s169 + $0x1f8] sm:$0xff]
      %v248 = vld [vmem:[%s173] sm:$0x1]
      %vm249 = vcmask 64512
      %v250 = vsel %vm249, %v184, 0.0
      %v251 = vsel %vm249, %v185, 0.0
      %v252 = vadd.f32 %v250, %v251
      %v253 = vsel %vm249, %v186, 0.0
      %v254 = vadd.f32 %v252, %v253
      %v255 = vsel %vm249, %v187, 0.0
      %v256 = vadd.f32 %v254, %v255
      %v257 = vsel %vm249, %v188, 0.0
      %v258 = vadd.f32 %v256, %v257
      %v259 = vsel %vm249, %v189, 0.0
      %v260 = vadd.f32 %v258, %v259
      %v261 = vsel %vm249, %v190, 0.0
      %v262 = vadd.f32 %v260, %v261
      %v263 = vsel %vm249, %v191, 0.0
      %v264 = vadd.f32 %v262, %v263
      %v265 = vsel %vm249, %v192, 0.0
      %v266 = vadd.f32 %v264, %v265
      %v267 = vsel %vm249, %v193, 0.0
      %v268 = vadd.f32 %v266, %v267
      %v269 = vsel %vm249, %v194, 0.0
      %v270 = vadd.f32 %v268, %v269
      %v271 = vsel %vm249, %v195, 0.0
      %v272 = vadd.f32 %v270, %v271
      %v273 = vsel %vm249, %v196, 0.0
      %v274 = vadd.f32 %v272, %v273
      %v275 = vsel %vm249, %v197, 0.0
      %v276 = vadd.f32 %v274, %v275
      %v277 = vsel %vm249, %v198, 0.0
      %v278 = vadd.f32 %v276, %v277
      %v279 = vsel %vm249, %v199, 0.0
      %v280 = vadd.f32 %v278, %v279
      %v281 = vsel %vm249, %v200, 0.0
      %v282 = vadd.f32 %v280, %v281
      %v283 = vsel %vm249, %v201, 0.0
      %v284 = vadd.f32 %v282, %v283
      %v285 = vsel %vm249, %v202, 0.0
      %v286 = vadd.f32 %v284, %v285
      %v287 = vsel %vm249, %v203, 0.0
      %v288 = vadd.f32 %v286, %v287
      %v289 = vsel %vm249, %v204, 0.0
      %v290 = vadd.f32 %v288, %v289
      %v291 = vsel %vm249, %v205, 0.0
      %v292 = vadd.f32 %v290, %v291
      %v293 = vsel %vm249, %v206, 0.0
      %v294 = vadd.f32 %v292, %v293
      %v295 = vsel %vm249, %v207, 0.0
      %v296 = vadd.f32 %v294, %v295
      %v297 = vsel %vm249, %v208, 0.0
      %v298 = vadd.f32 %v296, %v297
      %v299 = vsel %vm249, %v209, 0.0
      %v300 = vadd.f32 %v298, %v299
      %v301 = vsel %vm249, %v210, 0.0
      %v302 = vadd.f32 %v300, %v301
      %v303 = vsel %vm249, %v211, 0.0
      %v304 = vadd.f32 %v302, %v303
      %v305 = vsel %vm249, %v212, 0.0
      %v306 = vadd.f32 %v304, %v305
      %v307 = vsel %vm249, %v213, 0.0
      %v308 = vadd.f32 %v306, %v307
      %v309 = vsel %vm249, %v214, 0.0
      %v310 = vadd.f32 %v308, %v309
      %v311 = vsel %vm249, %v215, 0.0
      %v312 = vadd.f32 %v310, %v311
      %v313 = vsel %vm249, %v216, 0.0
      %v314 = vadd.f32 %v312, %v313
      %v315 = vsel %vm249, %v217, 0.0
      %v316 = vadd.f32 %v314, %v315
      %v317 = vsel %vm249, %v218, 0.0
      %v318 = vadd.f32 %v316, %v317
      %v319 = vsel %vm249, %v219, 0.0
      %v320 = vadd.f32 %v318, %v319
      %v321 = vsel %vm249, %v220, 0.0
      %v322 = vadd.f32 %v320, %v321
      %v323 = vsel %vm249, %v221, 0.0
      %v324 = vadd.f32 %v322, %v323
      %v325 = vsel %vm249, %v222, 0.0
      %v326 = vadd.f32 %v324, %v325
      %v327 = vsel %vm249, %v223, 0.0
      %v328 = vadd.f32 %v326, %v327
      %v329 = vsel %vm249, %v224, 0.0
      %v330 = vadd.f32 %v328, %v329
      %v331 = vsel %vm249, %v225, 0.0
      %v332 = vadd.f32 %v330, %v331
      %v333 = vsel %vm249, %v226, 0.0
      %v334 = vadd.f32 %v332, %v333
      %v335 = vsel %vm249, %v227, 0.0
      %v336 = vadd.f32 %v334, %v335
      %v337 = vsel %vm249, %v228, 0.0
      %v338 = vadd.f32 %v336, %v337
      %v339 = vsel %vm249, %v229, 0.0
      %v340 = vadd.f32 %v338, %v339
      %v341 = vsel %vm249, %v230, 0.0
      %v342 = vadd.f32 %v340, %v341
      %v343 = vsel %vm249, %v231, 0.0
      %v344 = vadd.f32 %v342, %v343
      %v345 = vsel %vm249, %v232, 0.0
      %v346 = vadd.f32 %v344, %v345
      %v347 = vsel %vm249, %v233, 0.0
      %v348 = vadd.f32 %v346, %v347
      %v349 = vsel %vm249, %v234, 0.0
      %v350 = vadd.f32 %v348, %v349
      %v351 = vsel %vm249, %v235, 0.0
      %v352 = vadd.f32 %v350, %v351
      %v353 = vsel %vm249, %v236, 0.0
      %v354 = vadd.f32 %v352, %v353
      %v355 = vsel %vm249, %v237, 0.0
      %v356 = vadd.f32 %v354, %v355
      %v357 = vsel %vm249, %v238, 0.0
      %v358 = vadd.f32 %v356, %v357
      %v359 = vsel %vm249, %v239, 0.0
      %v360 = vadd.f32 %v358, %v359
      %v361 = vsel %vm249, %v240, 0.0
      %v362 = vadd.f32 %v360, %v361
      %v363 = vsel %vm249, %v241, 0.0
      %v364 = vadd.f32 %v362, %v363
      %v365 = vsel %vm249, %v242, 0.0
      %v366 = vadd.f32 %v364, %v365
      %v367 = vsel %vm249, %v243, 0.0
      %v368 = vadd.f32 %v366, %v367
      %v369 = vsel %vm249, %v244, 0.0
      %v370 = vadd.f32 %v368, %v369
      %v371 = vsel %vm249, %v245, 0.0
      %v372 = vadd.f32 %v370, %v371
      %v373 = vsel %vm249, %v246, 0.0
      %v374 = vadd.f32 %v372, %v373
      %v375 = vsel %vm249, %v247, 0.0
      %v376 = vadd.f32 %v374, %v375
      %v377 = vrot.slane %v376, 4
      %v378 = vadd.f32 %v376, %v377
      %v379 = vrot.slane %v378, 2
      %v380 = vadd.f32 %v378, %v379
      %v381 = vrot.slane %v380, 1
      %v382 = vadd.f32 %v380, %v381
      %v383 = vadd.f32 %v248, %v382
      %vm384 = vcmask 57344
      %385 = vst.msk [vmem:[%s173] sm:$0x1] %vm384, %v383
      %v386 = vld [vmem:[%s176] sm:$0x1]
      %v387 = vmul.f32 %v184, %v184
      %v388 = vmul.f32 %v185, %v185
      %v389 = vmul.f32 %v186, %v186
      %v390 = vmul.f32 %v187, %v187
      %v391 = vmul.f32 %v188, %v188
      %v392 = vmul.f32 %v189, %v189
      %v393 = vmul.f32 %v190, %v190
      %v394 = vmul.f32 %v191, %v191
      %v395 = vmul.f32 %v192, %v192
      %v396 = vmul.f32 %v193, %v193
      %v397 = vmul.f32 %v194, %v194
      %v398 = vmul.f32 %v195, %v195
      %v399 = vmul.f32 %v196, %v196
      %v400 = vmul.f32 %v197, %v197
      %v401 = vmul.f32 %v198, %v198
      %v402 = vmul.f32 %v199, %v199
      %v403 = vmul.f32 %v200, %v200
      %v404 = vmul.f32 %v201, %v201
      %v405 = vmul.f32 %v202, %v202
      %v406 = vmul.f32 %v203, %v203
      %v407 = vmul.f32 %v204, %v204
      %v408 = vmul.f32 %v205, %v205
      %v409 = vmul.f32 %v206, %v206
      %v410 = vmul.f32 %v207, %v207
      %v411 = vmul.f32 %v208, %v208
      %v412 = vmul.f32 %v209, %v209
      %v413 = vmul.f32 %v210, %v210
      %v414 = vmul.f32 %v211, %v211
      %v415 = vmul.f32 %v212, %v212
      %v416 = vmul.f32 %v213, %v213
      %v417 = vmul.f32 %v214, %v214
      %v418 = vmul.f32 %v215, %v215
      %v419 = vmul.f32 %v216, %v216
      %v420 = vmul.f32 %v217, %v217
      %v421 = vmul.f32 %v218, %v218
      %v422 = vmul.f32 %v219, %v219
      %v423 = vmul.f32 %v220, %v220
      %v424 = vmul.f32 %v221, %v221
      %v425 = vmul.f32 %v222, %v222
      %v426 = vmul.f32 %v223, %v223
      %v427 = vmul.f32 %v224, %v224
      %v428 = vmul.f32 %v225, %v225
      %v429 = vmul.f32 %v226, %v226
      %v430 = vmul.f32 %v227, %v227
      %v431 = vmul.f32 %v228, %v228
      %v432 = vmul.f32 %v229, %v229
      %v433 = vmul.f32 %v230, %v230
      %v434 = vmul.f32 %v231, %v231
      %v435 = vmul.f32 %v232, %v232
      %v436 = vmul.f32 %v233, %v233
      %v437 = vmul.f32 %v234, %v234
      %v438 = vmul.f32 %v235, %v235
      %v439 = vmul.f32 %v236, %v236
      %v440 = vmul.f32 %v237, %v237
      %v441 = vmul.f32 %v238, %v238
      %v442 = vmul.f32 %v239, %v239
      %v443 = vmul.f32 %v240, %v240
      %v444 = vmul.f32 %v241, %v241
      %v445 = vmul.f32 %v242, %v242
      %v446 = vmul.f32 %v243, %v243
      %v447 = vmul.f32 %v244, %v244
      %v448 = vmul.f32 %v245, %v245
      %v449 = vmul.f32 %v246, %v246
      %v450 = vmul.f32 %v247, %v247
      %v451 = vsel %vm249, %v387, 0.0
      %v452 = vsel %vm249, %v388, 0.0
      %v453 = vadd.f32 %v451, %v452
      %v454 = vsel %vm249, %v389, 0.0
      %v455 = vadd.f32 %v453, %v454
      %v456 = vsel %vm249, %v390, 0.0
      %v457 = vadd.f32 %v455, %v456
      %v458 = vsel %vm249, %v391, 0.0
      %v459 = vadd.f32 %v457, %v458
      %v460 = vsel %vm249, %v392, 0.0
      %v461 = vadd.f32 %v459, %v460
      %v462 = vsel %vm249, %v393, 0.0
      %v463 = vadd.f32 %v461, %v462
      %v464 = vsel %vm249, %v394, 0.0
      %v465 = vadd.f32 %v463, %v464
      %v466 = vsel %vm249, %v395, 0.0
      %v467 = vadd.f32 %v465, %v466
      %v468 = vsel %vm249, %v396, 0.0
      %v469 = vadd.f32 %v467, %v468
      %v470 = vsel %vm249, %v397, 0.0
      %v471 = vadd.f32 %v469, %v470
      %v472 = vsel %vm249, %v398, 0.0
      %v473 = vadd.f32 %v471, %v472
      %v474 = vsel %vm249, %v399, 0.0
      %v475 = vadd.f32 %v473, %v474
      %v476 = vsel %vm249, %v400, 0.0
      %v477 = vadd.f32 %v475, %v476
      %v478 = vsel %vm249, %v401, 0.0
      %v479 = vadd.f32 %v477, %v478
      %v480 = vsel %vm249, %v402, 0.0
      %v481 = vadd.f32 %v479, %v480
      %v482 = vsel %vm249, %v403, 0.0
      %v483 = vadd.f32 %v481, %v482
      %v484 = vsel %vm249, %v404, 0.0
      %v485 = vadd.f32 %v483, %v484
      %v486 = vsel %vm249, %v405, 0.0
      %v487 = vadd.f32 %v485, %v486
      %v488 = vsel %vm249, %v406, 0.0
      %v489 = vadd.f32 %v487, %v488
      %v490 = vsel %vm249, %v407, 0.0
      %v491 = vadd.f32 %v489, %v490
      %v492 = vsel %vm249, %v408, 0.0
      %v493 = vadd.f32 %v491, %v492
      %v494 = vsel %vm249, %v409, 0.0
      %v495 = vadd.f32 %v493, %v494
      %v496 = vsel %vm249, %v410, 0.0
      %v497 = vadd.f32 %v495, %v496
      %v498 = vsel %vm249, %v411, 0.0
      %v499 = vadd.f32 %v497, %v498
      %v500 = vsel %vm249, %v412, 0.0
      %v501 = vadd.f32 %v499, %v500
      %v502 = vsel %vm249, %v413, 0.0
      %v503 = vadd.f32 %v501, %v502
      %v504 = vsel %vm249, %v414, 0.0
      %v505 = vadd.f32 %v503, %v504
      %v506 = vsel %vm249, %v415, 0.0
      %v507 = vadd.f32 %v505, %v506
      %v508 = vsel %vm249, %v416, 0.0
      %v509 = vadd.f32 %v507, %v508
      %v510 = vsel %vm249, %v417, 0.0
      %v511 = vadd.f32 %v509, %v510
      %v512 = vsel %vm249, %v418, 0.0
      %v513 = vadd.f32 %v511, %v512
      %v514 = vsel %vm249, %v419, 0.0
      %v515 = vadd.f32 %v513, %v514
      %v516 = vsel %vm249, %v420, 0.0
      %v517 = vadd.f32 %v515, %v516
      %v518 = vsel %vm249, %v421, 0.0
      %v519 = vadd.f32 %v517, %v518
      %v520 = vsel %vm249, %v422, 0.0
      %v521 = vadd.f32 %v519, %v520
      %v522 = vsel %vm249, %v423, 0.0
      %v523 = vadd.f32 %v521, %v522
      %v524 = vsel %vm249, %v424, 0.0
      %v525 = vadd.f32 %v523, %v524
      %v526 = vsel %vm249, %v425, 0.0
      %v527 = vadd.f32 %v525, %v526
      %v528 = vsel %vm249, %v426, 0.0
      %v529 = vadd.f32 %v527, %v528
      %v530 = vsel %vm249, %v427, 0.0
      %v531 = vadd.f32 %v529, %v530
      %v532 = vsel %vm249, %v428, 0.0
      %v533 = vadd.f32 %v531, %v532
      %v534 = vsel %vm249, %v429, 0.0
      %v535 = vadd.f32 %v533, %v534
      %v536 = vsel %vm249, %v430, 0.0
      %v537 = vadd.f32 %v535, %v536
      %v538 = vsel %vm249, %v431, 0.0
      %v539 = vadd.f32 %v537, %v538
      %v540 = vsel %vm249, %v432, 0.0
      %v541 = vadd.f32 %v539, %v540
      %v542 = vsel %vm249, %v433, 0.0
      %v543 = vadd.f32 %v541, %v542
      %v544 = vsel %vm249, %v434, 0.0
      %v545 = vadd.f32 %v543, %v544
      %v546 = vsel %vm249, %v435, 0.0
      %v547 = vadd.f32 %v545, %v546
      %v548 = vsel %vm249, %v436, 0.0
      %v549 = vadd.f32 %v547, %v548
      %v550 = vsel %vm249, %v437, 0.0
      %v551 = vadd.f32 %v549, %v550
      %v552 = vsel %vm249, %v438, 0.0
      %v553 = vadd.f32 %v551, %v552
      %v554 = vsel %vm249, %v439, 0.0
      %v555 = vadd.f32 %v553, %v554
      %v556 = vsel %vm249, %v440, 0.0
      %v557 = vadd.f32 %v555, %v556
      %v558 = vsel %vm249, %v441, 0.0
      %v559 = vadd.f32 %v557, %v558
      %v560 = vsel %vm249, %v442, 0.0
      %v561 = vadd.f32 %v559, %v560
      %v562 = vsel %vm249, %v443, 0.0
      %v563 = vadd.f32 %v561, %v562
      %v564 = vsel %vm249, %v444, 0.0
      %v565 = vadd.f32 %v563, %v564
      %v566 = vsel %vm249, %v445, 0.0
      %v567 = vadd.f32 %v565, %v566
      %v568 = vsel %vm249, %v446, 0.0
      %v569 = vadd.f32 %v567, %v568
      %v570 = vsel %vm249, %v447, 0.0
      %v571 = vadd.f32 %v569, %v570
      %v572 = vsel %vm249, %v448, 0.0
      %v573 = vadd.f32 %v571, %v572
      %v574 = vsel %vm249, %v449, 0.0
      %v575 = vadd.f32 %v573, %v574
      %v576 = vsel %vm249, %v450, 0.0
      %v577 = vadd.f32 %v575, %v576
      %v578 = vrot.slane %v577, 4
      %v579 = vadd.f32 %v577, %v578
      %v580 = vrot.slane %v579, 2
      %v581 = vadd.f32 %v579, %v580
      %v582 = vrot.slane %v581, 1
      %v583 = vadd.f32 %v581, %v582
      %v584 = vadd.f32 %v386, %v583
      %585 = vst.msk [vmem:[%s176] sm:$0x1] %vm384, %v584
      %p586 = scmp.lt.s32.totalorder %s18, 1
      %s587 = scalar_select %p586, %s18, 1
      %s588 = scalar_lea.vmem %s1, %s587
      %p589 = scmp.lt.s32.totalorder %s18, 1
      %s590 = scalar_select %p589, %s18, 1
      %s591 = scalar_lea.vmem %s2, %s590
      // Predicated region
      $region29: #{resnet_block_forward.9} parent=23 // pred_check
        %p592 = pneg %p72
      $region30: #{resnet_block_forward.9} parent=23 // pred_check_branch
        %594 = sbr.rel (%p592) target = $region32
      $region31: #{resnet_block_forward.9} parent=23 // pred_region
        _
      $region32: #{resnet_block_forward.9} parent=23 // pred_fallthru
        _
      // Predicated region
      $region33: #{resnet_block_forward.9} parent=23 // pred_check
        %p595 = pneg %p98
      $region34: #{resnet_block_forward.9} parent=23 // pred_check_branch
        %597 = sbr.rel (%p595) target = $region36
      $region35: #{resnet_block_forward.9} parent=23 // pred_region
        _
      $region36: #{resnet_block_forward.9} parent=23 // pred_fallthru
        _
    $region24: #{resnet_block_forward.9} parent=5 // pred_fallthru
      _
    %p598 = scmp.le.s32.totalorder 2, %s9
    // Predicated region
    $region37: #{resnet_block_forward.9} parent=5 // pred_check
      %p599 = pneg %p598
    $region38: #{resnet_block_forward.9} parent=5 // pred_check_branch
      %601 = sbr.rel (%p599) target = $region40
    $region39: #{resnet_block_forward.9} parent=5 // pred_region
      %s602 = ssub.s32 %s9, 2
      // Predicated region
      $region41: #{resnet_block_forward.9} parent=39 // pred_check
        %p603 = pneg %p78
      $region42: #{resnet_block_forward.9} parent=39 // pred_check_branch
        %605 = sbr.rel (%p603) target = $region44
      $region43: #{resnet_block_forward.9} parent=39 // pred_region
        %p606 = scmp.lt.s32.totalorder %s20, 1
        %s607 = scalar_select %p606, %s20, 1
        %s608 = scalar_lea.vmem %s1, %s607
      $region44: #{resnet_block_forward.9} parent=39 // pred_fallthru
        _
      // Predicated region
      $region45: #{resnet_block_forward.9} parent=39 // pred_check
        %p609 = pneg %p104
      $region46: #{resnet_block_forward.9} parent=39 // pred_check_branch
        %611 = sbr.rel (%p609) target = $region48
      $region47: #{resnet_block_forward.9} parent=39 // pred_region
        %p612 = scmp.lt.s32.totalorder %s20, 1
        %s613 = scalar_select %p612, %s20, 1
        %s614 = scalar_lea.vmem %s2, %s613
      $region48: #{resnet_block_forward.9} parent=39 // pred_fallthru
        _
    $region40: #{resnet_block_forward.9} parent=5 // pred_fallthru
      _
  $region6: #{resnet_block_forward.9} parent=0 // loop_footer
    %s13 = sadd.s32 1, %s9
  $region7: #{resnet_block_forward.9} parent=0 // loop_footer_branch
    %8 = sbr.rel target = $region3
  $region8: #{resnet_block_forward.9} parent=0 // loop_exit
    _

// kernel: mul.46
$region0: #{mul.46}
  #allocation0 [shape = 's32[1]{0}', space=sflag, size = 0x4, scoped, tag = 'scoped memory for mul.46']
  %s0 = inlined_call_operand.vmem [shape: f32[2,1,8], index: 0, kind: input, shape index: {}]
  %s1 = inlined_call_operand.vmem [shape: f32[2,1,8], index: 1, kind: input, shape index: {}]
  %s2 = inlined_call_operand.vmem [shape: f32[2,1,8], index: 2, kind: output, shape index: {}]
  %v3 = vld [vmem:[%s0] sm:$0x1]
  %v4 = vld [vmem:[%s1] sm:$0x1]
  %5 = xla_tuple %v3, %v4
  %6 = xla_tuple %5
  %v7 = vmul.f32 %v3, %v4
  %8 = xla_tuple %v7
  %9 = vst [vmem:[%s2] sm:$0x1] %v7
  %s10 = scalar_lea.vmem %s0, 1
  %v11 = vld [vmem:[%s10] sm:$0x1]
  %s12 = scalar_lea.vmem %s1, 1
  %v13 = vld [vmem:[%s12] sm:$0x1]
  %14 = xla_tuple %v11, %v13
  %15 = xla_tuple %14
  %v16 = vmul.f32 %v11, %v13
  %17 = xla_tuple %v16
  %s18 = scalar_lea.vmem %s2, 1
  %19 = vst [vmem:[%s18] sm:$0x1] %v16

// kernel: resnet_block_forward.10
$region0: #{resnet_block_forward.10}
  #allocation0 [shape = 'u32[]', space=smem, size = 0x4, offset = 0x4, fixed_abs, tag = 'smem constant byte address 0x4 - core index']
  #allocation1 [shape = 'u32[144,128]{1,0:T(1,128)}', space=vmem, size = 0x12000, scoped, tag = 'internal scratch']
  %s0 = inlined_call_operand.vmem [shape: f32[2,512,8], index: 0, kind: input, shape index: {}]
  %s1 = inlined_call_operand.vmem [shape: f32[2,1,8], index: 1, kind: input, shape index: {}]
  %s2 = inlined_call_operand.vmem [shape: f32[2,1,8], index: 2, kind: input, shape index: {}]
  %s3 = inlined_call_operand.vmem [shape: bf16[2,512,8], index: 3, kind: output, shape index: {}]
  %s4 = sld [smem:[#allocation0]]
  $region45: #{resnet_block_forward.10} parent=0
    _
  %s6 = ssub.s32 1, %s4
  %s7 = scalar_select 0, %s6, %s4
  loop: start=0, step=1, limit=4
  $region2: #{resnet_block_forward.10} parent=0 // loop_pre_header
    _
  $region3: #{resnet_block_forward.10} parent=0 // loop_header
    %s9 = sphi 0, %s13
    %p10 = scmp.ge.s32.totalorder %s9, 4
    %s16 = sphi 0, %s28
    %s17 = sphi 0, %s24
    %s18 = sphi 0, %s16
    %s19 = sphi 0, %s17
    %s20 = sphi 0, %s18
    %s21 = sphi 0, %s19
    %s33 = sphi 0, %s35
    %s36 = sphi 0, %s33
    %s37 = sphi 0, %s36
    %s53 = sphi 0, %s37
    %s59 = sphi 0, %s61
    %s62 = sphi 0, %s59
    %s63 = sphi 0, %s62
    %s79 = sphi 0, %s63
    %s85 = sphi 0, %s87
    %s88 = sphi 0, %s85
    %s89 = sphi 0, %s88
    %s105 = sphi 0, %s89
    %s113 = sphi 0, %s115
    %s116 = sphi 0, %s113
    %s117 = sphi 0, %s116
    %s133 = sphi 0, %s117
  $region4: #{resnet_block_forward.10} parent=0 // loop_header_branch
    %12 = sbr.rel (%p10) target = $region8
  $region5: #{resnet_block_forward.10} parent=0 // loop_body
    %s14 = ssub.s32 %s9, 1
    %s15 = ssub.s32 %s9, 2
    %s22 = sadd.s32 1, %s17
    %p23 = scmp.ge.s32.totalorder %s22, 1
    %s24 = scalar_select %p23, 0, %s22
    %s25 = sadd.s32 1, %s16
    %s26 = scalar_select %p23, %s25, %s16
    %p27 = scmp.ge.s32.totalorder %s26, 2
    %s28 = scalar_select %p27, 0, %s26
    %s29 = ssub.s32 %s16, %s28
    %s30 = ssub.s32 %s17, %s24
    %s31 = sor.u32 %s29, %s30
    %p32 = scmp.eq.s32.totalorder %s31, 0
    %s34 = sadd.s32 %s33, 1
    %s35 = scalar_select %p32, %s33, %s34
    %p38 = pneg %p32
    %p39 = scmp.eq.s32.totalorder %s9, 1
    %p40 = por %p38, %p39
    %p41 = scmp.ne.s32.totalorder %s33, %s36
    %p42 = scmp.eq.s32.totalorder %s9, 0
    %p43 = por %p41, %p42
    %p44 = scmp.ne.s32.totalorder %s33, %s36
    %p45 = scmp.eq.s32.totalorder %s14, 1
    %p46 = por %p44, %p45
    %p47 = scmp.ne.s32.totalorder %s36, %s37
    %p48 = scmp.eq.s32.totalorder %s14, 0
    %p49 = por %p47, %p48
    %p50 = scmp.ne.s32.totalorder %s36, %s37
    %p51 = scmp.eq.s32.totalorder %s15, 1
    %p52 = por %p50, %p51
    %p54 = scmp.ne.s32.totalorder %s37, %s53
    %p55 = scmp.eq.s32.totalorder %s15, 0
    %p56 = por %p54, %p55
    %s57 = ssub.s32 %s16, %s28
    %p58 = scmp.eq.s32.totalorder %s57, 0
    %s60 = sadd.s32 %s59, 1
    %s61 = scalar_select %p58, %s59, %s60
    %p64 = pneg %p58
    %p65 = scmp.eq.s32.totalorder %s9, 1
    %p66 = por %p64, %p65
    %p67 = scmp.ne.s32.totalorder %s59, %s62
    %p68 = scmp.eq.s32.totalorder %s9, 0
    %p69 = por %p67, %p68
    %p70 = scmp.ne.s32.totalorder %s59, %s62
    %p71 = scmp.eq.s32.totalorder %s14, 1
    %p72 = por %p70, %p71
    %p73 = scmp.ne.s32.totalorder %s62, %s63
    %p74 = scmp.eq.s32.totalorder %s14, 0
    %p75 = por %p73, %p74
    %p76 = scmp.ne.s32.totalorder %s62, %s63
    %p77 = scmp.eq.s32.totalorder %s15, 1
    %p78 = por %p76, %p77
    %p80 = scmp.ne.s32.totalorder %s63, %s79
    %p81 = scmp.eq.s32.totalorder %s15, 0
    %p82 = por %p80, %p81
    %s83 = ssub.s32 %s16, %s28
    %p84 = scmp.eq.s32.totalorder %s83, 0
    %s86 = sadd.s32 %s85, 1
    %s87 = scalar_select %p84, %s85, %s86
    %p90 = pneg %p84
    %p91 = scmp.eq.s32.totalorder %s9, 1
    %p92 = por %p90, %p91
    %p93 = scmp.ne.s32.totalorder %s85, %s88
    %p94 = scmp.eq.s32.totalorder %s9, 0
    %p95 = por %p93, %p94
    %p96 = scmp.ne.s32.totalorder %s85, %s88
    %p97 = scmp.eq.s32.totalorder %s14, 1
    %p98 = por %p96, %p97
    %p99 = scmp.ne.s32.totalorder %s88, %s89
    %p100 = scmp.eq.s32.totalorder %s14, 0
    %p101 = por %p99, %p100
    %p102 = scmp.ne.s32.totalorder %s88, %s89
    %p103 = scmp.eq.s32.totalorder %s15, 1
    %p104 = por %p102, %p103
    %p106 = scmp.ne.s32.totalorder %s89, %s105
    %p107 = scmp.eq.s32.totalorder %s15, 0
    %p108 = por %p106, %p107
    %s109 = ssub.s32 %s16, %s28
    %s110 = ssub.s32 %s17, %s24
    %s111 = sor.u32 %s109, %s110
    %p112 = scmp.eq.s32.totalorder %s111, 0
    %s114 = sadd.s32 %s113, 1
    %s115 = scalar_select %p112, %s113, %s114
    %p118 = pneg %p112
    %p119 = scmp.eq.s32.totalorder %s9, 1
    %p120 = por %p118, %p119
    %p121 = scmp.ne.s32.totalorder %s113, %s116
    %p122 = scmp.eq.s32.totalorder %s9, 0
    %p123 = por %p121, %p122
    %p124 = scmp.ne.s32.totalorder %s113, %s116
    %p125 = scmp.eq.s32.totalorder %s14, 1
    %p126 = por %p124, %p125
    %p127 = scmp.ne.s32.totalorder %s116, %s117
    %p128 = scmp.eq.s32.totalorder %s14, 0
    %p129 = por %p127, %p128
    %p130 = scmp.ne.s32.totalorder %s116, %s117
    %p131 = scmp.eq.s32.totalorder %s15, 1
    %p132 = por %p130, %p131
    %p134 = scmp.ne.s32.totalorder %s117, %s133
    %p135 = scmp.eq.s32.totalorder %s15, 0
    %p136 = por %p134, %p135
    %p137 = scmp.le.s32.totalorder 1, %s9
    %p138 = scmp.lt.s32.totalorder %s9, 3
    %p139 = pnand %p137, %p138
    %p140 = pneg %p139
    // Predicated region
    $region9: #{resnet_block_forward.10} parent=5 // pred_check
      _
    $region10: #{resnet_block_forward.10} parent=5 // pred_check_branch
      %142 = sbr.rel (%p139) target = $region12
    $region11: #{resnet_block_forward.10} parent=5 // pred_region
      %s143 = ssub.s32 %s9, 1
    $region12: #{resnet_block_forward.10} parent=5 // pred_fallthru
      _
    %p144 = scmp.lt.s32.totalorder %s9, 2
    // Predicated region
    $region13: #{resnet_block_forward.10} parent=5 // pred_check
      %p145 = pneg %p144
    $region14: #{resnet_block_forward.10} parent=5 // pred_check_branch
      %147 = sbr.rel (%p145) target = $region16
    $region15: #{resnet_block_forward.10} parent=5 // pred_region
      // Predicated region
      $region17: #{resnet_block_forward.10} parent=15 // pred_check
        %p148 = pneg %p43
      $region18: #{resnet_block_forward.10} parent=15 // pred_check_branch
        %150 = sbr.rel (%p148) target = $region20
      $region19: #{resnet_block_forward.10} parent=15 // pred_region
        %s151 = smul.u32 64, %s17
        %p152 = scmp.lt.s32.totalorder %s16, 1
        %s153 = scalar_select %p152, %s16, 1
        %p154 = scmp.lt.s32.totalorder %s151, 63
        %s155 = scalar_select %p154, %s151, 63
        %s156 = smul.addr %s153, 64
        %s157 = sadd.s32 %s155, %s156
        %s158 = smul.addr %s157, 8
        %s159 = scalar_lea.vmem %s0, %s158
        %s160 = smul.u32 64, %s17
      $region20: #{resnet_block_forward.10} parent=15 // pred_fallthru
        _
      // Predicated region
      $region21: #{resnet_block_forward.10} parent=15 // pred_check
        %p161 = pneg %p69
      $region22: #{resnet_block_forward.10} parent=15 // pred_check_branch
        %163 = sbr.rel (%p161) target = $region24
      $region23: #{resnet_block_forward.10} parent=15 // pred_region
        %p164 = scmp.lt.s32.totalorder %s16, 1
        %s165 = scalar_select %p164, %s16, 1
        %s166 = scalar_lea.vmem %s1, %s165
      $region24: #{resnet_block_forward.10} parent=15 // pred_fallthru
        _
      // Predicated region
      $region25: #{resnet_block_forward.10} parent=15 // pred_check
        %p167 = pneg %p95
      $region26: #{resnet_block_forward.10} parent=15 // pred_check_branch
        %169 = sbr.rel (%p167) target = $region28
      $region27: #{resnet_block_forward.10} parent=15 // pred_region
        %p170 = scmp.lt.s32.totalorder %s16, 1
        %s171 = scalar_select %p170, %s16, 1
        %s172 = scalar_lea.vmem %s2, %s171
      $region28: #{resnet_block_forward.10} parent=15 // pred_fallthru
        _
    $region16: #{resnet_block_forward.10} parent=5 // pred_fallthru
      _
    %p173 = scmp.le.s32.totalorder 1, %s9
    %p174 = scmp.lt.s32.totalorder %s9, 3
    %p175 = pnand %p173, %p174
    %p176 = pneg %p175
    // Predicated region
    $region29: #{resnet_block_forward.10} parent=5 // pred_check
      _
    $region30: #{resnet_block_forward.10} parent=5 // pred_check_branch
      %178 = sbr.rel (%p175) target = $region32
    $region31: #{resnet_block_forward.10} parent=5 // pred_region
      %s179 = ssub.s32 %s9, 1
      %s180 = smul.u32 64, %s19
      %p181 = scmp.lt.s32.totalorder %s18, 1
      %s182 = scalar_select %p181, %s18, 1
      %p183 = scmp.lt.s32.totalorder %s180, 63
      %s184 = scalar_select %p183, %s180, 63
      %s185 = smul.addr %s182, 64
      %s186 = sadd.s32 %s184, %s185
      %s187 = smul.addr %s186, 8
      %s188 = scalar_lea.vmem %s0, %s187
      %p189 = pneg %p49
      %p190 = pneg %p46
      %p191 = scmp.lt.s32.totalorder %s18, 1
      %s192 = scalar_select %p191, %s18, 1
      %s193 = scalar_lea.vmem %s1, %s192
      %p194 = pneg %p75
      %p195 = pneg %p72
      %p196 = scmp.lt.s32.totalorder %s18, 1
      %s197 = scalar_select %p196, %s18, 1
      %s198 = scalar_lea.vmem %s2, %s197
      %p199 = pneg %p101
      %p200 = pneg %p98
      %p201 = pneg %p129
      %p202 = pneg %p126
      %s203 = smul.u32 64, %s19
      %p204 = scmp.lt.s32.totalorder %s18, 1
      %s205 = scalar_select %p204, %s18, 1
      %p206 = scmp.lt.s32.totalorder %s203, 63
      %s207 = scalar_select %p206, %s203, 63
      %s208 = smul.addr %s205, 64
      %s209 = sadd.s32 %s207, %s208
      %s210 = smul.addr %s209, 4
      %s211 = scalar_lea.vmem %s3, %s210
      %s212 = smul.u32 64, %s19
      %p213 = scmp.lt.s32.totalorder %s18, 1
      %s214 = scalar_select %p213, %s18, 1
      %p215 = scmp.lt.s32.totalorder %s212, 63
      %s216 = scalar_select %p215, %s212, 63
      %s217 = smul.addr %s214, 64
      %s218 = sadd.s32 %s216, %s217
      %s219 = smul.addr %s218, 8
      %s220 = scalar_lea.vmem %s0, %s219
      %s221 = smul.u32 64, %s19
      %p222 = scmp.lt.s32.totalorder %s18, 1
      %s223 = scalar_select %p222, %s18, 1
      %s224 = scalar_lea.vmem %s1, %s223
      %p225 = scmp.lt.s32.totalorder %s18, 1
      %s226 = scalar_select %p225, %s18, 1
      %s227 = scalar_lea.vmem %s2, %s226
      %s228 = smul.u32 64, %s19
      %p229 = scmp.lt.s32.totalorder %s18, 1
      %s230 = scalar_select %p229, %s18, 1
      %p231 = scmp.lt.s32.totalorder %s228, 63
      %s232 = scalar_select %p231, %s228, 63
      %s233 = smul.addr %s230, 64
      %s234 = sadd.s32 %s232, %s233
      %s235 = smul.addr %s234, 4
      %s236 = scalar_lea.vmem %s3, %s235
      %s237 = smul.u32 64, %s19
      %v238 = vld [vmem:[%s220] sm:$0xff]
      %v239 = vld [vmem:[%s220 + $0x8] sm:$0xff]
      %v240 = vld [vmem:[%s220 + $0x10] sm:$0xff]
      %v241 = vld [vmem:[%s220 + $0x18] sm:$0xff]
      %v242 = vld [vmem:[%s220 + $0x20] sm:$0xff]
      %v243 = vld [vmem:[%s220 + $0x28] sm:$0xff]
      %v244 = vld [vmem:[%s220 + $0x30] sm:$0xff]
      %v245 = vld [vmem:[%s220 + $0x38] sm:$0xff]
      %v246 = vld [vmem:[%s220 + $0x40] sm:$0xff]
      %v247 = vld [vmem:[%s220 + $0x48] sm:$0xff]
      %v248 = vld [vmem:[%s220 + $0x50] sm:$0xff]
      %v249 = vld [vmem:[%s220 + $0x58] sm:$0xff]
      %v250 = vld [vmem:[%s220 + $0x60] sm:$0xff]
      %v251 = vld [vmem:[%s220 + $0x68] sm:$0xff]
      %v252 = vld [vmem:[%s220 + $0x70] sm:$0xff]
      %v253 = vld [vmem:[%s220 + $0x78] sm:$0xff]
      %v254 = vld [vmem:[%s220 + $0x80] sm:$0xff]
      %v255 = vld [vmem:[%s220 + $0x88] sm:$0xff]
      %v256 = vld [vmem:[%s220 + $0x90] sm:$0xff]
      %v257 = vld [vmem:[%s220 + $0x98] sm:$0xff]
      %v258 = vld [vmem:[%s220 + $0xa0] sm:$0xff]
      %v259 = vld [vmem:[%s220 + $0xa8] sm:$0xff]
      %v260 = vld [vmem:[%s220 + $0xb0] sm:$0xff]
      %v261 = vld [vmem:[%s220 + $0xb8] sm:$0xff]
      %v262 = vld [vmem:[%s220 + $0xc0] sm:$0xff]
      %v263 = vld [vmem:[%s220 + $0xc8] sm:$0xff]
      %v264 = vld [vmem:[%s220 + $0xd0] sm:$0xff]
      %v265 = vld [vmem:[%s220 + $0xd8] sm:$0xff]
      %v266 = vld [vmem:[%s220 + $0xe0] sm:$0xff]
      %v267 = vld [vmem:[%s220 + $0xe8] sm:$0xff]
      %v268 = vld [vmem:[%s220 + $0xf0] sm:$0xff]
      %v269 = vld [vmem:[%s220 + $0xf8] sm:$0xff]
      %v270 = vld [vmem:[%s220 + $0x100] sm:$0xff]
      %v271 = vld [vmem:[%s220 + $0x108] sm:$0xff]
      %v272 = vld [vmem:[%s220 + $0x110] sm:$0xff]
      %v273 = vld [vmem:[%s220 + $0x118] sm:$0xff]
      %v274 = vld [vmem:[%s220 + $0x120] sm:$0xff]
      %v275 = vld [vmem:[%s220 + $0x128] sm:$0xff]
      %v276 = vld [vmem:[%s220 + $0x130] sm:$0xff]
      %v277 = vld [vmem:[%s220 + $0x138] sm:$0xff]
      %v278 = vld [vmem:[%s220 + $0x140] sm:$0xff]
      %v279 = vld [vmem:[%s220 + $0x148] sm:$0xff]
      %v280 = vld [vmem:[%s220 + $0x150] sm:$0xff]
      %v281 = vld [vmem:[%s220 + $0x158] sm:$0xff]
      %v282 = vld [vmem:[%s220 + $0x160] sm:$0xff]
      %v283 = vld [vmem:[%s220 + $0x168] sm:$0xff]
      %v284 = vld [vmem:[%s220 + $0x170] sm:$0xff]
      %v285 = vld [vmem:[%s220 + $0x178] sm:$0xff]
      %v286 = vld [vmem:[%s220 + $0x180] sm:$0xff]
      %v287 = vld [vmem:[%s220 + $0x188] sm:$0xff]
      %v288 = vld [vmem:[%s220 + $0x190] sm:$0xff]
      %v289 = vld [vmem:[%s220 + $0x198] sm:$0xff]
      %v290 = vld [vmem:[%s220 + $0x1a0] sm:$0xff]
      %v291 = vld [vmem:[%s220 + $0x1a8] sm:$0xff]
      %v292 = vld [vmem:[%s220 + $0x1b0] sm:$0xff]
      %v293 = vld [vmem:[%s220 + $0x1b8] sm:$0xff]
      %v294 = vld [vmem:[%s220 + $0x1c0] sm:$0xff]
      %v295 = vld [vmem:[%s220 + $0x1c8] sm:$0xff]
      %v296 = vld [vmem:[%s220 + $0x1d0] sm:$0xff]
      %v297 = vld [vmem:[%s220 + $0x1d8] sm:$0xff]
      %v298 = vld [vmem:[%s220 + $0x1e0] sm:$0xff]
      %v299 = vld [vmem:[%s220 + $0x1e8] sm:$0xff]
      %v300 = vld [vmem:[%s220 + $0x1f0] sm:$0xff]
      %v301 = vld [vmem:[%s220 + $0x1f8] sm:$0xff]
      %v302 = vld [vmem:[%s224] sm:$0x1]
      %v304 = vlaneseq
      %v305 = vshrl.u32 %v304, 7
      %v306 = vsub.s32 0, %v305
      %v307 = vrot.slane %v302, %v306
      %v309 = vmul.f32 %v238, %v307
      %v310 = vmul.f32 %v239, %v307
      %v311 = vmul.f32 %v240, %v307
      %v312 = vmul.f32 %v241, %v307
      %v313 = vmul.f32 %v242, %v307
      %v314 = vmul.f32 %v243, %v307
      %v315 = vmul.f32 %v244, %v307
      %v316 = vmul.f32 %v245, %v307
      %v317 = vmul.f32 %v246, %v307
      %v318 = vmul.f32 %v247, %v307
      %v319 = vmul.f32 %v248, %v307
      %v320 = vmul.f32 %v249, %v307
      %v321 = vmul.f32 %v250, %v307
      %v322 = vmul.f32 %v251, %v307
      %v323 = vmul.f32 %v252, %v307
      %v324 = vmul.f32 %v253, %v307
      %v325 = vmul.f32 %v254, %v307
      %v326 = vmul.f32 %v255, %v307
      %v327 = vmul.f32 %v256, %v307
      %v328 = vmul.f32 %v257, %v307
      %v329 = vmul.f32 %v258, %v307
      %v330 = vmul.f32 %v259, %v307
      %v331 = vmul.f32 %v260, %v307
      %v332 = vmul.f32 %v261, %v307
      %v333 = vmul.f32 %v262, %v307
      %v334 = vmul.f32 %v263, %v307
      %v335 = vmul.f32 %v264, %v307
      %v336 = vmul.f32 %v265, %v307
      %v337 = vmul.f32 %v266, %v307
      %v338 = vmul.f32 %v267, %v307
      %v339 = vmul.f32 %v268, %v307
      %v340 = vmul.f32 %v269, %v307
      %v341 = vmul.f32 %v270, %v307
      %v342 = vmul.f32 %v271, %v307
      %v343 = vmul.f32 %v272, %v307
      %v344 = vmul.f32 %v273, %v307
      %v345 = vmul.f32 %v274, %v307
      %v346 = vmul.f32 %v275, %v307
      %v347 = vmul.f32 %v276, %v307
      %v348 = vmul.f32 %v277, %v307
      %v349 = vmul.f32 %v278, %v307
      %v350 = vmul.f32 %v279, %v307
      %v351 = vmul.f32 %v280, %v307
      %v352 = vmul.f32 %v281, %v307
      %v353 = vmul.f32 %v282, %v307
      %v354 = vmul.f32 %v283, %v307
      %v355 = vmul.f32 %v284, %v307
      %v356 = vmul.f32 %v285, %v307
      %v357 = vmul.f32 %v286, %v307
      %v358 = vmul.f32 %v287, %v307
      %v359 = vmul.f32 %v288, %v307
      %v360 = vmul.f32 %v289, %v307
      %v361 = vmul.f32 %v290, %v307
      %v362 = vmul.f32 %v291, %v307
      %v363 = vmul.f32 %v292, %v307
      %v364 = vmul.f32 %v293, %v307
      %v365 = vmul.f32 %v294, %v307
      %v366 = vmul.f32 %v295, %v307
      %v367 = vmul.f32 %v296, %v307
      %v368 = vmul.f32 %v297, %v307
      %v369 = vmul.f32 %v298, %v307
      %v370 = vmul.f32 %v299, %v307
      %v371 = vmul.f32 %v300, %v307
      %v372 = vmul.f32 %v301, %v307
      %v373 = vld [vmem:[%s227] sm:$0x1]
      %v375 = vlaneseq
      %v376 = vshrl.u32 %v375, 7
      %v377 = vsub.s32 0, %v376
      %v378 = vrot.slane %v373, %v377
      %v380 = vadd.f32 %v309, %v378
      %v381 = vadd.f32 %v310, %v378
      %v382 = vadd.f32 %v311, %v378
      %v383 = vadd.f32 %v312, %v378
      %v384 = vadd.f32 %v313, %v378
      %v385 = vadd.f32 %v314, %v378
      %v386 = vadd.f32 %v315, %v378
      %v387 = vadd.f32 %v316, %v378
      %v388 = vadd.f32 %v317, %v378
      %v389 = vadd.f32 %v318, %v378
      %v390 = vadd.f32 %v319, %v378
      %v391 = vadd.f32 %v320, %v378
      %v392 = vadd.f32 %v321, %v378
      %v393 = vadd.f32 %v322, %v378
      %v394 = vadd.f32 %v323, %v378
      %v395 = vadd.f32 %v324, %v378
      %v396 = vadd.f32 %v325, %v378
      %v397 = vadd.f32 %v326, %v378
      %v398 = vadd.f32 %v327, %v378
      %v399 = vadd.f32 %v328, %v378
      %v400 = vadd.f32 %v329, %v378
      %v401 = vadd.f32 %v330, %v378
      %v402 = vadd.f32 %v331, %v378
      %v403 = vadd.f32 %v332, %v378
      %v404 = vadd.f32 %v333, %v378
      %v405 = vadd.f32 %v334, %v378
      %v406 = vadd.f32 %v335, %v378
      %v407 = vadd.f32 %v336, %v378
      %v408 = vadd.f32 %v337, %v378
      %v409 = vadd.f32 %v338, %v378
      %v410 = vadd.f32 %v339, %v378
      %v411 = vadd.f32 %v340, %v378
      %v412 = vadd.f32 %v341, %v378
      %v413 = vadd.f32 %v342, %v378
      %v414 = vadd.f32 %v343, %v378
      %v415 = vadd.f32 %v344, %v378
      %v416 = vadd.f32 %v345, %v378
      %v417 = vadd.f32 %v346, %v378
      %v418 = vadd.f32 %v347, %v378
      %v419 = vadd.f32 %v348, %v378
      %v420 = vadd.f32 %v349, %v378
      %v421 = vadd.f32 %v350, %v378
      %v422 = vadd.f32 %v351, %v378
      %v423 = vadd.f32 %v352, %v378
      %v424 = vadd.f32 %v353, %v378
      %v425 = vadd.f32 %v354, %v378
      %v426 = vadd.f32 %v355, %v378
      %v427 = vadd.f32 %v356, %v378
      %v428 = vadd.f32 %v357, %v378
      %v429 = vadd.f32 %v358, %v378
      %v430 = vadd.f32 %v359, %v378
      %v431 = vadd.f32 %v360, %v378
      %v432 = vadd.f32 %v361, %v378
      %v433 = vadd.f32 %v362, %v378
      %v434 = vadd.f32 %v363, %v378
      %v435 = vadd.f32 %v364, %v378
      %v436 = vadd.f32 %v365, %v378
      %v437 = vadd.f32 %v366, %v378
      %v438 = vadd.f32 %v367, %v378
      %v439 = vadd.f32 %v368, %v378
      %v440 = vadd.f32 %v369, %v378
      %v441 = vadd.f32 %v370, %v378
      %v442 = vadd.f32 %v371, %v378
      %v443 = vadd.f32 %v372, %v378
      %v444 = vxor.u32 %v380, 2147483648
      %v445 = vxor.u32 %v381, 2147483648
      %v446 = vxor.u32 %v382, 2147483648
      %v447 = vxor.u32 %v383, 2147483648
      %v448 = vxor.u32 %v384, 2147483648
      %v449 = vxor.u32 %v385, 2147483648
      %v450 = vxor.u32 %v386, 2147483648
      %v451 = vxor.u32 %v387, 2147483648
      %v452 = vxor.u32 %v388, 2147483648
      %v453 = vxor.u32 %v389, 2147483648
      %v454 = vxor.u32 %v390, 2147483648
      %v455 = vxor.u32 %v391, 2147483648
      %v456 = vxor.u32 %v392, 2147483648
      %v457 = vxor.u32 %v393, 2147483648
      %v458 = vxor.u32 %v394, 2147483648
      %v459 = vxor.u32 %v395, 2147483648
      %v460 = vxor.u32 %v396, 2147483648
      %v461 = vxor.u32 %v397, 2147483648
      %v462 = vxor.u32 %v398, 2147483648
      %v463 = vxor.u32 %v399, 2147483648
      %v464 = vxor.u32 %v400, 2147483648
      %v465 = vxor.u32 %v401, 2147483648
      %v466 = vxor.u32 %v402, 2147483648
      %v467 = vxor.u32 %v403, 2147483648
      %v468 = vxor.u32 %v404, 2147483648
      %v469 = vxor.u32 %v405, 2147483648
      %v470 = vxor.u32 %v406, 2147483648
      %v471 = vxor.u32 %v407, 2147483648
      %v472 = vxor.u32 %v408, 2147483648
      %v473 = vxor.u32 %v409, 2147483648
      %v474 = vxor.u32 %v410, 2147483648
      %v475 = vxor.u32 %v411, 2147483648
      %v476 = vxor.u32 %v412, 2147483648
      %v477 = vxor.u32 %v413, 2147483648
      %v478 = vxor.u32 %v414, 2147483648
      %v479 = vxor.u32 %v415, 2147483648
      %v480 = vxor.u32 %v416, 2147483648
      %v481 = vxor.u32 %v417, 2147483648
      %v482 = vxor.u32 %v418, 2147483648
      %v483 = vxor.u32 %v419, 2147483648
      %v484 = vxor.u32 %v420, 2147483648
      %v485 = vxor.u32 %v421, 2147483648
      %v486 = vxor.u32 %v422, 2147483648
      %v487 = vxor.u32 %v423, 2147483648
      %v488 = vxor.u32 %v424, 2147483648
      %v489 = vxor.u32 %v425, 2147483648
      %v490 = vxor.u32 %v426, 2147483648
      %v491 = vxor.u32 %v427, 2147483648
      %v492 = vxor.u32 %v428, 2147483648
      %v493 = vxor.u32 %v429, 2147483648
      %v494 = vxor.u32 %v430, 2147483648
      %v495 = vxor.u32 %v431, 2147483648
      %v496 = vxor.u32 %v432, 2147483648
      %v497 = vxor.u32 %v433, 2147483648
      %v498 = vxor.u32 %v434, 2147483648
      %v499 = vxor.u32 %v435, 2147483648
      %v500 = vxor.u32 %v436, 2147483648
      %v501 = vxor.u32 %v437, 2147483648
      %v502 = vxor.u32 %v438, 2147483648
      %v503 = vxor.u32 %v439, 2147483648
      %v504 = vxor.u32 %v440, 2147483648
      %v505 = vxor.u32 %v441, 2147483648
      %v506 = vxor.u32 %v442, 2147483648
      %v507 = vxor.u32 %v443, 2147483648
      %v508 = vmul.f32 %v444, 1.442695
      %v509 = vpow.pop %v508
      %v510 = vmul.f32 %v445, 1.442695
      %v511 = vpow.pop %v510
      %v512 = vmul.f32 %v446, 1.442695
      %v513 = vpow.pop %v512
      %v514 = vmul.f32 %v447, 1.442695
      %v515 = vpow.pop %v514
      %v516 = vmul.f32 %v448, 1.442695
      %v517 = vpow.pop %v516
      %v518 = vmul.f32 %v449, 1.442695
      %v519 = vpow.pop %v518
      %v520 = vmul.f32 %v450, 1.442695
      %v521 = vpow.pop %v520
      %v522 = vmul.f32 %v451, 1.442695
      %v523 = vpow.pop %v522
      %v524 = vmul.f32 %v452, 1.442695
      %v525 = vpow.pop %v524
      %v526 = vmul.f32 %v453, 1.442695
      %v527 = vpow.pop %v526
      %v528 = vmul.f32 %v454, 1.442695
      %v529 = vpow.pop %v528
      %v530 = vmul.f32 %v455, 1.442695
      %v531 = vpow.pop %v530
      %v532 = vmul.f32 %v456, 1.442695
      %v533 = vpow.pop %v532
      %v534 = vmul.f32 %v457, 1.442695
      %v535 = vpow.pop %v534
      %v536 = vmul.f32 %v458, 1.442695
      %v537 = vpow.pop %v536
      %v538 = vmul.f32 %v459, 1.442695
      %v539 = vpow.pop %v538
      %v540 = vmul.f32 %v460, 1.442695
      %v541 = vpow.pop %v540
      %v542 = vmul.f32 %v461, 1.442695
      %v543 = vpow.pop %v542
      %v544 = vmul.f32 %v462, 1.442695
      %v545 = vpow.pop %v544
      %v546 = vmul.f32 %v463, 1.442695
      %v547 = vpow.pop %v546
      %v548 = vmul.f32 %v464, 1.442695
      %v549 = vpow.pop %v548
      %v550 = vmul.f32 %v465, 1.442695
      %v551 = vpow.pop %v550
      %v552 = vmul.f32 %v466, 1.442695
      %v553 = vpow.pop %v552
      %v554 = vmul.f32 %v467, 1.442695
      %v555 = vpow.pop %v554
      %v556 = vmul.f32 %v468, 1.442695
      %v557 = vpow.pop %v556
      %v558 = vmul.f32 %v469, 1.442695
      %v559 = vpow.pop %v558
      %v560 = vmul.f32 %v470, 1.442695
      %v561 = vpow.pop %v560
      %v562 = vmul.f32 %v471, 1.442695
      %v563 = vpow.pop %v562
      %v564 = vmul.f32 %v472, 1.442695
      %v565 = vpow.pop %v564
      %v566 = vmul.f32 %v473, 1.442695
      %v567 = vpow.pop %v566
      %v568 = vmul.f32 %v474, 1.442695
      %v569 = vpow.pop %v568
      %v570 = vmul.f32 %v475, 1.442695
      %v571 = vpow.pop %v570
      %v572 = vmul.f32 %v476, 1.442695
      %v573 = vpow.pop %v572
      %v574 = vmul.f32 %v477, 1.442695
      %v575 = vpow.pop %v574
      %v576 = vmul.f32 %v478, 1.442695
      %v577 = vpow.pop %v576
      %v578 = vmul.f32 %v479, 1.442695
      %v579 = vpow.pop %v578
      %v580 = vmul.f32 %v480, 1.442695
      %v581 = vpow.pop %v580
      %v582 = vmul.f32 %v481, 1.442695
      %v583 = vpow.pop %v582
      %v584 = vmul.f32 %v482, 1.442695
      %v585 = vpow.pop %v584
      %v586 = vmul.f32 %v483, 1.442695
      %v587 = vpow.pop %v586
      %v588 = vmul.f32 %v484, 1.442695
      %v589 = vpow.pop %v588
      %v590 = vmul.f32 %v485, 1.442695
      %v591 = vpow.pop %v590
      %v592 = vmul.f32 %v486, 1.442695
      %v593 = vpow.pop %v592
      %v594 = vmul.f32 %v487, 1.442695
      %v595 = vpow.pop %v594
      %v596 = vmul.f32 %v488, 1.442695
      %v597 = vpow.pop %v596
      %v598 = vmul.f32 %v489, 1.442695
      %v599 = vpow.pop %v598
      %v600 = vmul.f32 %v490, 1.442695
      %v601 = vpow.pop %v600
      %v602 = vmul.f32 %v491, 1.442695
      %v603 = vpow.pop %v602
      %v604 = vmul.f32 %v492, 1.442695
      %v605 = vpow.pop %v604
      %v606 = vmul.f32 %v493, 1.442695
      %v607 = vpow.pop %v606
      %v608 = vmul.f32 %v494, 1.442695
      %v609 = vpow.pop %v608
      %v610 = vmul.f32 %v495, 1.442695
      %v611 = vpow.pop %v610
      %v612 = vmul.f32 %v496, 1.442695
      %v613 = vpow.pop %v612
      %v614 = vmul.f32 %v497, 1.442695
      %v615 = vpow.pop %v614
      %v616 = vmul.f32 %v498, 1.442695
      %v617 = vpow.pop %v616
      %v618 = vmul.f32 %v499, 1.442695
      %v619 = vpow.pop %v618
      %v620 = vmul.f32 %v500, 1.442695
      %v621 = vpow.pop %v620
      %v622 = vmul.f32 %v501, 1.442695
      %v623 = vpow.pop %v622
      %v624 = vmul.f32 %v502, 1.442695
      %v625 = vpow.pop %v624
      %v626 = vmul.f32 %v503, 1.442695
      %v627 = vpow.pop %v626
      %v628 = vmul.f32 %v504, 1.442695
      %v629 = vpow.pop %v628
      %v630 = vmul.f32 %v505, 1.442695
      %v631 = vpow.pop %v630
      %v632 = vmul.f32 %v506, 1.442695
      %v633 = vpow.pop %v632
      %v634 = vmul.f32 %v507, 1.442695
      %v635 = vpow.pop %v634
      %v636 = vadd.f32 %v509, 1.0
      %v637 = vadd.f32 %v511, 1.0
      %v638 = vadd.f32 %v513, 1.0
      %v639 = vadd.f32 %v515, 1.0
      %v640 = vadd.f32 %v517, 1.0
      %v641 = vadd.f32 %v519, 1.0
      %v642 = vadd.f32 %v521, 1.0
      %v643 = vadd.f32 %v523, 1.0
      %v644 = vadd.f32 %v525, 1.0
      %v645 = vadd.f32 %v527, 1.0
      %v646 = vadd.f32 %v529, 1.0
      %v647 = vadd.f32 %v531, 1.0
      %v648 = vadd.f32 %v533, 1.0
      %v649 = vadd.f32 %v535, 1.0
      %v650 = vadd.f32 %v537, 1.0
      %v651 = vadd.f32 %v539, 1.0
      %v652 = vadd.f32 %v541, 1.0
      %v653 = vadd.f32 %v543, 1.0
      %v654 = vadd.f32 %v545, 1.0
      %v655 = vadd.f32 %v547, 1.0
      %v656 = vadd.f32 %v549, 1.0
      %v657 = vadd.f32 %v551, 1.0
      %v658 = vadd.f32 %v553, 1.0
      %v659 = vadd.f32 %v555, 1.0
      %v660 = vadd.f32 %v557, 1.0
      %v661 = vadd.f32 %v559, 1.0
      %v662 = vadd.f32 %v561, 1.0
      %v663 = vadd.f32 %v563, 1.0
      %v664 = vadd.f32 %v565, 1.0
      %v665 = vadd.f32 %v567, 1.0
      %v666 = vadd.f32 %v569, 1.0
      %v667 = vadd.f32 %v571, 1.0
      %v668 = vadd.f32 %v573, 1.0
      %v669 = vadd.f32 %v575, 1.0
      %v670 = vadd.f32 %v577, 1.0
      %v671 = vadd.f32 %v579, 1.0
      %v672 = vadd.f32 %v581, 1.0
      %v673 = vadd.f32 %v583, 1.0
      %v674 = vadd.f32 %v585, 1.0
      %v675 = vadd.f32 %v587, 1.0
      %v676 = vadd.f32 %v589, 1.0
      %v677 = vadd.f32 %v591, 1.0
      %v678 = vadd.f32 %v593, 1.0
      %v679 = vadd.f32 %v595, 1.0
      %v680 = vadd.f32 %v597, 1.0
      %v681 = vadd.f32 %v599, 1.0
      %v682 = vadd.f32 %v601, 1.0
      %v683 = vadd.f32 %v603, 1.0
      %v684 = vadd.f32 %v605, 1.0
      %v685 = vadd.f32 %v607, 1.0
      %v686 = vadd.f32 %v609, 1.0
      %v687 = vadd.f32 %v611, 1.0
      %v688 = vadd.f32 %v613, 1.0
      %v689 = vadd.f32 %v615, 1.0
      %v690 = vadd.f32 %v617, 1.0
      %v691 = vadd.f32 %v619, 1.0
      %v692 = vadd.f32 %v621, 1.0
      %v693 = vadd.f32 %v623, 1.0
      %v694 = vadd.f32 %v625, 1.0
      %v695 = vadd.f32 %v627, 1.0
      %v696 = vadd.f32 %v629, 1.0
      %v697 = vadd.f32 %v631, 1.0
      %v698 = vadd.f32 %v633, 1.0
      %v699 = vadd.f32 %v635, 1.0
      %v700 = vrcp.pop %v636
      %v701 = vmul.f32 1.0, %v700
      %v702 = vrcp.pop %v637
      %v703 = vmul.f32 1.0, %v702
      %v704 = vrcp.pop %v638
      %v705 = vmul.f32 1.0, %v704
      %v706 = vrcp.pop %v639
      %v707 = vmul.f32 1.0, %v706
      %v708 = vrcp.pop %v640
      %v709 = vmul.f32 1.0, %v708
      %v710 = vrcp.pop %v641
      %v711 = vmul.f32 1.0, %v710
      %v712 = vrcp.pop %v642
      %v713 = vmul.f32 1.0, %v712
      %v714 = vrcp.pop %v643
      %v715 = vmul.f32 1.0, %v714
      %v716 = vrcp.pop %v644
      %v717 = vmul.f32 1.0, %v716
      %v718 = vrcp.pop %v645
      %v719 = vmul.f32 1.0, %v718
      %v720 = vrcp.pop %v646
      %v721 = vmul.f32 1.0, %v720
      %v722 = vrcp.pop %v647
      %v723 = vmul.f32 1.0, %v722
      %v724 = vrcp.pop %v648
      %v725 = vmul.f32 1.0, %v724
      %v726 = vrcp.pop %v649
      %v727 = vmul.f32 1.0, %v726
      %v728 = vrcp.pop %v650
      %v729 = vmul.f32 1.0, %v728
      %v730 = vrcp.pop %v651
      %v731 = vmul.f32 1.0, %v730
      %v732 = vrcp.pop %v652
      %v733 = vmul.f32 1.0, %v732
      %v734 = vrcp.pop %v653
      %v735 = vmul.f32 1.0, %v734
      %v736 = vrcp.pop %v654
      %v737 = vmul.f32 1.0, %v736
      %v738 = vrcp.pop %v655
      %v739 = vmul.f32 1.0, %v738
      %v740 = vrcp.pop %v656
      %v741 = vmul.f32 1.0, %v740
      %v742 = vrcp.pop %v657
      %v743 = vmul.f32 1.0, %v742
      %v744 = vrcp.pop %v658
      %v745 = vmul.f32 1.0, %v744
      %v746 = vrcp.pop %v659
      %v747 = vmul.f32 1.0, %v746
      %v748 = vrcp.pop %v660
      %v749 = vmul.f32 1.0, %v748
      %v750 = vrcp.pop %v661
      %v751 = vmul.f32 1.0, %v750
      %v752 = vrcp.pop %v662
      %v753 = vmul.f32 1.0, %v752
      %v754 = vrcp.pop %v663
      %v755 = vmul.f32 1.0, %v754
      %v756 = vrcp.pop %v664
      %v757 = vmul.f32 1.0, %v756
      %v758 = vrcp.pop %v665
      %v759 = vmul.f32 1.0, %v758
      %v760 = vrcp.pop %v666
      %v761 = vmul.f32 1.0, %v760
      %v762 = vrcp.pop %v667
      %v763 = vmul.f32 1.0, %v762
      %v764 = vrcp.pop %v668
      %v765 = vmul.f32 1.0, %v764
      %v766 = vrcp.pop %v669
      %v767 = vmul.f32 1.0, %v766
      %v768 = vrcp.pop %v670
      %v769 = vmul.f32 1.0, %v768
      %v770 = vrcp.pop %v671
      %v771 = vmul.f32 1.0, %v770
      %v772 = vrcp.pop %v672
      %v773 = vmul.f32 1.0, %v772
      %v774 = vrcp.pop %v673
      %v775 = vmul.f32 1.0, %v774
      %v776 = vrcp.pop %v674
      %v777 = vmul.f32 1.0, %v776
      %v778 = vrcp.pop %v675
      %v779 = vmul.f32 1.0, %v778
      %v780 = vrcp.pop %v676
      %v781 = vmul.f32 1.0, %v780
      %v782 = vrcp.pop %v677
      %v783 = vmul.f32 1.0, %v782
      %v784 = vrcp.pop %v678
      %v785 = vmul.f32 1.0, %v784
      %v786 = vrcp.pop %v679
      %v787 = vmul.f32 1.0, %v786
      %v788 = vrcp.pop %v680
      %v789 = vmul.f32 1.0, %v788
      %v790 = vrcp.pop %v681
      %v791 = vmul.f32 1.0, %v790
      %v792 = vrcp.pop %v682
      %v793 = vmul.f32 1.0, %v792
      %v794 = vrcp.pop %v683
      %v795 = vmul.f32 1.0, %v794
      %v796 = vrcp.pop %v684
      %v797 = vmul.f32 1.0, %v796
      %v798 = vrcp.pop %v685
      %v799 = vmul.f32 1.0, %v798
      %v800 = vrcp.pop %v686
      %v801 = vmul.f32 1.0, %v800
      %v802 = vrcp.pop %v687
      %v803 = vmul.f32 1.0, %v802
      %v804 = vrcp.pop %v688
      %v805 = vmul.f32 1.0, %v804
      %v806 = vrcp.pop %v689
      %v807 = vmul.f32 1.0, %v806
      %v808 = vrcp.pop %v690
      %v809 = vmul.f32 1.0, %v808
      %v810 = vrcp.pop %v691
      %v811 = vmul.f32 1.0, %v810
      %v812 = vrcp.pop %v692
      %v813 = vmul.f32 1.0, %v812
      %v814 = vrcp.pop %v693
      %v815 = vmul.f32 1.0, %v814
      %v816 = vrcp.pop %v694
      %v817 = vmul.f32 1.0, %v816
      %v818 = vrcp.pop %v695
      %v819 = vmul.f32 1.0, %v818
      %v820 = vrcp.pop %v696
      %v821 = vmul.f32 1.0, %v820
      %v822 = vrcp.pop %v697
      %v823 = vmul.f32 1.0, %v822
      %v824 = vrcp.pop %v698
      %v825 = vmul.f32 1.0, %v824
      %v826 = vrcp.pop %v699
      %v827 = vmul.f32 1.0, %v826
      %v828 = vmul.f32 %v380, %v701
      %v829 = vmul.f32 %v381, %v703
      %v830 = vmul.f32 %v382, %v705
      %v831 = vmul.f32 %v383, %v707
      %v832 = vmul.f32 %v384, %v709
      %v833 = vmul.f32 %v385, %v711
      %v834 = vmul.f32 %v386, %v713
      %v835 = vmul.f32 %v387, %v715
      %v836 = vmul.f32 %v388, %v717
      %v837 = vmul.f32 %v389, %v719
      %v838 = vmul.f32 %v390, %v721
      %v839 = vmul.f32 %v391, %v723
      %v840 = vmul.f32 %v392, %v725
      %v841 = vmul.f32 %v393, %v727
      %v842 = vmul.f32 %v394, %v729
      %v843 = vmul.f32 %v395, %v731
      %v844 = vmul.f32 %v396, %v733
      %v845 = vmul.f32 %v397, %v735
      %v846 = vmul.f32 %v398, %v737
      %v847 = vmul.f32 %v399, %v739
      %v848 = vmul.f32 %v400, %v741
      %v849 = vmul.f32 %v401, %v743
      %v850 = vmul.f32 %v402, %v745
      %v851 = vmul.f32 %v403, %v747
      %v852 = vmul.f32 %v404, %v749
      %v853 = vmul.f32 %v405, %v751
      %v854 = vmul.f32 %v406, %v753
      %v855 = vmul.f32 %v407, %v755
      %v856 = vmul.f32 %v408, %v757
      %v857 = vmul.f32 %v409, %v759
      %v858 = vmul.f32 %v410, %v761
      %v859 = vmul.f32 %v411, %v763
      %v860 = vmul.f32 %v412, %v765
      %v861 = vmul.f32 %v413, %v767
      %v862 = vmul.f32 %v414, %v769
      %v863 = vmul.f32 %v415, %v771
      %v864 = vmul.f32 %v416, %v773
      %v865 = vmul.f32 %v417, %v775
      %v866 = vmul.f32 %v418, %v777
      %v867 = vmul.f32 %v419, %v779
      %v868 = vmul.f32 %v420, %v781
      %v869 = vmul.f32 %v421, %v783
      %v870 = vmul.f32 %v422, %v785
      %v871 = vmul.f32 %v423, %v787
      %v872 = vmul.f32 %v424, %v789
      %v873 = vmul.f32 %v425, %v791
      %v874 = vmul.f32 %v426, %v793
      %v875 = vmul.f32 %v427, %v795
      %v876 = vmul.f32 %v428, %v797
      %v877 = vmul.f32 %v429, %v799
      %v878 = vmul.f32 %v430, %v801
      %v879 = vmul.f32 %v431, %v803
      %v880 = vmul.f32 %v432, %v805
      %v881 = vmul.f32 %v433, %v807
      %v882 = vmul.f32 %v434, %v809
      %v883 = vmul.f32 %v435, %v811
      %v884 = vmul.f32 %v436, %v813
      %v885 = vmul.f32 %v437, %v815
      %v886 = vmul.f32 %v438, %v817
      %v887 = vmul.f32 %v439, %v819
      %v888 = vmul.f32 %v440, %v821
      %v889 = vmul.f32 %v441, %v823
      %v890 = vmul.f32 %v442, %v825
      %v891 = vmul.f32 %v443, %v827
      %v892 = vpack.c.bf16 %v829, %v828
      %v893 = vpack.c.bf16 %v831, %v830
      %v894 = vpack.c.bf16 %v833, %v832
      %v895 = vpack.c.bf16 %v835, %v834
      %v896 = vpack.c.bf16 %v837, %v836
      %v897 = vpack.c.bf16 %v839, %v838
      %v898 = vpack.c.bf16 %v841, %v840
      %v899 = vpack.c.bf16 %v843, %v842
      %v900 = vpack.c.bf16 %v845, %v844
      %v901 = vpack.c.bf16 %v847, %v846
      %v902 = vpack.c.bf16 %v849, %v848
      %v903 = vpack.c.bf16 %v851, %v850
      %v904 = vpack.c.bf16 %v853, %v852
      %v905 = vpack.c.bf16 %v855, %v854
      %v906 = vpack.c.bf16 %v857, %v856
      %v907 = vpack.c.bf16 %v859, %v858
      %v908 = vpack.c.bf16 %v861, %v860
      %v909 = vpack.c.bf16 %v863, %v862
      %v910 = vpack.c.bf16 %v865, %v864
      %v911 = vpack.c.bf16 %v867, %v866
      %v912 = vpack.c.bf16 %v869, %v868
      %v913 = vpack.c.bf16 %v871, %v870
      %v914 = vpack.c.bf16 %v873, %v872
      %v915 = vpack.c.bf16 %v875, %v874
      %v916 = vpack.c.bf16 %v877, %v876
      %v917 = vpack.c.bf16 %v879, %v878
      %v918 = vpack.c.bf16 %v881, %v880
      %v919 = vpack.c.bf16 %v883, %v882
      %v920 = vpack.c.bf16 %v885, %v884
      %v921 = vpack.c.bf16 %v887, %v886
      %v922 = vpack.c.bf16 %v889, %v888
      %v923 = vpack.c.bf16 %v891, %v890
      %v956 = vunpack.c.l.b16 %v892
      %v957 = vunpack.c.h.b16 %v892
      %v958 = vunpack.c.l.b16 %v893
      %v959 = vunpack.c.h.b16 %v893
      %v960 = vunpack.c.l.b16 %v894
      %v961 = vunpack.c.h.b16 %v894
      %v962 = vunpack.c.l.b16 %v895
      %v963 = vunpack.c.h.b16 %v895
      %v964 = vunpack.c.l.b16 %v896
      %v965 = vunpack.c.h.b16 %v896
      %v966 = vunpack.c.l.b16 %v897
      %v967 = vunpack.c.h.b16 %v897
      %v968 = vunpack.c.l.b16 %v898
      %v969 = vunpack.c.h.b16 %v898
      %v970 = vunpack.c.l.b16 %v899
      %v971 = vunpack.c.h.b16 %v899
      %v972 = vunpack.c.l.b16 %v900
      %v973 = vunpack.c.h.b16 %v900
      %v974 = vunpack.c.l.b16 %v901
      %v975 = vunpack.c.h.b16 %v901
      %v976 = vunpack.c.l.b16 %v902
      %v977 = vunpack.c.h.b16 %v902
      %v978 = vunpack.c.l.b16 %v903
      %v979 = vunpack.c.h.b16 %v903
      %v980 = vunpack.c.l.b16 %v904
      %v981 = vunpack.c.h.b16 %v904
      %v982 = vunpack.c.l.b16 %v905
      %v983 = vunpack.c.h.b16 %v905
      %v984 = vunpack.c.l.b16 %v906
      %v985 = vunpack.c.h.b16 %v906
      %v986 = vunpack.c.l.b16 %v907
      %v987 = vunpack.c.h.b16 %v907
      %v988 = vunpack.c.l.b16 %v908
      %v989 = vunpack.c.h.b16 %v908
      %v990 = vunpack.c.l.b16 %v909
      %v991 = vunpack.c.h.b16 %v909
      %v992 = vunpack.c.l.b16 %v910
      %v993 = vunpack.c.h.b16 %v910
      %v994 = vunpack.c.l.b16 %v911
      %v995 = vunpack.c.h.b16 %v911
      %v996 = vunpack.c.l.b16 %v912
      %v997 = vunpack.c.h.b16 %v912
      %v998 = vunpack.c.l.b16 %v913
      %v999 = vunpack.c.h.b16 %v913
      %v1000 = vunpack.c.l.b16 %v914
      %v1001 = vunpack.c.h.b16 %v914
      %v1002 = vunpack.c.l.b16 %v915
      %v1003 = vunpack.c.h.b16 %v915
      %v1004 = vunpack.c.l.b16 %v916
      %v1005 = vunpack.c.h.b16 %v916
      %v1006 = vunpack.c.l.b16 %v917
      %v1007 = vunpack.c.h.b16 %v917
      %v1008 = vunpack.c.l.b16 %v918
      %v1009 = vunpack.c.h.b16 %v918
      %v1010 = vunpack.c.l.b16 %v919
      %v1011 = vunpack.c.h.b16 %v919
      %v1012 = vunpack.c.l.b16 %v920
      %v1013 = vunpack.c.h.b16 %v920
      %v1014 = vunpack.c.l.b16 %v921
      %v1015 = vunpack.c.h.b16 %v921
      %v1016 = vunpack.c.l.b16 %v922
      %v1017 = vunpack.c.h.b16 %v922
      %v1018 = vunpack.c.l.b16 %v923
      %v1019 = vunpack.c.h.b16 %v923
      %v1020 = vpack.c.b16 %v956, %v956
      %v1021 = vpack.c.b16 %v957, %v957
      %v1022 = vpack.c.b16 %v958, %v958
      %v1023 = vpack.c.b16 %v959, %v959
      %v1024 = vpack.c.b16 %v960, %v960
      %v1025 = vpack.c.b16 %v961, %v961
      %v1026 = vpack.c.b16 %v962, %v962
      %v1027 = vpack.c.b16 %v963, %v963
      %v1028 = vpack.c.b16 %v964, %v964
      %v1029 = vpack.c.b16 %v965, %v965
      %v1030 = vpack.c.b16 %v966, %v966
      %v1031 = vpack.c.b16 %v967, %v967
      %v1032 = vpack.c.b16 %v968, %v968
      %v1033 = vpack.c.b16 %v969, %v969
      %v1034 = vpack.c.b16 %v970, %v970
      %v1035 = vpack.c.b16 %v971, %v971
      %v1036 = vpack.c.b16 %v972, %v972
      %v1037 = vpack.c.b16 %v973, %v973
      %v1038 = vpack.c.b16 %v974, %v974
      %v1039 = vpack.c.b16 %v975, %v975
      %v1040 = vpack.c.b16 %v976, %v976
      %v1041 = vpack.c.b16 %v977, %v977
      %v1042 = vpack.c.b16 %v978, %v978
      %v1043 = vpack.c.b16 %v979, %v979
      %v1044 = vpack.c.b16 %v980, %v980
      %v1045 = vpack.c.b16 %v981, %v981
      %v1046 = vpack.c.b16 %v982, %v982
      %v1047 = vpack.c.b16 %v983, %v983
      %v1048 = vpack.c.b16 %v984, %v984
      %v1049 = vpack.c.b16 %v985, %v985
      %v1050 = vpack.c.b16 %v986, %v986
      %v1051 = vpack.c.b16 %v987, %v987
      %v1052 = vpack.c.b16 %v988, %v988
      %v1053 = vpack.c.b16 %v989, %v989
      %v1054 = vpack.c.b16 %v990, %v990
      %v1055 = vpack.c.b16 %v991, %v991
      %v1056 = vpack.c.b16 %v992, %v992
      %v1057 = vpack.c.b16 %v993, %v993
      %v1058 = vpack.c.b16 %v994, %v994
      %v1059 = vpack.c.b16 %v995, %v995
      %v1060 = vpack.c.b16 %v996, %v996
      %v1061 = vpack.c.b16 %v997, %v997
      %v1062 = vpack.c.b16 %v998, %v998
      %v1063 = vpack.c.b16 %v999, %v999
      %v1064 = vpack.c.b16 %v1000, %v1000
      %v1065 = vpack.c.b16 %v1001, %v1001
      %v1066 = vpack.c.b16 %v1002, %v1002
      %v1067 = vpack.c.b16 %v1003, %v1003
      %v1068 = vpack.c.b16 %v1004, %v1004
      %v1069 = vpack.c.b16 %v1005, %v1005
      %v1070 = vpack.c.b16 %v1006, %v1006
      %v1071 = vpack.c.b16 %v1007, %v1007
      %v1072 = vpack.c.b16 %v1008, %v1008
      %v1073 = vpack.c.b16 %v1009, %v1009
      %v1074 = vpack.c.b16 %v1010, %v1010
      %v1075 = vpack.c.b16 %v1011, %v1011
      %v1076 = vpack.c.b16 %v1012, %v1012
      %v1077 = vpack.c.b16 %v1013, %v1013
      %v1078 = vpack.c.b16 %v1014, %v1014
      %v1079 = vpack.c.b16 %v1015, %v1015
      %v1080 = vpack.c.b16 %v1016, %v1016
      %v1081 = vpack.c.b16 %v1017, %v1017
      %v1082 = vpack.c.b16 %v1018, %v1018
      %v1083 = vpack.c.b16 %v1019, %v1019
      %vm1148 = vcmask 60416
      %1149 = vst.msk [vmem:[%s236] sm:$0xf] %vm1148, %v1020
      %1150 = vst.msk [vmem:[%s236 + $0x4] sm:$0xf] %vm1148, %v1021
      %1151 = vst.msk [vmem:[%s236 + $0x8] sm:$0xf] %vm1148, %v1022
      %1152 = vst.msk [vmem:[%s236 + $0xc] sm:$0xf] %vm1148, %v1023
      %1153 = vst.msk [vmem:[%s236 + $0x10] sm:$0xf] %vm1148, %v1024
      %1154 = vst.msk [vmem:[%s236 + $0x14] sm:$0xf] %vm1148, %v1025
      %1155 = vst.msk [vmem:[%s236 + $0x18] sm:$0xf] %vm1148, %v1026
      %1156 = vst.msk [vmem:[%s236 + $0x1c] sm:$0xf] %vm1148, %v1027
      %1157 = vst.msk [vmem:[%s236 + $0x20] sm:$0xf] %vm1148, %v1028
      %1158 = vst.msk [vmem:[%s236 + $0x24] sm:$0xf] %vm1148, %v1029
      %1159 = vst.msk [vmem:[%s236 + $0x28] sm:$0xf] %vm1148, %v1030
      %1160 = vst.msk [vmem:[%s236 + $0x2c] sm:$0xf] %vm1148, %v1031
      %1161 = vst.msk [vmem:[%s236 + $0x30] sm:$0xf] %vm1148, %v1032
      %1162 = vst.msk [vmem:[%s236 + $0x34] sm:$0xf] %vm1148, %v1033
      %1163 = vst.msk [vmem:[%s236 + $0x38] sm:$0xf] %vm1148, %v1034
      %1164 = vst.msk [vmem:[%s236 + $0x3c] sm:$0xf] %vm1148, %v1035
      %1165 = vst.msk [vmem:[%s236 + $0x40] sm:$0xf] %vm1148, %v1036
      %1166 = vst.msk [vmem:[%s236 + $0x44] sm:$0xf] %vm1148, %v1037
      %1167 = vst.msk [vmem:[%s236 + $0x48] sm:$0xf] %vm1148, %v1038
      %1168 = vst.msk [vmem:[%s236 + $0x4c] sm:$0xf] %vm1148, %v1039
      %1169 = vst.msk [vmem:[%s236 + $0x50] sm:$0xf] %vm1148, %v1040
      %1170 = vst.msk [vmem:[%s236 + $0x54] sm:$0xf] %vm1148, %v1041
      %1171 = vst.msk [vmem:[%s236 + $0x58] sm:$0xf] %vm1148, %v1042
      %1172 = vst.msk [vmem:[%s236 + $0x5c] sm:$0xf] %vm1148, %v1043
      %1173 = vst.msk [vmem:[%s236 + $0x60] sm:$0xf] %vm1148, %v1044
      %1174 = vst.msk [vmem:[%s236 + $0x64] sm:$0xf] %vm1148, %v1045
      %1175 = vst.msk [vmem:[%s236 + $0x68] sm:$0xf] %vm1148, %v1046
      %1176 = vst.msk [vmem:[%s236 + $0x6c] sm:$0xf] %vm1148, %v1047
      %1177 = vst.msk [vmem:[%s236 + $0x70] sm:$0xf] %vm1148, %v1048
      %1178 = vst.msk [vmem:[%s236 + $0x74] sm:$0xf] %vm1148, %v1049
      %1179 = vst.msk [vmem:[%s236 + $0x78] sm:$0xf] %vm1148, %v1050
      %1180 = vst.msk [vmem:[%s236 + $0x7c] sm:$0xf] %vm1148, %v1051
      %1181 = vst.msk [vmem:[%s236 + $0x80] sm:$0xf] %vm1148, %v1052
      %1182 = vst.msk [vmem:[%s236 + $0x84] sm:$0xf] %vm1148, %v1053
      %1183 = vst.msk [vmem:[%s236 + $0x88] sm:$0xf] %vm1148, %v1054
      %1184 = vst.msk [vmem:[%s236 + $0x8c] sm:$0xf] %vm1148, %v1055
      %1185 = vst.msk [vmem:[%s236 + $0x90] sm:$0xf] %vm1148, %v1056
      %1186 = vst.msk [vmem:[%s236 + $0x94] sm:$0xf] %vm1148, %v1057
      %1187 = vst.msk [vmem:[%s236 + $0x98] sm:$0xf] %vm1148, %v1058
      %1188 = vst.msk [vmem:[%s236 + $0x9c] sm:$0xf] %vm1148, %v1059
      %1189 = vst.msk [vmem:[%s236 + $0xa0] sm:$0xf] %vm1148, %v1060
      %1190 = vst.msk [vmem:[%s236 + $0xa4] sm:$0xf] %vm1148, %v1061
      %1191 = vst.msk [vmem:[%s236 + $0xa8] sm:$0xf] %vm1148, %v1062
      %1192 = vst.msk [vmem:[%s236 + $0xac] sm:$0xf] %vm1148, %v1063
      %1193 = vst.msk [vmem:[%s236 + $0xb0] sm:$0xf] %vm1148, %v1064
      %1194 = vst.msk [vmem:[%s236 + $0xb4] sm:$0xf] %vm1148, %v1065
      %1195 = vst.msk [vmem:[%s236 + $0xb8] sm:$0xf] %vm1148, %v1066
      %1196 = vst.msk [vmem:[%s236 + $0xbc] sm:$0xf] %vm1148, %v1067
      %1197 = vst.msk [vmem:[%s236 + $0xc0] sm:$0xf] %vm1148, %v1068
      %1198 = vst.msk [vmem:[%s236 + $0xc4] sm:$0xf] %vm1148, %v1069
      %1199 = vst.msk [vmem:[%s236 + $0xc8] sm:$0xf] %vm1148, %v1070
      %1200 = vst.msk [vmem:[%s236 + $0xcc] sm:$0xf] %vm1148, %v1071
      %1201 = vst.msk [vmem:[%s236 + $0xd0] sm:$0xf] %vm1148, %v1072
      %1202 = vst.msk [vmem:[%s236 + $0xd4] sm:$0xf] %vm1148, %v1073
      %1203 = vst.msk [vmem:[%s236 + $0xd8] sm:$0xf] %vm1148, %v1074
      %1204 = vst.msk [vmem:[%s236 + $0xdc] sm:$0xf] %vm1148, %v1075
      %1205 = vst.msk [vmem:[%s236 + $0xe0] sm:$0xf] %vm1148, %v1076
      %1206 = vst.msk [vmem:[%s236 + $0xe4] sm:$0xf] %vm1148, %v1077
      %1207 = vst.msk [vmem:[%s236 + $0xe8] sm:$0xf] %vm1148, %v1078
      %1208 = vst.msk [vmem:[%s236 + $0xec] sm:$0xf] %vm1148, %v1079
      %1209 = vst.msk [vmem:[%s236 + $0xf0] sm:$0xf] %vm1148, %v1080
      %1210 = vst.msk [vmem:[%s236 + $0xf4] sm:$0xf] %vm1148, %v1081
      %1211 = vst.msk [vmem:[%s236 + $0xf8] sm:$0xf] %vm1148, %v1082
      %1212 = vst.msk [vmem:[%s236 + $0xfc] sm:$0xf] %vm1148, %v1083
      %s1213 = smul.u32 64, %s19
      %p1214 = scmp.lt.s32.totalorder %s18, 1
      %s1215 = scalar_select %p1214, %s18, 1
      %p1216 = scmp.lt.s32.totalorder %s1213, 63
      %s1217 = scalar_select %p1216, %s1213, 63
      %s1218 = smul.addr %s1215, 64
      %s1219 = sadd.s32 %s1217, %s1218
      %s1220 = smul.addr %s1219, 4
      %s1221 = scalar_lea.vmem %s3, %s1220
      // Predicated region
      $region33: #{resnet_block_forward.10} parent=31 // pred_check
        %p1222 = pneg %p126
      $region34: #{resnet_block_forward.10} parent=31 // pred_check_branch
        %1224 = sbr.rel (%p1222) target = $region36
      $region35: #{resnet_block_forward.10} parent=31 // pred_region
        %s1225 = smul.u32 64, %s19
      $region36: #{resnet_block_forward.10} parent=31 // pred_fallthru
        _
    $region32: #{resnet_block_forward.10} parent=5 // pred_fallthru
      _
    %p1226 = scmp.le.s32.totalorder 2, %s9
    // Predicated region
    $region37: #{resnet_block_forward.10} parent=5 // pred_check
      %p1227 = pneg %p1226
    $region38: #{resnet_block_forward.10} parent=5 // pred_check_branch
      %1229 = sbr.rel (%p1227) target = $region40
    $region39: #{resnet_block_forward.10} parent=5 // pred_region
      %s1230 = ssub.s32 %s9, 2
      // Predicated region
      $region41: #{resnet_block_forward.10} parent=39 // pred_check
        %p1231 = pneg %p132
      $region42: #{resnet_block_forward.10} parent=39 // pred_check_branch
        %1233 = sbr.rel (%p1231) target = $region44
      $region43: #{resnet_block_forward.10} parent=39 // pred_region
        %s1234 = smul.u32 64, %s21
        %p1235 = scmp.lt.s32.totalorder %s20, 1
        %s1236 = scalar_select %p1235, %s20, 1
        %p1237 = scmp.lt.s32.totalorder %s1234, 63
        %s1238 = scalar_select %p1237, %s1234, 63
        %s1239 = smul.addr %s1236, 64
        %s1240 = sadd.s32 %s1238, %s1239
        %s1241 = smul.addr %s1240, 4
        %s1242 = scalar_lea.vmem %s3, %s1241
      $region44: #{resnet_block_forward.10} parent=39 // pred_fallthru
        _
    $region40: #{resnet_block_forward.10} parent=5 // pred_fallthru
      _
  $region6: #{resnet_block_forward.10} parent=0 // loop_footer
    %s13 = sadd.s32 1, %s9
  $region7: #{resnet_block_forward.10} parent=0 // loop_footer_branch
    %8 = sbr.rel target = $region3
  $region8: #{resnet_block_forward.10} parent=0 // loop_exit
    _

// kernel: resnet_block_forward.11
$region0: #{resnet_block_forward.11}
  #allocation0 [shape = 'u32[]', space=smem, size = 0x4, offset = 0x4, fixed_abs, tag = 'smem constant byte address 0x4 - core index']
  #allocation1 [shape = 'u32[144,128]{1,0:T(1,128)}', space=vmem, size = 0x12000, scoped, tag = 'internal scratch']
  #allocation2 [shape = 'f32[80,8]{1,0:T(8,128)}', space=vmem, size = 0xa000, scoped, tag = 'scratch operand']
  %s0 = inlined_call_operand.vmem [shape: bf16[2,10,110,8], index: 0, kind: input, shape index: {}]
  %s1 = inlined_call_operand.vmem [shape: bf16[27,8,8], index: 1, kind: input, shape index: {}]
  %s2 = inlined_call_operand.vmem [shape: f32[1,8], index: 2, kind: input, shape index: {}]
  %s3 = inlined_call_operand.vmem [shape: bf16[2,8,80,4], index: 3, kind: input, shape index: {}]
  %s4 = inlined_call_operand.vmem [shape: bf16[4,8], index: 4, kind: input, shape index: {}]
  %s5 = inlined_call_operand.vmem [shape: f32[2,8,80,8], index: 5, kind: output, shape index: {}]
  %s6 = sld [smem:[#allocation0]]
  $region61: #{resnet_block_forward.11} parent=0
    _
  %s8 = ssub.s32 1, %s6
  %s9 = scalar_select 0, %s8, %s6
  loop: start=0, step=1, limit=50
  $region2: #{resnet_block_forward.11} parent=0 // loop_pre_header
    _
  $region3: #{resnet_block_forward.11} parent=0 // loop_header
    %s11 = sphi 0, %s15
    %p12 = scmp.ge.s32.totalorder %s11, 50
    %s18 = sphi 0, %s37
    %s19 = sphi 0, %s33
    %s20 = sphi 0, %s29
    %s21 = sphi 0, %s18
    %s22 = sphi 0, %s19
    %s23 = sphi 0, %s20
    %s24 = sphi 0, %s21
    %s25 = sphi 0, %s22
    %s26 = sphi 0, %s23
    %s44 = sphi 0, %s46
    %s47 = sphi 0, %s44
    %s48 = sphi 0, %s47
    %s64 = sphi 0, %s48
    %s70 = sphi 0, %s72
    %s73 = sphi 0, %s70
    %s74 = sphi 0, %s73
    %s90 = sphi 0, %s74
    %s94 = sphi 0, %s94
    %s96 = sphi 0, %s94
    %s97 = sphi 0, %s96
    %s111 = sphi 0, %s97
    %s119 = sphi 0, %s121
    %s122 = sphi 0, %s119
    %s123 = sphi 0, %s122
    %s139 = sphi 0, %s123
    %s143 = sphi 0, %s143
    %s145 = sphi 0, %s143
    %s146 = sphi 0, %s145
    %s160 = sphi 0, %s146
    %s168 = sphi 0, %s170
    %s171 = sphi 0, %s168
    %s172 = sphi 0, %s171
    %s188 = sphi 0, %s172
  $region4: #{resnet_block_forward.11} parent=0 // loop_header_branch
    %14 = sbr.rel (%p12) target = $region8
  $region5: #{resnet_block_forward.11} parent=0 // loop_body
    %s16 = ssub.s32 %s11, 1
    %s17 = ssub.s32 %s11, 2
    %s27 = sadd.s32 1, %s20
    %p28 = scmp.ge.s32.totalorder %s27, 3
    %s29 = scalar_select %p28, 0, %s27
    %s30 = sadd.s32 1, %s19
    %s31 = scalar_select %p28, %s30, %s19
    %p32 = scmp.ge.s32.totalorder %s31, 8
    %s33 = scalar_select %p32, 0, %s31
    %s34 = sadd.s32 1, %s18
    %s35 = scalar_select %p32, %s34, %s18
    %p36 = scmp.ge.s32.totalorder %s35, 2
    %s37 = scalar_select %p36, 0, %s35
    %s38 = sadd.s32 %s19, %s20
    %s39 = sadd.s32 %s33, %s29
    %s40 = ssub.s32 %s18, %s37
    %s41 = ssub.s32 %s38, %s39
    %s42 = sor.u32 %s40, %s41
    %p43 = scmp.eq.s32.totalorder %s42, 0
    %s45 = sadd.s32 %s44, 1
    %s46 = scalar_select %p43, %s44, %s45
    %p49 = pneg %p43
    %p50 = scmp.eq.s32.totalorder %s11, 47
    %p51 = por %p49, %p50
    %p52 = scmp.ne.s32.totalorder %s44, %s47
    %p53 = scmp.eq.s32.totalorder %s11, 0
    %p54 = por %p52, %p53
    %p55 = scmp.ne.s32.totalorder %s44, %s47
    %p56 = scmp.eq.s32.totalorder %s16, 47
    %p57 = por %p55, %p56
    %p58 = scmp.ne.s32.totalorder %s47, %s48
    %p59 = scmp.eq.s32.totalorder %s16, 0
    %p60 = por %p58, %p59
    %p61 = scmp.ne.s32.totalorder %s47, %s48
    %p62 = scmp.eq.s32.totalorder %s17, 47
    %p63 = por %p61, %p62
    %p65 = scmp.ne.s32.totalorder %s48, %s64
    %p66 = scmp.eq.s32.totalorder %s17, 0
    %p67 = por %p65, %p66
    %s68 = ssub.s32 %s20, %s29
    %p69 = scmp.eq.s32.totalorder %s68, 0
    %s71 = sadd.s32 %s70, 1
    %s72 = scalar_select %p69, %s70, %s71
    %p75 = pneg %p69
    %p76 = scmp.eq.s32.totalorder %s11, 47
    %p77 = por %p75, %p76
    %p78 = scmp.ne.s32.totalorder %s70, %s73
    %p79 = scmp.eq.s32.totalorder %s11, 0
    %p80 = por %p78, %p79
    %p81 = scmp.ne.s32.totalorder %s70, %s73
    %p82 = scmp.eq.s32.totalorder %s16, 47
    %p83 = por %p81, %p82
    %p84 = scmp.ne.s32.totalorder %s73, %s74
    %p85 = scmp.eq.s32.totalorder %s16, 0
    %p86 = por %p84, %p85
    %p87 = scmp.ne.s32.totalorder %s73, %s74
    %p88 = scmp.eq.s32.totalorder %s17, 47
    %p89 = por %p87, %p88
    %p91 = scmp.ne.s32.totalorder %s74, %s90
    %p92 = scmp.eq.s32.totalorder %s17, 0
    %p93 = por %p91, %p92
    %s95 = sadd.s32 %s94, 1
    %p98 = scmp.eq.s32.totalorder %s11, 47
    %p99 = scmp.ne.s32.totalorder %s94, %s96
    %p100 = scmp.eq.s32.totalorder %s11, 0
    %p101 = por %p99, %p100
    %p102 = scmp.ne.s32.totalorder %s94, %s96
    %p103 = scmp.eq.s32.totalorder %s16, 47
    %p104 = por %p102, %p103
    %p105 = scmp.ne.s32.totalorder %s96, %s97
    %p106 = scmp.eq.s32.totalorder %s16, 0
    %p107 = por %p105, %p106
    %p108 = scmp.ne.s32.totalorder %s96, %s97
    %p109 = scmp.eq.s32.totalorder %s17, 47
    %p110 = por %p108, %p109
    %p112 = scmp.ne.s32.totalorder %s97, %s111
    %p113 = scmp.eq.s32.totalorder %s17, 0
    %p114 = por %p112, %p113
    %s115 = ssub.s32 %s18, %s37
    %s116 = ssub.s32 %s19, %s33
    %s117 = sor.u32 %s115, %s116
    %p118 = scmp.eq.s32.totalorder %s117, 0
    %s120 = sadd.s32 %s119, 1
    %s121 = scalar_select %p118, %s119, %s120
    %p124 = pneg %p118
    %p125 = scmp.eq.s32.totalorder %s11, 47
    %p126 = por %p124, %p125
    %p127 = scmp.ne.s32.totalorder %s119, %s122
    %p128 = scmp.eq.s32.totalorder %s11, 0
    %p129 = por %p127, %p128
    %p130 = scmp.ne.s32.totalorder %s119, %s122
    %p131 = scmp.eq.s32.totalorder %s16, 47
    %p132 = por %p130, %p131
    %p133 = scmp.ne.s32.totalorder %s122, %s123
    %p134 = scmp.eq.s32.totalorder %s16, 0
    %p135 = por %p133, %p134
    %p136 = scmp.ne.s32.totalorder %s122, %s123
    %p137 = scmp.eq.s32.totalorder %s17, 47
    %p138 = por %p136, %p137
    %p140 = scmp.ne.s32.totalorder %s123, %s139
    %p141 = scmp.eq.s32.totalorder %s17, 0
    %p142 = por %p140, %p141
    %s144 = sadd.s32 %s143, 1
    %p147 = scmp.eq.s32.totalorder %s11, 47
    %p148 = scmp.ne.s32.totalorder %s143, %s145
    %p149 = scmp.eq.s32.totalorder %s11, 0
    %p150 = por %p148, %p149
    %p151 = scmp.ne.s32.totalorder %s143, %s145
    %p152 = scmp.eq.s32.totalorder %s16, 47
    %p153 = por %p151, %p152
    %p154 = scmp.ne.s32.totalorder %s145, %s146
    %p155 = scmp.eq.s32.totalorder %s16, 0
    %p156 = por %p154, %p155
    %p157 = scmp.ne.s32.totalorder %s145, %s146
    %p158 = scmp.eq.s32.totalorder %s17, 47
    %p159 = por %p157, %p158
    %p161 = scmp.ne.s32.totalorder %s146, %s160
    %p162 = scmp.eq.s32.totalorder %s17, 0
    %p163 = por %p161, %p162
    %s164 = ssub.s32 %s18, %s37
    %s165 = ssub.s32 %s19, %s33
    %s166 = sor.u32 %s164, %s165
    %p167 = scmp.eq.s32.totalorder %s166, 0
    %s169 = sadd.s32 %s168, 1
    %s170 = scalar_select %p167, %s168, %s169
    %p173 = pneg %p167
    %p174 = scmp.eq.s32.totalorder %s11, 47
    %p175 = por %p173, %p174
    %p176 = scmp.ne.s32.totalorder %s168, %s171
    %p177 = scmp.eq.s32.totalorder %s11, 0
    %p178 = por %p176, %p177
    %p179 = scmp.ne.s32.totalorder %s168, %s171
    %p180 = scmp.eq.s32.totalorder %s16, 47
    %p181 = por %p179, %p180
    %p182 = scmp.ne.s32.totalorder %s171, %s172
    %p183 = scmp.eq.s32.totalorder %s16, 0
    %p184 = por %p182, %p183
    %p185 = scmp.ne.s32.totalorder %s171, %s172
    %p186 = scmp.eq.s32.totalorder %s17, 47
    %p187 = por %p185, %p186
    %p189 = scmp.ne.s32.totalorder %s172, %s188
    %p190 = scmp.eq.s32.totalorder %s17, 0
    %p191 = por %p189, %p190
    %p192 = scmp.le.s32.totalorder 1, %s11
    %p193 = scmp.lt.s32.totalorder %s11, 49
    %p194 = pnand %p192, %p193
    %p195 = pneg %p194
    // Predicated region
    $region9: #{resnet_block_forward.11} parent=5 // pred_check
      _
    $region10: #{resnet_block_forward.11} parent=5 // pred_check_branch
      %197 = sbr.rel (%p194) target = $region12
    $region11: #{resnet_block_forward.11} parent=5 // pred_region
      %s198 = ssub.s32 %s11, 1
      // Predicated region
      $region13: #{resnet_block_forward.11} parent=11 // pred_check
        %p199 = pneg %p107
      $region14: #{resnet_block_forward.11} parent=11 // pred_check_branch
        %201 = sbr.rel (%p199) target = $region16
      $region15: #{resnet_block_forward.11} parent=11 // pred_region
        _
      $region16: #{resnet_block_forward.11} parent=11 // pred_fallthru
        _
      // Predicated region
      $region17: #{resnet_block_forward.11} parent=11 // pred_check
        %p202 = pneg %p156
      $region18: #{resnet_block_forward.11} parent=11 // pred_check_branch
        %204 = sbr.rel (%p202) target = $region20
      $region19: #{resnet_block_forward.11} parent=11 // pred_region
        _
      $region20: #{resnet_block_forward.11} parent=11 // pred_fallthru
        _
    $region12: #{resnet_block_forward.11} parent=5 // pred_fallthru
      _
    %p205 = scmp.lt.s32.totalorder %s11, 48
    // Predicated region
    $region21: #{resnet_block_forward.11} parent=5 // pred_check
      %p206 = pneg %p205
    $region22: #{resnet_block_forward.11} parent=5 // pred_check_branch
      %208 = sbr.rel (%p206) target = $region24
    $region23: #{resnet_block_forward.11} parent=5 // pred_region
      // Predicated region
      $region25: #{resnet_block_forward.11} parent=23 // pred_check
        %p209 = pneg %p54
      $region26: #{resnet_block_forward.11} parent=23 // pred_check_branch
        %211 = sbr.rel (%p209) target = $region28
      $region27: #{resnet_block_forward.11} parent=23 // pred_region
        %s212 = sadd.s32 %s19, %s20
        %p213 = scmp.lt.s32.totalorder %s18, 1
        %s214 = scalar_select %p213, %s18, 1
        %p215 = scmp.lt.s32.totalorder %s212, 9
        %s216 = scalar_select %p215, %s212, 9
        %s217 = smul.addr %s216, 14
        %s218 = smul.addr %s214, 140
        %s219 = sadd.s32 %s217, %s218
        %s220 = smul.addr %s219, 4
        %s221 = scalar_lea.vmem %s0, %s220
        %s222 = sadd.s32 %s19, %s20
      $region28: #{resnet_block_forward.11} parent=23 // pred_fallthru
        _
      // Predicated region
      $region29: #{resnet_block_forward.11} parent=23 // pred_check
        %p223 = pneg %p80
      $region30: #{resnet_block_forward.11} parent=23 // pred_check_branch
        %225 = sbr.rel (%p223) target = $region32
      $region31: #{resnet_block_forward.11} parent=23 // pred_region
        %s226 = smul.u32 9, %s20
        %p227 = scmp.lt.s32.totalorder %s226, 26
        %s228 = scalar_select %p227, %s226, 26
        %s229 = smul.addr %s228, 4
        %s230 = scalar_lea.vmem %s1, %s229
        %s231 = smul.u32 9, %s20
      $region32: #{resnet_block_forward.11} parent=23 // pred_fallthru
        _
      // Predicated region
      $region33: #{resnet_block_forward.11} parent=23 // pred_check
        %p232 = pneg %p129
      $region34: #{resnet_block_forward.11} parent=23 // pred_check_branch
        %234 = sbr.rel (%p232) target = $region36
      $region35: #{resnet_block_forward.11} parent=23 // pred_region
        %p235 = scmp.lt.s32.totalorder %s18, 1
        %s236 = scalar_select %p235, %s18, 1
        %p237 = scmp.lt.s32.totalorder %s19, 7
        %s238 = scalar_select %p237, %s19, 7
        %s239 = smul.addr %s238, 10
        %s240 = smul.addr %s236, 80
        %s241 = sadd.s32 %s239, %s240
        %s242 = smul.addr %s241, 4
        %s243 = scalar_lea.vmem %s3, %s242
      $region36: #{resnet_block_forward.11} parent=23 // pred_fallthru
        _
    $region24: #{resnet_block_forward.11} parent=5 // pred_fallthru
      _
    %p244 = scmp.le.s32.totalorder 1, %s11
    %p245 = scmp.lt.s32.totalorder %s11, 49
    %p246 = pnand %p244, %p245
    %p247 = pneg %p246
    // Predicated region
    $region37: #{resnet_block_forward.11} parent=5 // pred_check
      _
    $region38: #{resnet_block_forward.11} parent=5 // pred_check_branch
      %249 = sbr.rel (%p246) target = $region40
    $region39: #{resnet_block_forward.11} parent=5 // pred_region
      %s250 = ssub.s32 %s11, 1
      %s251 = sadd.s32 %s22, %s23
      %p252 = scmp.lt.s32.totalorder %s21, 1
      %s253 = scalar_select %p252, %s21, 1
      %p254 = scmp.lt.s32.totalorder %s251, 9
      %s255 = scalar_select %p254, %s251, 9
      %s256 = smul.addr %s255, 14
      %s257 = smul.addr %s253, 140
      %s258 = sadd.s32 %s256, %s257
      %s259 = smul.addr %s258, 4
      %s260 = scalar_lea.vmem %s0, %s259
      %p261 = pneg %p60
      %p262 = pneg %p57
      %s263 = smul.u32 9, %s23
      %p264 = scmp.lt.s32.totalorder %s263, 26
      %s265 = scalar_select %p264, %s263, 26
      %s266 = smul.addr %s265, 4
      %s267 = scalar_lea.vmem %s1, %s266
      %p268 = pneg %p86
      %p269 = pneg %p83
      %p270 = pneg %p107
      %p271 = pneg %p104
      %p272 = scmp.lt.s32.totalorder %s21, 1
      %s273 = scalar_select %p272, %s21, 1
      %p274 = scmp.lt.s32.totalorder %s22, 7
      %s275 = scalar_select %p274, %s22, 7
      %s276 = smul.addr %s275, 10
      %s277 = smul.addr %s273, 80
      %s278 = sadd.s32 %s276, %s277
      %s279 = smul.addr %s278, 4
      %s280 = scalar_lea.vmem %s3, %s279
      %p281 = pneg %p135
      %p282 = pneg %p132
      %p283 = pneg %p156
      %p284 = pneg %p153
      %p285 = pneg %p184
      %p286 = pneg %p181
      %p287 = scmp.lt.s32.totalorder %s21, 1
      %s288 = scalar_select %p287, %s21, 1
      %p289 = scmp.lt.s32.totalorder %s22, 7
      %s290 = scalar_select %p289, %s22, 7
      %s291 = smul.addr %s290, 10
      %s292 = smul.addr %s288, 80
      %s293 = sadd.s32 %s291, %s292
      %s294 = smul.addr %s293, 8
      %s295 = scalar_lea.vmem %s5, %s294
      %s296 = sadd.s32 %s22, %s23
      %p297 = scmp.lt.s32.totalorder %s21, 1
      %s298 = scalar_select %p297, %s21, 1
      %p299 = scmp.lt.s32.totalorder %s296, 9
      %s300 = scalar_select %p299, %s296, 9
      %s301 = smul.addr %s300, 14
      %s302 = smul.addr %s298, 140
      %s303 = sadd.s32 %s301, %s302
      %s304 = smul.addr %s303, 4
      %s305 = scalar_lea.vmem %s0, %s304
      %s306 = sadd.s32 %s22, %s23
      %s307 = smul.u32 9, %s23
      %p308 = scmp.lt.s32.totalorder %s307, 26
      %s309 = scalar_select %p308, %s307, 26
      %s310 = smul.addr %s309, 4
      %s311 = scalar_lea.vmem %s1, %s310
      %s312 = smul.u32 9, %s23
      %p313 = scmp.lt.s32.totalorder %s21, 1
      %s314 = scalar_select %p313, %s21, 1
      %p315 = scmp.lt.s32.totalorder %s22, 7
      %s316 = scalar_select %p315, %s22, 7
      %s317 = smul.addr %s316, 10
      %s318 = smul.addr %s314, 80
      %s319 = sadd.s32 %s317, %s318
      %s320 = smul.addr %s319, 4
      %s321 = scalar_lea.vmem %s3, %s320
      %p322 = scmp.lt.s32.totalorder %s21, 1
      %s323 = scalar_select %p322, %s21, 1
      %p324 = scmp.lt.s32.totalorder %s22, 7
      %s325 = scalar_select %p324, %s22, 7
      %s326 = smul.addr %s325, 10
      %s327 = smul.addr %s323, 80
      %s328 = sadd.s32 %s326, %s327
      %s329 = smul.addr %s328, 8
      %s330 = scalar_lea.vmem %s5, %s329
      %p332 = scmp.eq.s32.totalorder %s23, 0
      // Predicated region
      $region41: #{resnet_block_forward.11} parent=39 // pred_check
        %p333 = pneg %p332
      $region42: #{resnet_block_forward.11} parent=39 // pred_check_branch
        %335 = sbr.rel (%p333) target = $region44
      $region43: #{resnet_block_forward.11} parent=39 // pred_region
        %vm336 = vcmask 64512
        %337 = vst.msk [vmem:[#allocation2] sm:$0xff] %vm336, 0.0
        %338 = vst.msk [vmem:[#allocation2 + $0x8] sm:$0xff] %vm336, 0.0
        %339 = vst.msk [vmem:[#allocation2 + $0x10] sm:$0xff] %vm336, 0.0
        %340 = vst.msk [vmem:[#allocation2 + $0x18] sm:$0xff] %vm336, 0.0
        %341 = vst.msk [vmem:[#allocation2 + $0x20] sm:$0xff] %vm336, 0.0
        %342 = vst.msk [vmem:[#allocation2 + $0x28] sm:$0xff] %vm336, 0.0
        %343 = vst.msk [vmem:[#allocation2 + $0x30] sm:$0xff] %vm336, 0.0
        %344 = vst.msk [vmem:[#allocation2 + $0x38] sm:$0xff] %vm336, 0.0
        %345 = vst.msk [vmem:[#allocation2 + $0x40] sm:$0xff] %vm336, 0.0
        %346 = vst.msk [vmem:[#allocation2 + $0x48] sm:$0xff] %vm336, 0.0
      $region44: #{resnet_block_forward.11} parent=39 // pred_fallthru
        _
      %v347 = vld [vmem:[%s305] sm:$0xf]
      %v348 = vld [vmem:[%s305 + $0x4] sm:$0xf]
      %v349 = vld [vmem:[%s305 + $0x8] sm:$0xf]
      %v350 = vld [vmem:[%s305 + $0xc] sm:$0xf]
      %v351 = vld [vmem:[%s305 + $0x10] sm:$0xf]
      %v352 = vld [vmem:[%s305 + $0x14] sm:$0xf]
      %v353 = vld [vmem:[%s305 + $0x18] sm:$0xf]
      %v354 = vld [vmem:[%s305 + $0x1c] sm:$0xf]
      %v355 = vld [vmem:[%s305 + $0x20] sm:$0xf]
      %v356 = vld [vmem:[%s305 + $0x24] sm:$0xf]
      %v357 = vld [vmem:[%s305 + $0x28] sm:$0xf]
      %v358 = vld [vmem:[%s305 + $0x2c] sm:$0xf]
      %v359 = vld [vmem:[%s305 + $0x30] sm:$0xf]
      %v360 = vld [vmem:[#allocation2] sm:$0xff]
      %v361 = vld [vmem:[#allocation2 + $0x8] sm:$0xff]
      %v362 = vld [vmem:[#allocation2 + $0x10] sm:$0xff]
      %v363 = vld [vmem:[#allocation2 + $0x18] sm:$0xff]
      %v364 = vld [vmem:[#allocation2 + $0x20] sm:$0xff]
      %v365 = vld [vmem:[#allocation2 + $0x28] sm:$0xff]
      %v366 = vld [vmem:[#allocation2 + $0x30] sm:$0xff]
      %v367 = vld [vmem:[#allocation2 + $0x38] sm:$0xff]
      %v368 = vld [vmem:[#allocation2 + $0x40] sm:$0xff]
      %v369 = vld [vmem:[#allocation2 + $0x48] sm:$0xff]
      %v370 = vld [vmem:[%s311] sm:$0xf]
      %v381 = vunpack.c.l.b16 %v347
      %v382 = vunpack.c.l.b16 %v348
      %v383 = vunpack.c.l.b16 %v349
      %v384 = vunpack.c.l.b16 %v350
      %v385 = vunpack.c.l.b16 %v351
      %v386 = vunpack.c.l.b16 %v352
      %v387 = vunpack.c.l.b16 %v353
      %v388 = vunpack.c.l.b16 %v354
      %v389 = vunpack.c.l.b16 %v355
      %v390 = vunpack.c.l.b16 %v356
      %v391 = vpack.c.b16 %v382, %v381
      %v392 = vpack.c.b16 %v384, %v383
      %v393 = vpack.c.b16 %v386, %v385
      %v394 = vpack.c.b16 %v388, %v387
      %v395 = vpack.c.b16 %v390, %v389
      %vm396 = vcmask 64512
      %v398 = vsel %vm396, %v391, 0
      %v401 = vsel %vm396, %v392, 0
      %v404 = vsel %vm396, %v393, 0
      %v407 = vsel %vm396, %v394, 0
      %v410 = vsel %vm396, %v395, 0
      %vm412 = vcmask 1043456
      %v414 = vsel %vm412, %v370, 0
      %416 = vmatprep.subr.bf16.mxu0 0
      %417 = vmatpush1.bf16.msra.mxu0 %v414
      %418 = vmatprep.subr.bf16.mxu0 0
      %419 = vmatpush1.bf16.msra.mxu0 0
      %420 = vmatprep.subr.bf16.mxu0 0
      %421 = vmatpush1.bf16.msra.mxu0 0
      %422 = vmatprep.subr.bf16.mxu0 0
      %423 = vmatpush1.bf16.msra.mxu0 0
      %424 = vmatprep.subr.bf16.mxu0 0
      %425 = vmatpush1.bf16.msra.mxu0 0
      %426 = vmatprep.subr.bf16.mxu0 0
      %427 = vmatpush1.bf16.msra.mxu0 0
      %428 = vmatprep.subr.bf16.mxu0 0
      %429 = vmatpush1.bf16.msra.mxu0 0
      %430 = vmatprep.subr.bf16.mxu0 0
      %431 = vmatpush1.bf16.msra.mxu0 0
      %432 = vmatprep.subr.bf16.mxu0 0
      %433 = vmatpush1.bf16.msra.mxu0 0
      %434 = vmatprep.subr.bf16.mxu0 0
      %435 = vmatpush1.bf16.msra.mxu0 0
      %436 = vmatprep.subr.bf16.mxu0 0
      %437 = vmatpush1.bf16.msra.mxu0 0
      %438 = vmatprep.subr.bf16.mxu0 0
      %439 = vmatpush1.bf16.msra.mxu0 0
      %440 = vmatprep.subr.bf16.mxu0 0
      %441 = vmatpush1.bf16.msra.mxu0 0
      %442 = vmatprep.subr.bf16.mxu0 0
      %443 = vmatpush1.bf16.msra.mxu0 0
      %444 = vmatprep.subr.bf16.mxu0 0
      %445 = vmatpush1.bf16.msra.mxu0 0
      %446 = vmatprep.subr.bf16.mxu0 0
      %447 = vmatpush1.bf16.msra.mxu0 0
      %448 = vmatprep.mubr.bf16.mxu0 0
      %449 = vmatmul.mubr.bf16.gmra.mrb[0].mxu0 %v398
      %v450 = vpop.f32.mrb[0].mxu0
      %v451 = vadd.f32 0.0, %v450
      %v452 = vpop.f32.mrb[0].mxu0
      %v453 = vpop.f32.mrb[0].mxu0
      %v454 = vadd.f32 0.0, %v453
      %v455 = vpop.f32.mrb[0].mxu0
      %456 = vmatprep.mubr.bf16.mxu0 0
      %457 = vmatmul.mubr.bf16.gmra.mrb[0].mxu0 %v401
      %v458 = vpop.f32.mrb[0].mxu0
      %v459 = vadd.f32 0.0, %v458
      %v460 = vpop.f32.mrb[0].mxu0
      %v461 = vpop.f32.mrb[0].mxu0
      %v462 = vadd.f32 0.0, %v461
      %v463 = vpop.f32.mrb[0].mxu0
      %464 = vmatprep.mubr.bf16.mxu0 0
      %465 = vmatmul.mubr.bf16.gmra.mrb[0].mxu0 %v404
      %v466 = vpop.f32.mrb[0].mxu0
      %v467 = vadd.f32 0.0, %v466
      %v468 = vpop.f32.mrb[0].mxu0
      %v469 = vpop.f32.mrb[0].mxu0
      %v470 = vadd.f32 0.0, %v469
      %v471 = vpop.f32.mrb[0].mxu0
      %472 = vmatprep.mubr.bf16.mxu0 0
      %473 = vmatmul.mubr.bf16.gmra.mrb[0].mxu0 %v407
      %v474 = vpop.f32.mrb[0].mxu0
      %v475 = vadd.f32 0.0, %v474
      %v476 = vpop.f32.mrb[0].mxu0
      %v477 = vpop.f32.mrb[0].mxu0
      %v478 = vadd.f32 0.0, %v477
      %v479 = vpop.f32.mrb[0].mxu0
      %480 = vmatprep.mubr.bf16.mxu0 0
      %481 = vmatmul.mubr.bf16.gmra.mrb[0].mxu0 %v410
      %v482 = vpop.f32.mrb[0].mxu0
      %v483 = vadd.f32 0.0, %v482
      %v484 = vpop.f32.mrb[0].mxu0
      %v485 = vpop.f32.mrb[0].mxu0
      %v486 = vadd.f32 0.0, %v485
      %v487 = vpop.f32.mrb[0].mxu0
      %488 = vdwg.mxu0
      %v489 = vadd.f32 %v360, %v451
      %v490 = vadd.f32 %v361, %v454
      %v491 = vadd.f32 %v362, %v459
      %v492 = vadd.f32 %v363, %v462
      %v493 = vadd.f32 %v364, %v467
      %v494 = vadd.f32 %v365, %v470
      %v495 = vadd.f32 %v366, %v475
      %v496 = vadd.f32 %v367, %v478
      %v497 = vadd.f32 %v368, %v483
      %v498 = vadd.f32 %v369, %v486
      %499 = vst.msk [vmem:[#allocation2] sm:$0xff] %vm396, %v489
      %500 = vst.msk [vmem:[#allocation2 + $0x8] sm:$0xff] %vm396, %v490
      %501 = vst.msk [vmem:[#allocation2 + $0x10] sm:$0xff] %vm396, %v491
      %502 = vst.msk [vmem:[#allocation2 + $0x18] sm:$0xff] %vm396, %v492
      %503 = vst.msk [vmem:[#allocation2 + $0x20] sm:$0xff] %vm396, %v493
      %504 = vst.msk [vmem:[#allocation2 + $0x28] sm:$0xff] %vm396, %v494
      %505 = vst.msk [vmem:[#allocation2 + $0x30] sm:$0xff] %vm396, %v495
      %506 = vst.msk [vmem:[#allocation2 + $0x38] sm:$0xff] %vm396, %v496
      %507 = vst.msk [vmem:[#allocation2 + $0x40] sm:$0xff] %vm396, %v497
      %508 = vst.msk [vmem:[#allocation2 + $0x48] sm:$0xff] %vm396, %v498
      %v509 = vld [vmem:[#allocation2] sm:$0xff]
      %v510 = vld [vmem:[#allocation2 + $0x8] sm:$0xff]
      %v511 = vld [vmem:[#allocation2 + $0x10] sm:$0xff]
      %v512 = vld [vmem:[#allocation2 + $0x18] sm:$0xff]
      %v513 = vld [vmem:[#allocation2 + $0x20] sm:$0xff]
      %v514 = vld [vmem:[#allocation2 + $0x28] sm:$0xff]
      %v515 = vld [vmem:[#allocation2 + $0x30] sm:$0xff]
      %v516 = vld [vmem:[#allocation2 + $0x38] sm:$0xff]
      %v517 = vld [vmem:[#allocation2 + $0x40] sm:$0xff]
      %v518 = vld [vmem:[#allocation2 + $0x48] sm:$0xff]
      %s519 = scalar_lea.vmem %s311, 4
      %v520 = vld [vmem:[%s519] sm:$0xf]
      %v522 = vunpack.c.l.b16 %v357
      %v523 = vpack.c.b16 %v522, %v522
      %vm524 = vsmask.f32 7424
      %v525 = vshrl.u32 %v391, 16
      %v527 = vshll.u32 %v391, 16
      %v529 = vrot.slane %v527, 1
      %v530 = vor.u32 %v525, %v529
      %v531 = vshll.u32 %v392, 16
      %v533 = vrot.slane %v531, 1
      %v534 = vsel %vm524, %v530, %v533
      %v535 = vshrl.u32 %v392, 16
      %v537 = vor.u32 %v535, %v533
      %v538 = vshll.u32 %v393, 16
      %v540 = vrot.slane %v538, 1
      %v541 = vsel %vm524, %v537, %v540
      %v542 = vshrl.u32 %v393, 16
      %v544 = vor.u32 %v542, %v540
      %v545 = vshll.u32 %v394, 16
      %v547 = vrot.slane %v545, 1
      %v548 = vsel %vm524, %v544, %v547
      %v549 = vshrl.u32 %v394, 16
      %v551 = vor.u32 %v549, %v547
      %v552 = vshll.u32 %v395, 16
      %v554 = vrot.slane %v552, 1
      %v555 = vsel %vm524, %v551, %v554
      %v556 = vshrl.u32 %v395, 16
      %v558 = vor.u32 %v556, %v554
      %v560 = vshll.u32 %v523, 16
      %v562 = vrot.slane %v560, 1
      %v563 = vsel %vm524, %v558, %v562
      %v565 = vsel %vm396, %v534, 0
      %v568 = vsel %vm396, %v541, 0
      %v571 = vsel %vm396, %v548, 0
      %v574 = vsel %vm396, %v555, 0
      %v577 = vsel %vm396, %v563, 0
      %v580 = vsel %vm412, %v520, 0
      %582 = vmatprep.subr.bf16.mxu0 0
      %583 = vmatpush1.bf16.msra.mxu0 %v580
      %584 = vmatprep.subr.bf16.mxu0 0
      %585 = vmatpush1.bf16.msra.mxu0 0
      %586 = vmatprep.subr.bf16.mxu0 0
      %587 = vmatpush1.bf16.msra.mxu0 0
      %588 = vmatprep.subr.bf16.mxu0 0
      %589 = vmatpush1.bf16.msra.mxu0 0
      %590 = vmatprep.subr.bf16.mxu0 0
      %591 = vmatpush1.bf16.msra.mxu0 0
      %592 = vmatprep.subr.bf16.mxu0 0
      %593 = vmatpush1.bf16.msra.mxu0 0
      %594 = vmatprep.subr.bf16.mxu0 0
      %595 = vmatpush1.bf16.msra.mxu0 0
      %596 = vmatprep.subr.bf16.mxu0 0
      %597 = vmatpush1.bf16.msra.mxu0 0
      %598 = vmatprep.subr.bf16.mxu0 0
      %599 = vmatpush1.bf16.msra.mxu0 0
      %600 = vmatprep.subr.bf16.mxu0 0
      %601 = vmatpush1.bf16.msra.mxu0 0
      %602 = vmatprep.subr.bf16.mxu0 0
      %603 = vmatpush1.bf16.msra.mxu0 0
      %604 = vmatprep.subr.bf16.mxu0 0
      %605 = vmatpush1.bf16.msra.mxu0 0
      %606 = vmatprep.subr.bf16.mxu0 0
      %607 = vmatpush1.bf16.msra.mxu0 0
      %608 = vmatprep.subr.bf16.mxu0 0
      %609 = vmatpush1.bf16.msra.mxu0 0
      %610 = vmatprep.subr.bf16.mxu0 0
      %611 = vmatpush1.bf16.msra.mxu0 0
      %612 = vmatprep.subr.bf16.mxu0 0
      %613 = vmatpush1.bf16.msra.mxu0 0
      %614 = vmatprep.mubr.bf16.mxu0 0
      %615 = vmatmul.mubr.bf16.gmra.mrb[0].mxu0 %v565
      %v616 = vpop.f32.mrb[0].mxu0
      %v617 = vadd.f32 0.0, %v616
      %v618 = vpop.f32.mrb[0].mxu0
      %v619 = vpop.f32.mrb[0].mxu0
      %v620 = vadd.f32 0.0, %v619
      %v621 = vpop.f32.mrb[0].mxu0
      %622 = vmatprep.mubr.bf16.mxu0 0
      %623 = vmatmul.mubr.bf16.gmra.mrb[0].mxu0 %v568
      %v624 = vpop.f32.mrb[0].mxu0
      %v625 = vadd.f32 0.0, %v624
      %v626 = vpop.f32.mrb[0].mxu0
      %v627 = vpop.f32.mrb[0].mxu0
      %v628 = vadd.f32 0.0, %v627
      %v629 = vpop.f32.mrb[0].mxu0
      %630 = vmatprep.mubr.bf16.mxu0 0
      %631 = vmatmul.mubr.bf16.gmra.mrb[0].mxu0 %v571
      %v632 = vpop.f32.mrb[0].mxu0
      %v633 = vadd.f32 0.0, %v632
      %v634 = vpop.f32.mrb[0].mxu0
      %v635 = vpop.f32.mrb[0].mxu0
      %v636 = vadd.f32 0.0, %v635
      %v637 = vpop.f32.mrb[0].mxu0
      %638 = vmatprep.mubr.bf16.mxu0 0
      %639 = vmatmul.mubr.bf16.gmra.mrb[0].mxu0 %v574
      %v640 = vpop.f32.mrb[0].mxu0
      %v641 = vadd.f32 0.0, %v640
      %v642 = vpop.f32.mrb[0].mxu0
      %v643 = vpop.f32.mrb[0].mxu0
      %v644 = vadd.f32 0.0, %v643
      %v645 = vpop.f32.mrb[0].mxu0
      %646 = vmatprep.mubr.bf16.mxu0 0
      %647 = vmatmul.mubr.bf16.gmra.mrb[0].mxu0 %v577
      %v648 = vpop.f32.mrb[0].mxu0
      %v649 = vadd.f32 0.0, %v648
      %v650 = vpop.f32.mrb[0].mxu0
      %v651 = vpop.f32.mrb[0].mxu0
      %v652 = vadd.f32 0.0, %v651
      %v653 = vpop.f32.mrb[0].mxu0
      %654 = vdwg.mxu0
      %v655 = vadd.f32 %v509, %v617
      %v656 = vadd.f32 %v510, %v620
      %v657 = vadd.f32 %v511, %v625
      %v658 = vadd.f32 %v512, %v628
      %v659 = vadd.f32 %v513, %v633
      %v660 = vadd.f32 %v514, %v636
      %v661 = vadd.f32 %v515, %v641
      %v662 = vadd.f32 %v516, %v644
      %v663 = vadd.f32 %v517, %v649
      %v664 = vadd.f32 %v518, %v652
      %665 = vst.msk [vmem:[#allocation2] sm:$0xff] %vm396, %v655
      %666 = vst.msk [vmem:[#allocation2 + $0x8] sm:$0xff] %vm396, %v656
      %667 = vst.msk [vmem:[#allocation2 + $0x10] sm:$0xff] %vm396, %v657
      %668 = vst.msk [vmem:[#allocation2 + $0x18] sm:$0xff] %vm396, %v658
      %669 = vst.msk [vmem:[#allocation2 + $0x20] sm:$0xff] %vm396, %v659
      %670 = vst.msk [vmem:[#allocation2 + $0x28] sm:$0xff] %vm396, %v660
      %671 = vst.msk [vmem:[#allocation2 + $0x30] sm:$0xff] %vm396, %v661
      %672 = vst.msk [vmem:[#allocation2 + $0x38] sm:$0xff] %vm396, %v662
      %673 = vst.msk [vmem:[#allocation2 + $0x40] sm:$0xff] %vm396, %v663
      %674 = vst.msk [vmem:[#allocation2 + $0x48] sm:$0xff] %vm396, %v664
      %v675 = vld [vmem:[#allocation2] sm:$0xff]
      %v676 = vld [vmem:[#allocation2 + $0x8] sm:$0xff]
      %v677 = vld [vmem:[#allocation2 + $0x10] sm:$0xff]
      %v678 = vld [vmem:[#allocation2 + $0x18] sm:$0xff]
      %v679 = vld [vmem:[#allocation2 + $0x20] sm:$0xff]
      %v680 = vld [vmem:[#allocation2 + $0x28] sm:$0xff]
      %v681 = vld [vmem:[#allocation2 + $0x30] sm:$0xff]
      %v682 = vld [vmem:[#allocation2 + $0x38] sm:$0xff]
      %v683 = vld [vmem:[#allocation2 + $0x40] sm:$0xff]
      %v684 = vld [vmem:[#allocation2 + $0x48] sm:$0xff]
      %s685 = scalar_lea.vmem %s311, 8
      %v686 = vld [vmem:[%s685] sm:$0xf]
      %vm687 = vcmask 1046528
      %v688 = vrot.slane %v391, 1
      %v689 = vrot.slane %v392, 1
      %v690 = vsel %vm687, %v688, %v689
      %v691 = vrot.slane %v393, 1
      %v692 = vsel %vm687, %v689, %v691
      %v693 = vrot.slane %v394, 1
      %v694 = vsel %vm687, %v691, %v693
      %v695 = vrot.slane %v395, 1
      %v696 = vsel %vm687, %v693, %v695
      %v697 = vrot.slane %v523, 1
      %v698 = vsel %vm687, %v695, %v697
      %v700 = vsel %vm396, %v690, 0
      %v703 = vsel %vm396, %v692, 0
      %v706 = vsel %vm396, %v694, 0
      %v709 = vsel %vm396, %v696, 0
      %v712 = vsel %vm396, %v698, 0
      %v715 = vsel %vm412, %v686, 0
      %717 = vmatprep.subr.bf16.mxu0 0
      %718 = vmatpush1.bf16.msra.mxu0 %v715
      %719 = vmatprep.subr.bf16.mxu0 0
      %720 = vmatpush1.bf16.msra.mxu0 0
      %721 = vmatprep.subr.bf16.mxu0 0
      %722 = vmatpush1.bf16.msra.mxu0 0
      %723 = vmatprep.subr.bf16.mxu0 0
      %724 = vmatpush1.bf16.msra.mxu0 0
      %725 = vmatprep.subr.bf16.mxu0 0
      %726 = vmatpush1.bf16.msra.mxu0 0
      %727 = vmatprep.subr.bf16.mxu0 0
      %728 = vmatpush1.bf16.msra.mxu0 0
      %729 = vmatprep.subr.bf16.mxu0 0
      %730 = vmatpush1.bf16.msra.mxu0 0
      %731 = vmatprep.subr.bf16.mxu0 0
      %732 = vmatpush1.bf16.msra.mxu0 0
      %733 = vmatprep.subr.bf16.mxu0 0
      %734 = vmatpush1.bf16.msra.mxu0 0
      %735 = vmatprep.subr.bf16.mxu0 0
      %736 = vmatpush1.bf16.msra.mxu0 0
      %737 = vmatprep.subr.bf16.mxu0 0
      %738 = vmatpush1.bf16.msra.mxu0 0
      %739 = vmatprep.subr.bf16.mxu0 0
      %740 = vmatpush1.bf16.msra.mxu0 0
      %741 = vmatprep.subr.bf16.mxu0 0
      %742 = vmatpush1.bf16.msra.mxu0 0
      %743 = vmatprep.subr.bf16.mxu0 0
      %744 = vmatpush1.bf16.msra.mxu0 0
      %745 = vmatprep.subr.bf16.mxu0 0
      %746 = vmatpush1.bf16.msra.mxu0 0
      %747 = vmatprep.subr.bf16.mxu0 0
      %748 = vmatpush1.bf16.msra.mxu0 0
      %749 = vmatprep.mubr.bf16.mxu0 0
      %750 = vmatmul.mubr.bf16.gmra.mrb[0].mxu0 %v700
      %v751 = vpop.f32.mrb[0].mxu0
      %v752 = vadd.f32 0.0, %v751
      %v753 = vpop.f32.mrb[0].mxu0
      %v754 = vpop.f32.mrb[0].mxu0
      %v755 = vadd.f32 0.0, %v754
      %v756 = vpop.f32.mrb[0].mxu0
      %757 = vmatprep.mubr.bf16.mxu0 0
      %758 = vmatmul.mubr.bf16.gmra.mrb[0].mxu0 %v703
      %v759 = vpop.f32.mrb[0].mxu0
      %v760 = vadd.f32 0.0, %v759
      %v761 = vpop.f32.mrb[0].mxu0
      %v762 = vpop.f32.mrb[0].mxu0
      %v763 = vadd.f32 0.0, %v762
      %v764 = vpop.f32.mrb[0].mxu0
      %765 = vmatprep.mubr.bf16.mxu0 0
      %766 = vmatmul.mubr.bf16.gmra.mrb[0].mxu0 %v706
      %v767 = vpop.f32.mrb[0].mxu0
      %v768 = vadd.f32 0.0, %v767
      %v769 = vpop.f32.mrb[0].mxu0
      %v770 = vpop.f32.mrb[0].mxu0
      %v771 = vadd.f32 0.0, %v770
      %v772 = vpop.f32.mrb[0].mxu0
      %773 = vmatprep.mubr.bf16.mxu0 0
      %774 = vmatmul.mubr.bf16.gmra.mrb[0].mxu0 %v709
      %v775 = vpop.f32.mrb[0].mxu0
      %v776 = vadd.f32 0.0, %v775
      %v777 = vpop.f32.mrb[0].mxu0
      %v778 = vpop.f32.mrb[0].mxu0
      %v779 = vadd.f32 0.0, %v778
      %v780 = vpop.f32.mrb[0].mxu0
      %781 = vmatprep.mubr.bf16.mxu0 0
      %782 = vmatmul.mubr.bf16.gmra.mrb[0].mxu0 %v712
      %v783 = vpop.f32.mrb[0].mxu0
      %v784 = vadd.f32 0.0, %v783
      %v785 = vpop.f32.mrb[0].mxu0
      %v786 = vpop.f32.mrb[0].mxu0
      %v787 = vadd.f32 0.0, %v786
      %v788 = vpop.f32.mrb[0].mxu0
      %789 = vdwg.mxu0
      %v790 = vadd.f32 %v675, %v752
      %v791 = vadd.f32 %v676, %v755
      %v792 = vadd.f32 %v677, %v760
      %v793 = vadd.f32 %v678, %v763
      %v794 = vadd.f32 %v679, %v768
      %v795 = vadd.f32 %v680, %v771
      %v796 = vadd.f32 %v681, %v776
      %v797 = vadd.f32 %v682, %v779
      %v798 = vadd.f32 %v683, %v784
      %v799 = vadd.f32 %v684, %v787
      %800 = vst.msk [vmem:[#allocation2] sm:$0xff] %vm396, %v790
      %801 = vst.msk [vmem:[#allocation2 + $0x8] sm:$0xff] %vm396, %v791
      %802 = vst.msk [vmem:[#allocation2 + $0x10] sm:$0xff] %vm396, %v792
      %803 = vst.msk [vmem:[#allocation2 + $0x18] sm:$0xff] %vm396, %v793
      %804 = vst.msk [vmem:[#allocation2 + $0x20] sm:$0xff] %vm396, %v794
      %805 = vst.msk [vmem:[#allocation2 + $0x28] sm:$0xff] %vm396, %v795
      %806 = vst.msk [vmem:[#allocation2 + $0x30] sm:$0xff] %vm396, %v796
      %807 = vst.msk [vmem:[#allocation2 + $0x38] sm:$0xff] %vm396, %v797
      %808 = vst.msk [vmem:[#allocation2 + $0x40] sm:$0xff] %vm396, %v798
      %809 = vst.msk [vmem:[#allocation2 + $0x48] sm:$0xff] %vm396, %v799
      %v810 = vld [vmem:[#allocation2] sm:$0xff]
      %v811 = vld [vmem:[#allocation2 + $0x8] sm:$0xff]
      %v812 = vld [vmem:[#allocation2 + $0x10] sm:$0xff]
      %v813 = vld [vmem:[#allocation2 + $0x18] sm:$0xff]
      %v814 = vld [vmem:[#allocation2 + $0x20] sm:$0xff]
      %v815 = vld [vmem:[#allocation2 + $0x28] sm:$0xff]
      %v816 = vld [vmem:[#allocation2 + $0x30] sm:$0xff]
      %v817 = vld [vmem:[#allocation2 + $0x38] sm:$0xff]
      %v818 = vld [vmem:[#allocation2 + $0x40] sm:$0xff]
      %v819 = vld [vmem:[#allocation2 + $0x48] sm:$0xff]
      %s820 = scalar_lea.vmem %s311, 12
      %v821 = vld [vmem:[%s820] sm:$0xf]
      %v823 = vunpack.c.l.b16 %v358
      %v824 = vpack.c.b16 %v383, %v382
      %v825 = vpack.c.b16 %v385, %v384
      %v826 = vpack.c.b16 %v387, %v386
      %v827 = vpack.c.b16 %v389, %v388
      %v828 = vpack.c.b16 %v522, %v390
      %v829 = vpack.c.b16 %v823, %v823
      %v830 = vrot.slane %v824, 1
      %v831 = vrot.slane %v825, 1
      %v832 = vsel %vm687, %v830, %v831
      %v833 = vrot.slane %v826, 1
      %v834 = vsel %vm687, %v831, %v833
      %v835 = vrot.slane %v827, 1
      %v836 = vsel %vm687, %v833, %v835
      %v837 = vrot.slane %v828, 1
      %v838 = vsel %vm687, %v835, %v837
      %v839 = vrot.slane %v829, 1
      %v840 = vsel %vm687, %v837, %v839
      %v842 = vsel %vm396, %v832, 0
      %v845 = vsel %vm396, %v834, 0
      %v848 = vsel %vm396, %v836, 0
      %v851 = vsel %vm396, %v838, 0
      %v854 = vsel %vm396, %v840, 0
      %v857 = vsel %vm412, %v821, 0
      %859 = vmatprep.subr.bf16.mxu0 0
      %860 = vmatpush1.bf16.msra.mxu0 %v857
      %861 = vmatprep.subr.bf16.mxu0 0
      %862 = vmatpush1.bf16.msra.mxu0 0
      %863 = vmatprep.subr.bf16.mxu0 0
      %864 = vmatpush1.bf16.msra.mxu0 0
      %865 = vmatprep.subr.bf16.mxu0 0
      %866 = vmatpush1.bf16.msra.mxu0 0
      %867 = vmatprep.subr.bf16.mxu0 0
      %868 = vmatpush1.bf16.msra.mxu0 0
      %869 = vmatprep.subr.bf16.mxu0 0
      %870 = vmatpush1.bf16.msra.mxu0 0
      %871 = vmatprep.subr.bf16.mxu0 0
      %872 = vmatpush1.bf16.msra.mxu0 0
      %873 = vmatprep.subr.bf16.mxu0 0
      %874 = vmatpush1.bf16.msra.mxu0 0
      %875 = vmatprep.subr.bf16.mxu0 0
      %876 = vmatpush1.bf16.msra.mxu0 0
      %877 = vmatprep.subr.bf16.mxu0 0
      %878 = vmatpush1.bf16.msra.mxu0 0
      %879 = vmatprep.subr.bf16.mxu0 0
      %880 = vmatpush1.bf16.msra.mxu0 0
      %881 = vmatprep.subr.bf16.mxu0 0
      %882 = vmatpush1.bf16.msra.mxu0 0
      %883 = vmatprep.subr.bf16.mxu0 0
      %884 = vmatpush1.bf16.msra.mxu0 0
      %885 = vmatprep.subr.bf16.mxu0 0
      %886 = vmatpush1.bf16.msra.mxu0 0
      %887 = vmatprep.subr.bf16.mxu0 0
      %888 = vmatpush1.bf16.msra.mxu0 0
      %889 = vmatprep.subr.bf16.mxu0 0
      %890 = vmatpush1.bf16.msra.mxu0 0
      %891 = vmatprep.mubr.bf16.mxu0 0
      %892 = vmatmul.mubr.bf16.gmra.mrb[0].mxu0 %v842
      %v893 = vpop.f32.mrb[0].mxu0
      %v894 = vadd.f32 0.0, %v893
      %v895 = vpop.f32.mrb[0].mxu0
      %v896 = vpop.f32.mrb[0].mxu0
      %v897 = vadd.f32 0.0, %v896
      %v898 = vpop.f32.mrb[0].mxu0
      %899 = vmatprep.mubr.bf16.mxu0 0
      %900 = vmatmul.mubr.bf16.gmra.mrb[0].mxu0 %v845
      %v901 = vpop.f32.mrb[0].mxu0
      %v902 = vadd.f32 0.0, %v901
      %v903 = vpop.f32.mrb[0].mxu0
      %v904 = vpop.f32.mrb[0].mxu0
      %v905 = vadd.f32 0.0, %v904
      %v906 = vpop.f32.mrb[0].mxu0
      %907 = vmatprep.mubr.bf16.mxu0 0
      %908 = vmatmul.mubr.bf16.gmra.mrb[0].mxu0 %v848
      %v909 = vpop.f32.mrb[0].mxu0
      %v910 = vadd.f32 0.0, %v909
      %v911 = vpop.f32.mrb[0].mxu0
      %v912 = vpop.f32.mrb[0].mxu0
      %v913 = vadd.f32 0.0, %v912
      %v914 = vpop.f32.mrb[0].mxu0
      %915 = vmatprep.mubr.bf16.mxu0 0
      %916 = vmatmul.mubr.bf16.gmra.mrb[0].mxu0 %v851
      %v917 = vpop.f32.mrb[0].mxu0
      %v918 = vadd.f32 0.0, %v917
      %v919 = vpop.f32.mrb[0].mxu0
      %v920 = vpop.f32.mrb[0].mxu0
      %v921 = vadd.f32 0.0, %v920
      %v922 = vpop.f32.mrb[0].mxu0
      %923 = vmatprep.mubr.bf16.mxu0 0
      %924 = vmatmul.mubr.bf16.gmra.mrb[0].mxu0 %v854
      %v925 = vpop.f32.mrb[0].mxu0
      %v926 = vadd.f32 0.0, %v925
      %v927 = vpop.f32.mrb[0].mxu0
      %v928 = vpop.f32.mrb[0].mxu0
      %v929 = vadd.f32 0.0, %v928
      %v930 = vpop.f32.mrb[0].mxu0
      %931 = vdwg.mxu0
      %v932 = vadd.f32 %v810, %v894
      %v933 = vadd.f32 %v811, %v897
      %v934 = vadd.f32 %v812, %v902
      %v935 = vadd.f32 %v813, %v905
      %v936 = vadd.f32 %v814, %v910
      %v937 = vadd.f32 %v815, %v913
      %v938 = vadd.f32 %v816, %v918
      %v939 = vadd.f32 %v817, %v921
      %v940 = vadd.f32 %v818, %v926
      %v941 = vadd.f32 %v819, %v929
      %942 = vst.msk [vmem:[#allocation2] sm:$0xff] %vm396, %v932
      %943 = vst.msk [vmem:[#allocation2 + $0x8] sm:$0xff] %vm396, %v933
      %944 = vst.msk [vmem:[#allocation2 + $0x10] sm:$0xff] %vm396, %v934
      %945 = vst.msk [vmem:[#allocation2 + $0x18] sm:$0xff] %vm396, %v935
      %946 = vst.msk [vmem:[#allocation2 + $0x20] sm:$0xff] %vm396, %v936
      %947 = vst.msk [vmem:[#allocation2 + $0x28] sm:$0xff] %vm396, %v937
      %948 = vst.msk [vmem:[#allocation2 + $0x30] sm:$0xff] %vm396, %v938
      %949 = vst.msk [vmem:[#allocation2 + $0x38] sm:$0xff] %vm396, %v939
      %950 = vst.msk [vmem:[#allocation2 + $0x40] sm:$0xff] %vm396, %v940
      %951 = vst.msk [vmem:[#allocation2 + $0x48] sm:$0xff] %vm396, %v941
      %v952 = vld [vmem:[#allocation2] sm:$0xff]
      %v953 = vld [vmem:[#allocation2 + $0x8] sm:$0xff]
      %v954 = vld [vmem:[#allocation2 + $0x10] sm:$0xff]
      %v955 = vld [vmem:[#allocation2 + $0x18] sm:$0xff]
      %v956 = vld [vmem:[#allocation2 + $0x20] sm:$0xff]
      %v957 = vld [vmem:[#allocation2 + $0x28] sm:$0xff]
      %v958 = vld [vmem:[#allocation2 + $0x30] sm:$0xff]
      %v959 = vld [vmem:[#allocation2 + $0x38] sm:$0xff]
      %v960 = vld [vmem:[#allocation2 + $0x40] sm:$0xff]
      %v961 = vld [vmem:[#allocation2 + $0x48] sm:$0xff]
      %s962 = scalar_lea.vmem %s311, 16
      %v963 = vld [vmem:[%s962] sm:$0xf]
      %vm964 = vsmask.f32 6400
      %v966 = vshrl.u32 %v824, 16
      %v968 = vrot.slane %v966, 1
      %v969 = vshll.u32 %v824, 16
      %v971 = vrot.slane %v969, 2
      %v972 = vor.u32 %v968, %v971
      %v974 = vshrl.u32 %v825, 16
      %v976 = vrot.slane %v974, 1
      %v977 = vshll.u32 %v825, 16
      %v979 = vrot.slane %v977, 2
      %v980 = vor.u32 %v976, %v979
      %v981 = vsel %vm964, %v972, %v980
      %v983 = vshrl.u32 %v826, 16
      %v985 = vrot.slane %v983, 1
      %v986 = vshll.u32 %v826, 16
      %v988 = vrot.slane %v986, 2
      %v989 = vor.u32 %v985, %v988
      %v990 = vsel %vm964, %v980, %v989
      %v992 = vshrl.u32 %v827, 16
      %v994 = vrot.slane %v992, 1
      %v995 = vshll.u32 %v827, 16
      %v997 = vrot.slane %v995, 2
      %v998 = vor.u32 %v994, %v997
      %v999 = vsel %vm964, %v989, %v998
      %v1001 = vshrl.u32 %v828, 16
      %v1003 = vrot.slane %v1001, 1
      %v1004 = vshll.u32 %v828, 16
      %v1006 = vrot.slane %v1004, 2
      %v1007 = vor.u32 %v1003, %v1006
      %v1008 = vsel %vm964, %v998, %v1007
      %v1010 = vshrl.u32 %v829, 16
      %v1012 = vrot.slane %v1010, 1
      %v1013 = vshll.u32 %v829, 16
      %v1015 = vrot.slane %v1013, 2
      %v1016 = vor.u32 %v1012, %v1015
      %v1017 = vsel %vm964, %v1007, %v1016
      %v1019 = vsel %vm396, %v981, 0
      %v1022 = vsel %vm396, %v990, 0
      %v1025 = vsel %vm396, %v999, 0
      %v1028 = vsel %vm396, %v1008, 0
      %v1031 = vsel %vm396, %v1017, 0
      %v1034 = vsel %vm412, %v963, 0
      %1036 = vmatprep.subr.bf16.mxu0 0
      %1037 = vmatpush1.bf16.msra.mxu0 %v1034
      %1038 = vmatprep.subr.bf16.mxu0 0
      %1039 = vmatpush1.bf16.msra.mxu0 0
      %1040 = vmatprep.subr.bf16.mxu0 0
      %1041 = vmatpush1.bf16.msra.mxu0 0
      %1042 = vmatprep.subr.bf16.mxu0 0
      %1043 = vmatpush1.bf16.msra.mxu0 0
      %1044 = vmatprep.subr.bf16.mxu0 0
      %1045 = vmatpush1.bf16.msra.mxu0 0
      %1046 = vmatprep.subr.bf16.mxu0 0
      %1047 = vmatpush1.bf16.msra.mxu0 0
      %1048 = vmatprep.subr.bf16.mxu0 0
      %1049 = vmatpush1.bf16.msra.mxu0 0
      %1050 = vmatprep.subr.bf16.mxu0 0
      %1051 = vmatpush1.bf16.msra.mxu0 0
      %1052 = vmatprep.subr.bf16.mxu0 0
      %1053 = vmatpush1.bf16.msra.mxu0 0
      %1054 = vmatprep.subr.bf16.mxu0 0
      %1055 = vmatpush1.bf16.msra.mxu0 0
      %1056 = vmatprep.subr.bf16.mxu0 0
      %1057 = vmatpush1.bf16.msra.mxu0 0
      %1058 = vmatprep.subr.bf16.mxu0 0
      %1059 = vmatpush1.bf16.msra.mxu0 0
      %1060 = vmatprep.subr.bf16.mxu0 0
      %1061 = vmatpush1.bf16.msra.mxu0 0
      %1062 = vmatprep.subr.bf16.mxu0 0
      %1063 = vmatpush1.bf16.msra.mxu0 0
      %1064 = vmatprep.subr.bf16.mxu0 0
      %1065 = vmatpush1.bf16.msra.mxu0 0
      %1066 = vmatprep.subr.bf16.mxu0 0
      %1067 = vmatpush1.bf16.msra.mxu0 0
      %1068 = vmatprep.mubr.bf16.mxu0 0
      %1069 = vmatmul.mubr.bf16.gmra.mrb[0].mxu0 %v1019
      %v1070 = vpop.f32.mrb[0].mxu0
      %v1071 = vadd.f32 0.0, %v1070
      %v1072 = vpop.f32.mrb[0].mxu0
      %v1073 = vpop.f32.mrb[0].mxu0
      %v1074 = vadd.f32 0.0, %v1073
      %v1075 = vpop.f32.mrb[0].mxu0
      %1076 = vmatprep.mubr.bf16.mxu0 0
      %1077 = vmatmul.mubr.bf16.gmra.mrb[0].mxu0 %v1022
      %v1078 = vpop.f32.mrb[0].mxu0
      %v1079 = vadd.f32 0.0, %v1078
      %v1080 = vpop.f32.mrb[0].mxu0
      %v1081 = vpop.f32.mrb[0].mxu0
      %v1082 = vadd.f32 0.0, %v1081
      %v1083 = vpop.f32.mrb[0].mxu0
      %1084 = vmatprep.mubr.bf16.mxu0 0
      %1085 = vmatmul.mubr.bf16.gmra.mrb[0].mxu0 %v1025
      %v1086 = vpop.f32.mrb[0].mxu0
      %v1087 = vadd.f32 0.0, %v1086
      %v1088 = vpop.f32.mrb[0].mxu0
      %v1089 = vpop.f32.mrb[0].mxu0
      %v1090 = vadd.f32 0.0, %v1089
      %v1091 = vpop.f32.mrb[0].mxu0
      %1092 = vmatprep.mubr.bf16.mxu0 0
      %1093 = vmatmul.mubr.bf16.gmra.mrb[0].mxu0 %v1028
      %v1094 = vpop.f32.mrb[0].mxu0
      %v1095 = vadd.f32 0.0, %v1094
      %v1096 = vpop.f32.mrb[0].mxu0
      %v1097 = vpop.f32.mrb[0].mxu0
      %v1098 = vadd.f32 0.0, %v1097
      %v1099 = vpop.f32.mrb[0].mxu0
      %1100 = vmatprep.mubr.bf16.mxu0 0
      %1101 = vmatmul.mubr.bf16.gmra.mrb[0].mxu0 %v1031
      %v1102 = vpop.f32.mrb[0].mxu0
      %v1103 = vadd.f32 0.0, %v1102
      %v1104 = vpop.f32.mrb[0].mxu0
      %v1105 = vpop.f32.mrb[0].mxu0
      %v1106 = vadd.f32 0.0, %v1105
      %v1107 = vpop.f32.mrb[0].mxu0
      %1108 = vdwg.mxu0
      %v1109 = vadd.f32 %v952, %v1071
      %v1110 = vadd.f32 %v953, %v1074
      %v1111 = vadd.f32 %v954, %v1079
      %v1112 = vadd.f32 %v955, %v1082
      %v1113 = vadd.f32 %v956, %v1087
      %v1114 = vadd.f32 %v957, %v1090
      %v1115 = vadd.f32 %v958, %v1095
      %v1116 = vadd.f32 %v959, %v1098
      %v1117 = vadd.f32 %v960, %v1103
      %v1118 = vadd.f32 %v961, %v1106
      %1119 = vst.msk [vmem:[#allocation2] sm:$0xff] %vm396, %v1109
      %1120 = vst.msk [vmem:[#allocation2 + $0x8] sm:$0xff] %vm396, %v1110
      %1121 = vst.msk [vmem:[#allocation2 + $0x10] sm:$0xff] %vm396, %v1111
      %1122 = vst.msk [vmem:[#allocation2 + $0x18] sm:$0xff] %vm396, %v1112
      %1123 = vst.msk [vmem:[#allocation2 + $0x20] sm:$0xff] %vm396, %v1113
      %1124 = vst.msk [vmem:[#allocation2 + $0x28] sm:$0xff] %vm396, %v1114
      %1125 = vst.msk [vmem:[#allocation2 + $0x30] sm:$0xff] %vm396, %v1115
      %1126 = vst.msk [vmem:[#allocation2 + $0x38] sm:$0xff] %vm396, %v1116
      %1127 = vst.msk [vmem:[#allocation2 + $0x40] sm:$0xff] %vm396, %v1117
      %1128 = vst.msk [vmem:[#allocation2 + $0x48] sm:$0xff] %vm396, %v1118
      %v1129 = vld [vmem:[#allocation2] sm:$0xff]
      %v1130 = vld [vmem:[#allocation2 + $0x8] sm:$0xff]
      %v1131 = vld [vmem:[#allocation2 + $0x10] sm:$0xff]
      %v1132 = vld [vmem:[#allocation2 + $0x18] sm:$0xff]
      %v1133 = vld [vmem:[#allocation2 + $0x20] sm:$0xff]
      %v1134 = vld [vmem:[#allocation2 + $0x28] sm:$0xff]
      %v1135 = vld [vmem:[#allocation2 + $0x30] sm:$0xff]
      %v1136 = vld [vmem:[#allocation2 + $0x38] sm:$0xff]
      %v1137 = vld [vmem:[#allocation2 + $0x40] sm:$0xff]
      %v1138 = vld [vmem:[#allocation2 + $0x48] sm:$0xff]
      %s1139 = scalar_lea.vmem %s311, 20
      %v1140 = vld [vmem:[%s1139] sm:$0xf]
      %vm1141 = vcmask 1045504
      %v1142 = vrot.slane %v824, 2
      %v1143 = vrot.slane %v825, 2
      %v1144 = vsel %vm1141, %v1142, %v1143
      %v1145 = vrot.slane %v826, 2
      %v1146 = vsel %vm1141, %v1143, %v1145
      %v1147 = vrot.slane %v827, 2
      %v1148 = vsel %vm1141, %v1145, %v1147
      %v1149 = vrot.slane %v828, 2
      %v1150 = vsel %vm1141, %v1147, %v1149
      %v1151 = vrot.slane %v829, 2
      %v1152 = vsel %vm1141, %v1149, %v1151
      %v1154 = vsel %vm396, %v1144, 0
      %v1157 = vsel %vm396, %v1146, 0
      %v1160 = vsel %vm396, %v1148, 0
      %v1163 = vsel %vm396, %v1150, 0
      %v1166 = vsel %vm396, %v1152, 0
      %v1169 = vsel %vm412, %v1140, 0
      %1171 = vmatprep.subr.bf16.mxu0 0
      %1172 = vmatpush1.bf16.msra.mxu0 %v1169
      %1173 = vmatprep.subr.bf16.mxu0 0
      %1174 = vmatpush1.bf16.msra.mxu0 0
      %1175 = vmatprep.subr.bf16.mxu0 0
      %1176 = vmatpush1.bf16.msra.mxu0 0
      %1177 = vmatprep.subr.bf16.mxu0 0
      %1178 = vmatpush1.bf16.msra.mxu0 0
      %1179 = vmatprep.subr.bf16.mxu0 0
      %1180 = vmatpush1.bf16.msra.mxu0 0
      %1181 = vmatprep.subr.bf16.mxu0 0
      %1182 = vmatpush1.bf16.msra.mxu0 0
      %1183 = vmatprep.subr.bf16.mxu0 0
      %1184 = vmatpush1.bf16.msra.mxu0 0
      %1185 = vmatprep.subr.bf16.mxu0 0
      %1186 = vmatpush1.bf16.msra.mxu0 0
      %1187 = vmatprep.subr.bf16.mxu0 0
      %1188 = vmatpush1.bf16.msra.mxu0 0
      %1189 = vmatprep.subr.bf16.mxu0 0
      %1190 = vmatpush1.bf16.msra.mxu0 0
      %1191 = vmatprep.subr.bf16.mxu0 0
      %1192 = vmatpush1.bf16.msra.mxu0 0
      %1193 = vmatprep.subr.bf16.mxu0 0
      %1194 = vmatpush1.bf16.msra.mxu0 0
      %1195 = vmatprep.subr.bf16.mxu0 0
      %1196 = vmatpush1.bf16.msra.mxu0 0
      %1197 = vmatprep.subr.bf16.mxu0 0
      %1198 = vmatpush1.bf16.msra.mxu0 0
      %1199 = vmatprep.subr.bf16.mxu0 0
      %1200 = vmatpush1.bf16.msra.mxu0 0
      %1201 = vmatprep.subr.bf16.mxu0 0
      %1202 = vmatpush1.bf16.msra.mxu0 0
      %1203 = vmatprep.mubr.bf16.mxu0 0
      %1204 = vmatmul.mubr.bf16.gmra.mrb[0].mxu0 %v1154
      %v1205 = vpop.f32.mrb[0].mxu0
      %v1206 = vadd.f32 0.0, %v1205
      %v1207 = vpop.f32.mrb[0].mxu0
      %v1208 = vpop.f32.mrb[0].mxu0
      %v1209 = vadd.f32 0.0, %v1208
      %v1210 = vpop.f32.mrb[0].mxu0
      %1211 = vmatprep.mubr.bf16.mxu0 0
      %1212 = vmatmul.mubr.bf16.gmra.mrb[0].mxu0 %v1157
      %v1213 = vpop.f32.mrb[0].mxu0
      %v1214 = vadd.f32 0.0, %v1213
      %v1215 = vpop.f32.mrb[0].mxu0
      %v1216 = vpop.f32.mrb[0].mxu0
      %v1217 = vadd.f32 0.0, %v1216
      %v1218 = vpop.f32.mrb[0].mxu0
      %1219 = vmatprep.mubr.bf16.mxu0 0
      %1220 = vmatmul.mubr.bf16.gmra.mrb[0].mxu0 %v1160
      %v1221 = vpop.f32.mrb[0].mxu0
      %v1222 = vadd.f32 0.0, %v1221
      %v1223 = vpop.f32.mrb[0].mxu0
      %v1224 = vpop.f32.mrb[0].mxu0
      %v1225 = vadd.f32 0.0, %v1224
      %v1226 = vpop.f32.mrb[0].mxu0
      %1227 = vmatprep.mubr.bf16.mxu0 0
      %1228 = vmatmul.mubr.bf16.gmra.mrb[0].mxu0 %v1163
      %v1229 = vpop.f32.mrb[0].mxu0
      %v1230 = vadd.f32 0.0, %v1229
      %v1231 = vpop.f32.mrb[0].mxu0
      %v1232 = vpop.f32.mrb[0].mxu0
      %v1233 = vadd.f32 0.0, %v1232
      %v1234 = vpop.f32.mrb[0].mxu0
      %1235 = vmatprep.mubr.bf16.mxu0 0
      %1236 = vmatmul.mubr.bf16.gmra.mrb[0].mxu0 %v1166
      %v1237 = vpop.f32.mrb[0].mxu0
      %v1238 = vadd.f32 0.0, %v1237
      %v1239 = vpop.f32.mrb[0].mxu0
      %v1240 = vpop.f32.mrb[0].mxu0
      %v1241 = vadd.f32 0.0, %v1240
      %v1242 = vpop.f32.mrb[0].mxu0
      %1243 = vdwg.mxu0
      %v1244 = vadd.f32 %v1129, %v1206
      %v1245 = vadd.f32 %v1130, %v1209
      %v1246 = vadd.f32 %v1131, %v1214
      %v1247 = vadd.f32 %v1132, %v1217
      %v1248 = vadd.f32 %v1133, %v1222
      %v1249 = vadd.f32 %v1134, %v1225
      %v1250 = vadd.f32 %v1135, %v1230
      %v1251 = vadd.f32 %v1136, %v1233
      %v1252 = vadd.f32 %v1137, %v1238
      %v1253 = vadd.f32 %v1138, %v1241
      %1254 = vst.msk [vmem:[#allocation2] sm:$0xff] %vm396, %v1244
      %1255 = vst.msk [vmem:[#allocation2 + $0x8] sm:$0xff] %vm396, %v1245
      %1256 = vst.msk [vmem:[#allocation2 + $0x10] sm:$0xff] %vm396, %v1246
      %1257 = vst.msk [vmem:[#allocation2 + $0x18] sm:$0xff] %vm396, %v1247
      %1258 = vst.msk [vmem:[#allocation2 + $0x20] sm:$0xff] %vm396, %v1248
      %1259 = vst.msk [vmem:[#allocation2 + $0x28] sm:$0xff] %vm396, %v1249
      %1260 = vst.msk [vmem:[#allocation2 + $0x30] sm:$0xff] %vm396, %v1250
      %1261 = vst.msk [vmem:[#allocation2 + $0x38] sm:$0xff] %vm396, %v1251
      %1262 = vst.msk [vmem:[#allocation2 + $0x40] sm:$0xff] %vm396, %v1252
      %1263 = vst.msk [vmem:[#allocation2 + $0x48] sm:$0xff] %vm396, %v1253
      %v1264 = vld [vmem:[#allocation2] sm:$0xff]
      %v1265 = vld [vmem:[#allocation2 + $0x8] sm:$0xff]
      %v1266 = vld [vmem:[#allocation2 + $0x10] sm:$0xff]
      %v1267 = vld [vmem:[#allocation2 + $0x18] sm:$0xff]
      %v1268 = vld [vmem:[#allocation2 + $0x20] sm:$0xff]
      %v1269 = vld [vmem:[#allocation2 + $0x28] sm:$0xff]
      %v1270 = vld [vmem:[#allocation2 + $0x30] sm:$0xff]
      %v1271 = vld [vmem:[#allocation2 + $0x38] sm:$0xff]
      %v1272 = vld [vmem:[#allocation2 + $0x40] sm:$0xff]
      %v1273 = vld [vmem:[#allocation2 + $0x48] sm:$0xff]
      %s1274 = scalar_lea.vmem %s311, 24
      %v1275 = vld [vmem:[%s1274] sm:$0xf]
      %v1277 = vunpack.c.l.b16 %v359
      %v1278 = vpack.c.b16 %v823, %v522
      %v1279 = vpack.c.b16 %v1277, %v1277
      %v1280 = vrot.slane %v392, 2
      %v1281 = vrot.slane %v393, 2
      %v1282 = vsel %vm1141, %v1280, %v1281
      %v1283 = vrot.slane %v394, 2
      %v1284 = vsel %vm1141, %v1281, %v1283
      %v1285 = vrot.slane %v395, 2
      %v1286 = vsel %vm1141, %v1283, %v1285
      %v1287 = vrot.slane %v1278, 2
      %v1288 = vsel %vm1141, %v1285, %v1287
      %v1289 = vrot.slane %v1279, 2
      %v1290 = vsel %vm1141, %v1287, %v1289
      %v1292 = vsel %vm396, %v1282, 0
      %v1295 = vsel %vm396, %v1284, 0
      %v1298 = vsel %vm396, %v1286, 0
      %v1301 = vsel %vm396, %v1288, 0
      %v1304 = vsel %vm396, %v1290, 0
      %v1307 = vsel %vm412, %v1275, 0
      %1309 = vmatprep.subr.bf16.mxu0 0
      %1310 = vmatpush1.bf16.msra.mxu0 %v1307
      %1311 = vmatprep.subr.bf16.mxu0 0
      %1312 = vmatpush1.bf16.msra.mxu0 0
      %1313 = vmatprep.subr.bf16.mxu0 0
      %1314 = vmatpush1.bf16.msra.mxu0 0
      %1315 = vmatprep.subr.bf16.mxu0 0
      %1316 = vmatpush1.bf16.msra.mxu0 0
      %1317 = vmatprep.subr.bf16.mxu0 0
      %1318 = vmatpush1.bf16.msra.mxu0 0
      %1319 = vmatprep.subr.bf16.mxu0 0
      %1320 = vmatpush1.bf16.msra.mxu0 0
      %1321 = vmatprep.subr.bf16.mxu0 0
      %1322 = vmatpush1.bf16.msra.mxu0 0
      %1323 = vmatprep.subr.bf16.mxu0 0
      %1324 = vmatpush1.bf16.msra.mxu0 0
      %1325 = vmatprep.subr.bf16.mxu0 0
      %1326 = vmatpush1.bf16.msra.mxu0 0
      %1327 = vmatprep.subr.bf16.mxu0 0
      %1328 = vmatpush1.bf16.msra.mxu0 0
      %1329 = vmatprep.subr.bf16.mxu0 0
      %1330 = vmatpush1.bf16.msra.mxu0 0
      %1331 = vmatprep.subr.bf16.mxu0 0
      %1332 = vmatpush1.bf16.msra.mxu0 0
      %1333 = vmatprep.subr.bf16.mxu0 0
      %1334 = vmatpush1.bf16.msra.mxu0 0
      %1335 = vmatprep.subr.bf16.mxu0 0
      %1336 = vmatpush1.bf16.msra.mxu0 0
      %1337 = vmatprep.subr.bf16.mxu0 0
      %1338 = vmatpush1.bf16.msra.mxu0 0
      %1339 = vmatprep.subr.bf16.mxu0 0
      %1340 = vmatpush1.bf16.msra.mxu0 0
      %1341 = vmatprep.mubr.bf16.mxu0 0
      %1342 = vmatmul.mubr.bf16.gmra.mrb[0].mxu0 %v1292
      %v1343 = vpop.f32.mrb[0].mxu0
      %v1344 = vadd.f32 0.0, %v1343
      %v1345 = vpop.f32.mrb[0].mxu0
      %v1346 = vpop.f32.mrb[0].mxu0
      %v1347 = vadd.f32 0.0, %v1346
      %v1348 = vpop.f32.mrb[0].mxu0
      %1349 = vmatprep.mubr.bf16.mxu0 0
      %1350 = vmatmul.mubr.bf16.gmra.mrb[0].mxu0 %v1295
      %v1351 = vpop.f32.mrb[0].mxu0
      %v1352 = vadd.f32 0.0, %v1351
      %v1353 = vpop.f32.mrb[0].mxu0
      %v1354 = vpop.f32.mrb[0].mxu0
      %v1355 = vadd.f32 0.0, %v1354
      %v1356 = vpop.f32.mrb[0].mxu0
      %1357 = vmatprep.mubr.bf16.mxu0 0
      %1358 = vmatmul.mubr.bf16.gmra.mrb[0].mxu0 %v1298
      %v1359 = vpop.f32.mrb[0].mxu0
      %v1360 = vadd.f32 0.0, %v1359
      %v1361 = vpop.f32.mrb[0].mxu0
      %v1362 = vpop.f32.mrb[0].mxu0
      %v1363 = vadd.f32 0.0, %v1362
      %v1364 = vpop.f32.mrb[0].mxu0
      %1365 = vmatprep.mubr.bf16.mxu0 0
      %1366 = vmatmul.mubr.bf16.gmra.mrb[0].mxu0 %v1301
      %v1367 = vpop.f32.mrb[0].mxu0
      %v1368 = vadd.f32 0.0, %v1367
      %v1369 = vpop.f32.mrb[0].mxu0
      %v1370 = vpop.f32.mrb[0].mxu0
      %v1371 = vadd.f32 0.0, %v1370
      %v1372 = vpop.f32.mrb[0].mxu0
      %1373 = vmatprep.mubr.bf16.mxu0 0
      %1374 = vmatmul.mubr.bf16.gmra.mrb[0].mxu0 %v1304
      %v1375 = vpop.f32.mrb[0].mxu0
      %v1376 = vadd.f32 0.0, %v1375
      %v1377 = vpop.f32.mrb[0].mxu0
      %v1378 = vpop.f32.mrb[0].mxu0
      %v1379 = vadd.f32 0.0, %v1378
      %v1380 = vpop.f32.mrb[0].mxu0
      %1381 = vdwg.mxu0
      %v1382 = vadd.f32 %v1264, %v1344
      %v1383 = vadd.f32 %v1265, %v1347
      %v1384 = vadd.f32 %v1266, %v1352
      %v1385 = vadd.f32 %v1267, %v1355
      %v1386 = vadd.f32 %v1268, %v1360
      %v1387 = vadd.f32 %v1269, %v1363
      %v1388 = vadd.f32 %v1270, %v1368
      %v1389 = vadd.f32 %v1271, %v1371
      %v1390 = vadd.f32 %v1272, %v1376
      %v1391 = vadd.f32 %v1273, %v1379
      %1392 = vst.msk [vmem:[#allocation2] sm:$0xff] %vm396, %v1382
      %1393 = vst.msk [vmem:[#allocation2 + $0x8] sm:$0xff] %vm396, %v1383
      %1394 = vst.msk [vmem:[#allocation2 + $0x10] sm:$0xff] %vm396, %v1384
      %1395 = vst.msk [vmem:[#allocation2 + $0x18] sm:$0xff] %vm396, %v1385
      %1396 = vst.msk [vmem:[#allocation2 + $0x20] sm:$0xff] %vm396, %v1386
      %1397 = vst.msk [vmem:[#allocation2 + $0x28] sm:$0xff] %vm396, %v1387
      %1398 = vst.msk [vmem:[#allocation2 + $0x30] sm:$0xff] %vm396, %v1388
      %1399 = vst.msk [vmem:[#allocation2 + $0x38] sm:$0xff] %vm396, %v1389
      %1400 = vst.msk [vmem:[#allocation2 + $0x40] sm:$0xff] %vm396, %v1390
      %1401 = vst.msk [vmem:[#allocation2 + $0x48] sm:$0xff] %vm396, %v1391
      %v1402 = vld [vmem:[#allocation2] sm:$0xff]
      %v1403 = vld [vmem:[#allocation2 + $0x8] sm:$0xff]
      %v1404 = vld [vmem:[#allocation2 + $0x10] sm:$0xff]
      %v1405 = vld [vmem:[#allocation2 + $0x18] sm:$0xff]
      %v1406 = vld [vmem:[#allocation2 + $0x20] sm:$0xff]
      %v1407 = vld [vmem:[#allocation2 + $0x28] sm:$0xff]
      %v1408 = vld [vmem:[#allocation2 + $0x30] sm:$0xff]
      %v1409 = vld [vmem:[#allocation2 + $0x38] sm:$0xff]
      %v1410 = vld [vmem:[#allocation2 + $0x40] sm:$0xff]
      %v1411 = vld [vmem:[#allocation2 + $0x48] sm:$0xff]
      %s1412 = scalar_lea.vmem %s311, 28
      %v1413 = vld [vmem:[%s1412] sm:$0xf]
      %vm1414 = vsmask.f32 5376
      %v1415 = vrot.slane %v535, 2
      %v1416 = vrot.slane %v531, 3
      %v1417 = vor.u32 %v1415, %v1416
      %v1418 = vrot.slane %v542, 2
      %v1419 = vrot.slane %v538, 3
      %v1420 = vor.u32 %v1418, %v1419
      %v1421 = vsel %vm1414, %v1417, %v1420
      %v1422 = vrot.slane %v549, 2
      %v1423 = vrot.slane %v545, 3
      %v1424 = vor.u32 %v1422, %v1423
      %v1425 = vsel %vm1414, %v1420, %v1424
      %v1426 = vrot.slane %v556, 2
      %v1427 = vrot.slane %v552, 3
      %v1428 = vor.u32 %v1426, %v1427
      %v1429 = vsel %vm1414, %v1424, %v1428
      %v1431 = vshrl.u32 %v1278, 16
      %v1433 = vrot.slane %v1431, 2
      %v1434 = vshll.u32 %v1278, 16
      %v1436 = vrot.slane %v1434, 3
      %v1437 = vor.u32 %v1433, %v1436
      %v1438 = vsel %vm1414, %v1428, %v1437
      %v1440 = vshrl.u32 %v1279, 16
      %v1442 = vrot.slane %v1440, 2
      %v1443 = vshll.u32 %v1279, 16
      %v1445 = vrot.slane %v1443, 3
      %v1446 = vor.u32 %v1442, %v1445
      %v1447 = vsel %vm1414, %v1437, %v1446
      %v1449 = vsel %vm396, %v1421, 0
      %v1452 = vsel %vm396, %v1425, 0
      %v1455 = vsel %vm396, %v1429, 0
      %v1458 = vsel %vm396, %v1438, 0
      %v1461 = vsel %vm396, %v1447, 0
      %v1464 = vsel %vm412, %v1413, 0
      %1466 = vmatprep.subr.bf16.mxu0 0
      %1467 = vmatpush1.bf16.msra.mxu0 %v1464
      %1468 = vmatprep.subr.bf16.mxu0 0
      %1469 = vmatpush1.bf16.msra.mxu0 0
      %1470 = vmatprep.subr.bf16.mxu0 0
      %1471 = vmatpush1.bf16.msra.mxu0 0
      %1472 = vmatprep.subr.bf16.mxu0 0
      %1473 = vmatpush1.bf16.msra.mxu0 0
      %1474 = vmatprep.subr.bf16.mxu0 0
      %1475 = vmatpush1.bf16.msra.mxu0 0
      %1476 = vmatprep.subr.bf16.mxu0 0
      %1477 = vmatpush1.bf16.msra.mxu0 0
      %1478 = vmatprep.subr.bf16.mxu0 0
      %1479 = vmatpush1.bf16.msra.mxu0 0
      %1480 = vmatprep.subr.bf16.mxu0 0
      %1481 = vmatpush1.bf16.msra.mxu0 0
      %1482 = vmatprep.subr.bf16.mxu0 0
      %1483 = vmatpush1.bf16.msra.mxu0 0
      %1484 = vmatprep.subr.bf16.mxu0 0
      %1485 = vmatpush1.bf16.msra.mxu0 0
      %1486 = vmatprep.subr.bf16.mxu0 0
      %1487 = vmatpush1.bf16.msra.mxu0 0
      %1488 = vmatprep.subr.bf16.mxu0 0
      %1489 = vmatpush1.bf16.msra.mxu0 0
      %1490 = vmatprep.subr.bf16.mxu0 0
      %1491 = vmatpush1.bf16.msra.mxu0 0
      %1492 = vmatprep.subr.bf16.mxu0 0
      %1493 = vmatpush1.bf16.msra.mxu0 0
      %1494 = vmatprep.subr.bf16.mxu0 0
      %1495 = vmatpush1.bf16.msra.mxu0 0
      %1496 = vmatprep.subr.bf16.mxu0 0
      %1497 = vmatpush1.bf16.msra.mxu0 0
      %1498 = vmatprep.mubr.bf16.mxu0 0
      %1499 = vmatmul.mubr.bf16.gmra.mrb[0].mxu0 %v1449
      %v1500 = vpop.f32.mrb[0].mxu0
      %v1501 = vadd.f32 0.0, %v1500
      %v1502 = vpop.f32.mrb[0].mxu0
      %v1503 = vpop.f32.mrb[0].mxu0
      %v1504 = vadd.f32 0.0, %v1503
      %v1505 = vpop.f32.mrb[0].mxu0
      %1506 = vmatprep.mubr.bf16.mxu0 0
      %1507 = vmatmul.mubr.bf16.gmra.mrb[0].mxu0 %v1452
      %v1508 = vpop.f32.mrb[0].mxu0
      %v1509 = vadd.f32 0.0, %v1508
      %v1510 = vpop.f32.mrb[0].mxu0
      %v1511 = vpop.f32.mrb[0].mxu0
      %v1512 = vadd.f32 0.0, %v1511
      %v1513 = vpop.f32.mrb[0].mxu0
      %1514 = vmatprep.mubr.bf16.mxu0 0
      %1515 = vmatmul.mubr.bf16.gmra.mrb[0].mxu0 %v1455
      %v1516 = vpop.f32.mrb[0].mxu0
      %v1517 = vadd.f32 0.0, %v1516
      %v1518 = vpop.f32.mrb[0].mxu0
      %v1519 = vpop.f32.mrb[0].mxu0
      %v1520 = vadd.f32 0.0, %v1519
      %v1521 = vpop.f32.mrb[0].mxu0
      %1522 = vmatprep.mubr.bf16.mxu0 0
      %1523 = vmatmul.mubr.bf16.gmra.mrb[0].mxu0 %v1458
      %v1524 = vpop.f32.mrb[0].mxu0
      %v1525 = vadd.f32 0.0, %v1524
      %v1526 = vpop.f32.mrb[0].mxu0
      %v1527 = vpop.f32.mrb[0].mxu0
      %v1528 = vadd.f32 0.0, %v1527
      %v1529 = vpop.f32.mrb[0].mxu0
      %1530 = vmatprep.mubr.bf16.mxu0 0
      %1531 = vmatmul.mubr.bf16.gmra.mrb[0].mxu0 %v1461
      %v1532 = vpop.f32.mrb[0].mxu0
      %v1533 = vadd.f32 0.0, %v1532
      %v1534 = vpop.f32.mrb[0].mxu0
      %v1535 = vpop.f32.mrb[0].mxu0
      %v1536 = vadd.f32 0.0, %v1535
      %v1537 = vpop.f32.mrb[0].mxu0
      %1538 = vdwg.mxu0
      %v1539 = vadd.f32 %v1402, %v1501
      %v1540 = vadd.f32 %v1403, %v1504
      %v1541 = vadd.f32 %v1404, %v1509
      %v1542 = vadd.f32 %v1405, %v1512
      %v1543 = vadd.f32 %v1406, %v1517
      %v1544 = vadd.f32 %v1407, %v1520
      %v1545 = vadd.f32 %v1408, %v1525
      %v1546 = vadd.f32 %v1409, %v1528
      %v1547 = vadd.f32 %v1410, %v1533
      %v1548 = vadd.f32 %v1411, %v1536
      %1549 = vst.msk [vmem:[#allocation2] sm:$0xff] %vm396, %v1539
      %1550 = vst.msk [vmem:[#allocation2 + $0x8] sm:$0xff] %vm396, %v1540
      %1551 = vst.msk [vmem:[#allocation2 + $0x10] sm:$0xff] %vm396, %v1541
      %1552 = vst.msk [vmem:[#allocation2 + $0x18] sm:$0xff] %vm396, %v1542
      %1553 = vst.msk [vmem:[#allocation2 + $0x20] sm:$0xff] %vm396, %v1543
      %1554 = vst.msk [vmem:[#allocation2 + $0x28] sm:$0xff] %vm396, %v1544
      %1555 = vst.msk [vmem:[#allocation2 + $0x30] sm:$0xff] %vm396, %v1545
      %1556 = vst.msk [vmem:[#allocation2 + $0x38] sm:$0xff] %vm396, %v1546
      %1557 = vst.msk [vmem:[#allocation2 + $0x40] sm:$0xff] %vm396, %v1547
      %1558 = vst.msk [vmem:[#allocation2 + $0x48] sm:$0xff] %vm396, %v1548
      %v1559 = vld [vmem:[#allocation2] sm:$0xff]
      %v1560 = vld [vmem:[#allocation2 + $0x8] sm:$0xff]
      %v1561 = vld [vmem:[#allocation2 + $0x10] sm:$0xff]
      %v1562 = vld [vmem:[#allocation2 + $0x18] sm:$0xff]
      %v1563 = vld [vmem:[#allocation2 + $0x20] sm:$0xff]
      %v1564 = vld [vmem:[#allocation2 + $0x28] sm:$0xff]
      %v1565 = vld [vmem:[#allocation2 + $0x30] sm:$0xff]
      %v1566 = vld [vmem:[#allocation2 + $0x38] sm:$0xff]
      %v1567 = vld [vmem:[#allocation2 + $0x40] sm:$0xff]
      %v1568 = vld [vmem:[#allocation2 + $0x48] sm:$0xff]
      %s1569 = scalar_lea.vmem %s311, 32
      %v1570 = vld [vmem:[%s1569] sm:$0xf]
      %vm1571 = vcmask 1044480
      %v1572 = vrot.slane %v392, 3
      %v1573 = vrot.slane %v393, 3
      %v1574 = vsel %vm1571, %v1572, %v1573
      %v1575 = vrot.slane %v394, 3
      %v1576 = vsel %vm1571, %v1573, %v1575
      %v1577 = vrot.slane %v395, 3
      %v1578 = vsel %vm1571, %v1575, %v1577
      %v1579 = vrot.slane %v1278, 3
      %v1580 = vsel %vm1571, %v1577, %v1579
      %v1581 = vrot.slane %v1279, 3
      %v1582 = vsel %vm1571, %v1579, %v1581
      %v1584 = vsel %vm396, %v1574, 0
      %v1587 = vsel %vm396, %v1576, 0
      %v1590 = vsel %vm396, %v1578, 0
      %v1593 = vsel %vm396, %v1580, 0
      %v1596 = vsel %vm396, %v1582, 0
      %v1599 = vsel %vm412, %v1570, 0
      %1601 = vmatprep.subr.bf16.mxu0 0
      %1602 = vmatpush1.bf16.msra.mxu0 %v1599
      %1603 = vmatprep.subr.bf16.mxu0 0
      %1604 = vmatpush1.bf16.msra.mxu0 0
      %1605 = vmatprep.subr.bf16.mxu0 0
      %1606 = vmatpush1.bf16.msra.mxu0 0
      %1607 = vmatprep.subr.bf16.mxu0 0
      %1608 = vmatpush1.bf16.msra.mxu0 0
      %1609 = vmatprep.subr.bf16.mxu0 0
      %1610 = vmatpush1.bf16.msra.mxu0 0
      %1611 = vmatprep.subr.bf16.mxu0 0
      %1612 = vmatpush1.bf16.msra.mxu0 0
      %1613 = vmatprep.subr.bf16.mxu0 0
      %1614 = vmatpush1.bf16.msra.mxu0 0
      %1615 = vmatprep.subr.bf16.mxu0 0
      %1616 = vmatpush1.bf16.msra.mxu0 0
      %1617 = vmatprep.subr.bf16.mxu0 0
      %1618 = vmatpush1.bf16.msra.mxu0 0
      %1619 = vmatprep.subr.bf16.mxu0 0
      %1620 = vmatpush1.bf16.msra.mxu0 0
      %1621 = vmatprep.subr.bf16.mxu0 0
      %1622 = vmatpush1.bf16.msra.mxu0 0
      %1623 = vmatprep.subr.bf16.mxu0 0
      %1624 = vmatpush1.bf16.msra.mxu0 0
      %1625 = vmatprep.subr.bf16.mxu0 0
      %1626 = vmatpush1.bf16.msra.mxu0 0
      %1627 = vmatprep.subr.bf16.mxu0 0
      %1628 = vmatpush1.bf16.msra.mxu0 0
      %1629 = vmatprep.subr.bf16.mxu0 0
      %1630 = vmatpush1.bf16.msra.mxu0 0
      %1631 = vmatprep.subr.bf16.mxu0 0
      %1632 = vmatpush1.bf16.msra.mxu0 0
      %1633 = vmatprep.mubr.bf16.mxu0 0
      %1634 = vmatmul.mubr.bf16.gmra.mrb[0].mxu0 %v1584
      %v1635 = vpop.f32.mrb[0].mxu0
      %v1636 = vadd.f32 0.0, %v1635
      %v1637 = vpop.f32.mrb[0].mxu0
      %v1638 = vpop.f32.mrb[0].mxu0
      %v1639 = vadd.f32 0.0, %v1638
      %v1640 = vpop.f32.mrb[0].mxu0
      %1641 = vmatprep.mubr.bf16.mxu0 0
      %1642 = vmatmul.mubr.bf16.gmra.mrb[0].mxu0 %v1587
      %v1643 = vpop.f32.mrb[0].mxu0
      %v1644 = vadd.f32 0.0, %v1643
      %v1645 = vpop.f32.mrb[0].mxu0
      %v1646 = vpop.f32.mrb[0].mxu0
      %v1647 = vadd.f32 0.0, %v1646
      %v1648 = vpop.f32.mrb[0].mxu0
      %1649 = vmatprep.mubr.bf16.mxu0 0
      %1650 = vmatmul.mubr.bf16.gmra.mrb[0].mxu0 %v1590
      %v1651 = vpop.f32.mrb[0].mxu0
      %v1652 = vadd.f32 0.0, %v1651
      %v1653 = vpop.f32.mrb[0].mxu0
      %v1654 = vpop.f32.mrb[0].mxu0
      %v1655 = vadd.f32 0.0, %v1654
      %v1656 = vpop.f32.mrb[0].mxu0
      %1657 = vmatprep.mubr.bf16.mxu0 0
      %1658 = vmatmul.mubr.bf16.gmra.mrb[0].mxu0 %v1593
      %v1659 = vpop.f32.mrb[0].mxu0
      %v1660 = vadd.f32 0.0, %v1659
      %v1661 = vpop.f32.mrb[0].mxu0
      %v1662 = vpop.f32.mrb[0].mxu0
      %v1663 = vadd.f32 0.0, %v1662
      %v1664 = vpop.f32.mrb[0].mxu0
      %1665 = vmatprep.mubr.bf16.mxu0 0
      %1666 = vmatmul.mubr.bf16.gmra.mrb[0].mxu0 %v1596
      %v1667 = vpop.f32.mrb[0].mxu0
      %v1668 = vadd.f32 0.0, %v1667
      %v1669 = vpop.f32.mrb[0].mxu0
      %v1670 = vpop.f32.mrb[0].mxu0
      %v1671 = vadd.f32 0.0, %v1670
      %v1672 = vpop.f32.mrb[0].mxu0
      %1673 = vdwg.mxu0
      %v1674 = vadd.f32 %v1559, %v1636
      %v1675 = vadd.f32 %v1560, %v1639
      %v1676 = vadd.f32 %v1561, %v1644
      %v1677 = vadd.f32 %v1562, %v1647
      %v1678 = vadd.f32 %v1563, %v1652
      %v1679 = vadd.f32 %v1564, %v1655
      %v1680 = vadd.f32 %v1565, %v1660
      %v1681 = vadd.f32 %v1566, %v1663
      %v1682 = vadd.f32 %v1567, %v1668
      %v1683 = vadd.f32 %v1568, %v1671
      %1684 = vst.msk [vmem:[#allocation2] sm:$0xff] %vm396, %v1674
      %1685 = vst.msk [vmem:[#allocation2 + $0x8] sm:$0xff] %vm396, %v1675
      %1686 = vst.msk [vmem:[#allocation2 + $0x10] sm:$0xff] %vm396, %v1676
      %1687 = vst.msk [vmem:[#allocation2 + $0x18] sm:$0xff] %vm396, %v1677
      %1688 = vst.msk [vmem:[#allocation2 + $0x20] sm:$0xff] %vm396, %v1678
      %1689 = vst.msk [vmem:[#allocation2 + $0x28] sm:$0xff] %vm396, %v1679
      %1690 = vst.msk [vmem:[#allocation2 + $0x30] sm:$0xff] %vm396, %v1680
      %1691 = vst.msk [vmem:[#allocation2 + $0x38] sm:$0xff] %vm396, %v1681
      %1692 = vst.msk [vmem:[#allocation2 + $0x40] sm:$0xff] %vm396, %v1682
      %1693 = vst.msk [vmem:[#allocation2 + $0x48] sm:$0xff] %vm396, %v1683
      %p1694 = scmp.eq.s32.totalorder %s23, 2
      // Predicated region
      $region45: #{resnet_block_forward.11} parent=39 // pred_check
        %p1695 = pneg %p1694
      $region46: #{resnet_block_forward.11} parent=39 // pred_check_branch
        %1697 = sbr.rel (%p1695) target = $region48
      $region47: #{resnet_block_forward.11} parent=39 // pred_region
        %v1698 = vld [vmem:[%s321] sm:$0xf]
        %v1699 = vld [vmem:[%s321 + $0x4] sm:$0xf]
        %v1700 = vld [vmem:[%s321 + $0x8] sm:$0xf]
        %v1701 = vld [vmem:[%s321 + $0xc] sm:$0xf]
        %v1702 = vld [vmem:[%s321 + $0x10] sm:$0xf]
        %v1703 = vld [vmem:[%s321 + $0x14] sm:$0xf]
        %v1704 = vld [vmem:[%s321 + $0x18] sm:$0xf]
        %v1705 = vld [vmem:[%s321 + $0x1c] sm:$0xf]
        %v1706 = vld [vmem:[%s321 + $0x20] sm:$0xf]
        %v1707 = vld [vmem:[%s321 + $0x24] sm:$0xf]
        %v1708 = vld [vmem:[%s4] sm:$0x3]
        %v1719 = vunpack.c.l.b16 %v1698
        %v1720 = vunpack.c.l.b16 %v1699
        %v1721 = vunpack.c.l.b16 %v1700
        %v1722 = vunpack.c.l.b16 %v1701
        %v1723 = vunpack.c.l.b16 %v1702
        %v1724 = vunpack.c.l.b16 %v1703
        %v1725 = vunpack.c.l.b16 %v1704
        %v1726 = vunpack.c.l.b16 %v1705
        %v1727 = vunpack.c.l.b16 %v1706
        %v1728 = vunpack.c.l.b16 %v1707
        %v1729 = vpack.c.b16 %v1720, %v1719
        %v1730 = vpack.c.b16 %v1722, %v1721
        %v1731 = vpack.c.b16 %v1724, %v1723
        %v1732 = vpack.c.b16 %v1726, %v1725
        %v1733 = vpack.c.b16 %v1728, %v1727
        %vm1734 = vcmask 31744
        %v1736 = vsel %vm1734, %v1729, 0
        %v1739 = vsel %vm1734, %v1730, 0
        %v1742 = vsel %vm1734, %v1731, 0
        %v1745 = vsel %vm1734, %v1732, 0
        %v1748 = vsel %vm1734, %v1733, 0
        %vm1750 = vcmask 1041408
        %v1752 = vsel %vm1750, %v1708, 0
        %1754 = vmatprep.subr.bf16.mxu0 0
        %1755 = vmatpush1.bf16.msra.mxu0 %v1752
        %1756 = vmatprep.subr.bf16.mxu0 0
        %1757 = vmatpush1.bf16.msra.mxu0 0
        %1758 = vmatprep.subr.bf16.mxu0 0
        %1759 = vmatpush1.bf16.msra.mxu0 0
        %1760 = vmatprep.subr.bf16.mxu0 0
        %1761 = vmatpush1.bf16.msra.mxu0 0
        %1762 = vmatprep.subr.bf16.mxu0 0
        %1763 = vmatpush1.bf16.msra.mxu0 0
        %1764 = vmatprep.subr.bf16.mxu0 0
        %1765 = vmatpush1.bf16.msra.mxu0 0
        %1766 = vmatprep.subr.bf16.mxu0 0
        %1767 = vmatpush1.bf16.msra.mxu0 0
        %1768 = vmatprep.subr.bf16.mxu0 0
        %1769 = vmatpush1.bf16.msra.mxu0 0
        %1770 = vmatprep.subr.bf16.mxu0 0
        %1771 = vmatpush1.bf16.msra.mxu0 0
        %1772 = vmatprep.subr.bf16.mxu0 0
        %1773 = vmatpush1.bf16.msra.mxu0 0
        %1774 = vmatprep.subr.bf16.mxu0 0
        %1775 = vmatpush1.bf16.msra.mxu0 0
        %1776 = vmatprep.subr.bf16.mxu0 0
        %1777 = vmatpush1.bf16.msra.mxu0 0
        %1778 = vmatprep.subr.bf16.mxu0 0
        %1779 = vmatpush1.bf16.msra.mxu0 0
        %1780 = vmatprep.subr.bf16.mxu0 0
        %1781 = vmatpush1.bf16.msra.mxu0 0
        %1782 = vmatprep.subr.bf16.mxu0 0
        %1783 = vmatpush1.bf16.msra.mxu0 0
        %1784 = vmatprep.subr.bf16.mxu0 0
        %1785 = vmatpush1.bf16.msra.mxu0 0
        %1786 = vmatprep.mubr.bf16.mxu0 0
        %1787 = vmatmul.mubr.bf16.gmra.mrb[0].mxu0 %v1736
        %v1788 = vpop.f32.mrb[0].mxu0
        %v1789 = vadd.f32 0.0, %v1788
        %v1790 = vpop.f32.mrb[0].mxu0
        %v1791 = vpop.f32.mrb[0].mxu0
        %v1792 = vadd.f32 0.0, %v1791
        %v1793 = vpop.f32.mrb[0].mxu0
        %1794 = vmatprep.mubr.bf16.mxu0 0
        %1795 = vmatmul.mubr.bf16.gmra.mrb[0].mxu0 %v1739
        %v1796 = vpop.f32.mrb[0].mxu0
        %v1797 = vadd.f32 0.0, %v1796
        %v1798 = vpop.f32.mrb[0].mxu0
        %v1799 = vpop.f32.mrb[0].mxu0
        %v1800 = vadd.f32 0.0, %v1799
        %v1801 = vpop.f32.mrb[0].mxu0
        %1802 = vmatprep.mubr.bf16.mxu0 0
        %1803 = vmatmul.mubr.bf16.gmra.mrb[0].mxu0 %v1742
        %v1804 = vpop.f32.mrb[0].mxu0
        %v1805 = vadd.f32 0.0, %v1804
        %v1806 = vpop.f32.mrb[0].mxu0
        %v1807 = vpop.f32.mrb[0].mxu0
        %v1808 = vadd.f32 0.0, %v1807
        %v1809 = vpop.f32.mrb[0].mxu0
        %1810 = vmatprep.mubr.bf16.mxu0 0
        %1811 = vmatmul.mubr.bf16.gmra.mrb[0].mxu0 %v1745
        %v1812 = vpop.f32.mrb[0].mxu0
        %v1813 = vadd.f32 0.0, %v1812
        %v1814 = vpop.f32.mrb[0].mxu0
        %v1815 = vpop.f32.mrb[0].mxu0
        %v1816 = vadd.f32 0.0, %v1815
        %v1817 = vpop.f32.mrb[0].mxu0
        %1818 = vmatprep.mubr.bf16.mxu0 0
        %1819 = vmatmul.mubr.bf16.gmra.mrb[0].mxu0 %v1748
        %v1820 = vpop.f32.mrb[0].mxu0
        %v1821 = vadd.f32 0.0, %v1820
        %v1822 = vpop.f32.mrb[0].mxu0
        %v1823 = vpop.f32.mrb[0].mxu0
        %v1824 = vadd.f32 0.0, %v1823
        %v1825 = vpop.f32.mrb[0].mxu0
        %1826 = vdwg.mxu0
        %v1827 = vld [vmem:[#allocation2] sm:$0xff]
        %v1828 = vld [vmem:[#allocation2 + $0x8] sm:$0xff]
        %v1829 = vld [vmem:[#allocation2 + $0x10] sm:$0xff]
        %v1830 = vld [vmem:[#allocation2 + $0x18] sm:$0xff]
        %v1831 = vld [vmem:[#allocation2 + $0x20] sm:$0xff]
        %v1832 = vld [vmem:[#allocation2 + $0x28] sm:$0xff]
        %v1833 = vld [vmem:[#allocation2 + $0x30] sm:$0xff]
        %v1834 = vld [vmem:[#allocation2 + $0x38] sm:$0xff]
        %v1835 = vld [vmem:[#allocation2 + $0x40] sm:$0xff]
        %v1836 = vld [vmem:[#allocation2 + $0x48] sm:$0xff]
        %v1837 = vld [vmem:[%s2] sm:$0x1]
        %v1839 = vlaneseq
        %v1840 = vshrl.u32 %v1839, 7
        %v1841 = vsub.s32 0, %v1840
        %v1842 = vrot.slane %v1837, %v1841
        %v1844 = vadd.f32 %v1827, %v1842
        %v1845 = vadd.f32 %v1828, %v1842
        %v1846 = vadd.f32 %v1829, %v1842
        %v1847 = vadd.f32 %v1830, %v1842
        %v1848 = vadd.f32 %v1831, %v1842
        %v1849 = vadd.f32 %v1832, %v1842
        %v1850 = vadd.f32 %v1833, %v1842
        %v1851 = vadd.f32 %v1834, %v1842
        %v1852 = vadd.f32 %v1835, %v1842
        %v1853 = vadd.f32 %v1836, %v1842
        %v1854 = vadd.f32 %v1844, %v1789
        %v1855 = vadd.f32 %v1845, %v1792
        %v1856 = vadd.f32 %v1846, %v1797
        %v1857 = vadd.f32 %v1847, %v1800
        %v1858 = vadd.f32 %v1848, %v1805
        %v1859 = vadd.f32 %v1849, %v1808
        %v1860 = vadd.f32 %v1850, %v1813
        %v1861 = vadd.f32 %v1851, %v1816
        %v1862 = vadd.f32 %v1852, %v1821
        %v1863 = vadd.f32 %v1853, %v1824
        %1864 = vst.msk [vmem:[%s330] sm:$0xff] %vm396, %v1854
        %1865 = vst.msk [vmem:[%s330 + $0x8] sm:$0xff] %vm396, %v1855
        %1866 = vst.msk [vmem:[%s330 + $0x10] sm:$0xff] %vm396, %v1856
        %1867 = vst.msk [vmem:[%s330 + $0x18] sm:$0xff] %vm396, %v1857
        %1868 = vst.msk [vmem:[%s330 + $0x20] sm:$0xff] %vm396, %v1858
        %1869 = vst.msk [vmem:[%s330 + $0x28] sm:$0xff] %vm396, %v1859
        %1870 = vst.msk [vmem:[%s330 + $0x30] sm:$0xff] %vm396, %v1860
        %1871 = vst.msk [vmem:[%s330 + $0x38] sm:$0xff] %vm396, %v1861
        %1872 = vst.msk [vmem:[%s330 + $0x40] sm:$0xff] %vm396, %v1862
        %1873 = vst.msk [vmem:[%s330 + $0x48] sm:$0xff] %vm396, %v1863
      $region48: #{resnet_block_forward.11} parent=39 // pred_fallthru
        _
      %p1874 = scmp.lt.s32.totalorder %s21, 1
      %s1875 = scalar_select %p1874, %s21, 1
      %p1876 = scmp.lt.s32.totalorder %s22, 7
      %s1877 = scalar_select %p1876, %s22, 7
      %s1878 = smul.addr %s1877, 10
      %s1879 = smul.addr %s1875, 80
      %s1880 = sadd.s32 %s1878, %s1879
      %s1881 = smul.addr %s1880, 8
      %s1882 = scalar_lea.vmem %s5, %s1881
      // Predicated region
      $region49: #{resnet_block_forward.11} parent=39 // pred_check
        %p1883 = pneg %p181
      $region50: #{resnet_block_forward.11} parent=39 // pred_check_branch
        %1885 = sbr.rel (%p1883) target = $region52
      $region51: #{resnet_block_forward.11} parent=39 // pred_region
        _
      $region52: #{resnet_block_forward.11} parent=39 // pred_fallthru
        _
    $region40: #{resnet_block_forward.11} parent=5 // pred_fallthru
      _
    %p1886 = scmp.le.s32.totalorder 2, %s11
    // Predicated region
    $region53: #{resnet_block_forward.11} parent=5 // pred_check
      %p1887 = pneg %p1886
    $region54: #{resnet_block_forward.11} parent=5 // pred_check_branch
      %1889 = sbr.rel (%p1887) target = $region56
    $region55: #{resnet_block_forward.11} parent=5 // pred_region
      %s1890 = ssub.s32 %s11, 2
      // Predicated region
      $region57: #{resnet_block_forward.11} parent=55 // pred_check
        %p1891 = pneg %p187
      $region58: #{resnet_block_forward.11} parent=55 // pred_check_branch
        %1893 = sbr.rel (%p1891) target = $region60
      $region59: #{resnet_block_forward.11} parent=55 // pred_region
        %p1894 = scmp.lt.s32.totalorder %s24, 1
        %s1895 = scalar_select %p1894, %s24, 1
        %p1896 = scmp.lt.s32.totalorder %s25, 7
        %s1897 = scalar_select %p1896, %s25, 7
        %s1898 = smul.addr %s1897, 10
        %s1899 = smul.addr %s1895, 80
        %s1900 = sadd.s32 %s1898, %s1899
        %s1901 = smul.addr %s1900, 8
        %s1902 = scalar_lea.vmem %s5, %s1901
      $region60: #{resnet_block_forward.11} parent=55 // pred_fallthru
        _
    $region56: #{resnet_block_forward.11} parent=5 // pred_fallthru
      _
  $region6: #{resnet_block_forward.11} parent=0 // loop_footer
    %s15 = sadd.s32 1, %s11
  $region7: #{resnet_block_forward.11} parent=0 // loop_footer_branch
    %10 = sbr.rel target = $region3
  $region8: #{resnet_block_forward.11} parent=0 // loop_exit
    _

</llo_original>
